<compile_context>
chip_gen: v7x
topology: tpu7x:2x2x1
jax: 0.10.0
libtpu: 0.0.40
codegen_flags: <defaults>
</compile_context>

<pallas_src>
import functools
import numpy as np
import jax
import jax.numpy as jnp
from jax import lax
from jax.experimental import pallas as pl
from jax.experimental.pallas import tpu as pltpu

VMEM_LIMIT = 48 * 1024 * 1024        # fits v7x's 64 MiB/TC with headroom


def _ceil8(n):
    return -(-n // 8) * 8


def _ceil128(n):
    return -(-n // 128) * 128


# ----------------------------------------------------------------------------
# Pallas kernels
# ----------------------------------------------------------------------------
def conv3x3_relu_pool_kernel(Vp, x_ref, w_ref, b_ref, o_ref, stage_ref):
    """Fused Conv2d(3x3, s=1, p=1) + bias + ReLU + MaxPool2d(2, 2), one image.

    x_ref    : (1, 4*Cp, Psize)  4 (row,col)-parity planes of the zero-padded
                                 input, channel-major, spatial flattened with
                                 row stride Vp = W/2 + 1 (plus guard zeros)
    w_ref    : (4*Cout, 16*Cp)   per-output-parity weight matrices stacked on M
    b_ref    : (Cout, 1)
    o_ref    : (1, Cout, Nout)   pooled output, Nout = round_up((H/2)*Vp, 128)
    stage_ref: (16*Cp, Nout)     VMEM staging of the 16 shifted plane slices
    """
    cout = o_ref.shape[1]
    n_out = o_ref.shape[2]                 # lane-dense (multiple of 128)
    cp = stage_ref.shape[0] // 16

    # Stage the 16 distinct (plane, row-shift, col-shift) slices once.
    # All slices are contiguous lane ranges at static offsets {0, 1, Vp, Vp+1}.
    k = 0
    for p in (0, 1):                       # input row parity
        for q in (0, 1):                   # input col parity
            for ru in (0, 1):              # row shift inside the parity plane
                for rv in (0, 1):          # col shift inside the parity plane
                    stage_ref[pl.ds(k * cp, cp), :] = x_ref[
                        0, pl.ds((2 * p + q) * cp, cp), pl.ds(ru * Vp + rv, n_out)]
                    k += 1

    # One MXU matmul computes all 4 output-parity classes (M = 4*Cout, K = 16*cp).
    allp = jnp.dot(w_ref[...], stage_ref[...], preferred_element_type=jnp.float32)

    # 2x2 / stride-2 max-pool == elementwise max over the 4 parity classes.
    best = jnp.maximum(jnp.maximum(allp[0:cout], allp[cout:2 * cout]),
                       jnp.maximum(allp[2 * cout:3 * cout], allp[3 * cout:4 * cout]))
    # bias + ReLU (relu is monotone, bias is a per-channel constant -> commute).
    o_ref[0, :, :] = jnp.maximum(best + b_ref[...], 0.0)


def fc_kernel(x_ref, w1_ref, b1_ref, w2_ref, b2_ref, o_ref):
    """out = relu(x @ W1 + b1) @ W2 + b2, whole problem resident in VMEM."""
    h = jnp.maximum(
        jnp.dot(x_ref[...], w1_ref[...], preferred_element_type=jnp.float32)
        + b1_ref[...], 0.0)
    o_ref[...] = (jnp.dot(h, w2_ref[...], preferred_element_type=jnp.float32)
                  + b2_ref[...]).astype(o_ref.dtype)


# ----------------------------------------------------------------------------
# Wrappers (pallas_call plumbing + pure-JAX layout glue)
# ----------------------------------------------------------------------------
def _prep_parity_planes(x_nchw, psize):
    """(B,C,H,W) -> (B, 4*Cp, psize): zero-pad spatially by 1, split into the 4
    (row,col)-parity planes, pad C up to a multiple of 8, flatten spatially."""
    B, C, H, W = x_nchw.shape
    Cp = _ceil8(C)
    xp = jnp.pad(x_nchw, ((0, 0), (0, Cp - C), (1, 1), (1, 1)))
    planes = jnp.stack([xp[:, :, p::2, q::2] for p in (0, 1) for q in (0, 1)],
                       axis=1)                           # (B, 4, Cp, H/2+1, W/2+1)
    Hh, Vp = H // 2 + 1, W // 2 + 1
    flat = planes.reshape(B, 4 * Cp, Hh * Vp)
    return jnp.pad(flat, ((0, 0), (0, 0), (0, psize - Hh * Vp)))


def conv_block_pallas(planes, w_mat, bias, Vp, n_out_pad):
    B, cp4, psize = planes.shape
    cout = bias.shape[0]
    ktot = w_mat.shape[1]                                # 16 * Cp
    return pl.pallas_call(
        functools.partial(conv3x3_relu_pool_kernel, Vp),
        out_shape=jax.ShapeDtypeStruct((B, cout, n_out_pad), jnp.float32),
        grid_spec=pltpu.PrefetchScalarGridSpec(
            num_scalar_prefetch=0,
            grid=(B,),
            in_specs=[
                pl.BlockSpec((1, cp4, psize), lambda i: (i, 0, 0)),
                pl.BlockSpec((4 * cout, ktot), lambda i: (0, 0)),
                pl.BlockSpec((cout, 1), lambda i: (0, 0)),
            ],
            out_specs=pl.BlockSpec((1, cout, n_out_pad), lambda i: (i, 0, 0)),
            scratch_shapes=[pltpu.VMEM((ktot, n_out_pad), jnp.float32)],
        ),
        compiler_params=pltpu.CompilerParams(
            dimension_semantics=("parallel",),   # v7x: one image per TensorCore
            vmem_limit_bytes=VMEM_LIMIT),
    )(planes, w_mat, bias)


def conv_block(x, w_mat, bias):
    """One fused Conv3x3+ReLU+MaxPool block (glue + pallas_call)."""
    B, C, H, W = x.shape
    assert H % 2 == 0 and W % 2 == 0
    cout = bias.shape[0]
    Vp = W // 2 + 1
    n_out = (H // 2) * Vp
    n_out_pad = _ceil128(n_out)                      # lane-dense kernel output
    psize = _ceil128(Vp + 1 + n_out_pad)             # covers max slice offset
    planes = _prep_parity_planes(x, psize)
    y = conv_block_pallas(planes, w_mat, bias, Vp, n_out_pad)
    # Drop lane padding + the per-row junk column (layout plumbing, plain JAX).
    return y[:, :, :n_out].reshape(B, cout, H // 2, Vp)[:, :, :, :W // 2]


def fc_pallas(x, w1, b1, w2, b2):
    B, F = x.shape
    U = w1.shape[1]
    C = w2.shape[1]
    return pl.pallas_call(
        fc_kernel,
        out_shape=jax.ShapeDtypeStruct((B, C), jnp.float32),
        grid_spec=pltpu.PrefetchScalarGridSpec(
            num_scalar_prefetch=0,
            grid=(1,),
            in_specs=[
                pl.BlockSpec((B, F), lambda i: (0, 0)),
                pl.BlockSpec((F, U), lambda i: (0, 0)),
                pl.BlockSpec((1, U), lambda i: (0, 0)),
                pl.BlockSpec((U, C), lambda i: (0, 0)),
                pl.BlockSpec((1, C), lambda i: (0, 0)),
            ],
            out_specs=pl.BlockSpec((B, C), lambda i: (0, 0)),
        ),
        compiler_params=pltpu.CompilerParams(
            dimension_semantics=("arbitrary",),
            vmem_limit_bytes=VMEM_LIMIT),
    )(x, w1, b1, w2, b2)


def cnn_forward_pallas(x_nchw, conv_params_prep, fc_params_prep):
    """Forward pass of CNN_Model (eval mode). x_nchw: (B, 3, H, W) float32."""
    x = x_nchw
    for w_mat, bias in conv_params_prep:
        x = conv_block(x, w_mat, bias)
        # TODO(synk): nn.Dropout(p=0.3) is modeled as identity (inference/eval
        # mode); use_batch_normalization=False so no BatchNorm layer exists.
    B = x.shape[0]
    feat = x.reshape(B, -1)            # NCHW flatten == torch.nn.Flatten semantics
    w1, b1, w2, b2 = fc_params_prep
    return fc_pallas(feat, w1, b1, w2, b2)


# ----------------------------------------------------------------------------
# One-time parameter preparation (torch layout -> kernel layout)
# ----------------------------------------------------------------------------
def prepare_conv_params(conv_params):
    """(Cout,Cin,3,3)/(Cout,) -> ((4*Cout, 16*Cp) parity weight matrix, (Cout,1) bias)."""
    prepped = []
    for w, b in conv_params:
        w_np = np.asarray(w, np.float32)
        cout, cin = w_np.shape[:2]
        cp = _ceil8(cin)
        wm = np.zeros((4, cout, 16 * cp), np.float32)
        for a in (0, 1):                 # output row parity
            for pb in (0, 1):            # output col parity
                for dy in range(3):
                    for dx in range(3):
                        p, ru = (a + dy) % 2, (a + dy) // 2
                        q, rv = (pb + dx) % 2, (pb + dx) // 2
                        k = ((2 * p + q) * 2 + ru) * 2 + rv
                        wm[2 * a + pb, :, k * cp:k * cp + cin] = w_np[:, :, dy, dx]
        prepped.append((jnp.asarray(wm.reshape(4 * cout, 16 * cp)),
                        jnp.asarray(np.asarray(b, np.float32).reshape(cout, 1))))
    return prepped


def prepare_fc_params(fc_params):
    """Pre-transpose FC weights once: W1 -> (F,U), W2 -> (U,C)."""
    (w1, b1), (w2, b2) = fc_params
    return (jnp.asarray(w1).T, jnp.asarray(b1).reshape(1, -1),
            jnp.asarray(w2).T, jnp.asarray(b2).reshape(1, -1))


# ----------------------------------------------------------------------------
# Pure-JAX reference (for correctness check)
# ----------------------------------------------------------------------------
def reference_forward(x, conv_params, fc_params):
    for w, b in conv_params:
        x = lax.conv_general_dilated(x, w, (1, 1), ((1, 1), (1, 1)),
                                     dimension_numbers=("NCHW", "OIHW", "NCHW"))
        x = jnp.maximum(x + b[None, :, None, None], 0.0)
        x = lax.reduce_window(x, -jnp.inf, lax.max,
                              (1, 1, 2, 2), (1, 1, 2, 2), "VALID")
    x = x.reshape(x.shape[0], -1)
    (w1, b1), (w2, b2) = fc_params
    x = jnp.maximum(x @ w1.T + b1, 0.0)
    return x @ w2.T + b2


# ----------------------------------------------------------------------------
if __name__ == "__main__":
    # Small config: conv_channels=[8, 16], fc_units=128, num_classes=10.
    # The module hard-codes fc_input_size around a 100x100 input, so spatial=100.
    conv_channels = [8, 16]
    fc_units = 128
    num_classes = 10
    B, H0, W0 = 2, 100, 100

    keys = iter(jax.random.split(jax.random.PRNGKey(0), 16))

    conv_params = []
    in_ch = 3
    for out_ch in conv_channels:
        bound = 1.0 / np.sqrt(in_ch * 9)
        w = jax.random.uniform(next(keys), (out_ch, in_ch, 3, 3), jnp.float32, -bound, bound)
        b = jax.random.uniform(next(keys), (out_ch,), jnp.float32, -bound, bound)
        conv_params.append((w, b))
        in_ch = out_ch

    fc_in = conv_channels[-1] * (100 // 2 ** len(conv_channels)) ** 2   # 16*25*25 = 10000
    bnd1 = 1.0 / np.sqrt(fc_in)
    w1 = jax.random.uniform(next(keys), (fc_units, fc_in), jnp.float32, -bnd1, bnd1)
    b1 = jax.random.uniform(next(keys), (fc_units,), jnp.float32, -bnd1, bnd1)
    bnd2 = 1.0 / np.sqrt(fc_units)
    w2 = jax.random.uniform(next(keys), (num_classes, fc_units), jnp.float32, -bnd2, bnd2)
    b2 = jax.random.uniform(next(keys), (num_classes,), jnp.float32, -bnd2, bnd2)
    fc_params = ((w1, b1), (w2, b2))

    conv_prep = prepare_conv_params(conv_params)   # one-time layout prep
    fc_prep = prepare_fc_params(fc_params)         # one-time pre-transpose

    x = jax.random.normal(next(keys), (B, 3, H0, W0), jnp.float32)

    fwd = jax.jit(lambda xx: cnn_forward_pallas(xx, conv_prep, fc_prep))
    out = jax.block_until_ready(fwd(x))

    ref = jax.block_until_ready(reference_forward(x, conv_params, fc_params))
    np.testing.assert_allclose(np.asarray(out), np.asarray(ref), rtol=2e-3, atol=2e-3)
    assert out.shape == (B, num_classes)
    print("KERNEL_OK")
</pallas_src>

<mosaic_0001>
module attributes {stable_mosaic.version = 11 : i64} {
  func.func @conv3x3_relu_pool_kernel(%arg0: i32, %arg1: memref<1x32x2688xf32, #tpu.memory_space<vmem>>, %arg2: memref<32x128xf32, #tpu.memory_space<vmem>>, %arg3: memref<8x1xf32, #tpu.memory_space<vmem>>, %arg4: memref<1x8x2560xf32, #tpu.memory_space<vmem>>, %arg5: memref<128x2560xf32, #tpu.memory_space<vmem>>) attributes {dimension_semantics = [#tpu.dimension_semantics<parallel>], iteration_bounds = array<i64: 2>, scalar_prefetch = 0 : i64, scratch_operands = 1 : i64, tpu.core_type = #tpu.core_type<tc>, window_params = [{transform_indices = @transform_0, window_bounds = array<i64: 1, 32, 2688>}, {pipeline_mode = #tpu.pipeline_mode<synchronous>, transform_indices = @transform_1, window_bounds = array<i64: 32, 128>}, {pipeline_mode = #tpu.pipeline_mode<synchronous>, transform_indices = @transform_2, window_bounds = array<i64: 8, 1>}, {transform_indices = @transform_3, window_bounds = array<i64: 1, 8, 2560>}]} {
    %c0 = arith.constant 0 : index
    %c0_0 = arith.constant 0 : index
    %c0_1 = arith.constant 0 : index
    %0 = vector.load %arg1[%c0, %c0_0, %c0_1] : memref<1x32x2688xf32, #tpu.memory_space<vmem>>, vector<1x8x2560xf32>
    %1 = vector.shape_cast %0 : vector<1x8x2560xf32> to vector<8x2560xf32>
    %c0_2 = arith.constant 0 : index
    %c0_3 = arith.constant 0 : index
    %2 = vector.load %arg5[%c0_2, %c0_3] : memref<128x2560xf32, #tpu.memory_space<vmem>>, vector<8x2560xf32>
    tpu.vector_store %arg5[%c0_2, %c0_3], %1 {strides = array<i32>} : memref<128x2560xf32, #tpu.memory_space<vmem>>, vector<8x2560xf32>,
    %c0_4 = arith.constant 0 : index
    %c0_5 = arith.constant 0 : index
    %c1 = arith.constant 1 : index
    %3 = vector.load %arg1[%c0_4, %c0_5, %c1] : memref<1x32x2688xf32, #tpu.memory_space<vmem>>, vector<1x8x2560xf32>
    %4 = vector.shape_cast %3 : vector<1x8x2560xf32> to vector<8x2560xf32>
    %c8 = arith.constant 8 : index
    %c0_6 = arith.constant 0 : index
    %5 = vector.load %arg5[%c8, %c0_6] : memref<128x2560xf32, #tpu.memory_space<vmem>>, vector<8x2560xf32>
    tpu.vector_store %arg5[%c8, %c0_6], %4 {strides = array<i32>} : memref<128x2560xf32, #tpu.memory_space<vmem>>, vector<8x2560xf32>,
    %c0_7 = arith.constant 0 : index
    %c0_8 = arith.constant 0 : index
    %c51 = arith.constant 51 : index
    %6 = vector.load %arg1[%c0_7, %c0_8, %c51] : memref<1x32x2688xf32, #tpu.memory_space<vmem>>, vector<1x8x2560xf32>
    %7 = vector.shape_cast %6 : vector<1x8x2560xf32> to vector<8x2560xf32>
    %c16 = arith.constant 16 : index
    %c0_9 = arith.constant 0 : index
    %8 = vector.load %arg5[%c16, %c0_9] : memref<128x2560xf32, #tpu.memory_space<vmem>>, vector<8x2560xf32>
    tpu.vector_store %arg5[%c16, %c0_9], %7 {strides = array<i32>} : memref<128x2560xf32, #tpu.memory_space<vmem>>, vector<8x2560xf32>,
    %c0_10 = arith.constant 0 : index
    %c0_11 = arith.constant 0 : index
    %c52 = arith.constant 52 : index
    %9 = vector.load %arg1[%c0_10, %c0_11, %c52] : memref<1x32x2688xf32, #tpu.memory_space<vmem>>, vector<1x8x2560xf32>
    %10 = vector.shape_cast %9 : vector<1x8x2560xf32> to vector<8x2560xf32>
    %c24 = arith.constant 24 : index
    %c0_12 = arith.constant 0 : index
    %11 = vector.load %arg5[%c24, %c0_12] : memref<128x2560xf32, #tpu.memory_space<vmem>>, vector<8x2560xf32>
    tpu.vector_store %arg5[%c24, %c0_12], %10 {strides = array<i32>} : memref<128x2560xf32, #tpu.memory_space<vmem>>, vector<8x2560xf32>,
    %c0_13 = arith.constant 0 : index
    %c8_14 = arith.constant 8 : index
    %c0_15 = arith.constant 0 : index
    %12 = vector.load %arg1[%c0_13, %c8_14, %c0_15] : memref<1x32x2688xf32, #tpu.memory_space<vmem>>, vector<1x8x2560xf32>
    %13 = vector.shape_cast %12 : vector<1x8x2560xf32> to vector<8x2560xf32>
    %c32 = arith.constant 32 : index
    %c0_16 = arith.constant 0 : index
    %14 = vector.load %arg5[%c32, %c0_16] : memref<128x2560xf32, #tpu.memory_space<vmem>>, vector<8x2560xf32>
    tpu.vector_store %arg5[%c32, %c0_16], %13 {strides = array<i32>} : memref<128x2560xf32, #tpu.memory_space<vmem>>, vector<8x2560xf32>,
    %c0_17 = arith.constant 0 : index
    %c8_18 = arith.constant 8 : index
    %c1_19 = arith.constant 1 : index
    %15 = vector.load %arg1[%c0_17, %c8_18, %c1_19] : memref<1x32x2688xf32, #tpu.memory_space<vmem>>, vector<1x8x2560xf32>
    %16 = vector.shape_cast %15 : vector<1x8x2560xf32> to vector<8x2560xf32>
    %c40 = arith.constant 40 : index
    %c0_20 = arith.constant 0 : index
    %17 = vector.load %arg5[%c40, %c0_20] : memref<128x2560xf32, #tpu.memory_space<vmem>>, vector<8x2560xf32>
    tpu.vector_store %arg5[%c40, %c0_20], %16 {strides = array<i32>} : memref<128x2560xf32, #tpu.memory_space<vmem>>, vector<8x2560xf32>,
    %c0_21 = arith.constant 0 : index
    %c8_22 = arith.constant 8 : index
    %c51_23 = arith.constant 51 : index
    %18 = vector.load %arg1[%c0_21, %c8_22, %c51_23] : memref<1x32x2688xf32, #tpu.memory_space<vmem>>, vector<1x8x2560xf32>
    %19 = vector.shape_cast %18 : vector<1x8x2560xf32> to vector<8x2560xf32>
    %c48 = arith.constant 48 : index
    %c0_24 = arith.constant 0 : index
    %20 = vector.load %arg5[%c48, %c0_24] : memref<128x2560xf32, #tpu.memory_space<vmem>>, vector<8x2560xf32>
    tpu.vector_store %arg5[%c48, %c0_24], %19 {strides = array<i32>} : memref<128x2560xf32, #tpu.memory_space<vmem>>, vector<8x2560xf32>,
    %c0_25 = arith.constant 0 : index
    %c8_26 = arith.constant 8 : index
    %c52_27 = arith.constant 52 : index
    %21 = vector.load %arg1[%c0_25, %c8_26, %c52_27] : memref<1x32x2688xf32, #tpu.memory_space<vmem>>, vector<1x8x2560xf32>
    %22 = vector.shape_cast %21 : vector<1x8x2560xf32> to vector<8x2560xf32>
    %c56 = arith.constant 56 : index
    %c0_28 = arith.constant 0 : index
    %23 = vector.load %arg5[%c56, %c0_28] : memref<128x2560xf32, #tpu.memory_space<vmem>>, vector<8x2560xf32>
    tpu.vector_store %arg5[%c56, %c0_28], %22 {strides = array<i32>} : memref<128x2560xf32, #tpu.memory_space<vmem>>, vector<8x2560xf32>,
    %c0_29 = arith.constant 0 : index
    %c16_30 = arith.constant 16 : index
    %c0_31 = arith.constant 0 : index
    %24 = vector.load %arg1[%c0_29, %c16_30, %c0_31] : memref<1x32x2688xf32, #tpu.memory_space<vmem>>, vector<1x8x2560xf32>
    %25 = vector.shape_cast %24 : vector<1x8x2560xf32> to vector<8x2560xf32>
    %c64 = arith.constant 64 : index
    %c0_32 = arith.constant 0 : index
    %26 = vector.load %arg5[%c64, %c0_32] : memref<128x2560xf32, #tpu.memory_space<vmem>>, vector<8x2560xf32>
    tpu.vector_store %arg5[%c64, %c0_32], %25 {strides = array<i32>} : memref<128x2560xf32, #tpu.memory_space<vmem>>, vector<8x2560xf32>,
    %c0_33 = arith.constant 0 : index
    %c16_34 = arith.constant 16 : index
    %c1_35 = arith.constant 1 : index
    %27 = vector.load %arg1[%c0_33, %c16_34, %c1_35] : memref<1x32x2688xf32, #tpu.memory_space<vmem>>, vector<1x8x2560xf32>
    %28 = vector.shape_cast %27 : vector<1x8x2560xf32> to vector<8x2560xf32>
    %c72 = arith.constant 72 : index
    %c0_36 = arith.constant 0 : index
    %29 = vector.load %arg5[%c72, %c0_36] : memref<128x2560xf32, #tpu.memory_space<vmem>>, vector<8x2560xf32>
    tpu.vector_store %arg5[%c72, %c0_36], %28 {strides = array<i32>} : memref<128x2560xf32, #tpu.memory_space<vmem>>, vector<8x2560xf32>,
    %c0_37 = arith.constant 0 : index
    %c16_38 = arith.constant 16 : index
    %c51_39 = arith.constant 51 : index
    %30 = vector.load %arg1[%c0_37, %c16_38, %c51_39] : memref<1x32x2688xf32, #tpu.memory_space<vmem>>, vector<1x8x2560xf32>
    %31 = vector.shape_cast %30 : vector<1x8x2560xf32> to vector<8x2560xf32>
    %c80 = arith.constant 80 : index
    %c0_40 = arith.constant 0 : index
    %32 = vector.load %arg5[%c80, %c0_40] : memref<128x2560xf32, #tpu.memory_space<vmem>>, vector<8x2560xf32>
    tpu.vector_store %arg5[%c80, %c0_40], %31 {strides = array<i32>} : memref<128x2560xf32, #tpu.memory_space<vmem>>, vector<8x2560xf32>,
    %c0_41 = arith.constant 0 : index
    %c16_42 = arith.constant 16 : index
    %c52_43 = arith.constant 52 : index
    %33 = vector.load %arg1[%c0_41, %c16_42, %c52_43] : memref<1x32x2688xf32, #tpu.memory_space<vmem>>, vector<1x8x2560xf32>
    %34 = vector.shape_cast %33 : vector<1x8x2560xf32> to vector<8x2560xf32>
    %c88 = arith.constant 88 : index
    %c0_44 = arith.constant 0 : index
    %35 = vector.load %arg5[%c88, %c0_44] : memref<128x2560xf32, #tpu.memory_space<vmem>>, vector<8x2560xf32>
    tpu.vector_store %arg5[%c88, %c0_44], %34 {strides = array<i32>} : memref<128x2560xf32, #tpu.memory_space<vmem>>, vector<8x2560xf32>,
    %c0_45 = arith.constant 0 : index
    %c24_46 = arith.constant 24 : index
    %c0_47 = arith.constant 0 : index
    %36 = vector.load %arg1[%c0_45, %c24_46, %c0_47] : memref<1x32x2688xf32, #tpu.memory_space<vmem>>, vector<1x8x2560xf32>
    %37 = vector.shape_cast %36 : vector<1x8x2560xf32> to vector<8x2560xf32>
    %c96 = arith.constant 96 : index
    %c0_48 = arith.constant 0 : index
    %38 = vector.load %arg5[%c96, %c0_48] : memref<128x2560xf32, #tpu.memory_space<vmem>>, vector<8x2560xf32>
    tpu.vector_store %arg5[%c96, %c0_48], %37 {strides = array<i32>} : memref<128x2560xf32, #tpu.memory_space<vmem>>, vector<8x2560xf32>,
    %c0_49 = arith.constant 0 : index
    %c24_50 = arith.constant 24 : index
    %c1_51 = arith.constant 1 : index
    %39 = vector.load %arg1[%c0_49, %c24_50, %c1_51] : memref<1x32x2688xf32, #tpu.memory_space<vmem>>, vector<1x8x2560xf32>
    %40 = vector.shape_cast %39 : vector<1x8x2560xf32> to vector<8x2560xf32>
    %c104 = arith.constant 104 : index
    %c0_52 = arith.constant 0 : index
    %41 = vector.load %arg5[%c104, %c0_52] : memref<128x2560xf32, #tpu.memory_space<vmem>>, vector<8x2560xf32>
    tpu.vector_store %arg5[%c104, %c0_52], %40 {strides = array<i32>} : memref<128x2560xf32, #tpu.memory_space<vmem>>, vector<8x2560xf32>,
    %c0_53 = arith.constant 0 : index
    %c24_54 = arith.constant 24 : index
    %c51_55 = arith.constant 51 : index
    %42 = vector.load %arg1[%c0_53, %c24_54, %c51_55] : memref<1x32x2688xf32, #tpu.memory_space<vmem>>, vector<1x8x2560xf32>
    %43 = vector.shape_cast %42 : vector<1x8x2560xf32> to vector<8x2560xf32>
    %c112 = arith.constant 112 : index
    %c0_56 = arith.constant 0 : index
    %44 = vector.load %arg5[%c112, %c0_56] : memref<128x2560xf32, #tpu.memory_space<vmem>>, vector<8x2560xf32>
    tpu.vector_store %arg5[%c112, %c0_56], %43 {strides = array<i32>} : memref<128x2560xf32, #tpu.memory_space<vmem>>, vector<8x2560xf32>,
    %c0_57 = arith.constant 0 : index
    %c24_58 = arith.constant 24 : index
    %c52_59 = arith.constant 52 : index
    %45 = vector.load %arg1[%c0_57, %c24_58, %c52_59] : memref<1x32x2688xf32, #tpu.memory_space<vmem>>, vector<1x8x2560xf32>
    %46 = vector.shape_cast %45 : vector<1x8x2560xf32> to vector<8x2560xf32>
    %c120 = arith.constant 120 : index
    %c0_60 = arith.constant 0 : index
    %47 = vector.load %arg5[%c120, %c0_60] : memref<128x2560xf32, #tpu.memory_space<vmem>>, vector<8x2560xf32>
    tpu.vector_store %arg5[%c120, %c0_60], %46 {strides = array<i32>} : memref<128x2560xf32, #tpu.memory_space<vmem>>, vector<8x2560xf32>,
    %c0_61 = arith.constant 0 : index
    %c0_62 = arith.constant 0 : index
    %48 = vector.load %arg2[%c0_61, %c0_62] : memref<32x128xf32, #tpu.memory_space<vmem>>, vector<32x128xf32>
    %c0_63 = arith.constant 0 : index
    %c0_64 = arith.constant 0 : index
    %49 = vector.load %arg5[%c0_63, %c0_64] : memref<128x2560xf32, #tpu.memory_space<vmem>>, vector<128x2560xf32>
    %cst = arith.constant dense<0.000000e+00> : vector<32x2560xf32>
    %50 = tpu.matmul %48, %49, %cst {dimension_numbers = #tpu.dot_dimension_numbers<[1], [0], [0], [1], [0, 0, 1, 1], [], []>} : vector<32x128xf32>, vector<128x2560xf32>, vector<32x2560xf32> -> vector<32x2560xf32>
    %51 = vector.extract_strided_slice %50 {offsets = [0, 0], sizes = [8, 2560], strides = [1, 1]} : vector<32x2560xf32> to vector<8x2560xf32>
    %52 = vector.extract_strided_slice %50 {offsets = [8, 0], sizes = [8, 2560], strides = [1, 1]} : vector<32x2560xf32> to vector<8x2560xf32>
    %53 = arith.maximumf %51, %52 : vector<8x2560xf32>
    %54 = vector.extract_strided_slice %50 {offsets = [16, 0], sizes = [8, 2560], strides = [1, 1]} : vector<32x2560xf32> to vector<8x2560xf32>
    %55 = vector.extract_strided_slice %50 {offsets = [24, 0], sizes = [8, 2560], strides = [1, 1]} : vector<32x2560xf32> to vector<8x2560xf32>
    %56 = arith.maximumf %54, %55 : vector<8x2560xf32>
    %57 = arith.maximumf %53, %56 : vector<8x2560xf32>
    %c0_65 = arith.constant 0 : index
    %c0_66 = arith.constant 0 : index
    %58 = vector.load %arg3[%c0_65, %c0_66] : memref<8x1xf32, #tpu.memory_space<vmem>>, vector<8x1xf32>
    %59 = vector.broadcast %58 : vector<8x1xf32> to vector<8x2560xf32>
    %60 = arith.addf %57, %59 : vector<8x2560xf32>
    %cst_67 = arith.constant 0.000000e+00 : f32
    %61 = vector.broadcast %cst_67 : f32 to vector<8x2560xf32>
    %62 = arith.maximumf %60, %61 : vector<8x2560xf32>
    %c0_68 = arith.constant 0 : index
    %c0_69 = arith.constant 0 : index
    %c0_70 = arith.constant 0 : index
    %63 = vector.load %arg4[%c0_68, %c0_69, %c0_70] : memref<1x8x2560xf32, #tpu.memory_space<vmem>>, vector<1x8x2560xf32>
    %64 = vector.shape_cast %63 : vector<1x8x2560xf32> to vector<8x2560xf32>
    %65 = vector.shape_cast %62 : vector<8x2560xf32> to vector<1x8x2560xf32>
    tpu.vector_store %arg4[%c0_68, %c0_69, %c0_70], %65 {strides = array<i32>} : memref<1x8x2560xf32, #tpu.memory_space<vmem>>, vector<1x8x2560xf32>,
    return
  }
  func.func @transform_0(%arg0: i32) -> (i32, i32, i32) {
    %c0_i32 = arith.constant 0 : i32
    %c0_i32_0 = arith.constant 0 : i32
    %c0_i32_1 = arith.constant 0 : i32
    return %arg0, %c0_i32, %c0_i32_0 : i32, i32, i32
  }
  func.func @transform_1(%arg0: i32) -> (i32, i32) {
    %c0_i32 = arith.constant 0 : i32
    %c0_i32_0 = arith.constant 0 : i32
    %c0_i32_1 = arith.constant 0 : i32
    return %c0_i32, %c0_i32_0 : i32, i32
  }
  func.func @transform_2(%arg0: i32) -> (i32, i32) {
    %c0_i32 = arith.constant 0 : i32
    %c0_i32_0 = arith.constant 0 : i32
    %c0_i32_1 = arith.constant 0 : i32
    return %c0_i32, %c0_i32_0 : i32, i32
  }
  func.func @transform_3(%arg0: i32) -> (i32, i32, i32) {
    %c0_i32 = arith.constant 0 : i32
    %c0_i32_0 = arith.constant 0 : i32
    %c0_i32_1 = arith.constant 0 : i32
    return %arg0, %c0_i32, %c0_i32_0 : i32, i32, i32
  }
}

module attributes {stable_mosaic.version = 11 : i64} {
  func.func @conv3x3_relu_pool_kernel(%arg0: i32, %arg1: memref<1x32x896xf32, #tpu.memory_space<vmem>>, %arg2: memref<64x128xf32, #tpu.memory_space<vmem>>, %arg3: memref<16x1xf32, #tpu.memory_space<vmem>>, %arg4: memref<1x16x768xf32, #tpu.memory_space<vmem>>, %arg5: memref<128x768xf32, #tpu.memory_space<vmem>>) attributes {dimension_semantics = [#tpu.dimension_semantics<parallel>], iteration_bounds = array<i64: 2>, scalar_prefetch = 0 : i64, scratch_operands = 1 : i64, tpu.core_type = #tpu.core_type<tc>, window_params = [{transform_indices = @transform_0, window_bounds = array<i64: 1, 32, 896>}, {pipeline_mode = #tpu.pipeline_mode<synchronous>, transform_indices = @transform_1, window_bounds = array<i64: 64, 128>}, {pipeline_mode = #tpu.pipeline_mode<synchronous>, transform_indices = @transform_2, window_bounds = array<i64: 16, 1>}, {transform_indices = @transform_3, window_bounds = array<i64: 1, 16, 768>}]} {
    %c0 = arith.constant 0 : index
    %c0_0 = arith.constant 0 : index
    %c0_1 = arith.constant 0 : index
    %0 = vector.load %arg1[%c0, %c0_0, %c0_1] : memref<1x32x896xf32, #tpu.memory_space<vmem>>, vector<1x8x768xf32>
    %1 = vector.shape_cast %0 : vector<1x8x768xf32> to vector<8x768xf32>
    %c0_2 = arith.constant 0 : index
    %c0_3 = arith.constant 0 : index
    %2 = vector.load %arg5[%c0_2, %c0_3] : memref<128x768xf32, #tpu.memory_space<vmem>>, vector<8x768xf32>
    tpu.vector_store %arg5[%c0_2, %c0_3], %1 {strides = array<i32>} : memref<128x768xf32, #tpu.memory_space<vmem>>, vector<8x768xf32>,
    %c0_4 = arith.constant 0 : index
    %c0_5 = arith.constant 0 : index
    %c1 = arith.constant 1 : index
    %3 = vector.load %arg1[%c0_4, %c0_5, %c1] : memref<1x32x896xf32, #tpu.memory_space<vmem>>, vector<1x8x768xf32>
    %4 = vector.shape_cast %3 : vector<1x8x768xf32> to vector<8x768xf32>
    %c8 = arith.constant 8 : index
    %c0_6 = arith.constant 0 : index
    %5 = vector.load %arg5[%c8, %c0_6] : memref<128x768xf32, #tpu.memory_space<vmem>>, vector<8x768xf32>
    tpu.vector_store %arg5[%c8, %c0_6], %4 {strides = array<i32>} : memref<128x768xf32, #tpu.memory_space<vmem>>, vector<8x768xf32>,
    %c0_7 = arith.constant 0 : index
    %c0_8 = arith.constant 0 : index
    %c26 = arith.constant 26 : index
    %6 = vector.load %arg1[%c0_7, %c0_8, %c26] : memref<1x32x896xf32, #tpu.memory_space<vmem>>, vector<1x8x768xf32>
    %7 = vector.shape_cast %6 : vector<1x8x768xf32> to vector<8x768xf32>
    %c16 = arith.constant 16 : index
    %c0_9 = arith.constant 0 : index
    %8 = vector.load %arg5[%c16, %c0_9] : memref<128x768xf32, #tpu.memory_space<vmem>>, vector<8x768xf32>
    tpu.vector_store %arg5[%c16, %c0_9], %7 {strides = array<i32>} : memref<128x768xf32, #tpu.memory_space<vmem>>, vector<8x768xf32>,
    %c0_10 = arith.constant 0 : index
    %c0_11 = arith.constant 0 : index
    %c27 = arith.constant 27 : index
    %9 = vector.load %arg1[%c0_10, %c0_11, %c27] : memref<1x32x896xf32, #tpu.memory_space<vmem>>, vector<1x8x768xf32>
    %10 = vector.shape_cast %9 : vector<1x8x768xf32> to vector<8x768xf32>
    %c24 = arith.constant 24 : index
    %c0_12 = arith.constant 0 : index
    %11 = vector.load %arg5[%c24, %c0_12] : memref<128x768xf32, #tpu.memory_space<vmem>>, vector<8x768xf32>
    tpu.vector_store %arg5[%c24, %c0_12], %10 {strides = array<i32>} : memref<128x768xf32, #tpu.memory_space<vmem>>, vector<8x768xf32>,
    %c0_13 = arith.constant 0 : index
    %c8_14 = arith.constant 8 : index
    %c0_15 = arith.constant 0 : index
    %12 = vector.load %arg1[%c0_13, %c8_14, %c0_15] : memref<1x32x896xf32, #tpu.memory_space<vmem>>, vector<1x8x768xf32>
    %13 = vector.shape_cast %12 : vector<1x8x768xf32> to vector<8x768xf32>
    %c32 = arith.constant 32 : index
    %c0_16 = arith.constant 0 : index
    %14 = vector.load %arg5[%c32, %c0_16] : memref<128x768xf32, #tpu.memory_space<vmem>>, vector<8x768xf32>
    tpu.vector_store %arg5[%c32, %c0_16], %13 {strides = array<i32>} : memref<128x768xf32, #tpu.memory_space<vmem>>, vector<8x768xf32>,
    %c0_17 = arith.constant 0 : index
    %c8_18 = arith.constant 8 : index
    %c1_19 = arith.constant 1 : index
    %15 = vector.load %arg1[%c0_17, %c8_18, %c1_19] : memref<1x32x896xf32, #tpu.memory_space<vmem>>, vector<1x8x768xf32>
    %16 = vector.shape_cast %15 : vector<1x8x768xf32> to vector<8x768xf32>
    %c40 = arith.constant 40 : index
    %c0_20 = arith.constant 0 : index
    %17 = vector.load %arg5[%c40, %c0_20] : memref<128x768xf32, #tpu.memory_space<vmem>>, vector<8x768xf32>
    tpu.vector_store %arg5[%c40, %c0_20], %16 {strides = array<i32>} : memref<128x768xf32, #tpu.memory_space<vmem>>, vector<8x768xf32>,
    %c0_21 = arith.constant 0 : index
    %c8_22 = arith.constant 8 : index
    %c26_23 = arith.constant 26 : index
    %18 = vector.load %arg1[%c0_21, %c8_22, %c26_23] : memref<1x32x896xf32, #tpu.memory_space<vmem>>, vector<1x8x768xf32>
    %19 = vector.shape_cast %18 : vector<1x8x768xf32> to vector<8x768xf32>
    %c48 = arith.constant 48 : index
    %c0_24 = arith.constant 0 : index
    %20 = vector.load %arg5[%c48, %c0_24] : memref<128x768xf32, #tpu.memory_space<vmem>>, vector<8x768xf32>
    tpu.vector_store %arg5[%c48, %c0_24], %19 {strides = array<i32>} : memref<128x768xf32, #tpu.memory_space<vmem>>, vector<8x768xf32>,
    %c0_25 = arith.constant 0 : index
    %c8_26 = arith.constant 8 : index
    %c27_27 = arith.constant 27 : index
    %21 = vector.load %arg1[%c0_25, %c8_26, %c27_27] : memref<1x32x896xf32, #tpu.memory_space<vmem>>, vector<1x8x768xf32>
    %22 = vector.shape_cast %21 : vector<1x8x768xf32> to vector<8x768xf32>
    %c56 = arith.constant 56 : index
    %c0_28 = arith.constant 0 : index
    %23 = vector.load %arg5[%c56, %c0_28] : memref<128x768xf32, #tpu.memory_space<vmem>>, vector<8x768xf32>
    tpu.vector_store %arg5[%c56, %c0_28], %22 {strides = array<i32>} : memref<128x768xf32, #tpu.memory_space<vmem>>, vector<8x768xf32>,
    %c0_29 = arith.constant 0 : index
    %c16_30 = arith.constant 16 : index
    %c0_31 = arith.constant 0 : index
    %24 = vector.load %arg1[%c0_29, %c16_30, %c0_31] : memref<1x32x896xf32, #tpu.memory_space<vmem>>, vector<1x8x768xf32>
    %25 = vector.shape_cast %24 : vector<1x8x768xf32> to vector<8x768xf32>
    %c64 = arith.constant 64 : index
    %c0_32 = arith.constant 0 : index
    %26 = vector.load %arg5[%c64, %c0_32] : memref<128x768xf32, #tpu.memory_space<vmem>>, vector<8x768xf32>
    tpu.vector_store %arg5[%c64, %c0_32], %25 {strides = array<i32>} : memref<128x768xf32, #tpu.memory_space<vmem>>, vector<8x768xf32>,
    %c0_33 = arith.constant 0 : index
    %c16_34 = arith.constant 16 : index
    %c1_35 = arith.constant 1 : index
    %27 = vector.load %arg1[%c0_33, %c16_34, %c1_35] : memref<1x32x896xf32, #tpu.memory_space<vmem>>, vector<1x8x768xf32>
    %28 = vector.shape_cast %27 : vector<1x8x768xf32> to vector<8x768xf32>
    %c72 = arith.constant 72 : index
    %c0_36 = arith.constant 0 : index
    %29 = vector.load %arg5[%c72, %c0_36] : memref<128x768xf32, #tpu.memory_space<vmem>>, vector<8x768xf32>
    tpu.vector_store %arg5[%c72, %c0_36], %28 {strides = array<i32>} : memref<128x768xf32, #tpu.memory_space<vmem>>, vector<8x768xf32>,
    %c0_37 = arith.constant 0 : index
    %c16_38 = arith.constant 16 : index
    %c26_39 = arith.constant 26 : index
    %30 = vector.load %arg1[%c0_37, %c16_38, %c26_39] : memref<1x32x896xf32, #tpu.memory_space<vmem>>, vector<1x8x768xf32>
    %31 = vector.shape_cast %30 : vector<1x8x768xf32> to vector<8x768xf32>
    %c80 = arith.constant 80 : index
    %c0_40 = arith.constant 0 : index
    %32 = vector.load %arg5[%c80, %c0_40] : memref<128x768xf32, #tpu.memory_space<vmem>>, vector<8x768xf32>
    tpu.vector_store %arg5[%c80, %c0_40], %31 {strides = array<i32>} : memref<128x768xf32, #tpu.memory_space<vmem>>, vector<8x768xf32>,
    %c0_41 = arith.constant 0 : index
    %c16_42 = arith.constant 16 : index
    %c27_43 = arith.constant 27 : index
    %33 = vector.load %arg1[%c0_41, %c16_42, %c27_43] : memref<1x32x896xf32, #tpu.memory_space<vmem>>, vector<1x8x768xf32>
    %34 = vector.shape_cast %33 : vector<1x8x768xf32> to vector<8x768xf32>
    %c88 = arith.constant 88 : index
    %c0_44 = arith.constant 0 : index
    %35 = vector.load %arg5[%c88, %c0_44] : memref<128x768xf32, #tpu.memory_space<vmem>>, vector<8x768xf32>
    tpu.vector_store %arg5[%c88, %c0_44], %34 {strides = array<i32>} : memref<128x768xf32, #tpu.memory_space<vmem>>, vector<8x768xf32>,
    %c0_45 = arith.constant 0 : index
    %c24_46 = arith.constant 24 : index
    %c0_47 = arith.constant 0 : index
    %36 = vector.load %arg1[%c0_45, %c24_46, %c0_47] : memref<1x32x896xf32, #tpu.memory_space<vmem>>, vector<1x8x768xf32>
    %37 = vector.shape_cast %36 : vector<1x8x768xf32> to vector<8x768xf32>
    %c96 = arith.constant 96 : index
    %c0_48 = arith.constant 0 : index
    %38 = vector.load %arg5[%c96, %c0_48] : memref<128x768xf32, #tpu.memory_space<vmem>>, vector<8x768xf32>
    tpu.vector_store %arg5[%c96, %c0_48], %37 {strides = array<i32>} : memref<128x768xf32, #tpu.memory_space<vmem>>, vector<8x768xf32>,
    %c0_49 = arith.constant 0 : index
    %c24_50 = arith.constant 24 : index
    %c1_51 = arith.constant 1 : index
    %39 = vector.load %arg1[%c0_49, %c24_50, %c1_51] : memref<1x32x896xf32, #tpu.memory_space<vmem>>, vector<1x8x768xf32>
    %40 = vector.shape_cast %39 : vector<1x8x768xf32> to vector<8x768xf32>
    %c104 = arith.constant 104 : index
    %c0_52 = arith.constant 0 : index
    %41 = vector.load %arg5[%c104, %c0_52] : memref<128x768xf32, #tpu.memory_space<vmem>>, vector<8x768xf32>
    tpu.vector_store %arg5[%c104, %c0_52], %40 {strides = array<i32>} : memref<128x768xf32, #tpu.memory_space<vmem>>, vector<8x768xf32>,
    %c0_53 = arith.constant 0 : index
    %c24_54 = arith.constant 24 : index
    %c26_55 = arith.constant 26 : index
    %42 = vector.load %arg1[%c0_53, %c24_54, %c26_55] : memref<1x32x896xf32, #tpu.memory_space<vmem>>, vector<1x8x768xf32>
    %43 = vector.shape_cast %42 : vector<1x8x768xf32> to vector<8x768xf32>
    %c112 = arith.constant 112 : index
    %c0_56 = arith.constant 0 : index
    %44 = vector.load %arg5[%c112, %c0_56] : memref<128x768xf32, #tpu.memory_space<vmem>>, vector<8x768xf32>
    tpu.vector_store %arg5[%c112, %c0_56], %43 {strides = array<i32>} : memref<128x768xf32, #tpu.memory_space<vmem>>, vector<8x768xf32>,
    %c0_57 = arith.constant 0 : index
    %c24_58 = arith.constant 24 : index
    %c27_59 = arith.constant 27 : index
    %45 = vector.load %arg1[%c0_57, %c24_58, %c27_59] : memref<1x32x896xf32, #tpu.memory_space<vmem>>, vector<1x8x768xf32>
    %46 = vector.shape_cast %45 : vector<1x8x768xf32> to vector<8x768xf32>
    %c120 = arith.constant 120 : index
    %c0_60 = arith.constant 0 : index
    %47 = vector.load %arg5[%c120, %c0_60] : memref<128x768xf32, #tpu.memory_space<vmem>>, vector<8x768xf32>
    tpu.vector_store %arg5[%c120, %c0_60], %46 {strides = array<i32>} : memref<128x768xf32, #tpu.memory_space<vmem>>, vector<8x768xf32>,
    %c0_61 = arith.constant 0 : index
    %c0_62 = arith.constant 0 : index
    %48 = vector.load %arg2[%c0_61, %c0_62] : memref<64x128xf32, #tpu.memory_space<vmem>>, vector<64x128xf32>
    %c0_63 = arith.constant 0 : index
    %c0_64 = arith.constant 0 : index
    %49 = vector.load %arg5[%c0_63, %c0_64] : memref<128x768xf32, #tpu.memory_space<vmem>>, vector<128x768xf32>
    %cst = arith.constant dense<0.000000e+00> : vector<64x768xf32>
    %50 = tpu.matmul %48, %49, %cst {dimension_numbers = #tpu.dot_dimension_numbers<[1], [0], [0], [1], [0, 0, 1, 1], [], []>} : vector<64x128xf32>, vector<128x768xf32>, vector<64x768xf32> -> vector<64x768xf32>
    %51 = vector.extract_strided_slice %50 {offsets = [0, 0], sizes = [16, 768], strides = [1, 1]} : vector<64x768xf32> to vector<16x768xf32>
    %52 = vector.extract_strided_slice %50 {offsets = [16, 0], sizes = [16, 768], strides = [1, 1]} : vector<64x768xf32> to vector<16x768xf32>
    %53 = arith.maximumf %51, %52 : vector<16x768xf32>
    %54 = vector.extract_strided_slice %50 {offsets = [32, 0], sizes = [16, 768], strides = [1, 1]} : vector<64x768xf32> to vector<16x768xf32>
    %55 = vector.extract_strided_slice %50 {offsets = [48, 0], sizes = [16, 768], strides = [1, 1]} : vector<64x768xf32> to vector<16x768xf32>
    %56 = arith.maximumf %54, %55 : vector<16x768xf32>
    %57 = arith.maximumf %53, %56 : vector<16x768xf32>
    %c0_65 = arith.constant 0 : index
    %c0_66 = arith.constant 0 : index
    %58 = vector.load %arg3[%c0_65, %c0_66] : memref<16x1xf32, #tpu.memory_space<vmem>>, vector<16x1xf32>
    %59 = vector.broadcast %58 : vector<16x1xf32> to vector<16x768xf32>
    %60 = arith.addf %57, %59 : vector<16x768xf32>
    %cst_67 = arith.constant 0.000000e+00 : f32
    %61 = vector.broadcast %cst_67 : f32 to vector<16x768xf32>
    %62 = arith.maximumf %60, %61 : vector<16x768xf32>
    %c0_68 = arith.constant 0 : index
    %c0_69 = arith.constant 0 : index
    %c0_70 = arith.constant 0 : index
    %63 = vector.load %arg4[%c0_68, %c0_69, %c0_70] : memref<1x16x768xf32, #tpu.memory_space<vmem>>, vector<1x16x768xf32>
    %64 = vector.shape_cast %63 : vector<1x16x768xf32> to vector<16x768xf32>
    %65 = vector.shape_cast %62 : vector<16x768xf32> to vector<1x16x768xf32>
    tpu.vector_store %arg4[%c0_68, %c0_69, %c0_70], %65 {strides = array<i32>} : memref<1x16x768xf32, #tpu.memory_space<vmem>>, vector<1x16x768xf32>,
    return
  }
  func.func @transform_0(%arg0: i32) -> (i32, i32, i32) {
    %c0_i32 = arith.constant 0 : i32
    %c0_i32_0 = arith.constant 0 : i32
    %c0_i32_1 = arith.constant 0 : i32
    return %arg0, %c0_i32, %c0_i32_0 : i32, i32, i32
  }
  func.func @transform_1(%arg0: i32) -> (i32, i32) {
    %c0_i32 = arith.constant 0 : i32
    %c0_i32_0 = arith.constant 0 : i32
    %c0_i32_1 = arith.constant 0 : i32
    return %c0_i32, %c0_i32_0 : i32, i32
  }
  func.func @transform_2(%arg0: i32) -> (i32, i32) {
    %c0_i32 = arith.constant 0 : i32
    %c0_i32_0 = arith.constant 0 : i32
    %c0_i32_1 = arith.constant 0 : i32
    return %c0_i32, %c0_i32_0 : i32, i32
  }
  func.func @transform_3(%arg0: i32) -> (i32, i32, i32) {
    %c0_i32 = arith.constant 0 : i32
    %c0_i32_0 = arith.constant 0 : i32
    %c0_i32_1 = arith.constant 0 : i32
    return %arg0, %c0_i32, %c0_i32_0 : i32, i32, i32
  }
}

module attributes {stable_mosaic.version = 11 : i64} {
  func.func @fc_kernel(%arg0: i32, %arg1: memref<2x10000xf32, #tpu.memory_space<vmem>>, %arg2: memref<10000x128xf32, #tpu.memory_space<vmem>>, %arg3: memref<1x128xf32, #tpu.memory_space<vmem>>, %arg4: memref<128x10xf32, #tpu.memory_space<vmem>>, %arg5: memref<1x10xf32, #tpu.memory_space<vmem>>, %arg6: memref<2x10xf32, #tpu.memory_space<vmem>>) attributes {dimension_semantics = [#tpu.dimension_semantics<arbitrary>], iteration_bounds = array<i64: 1>, scalar_prefetch = 0 : i64, scratch_operands = 0 : i64, tpu.core_type = #tpu.core_type<tc>, window_params = [{pipeline_mode = #tpu.pipeline_mode<synchronous>, transform_indices = @transform_0, window_bounds = array<i64: 2, 10000>}, {pipeline_mode = #tpu.pipeline_mode<synchronous>, transform_indices = @transform_1, window_bounds = array<i64: 10000, 128>}, {pipeline_mode = #tpu.pipeline_mode<synchronous>, transform_indices = @transform_2, window_bounds = array<i64: 1, 128>}, {pipeline_mode = #tpu.pipeline_mode<synchronous>, transform_indices = @transform_3, window_bounds = array<i64: 128, 10>}, {pipeline_mode = #tpu.pipeline_mode<synchronous>, transform_indices = @transform_4, window_bounds = array<i64: 1, 10>}, {pipeline_mode = #tpu.pipeline_mode<synchronous>, transform_indices = @transform_5, window_bounds = array<i64: 2, 10>}]} {
    %c0 = arith.constant 0 : index
    %c0_0 = arith.constant 0 : index
    %0 = vector.load %arg1[%c0, %c0_0] : memref<2x10000xf32, #tpu.memory_space<vmem>>, vector<2x10000xf32>
    %c0_1 = arith.constant 0 : index
    %c0_2 = arith.constant 0 : index
    %1 = vector.load %arg2[%c0_1, %c0_2] : memref<10000x128xf32, #tpu.memory_space<vmem>>, vector<10000x128xf32>
    %cst = arith.constant dense<0.000000e+00> : vector<2x128xf32>
    %2 = tpu.matmul %0, %1, %cst {dimension_numbers = #tpu.dot_dimension_numbers<[1], [0], [0], [1], [0, 0, 1, 1], [], []>} : vector<2x10000xf32>, vector<10000x128xf32>, vector<2x128xf32> -> vector<2x128xf32>
    %c0_3 = arith.constant 0 : index
    %c0_4 = arith.constant 0 : index
    %3 = vector.load %arg3[%c0_3, %c0_4] : memref<1x128xf32, #tpu.memory_space<vmem>>, vector<1x128xf32>
    %4 = vector.broadcast %3 : vector<1x128xf32> to vector<2x128xf32>
    %5 = arith.addf %2, %4 : vector<2x128xf32>
    %cst_5 = arith.constant 0.000000e+00 : f32
    %6 = vector.broadcast %cst_5 : f32 to vector<2x128xf32>
    %7 = arith.maximumf %5, %6 : vector<2x128xf32>
    %c0_6 = arith.constant 0 : index
    %c0_7 = arith.constant 0 : index
    %8 = vector.load %arg4[%c0_6, %c0_7] : memref<128x10xf32, #tpu.memory_space<vmem>>, vector<128x10xf32>
    %cst_8 = arith.constant dense<0.000000e+00> : vector<2x10xf32>
    %9 = tpu.matmul %7, %8, %cst_8 {dimension_numbers = #tpu.dot_dimension_numbers<[1], [0], [0], [1], [0, 0, 1, 1], [], []>} : vector<2x128xf32>, vector<128x10xf32>, vector<2x10xf32> -> vector<2x10xf32>
    %c0_9 = arith.constant 0 : index
    %c0_10 = arith.constant 0 : index
    %10 = vector.load %arg5[%c0_9, %c0_10] : memref<1x10xf32, #tpu.memory_space<vmem>>, vector<1x10xf32>
    %11 = vector.broadcast %10 : vector<1x10xf32> to vector<2x10xf32>
    %12 = arith.addf %9, %11 : vector<2x10xf32>
    %c0_11 = arith.constant 0 : index
    %c0_12 = arith.constant 0 : index
    %13 = vector.load %arg6[%c0_11, %c0_12] : memref<2x10xf32, #tpu.memory_space<vmem>>, vector<2x10xf32>
    tpu.vector_store %arg6[%c0_11, %c0_12], %12 {strides = array<i32>} : memref<2x10xf32, #tpu.memory_space<vmem>>, vector<2x10xf32>,
    return
  }
  func.func @transform_0(%arg0: i32) -> (i32, i32) {
    %c0_i32 = arith.constant 0 : i32
    %c0_i32_0 = arith.constant 0 : i32
    %c0_i32_1 = arith.constant 0 : i32
    return %c0_i32, %c0_i32_0 : i32, i32
  }
  func.func @transform_1(%arg0: i32) -> (i32, i32) {
    %c0_i32 = arith.constant 0 : i32
    %c0_i32_0 = arith.constant 0 : i32
    %c0_i32_1 = arith.constant 0 : i32
    return %c0_i32, %c0_i32_0 : i32, i32
  }
  func.func @transform_2(%arg0: i32) -> (i32, i32) {
    %c0_i32 = arith.constant 0 : i32
    %c0_i32_0 = arith.constant 0 : i32
    %c0_i32_1 = arith.constant 0 : i32
    return %c0_i32, %c0_i32_0 : i32, i32
  }
  func.func @transform_3(%arg0: i32) -> (i32, i32) {
    %c0_i32 = arith.constant 0 : i32
    %c0_i32_0 = arith.constant 0 : i32
    %c0_i32_1 = arith.constant 0 : i32
    return %c0_i32, %c0_i32_0 : i32, i32
  }
  func.func @transform_4(%arg0: i32) -> (i32, i32) {
    %c0_i32 = arith.constant 0 : i32
    %c0_i32_0 = arith.constant 0 : i32
    %c0_i32_1 = arith.constant 0 : i32
    return %c0_i32, %c0_i32_0 : i32, i32
  }
  func.func @transform_5(%arg0: i32) -> (i32, i32) {
    %c0_i32 = arith.constant 0 : i32
    %c0_i32_0 = arith.constant 0 : i32
    %c0_i32_1 = arith.constant 0 : i32
    return %c0_i32, %c0_i32_0 : i32, i32
  }
}

</mosaic_0001>

<llo_original>
// kernel: _lambda_.3
$region0: #{_lambda_.3}
  #allocation0 [shape = 'u32[]', space=smem, size = 0x4, offset = 0x4, fixed_abs, tag = 'smem constant byte address 0x4 - core index']
  #allocation1 [shape = 'u32[144,128]{1,0:T(1,128)}', space=vmem, size = 0x12000, scoped, tag = 'internal scratch']
  #allocation2 [shape = 'f32[128,2560]{1,0:T(8,128)}', space=vmem, size = 0x140000, scoped, tag = 'scratch operand']
  %s0 = inlined_call_operand.vmem [shape: f32[2,32,2688], index: 0, kind: input, shape index: {}]
  %s1 = inlined_call_operand.vmem [shape: f32[32,128], index: 1, kind: input, shape index: {}]
  %s2 = inlined_call_operand.vmem [shape: f32[8,1], index: 2, kind: input, shape index: {}]
  %s3 = inlined_call_operand.vmem [shape: f32[2,8,2560], index: 3, kind: output, shape index: {}]
  %s4 = sld [smem:[#allocation0]]
  $region45: #{_lambda_.3} parent=0
    _
  %s6 = ssub.s32 1, %s4
  %s7 = scalar_select 0, %s6, %s4
  loop: start=0, step=1, limit=4
  $region2: #{_lambda_.3} parent=0 // loop_pre_header
    _
  $region3: #{_lambda_.3} parent=0 // loop_header
    %s9 = sphi 0, %s13
    %p10 = scmp.ge.s32.totalorder %s9, 4
    %s19 = sphi 0, %s21
    %s22 = sphi 0, %s19
    %s23 = sphi 0, %s22
    %s39 = sphi 0, %s23
    %s43 = sphi 0, %s43
    %s45 = sphi 0, %s43
    %s46 = sphi 0, %s45
    %s60 = sphi 0, %s46
    %s64 = sphi 0, %s64
    %s66 = sphi 0, %s64
    %s67 = sphi 0, %s66
    %s81 = sphi 0, %s67
    %s87 = sphi 0, %s89
    %s90 = sphi 0, %s87
    %s91 = sphi 0, %s90
    %s107 = sphi 0, %s91
  $region4: #{_lambda_.3} parent=0 // loop_header_branch
    %12 = sbr.rel (%p10) target = $region8
  $region5: #{_lambda_.3} parent=0 // loop_body
    %s14 = ssub.s32 %s9, 1
    %s15 = ssub.s32 %s9, 2
    %s16 = sadd.s32 %s9, 1
    %s17 = ssub.s32 %s9, %s16
    %p18 = scmp.eq.s32.totalorder %s17, 0
    %s20 = sadd.s32 %s19, 1
    %s21 = scalar_select %p18, %s19, %s20
    %p24 = pneg %p18
    %p25 = scmp.eq.s32.totalorder %s9, 1
    %p26 = por %p24, %p25
    %p27 = scmp.ne.s32.totalorder %s19, %s22
    %p28 = scmp.eq.s32.totalorder %s9, 0
    %p29 = por %p27, %p28
    %p30 = scmp.ne.s32.totalorder %s19, %s22
    %p31 = scmp.eq.s32.totalorder %s14, 1
    %p32 = por %p30, %p31
    %p33 = scmp.ne.s32.totalorder %s22, %s23
    %p34 = scmp.eq.s32.totalorder %s14, 0
    %p35 = por %p33, %p34
    %p36 = scmp.ne.s32.totalorder %s22, %s23
    %p37 = scmp.eq.s32.totalorder %s15, 1
    %p38 = por %p36, %p37
    %p40 = scmp.ne.s32.totalorder %s23, %s39
    %p41 = scmp.eq.s32.totalorder %s15, 0
    %p42 = por %p40, %p41
    %s44 = sadd.s32 %s43, 1
    %p47 = scmp.eq.s32.totalorder %s9, 1
    %p48 = scmp.ne.s32.totalorder %s43, %s45
    %p49 = scmp.eq.s32.totalorder %s9, 0
    %p50 = por %p48, %p49
    %p51 = scmp.ne.s32.totalorder %s43, %s45
    %p52 = scmp.eq.s32.totalorder %s14, 1
    %p53 = por %p51, %p52
    %p54 = scmp.ne.s32.totalorder %s45, %s46
    %p55 = scmp.eq.s32.totalorder %s14, 0
    %p56 = por %p54, %p55
    %p57 = scmp.ne.s32.totalorder %s45, %s46
    %p58 = scmp.eq.s32.totalorder %s15, 1
    %p59 = por %p57, %p58
    %p61 = scmp.ne.s32.totalorder %s46, %s60
    %p62 = scmp.eq.s32.totalorder %s15, 0
    %p63 = por %p61, %p62
    %s65 = sadd.s32 %s64, 1
    %p68 = scmp.eq.s32.totalorder %s9, 1
    %p69 = scmp.ne.s32.totalorder %s64, %s66
    %p70 = scmp.eq.s32.totalorder %s9, 0
    %p71 = por %p69, %p70
    %p72 = scmp.ne.s32.totalorder %s64, %s66
    %p73 = scmp.eq.s32.totalorder %s14, 1
    %p74 = por %p72, %p73
    %p75 = scmp.ne.s32.totalorder %s66, %s67
    %p76 = scmp.eq.s32.totalorder %s14, 0
    %p77 = por %p75, %p76
    %p78 = scmp.ne.s32.totalorder %s66, %s67
    %p79 = scmp.eq.s32.totalorder %s15, 1
    %p80 = por %p78, %p79
    %p82 = scmp.ne.s32.totalorder %s67, %s81
    %p83 = scmp.eq.s32.totalorder %s15, 0
    %p84 = por %p82, %p83
    %s85 = ssub.s32 %s9, %s16
    %p86 = scmp.eq.s32.totalorder %s85, 0
    %s88 = sadd.s32 %s87, 1
    %s89 = scalar_select %p86, %s87, %s88
    %p92 = pneg %p86
    %p93 = scmp.eq.s32.totalorder %s9, 1
    %p94 = por %p92, %p93
    %p95 = scmp.ne.s32.totalorder %s87, %s90
    %p96 = scmp.eq.s32.totalorder %s9, 0
    %p97 = por %p95, %p96
    %p98 = scmp.ne.s32.totalorder %s87, %s90
    %p99 = scmp.eq.s32.totalorder %s14, 1
    %p100 = por %p98, %p99
    %p101 = scmp.ne.s32.totalorder %s90, %s91
    %p102 = scmp.eq.s32.totalorder %s14, 0
    %p103 = por %p101, %p102
    %p104 = scmp.ne.s32.totalorder %s90, %s91
    %p105 = scmp.eq.s32.totalorder %s15, 1
    %p106 = por %p104, %p105
    %p108 = scmp.ne.s32.totalorder %s91, %s107
    %p109 = scmp.eq.s32.totalorder %s15, 0
    %p110 = por %p108, %p109
    %p111 = scmp.le.s32.totalorder 1, %s9
    %p112 = scmp.lt.s32.totalorder %s9, 3
    %p113 = pnand %p111, %p112
    %p114 = pneg %p113
    // Predicated region
    $region9: #{_lambda_.3} parent=5 // pred_check
      _
    $region10: #{_lambda_.3} parent=5 // pred_check_branch
      %116 = sbr.rel (%p113) target = $region12
    $region11: #{_lambda_.3} parent=5 // pred_region
      %s117 = ssub.s32 %s9, 1
      // Predicated region
      $region13: #{_lambda_.3} parent=11 // pred_check
        %p118 = pneg %p56
      $region14: #{_lambda_.3} parent=11 // pred_check_branch
        %120 = sbr.rel (%p118) target = $region16
      $region15: #{_lambda_.3} parent=11 // pred_region
        _
      $region16: #{_lambda_.3} parent=11 // pred_fallthru
        _
      // Predicated region
      $region17: #{_lambda_.3} parent=11 // pred_check
        %p121 = pneg %p77
      $region18: #{_lambda_.3} parent=11 // pred_check_branch
        %123 = sbr.rel (%p121) target = $region20
      $region19: #{_lambda_.3} parent=11 // pred_region
        _
      $region20: #{_lambda_.3} parent=11 // pred_fallthru
        _
    $region12: #{_lambda_.3} parent=5 // pred_fallthru
      _
    %p124 = scmp.lt.s32.totalorder %s9, 2
    // Predicated region
    $region21: #{_lambda_.3} parent=5 // pred_check
      %p125 = pneg %p124
    $region22: #{_lambda_.3} parent=5 // pred_check_branch
      %127 = sbr.rel (%p125) target = $region24
    $region23: #{_lambda_.3} parent=5 // pred_region
      // Predicated region
      $region25: #{_lambda_.3} parent=23 // pred_check
        %p128 = pneg %p29
      $region26: #{_lambda_.3} parent=23 // pred_check_branch
        %130 = sbr.rel (%p128) target = $region28
      $region27: #{_lambda_.3} parent=23 // pred_region
        %p131 = scmp.lt.s32.totalorder %s9, 1
        %s132 = scalar_select %p131, %s9, 1
        %s133 = smul.addr %s132, 84
        %s134 = smul.addr %s133, 8
        %s135 = scalar_lea.vmem %s0, %s134
      $region28: #{_lambda_.3} parent=23 // pred_fallthru
        _
    $region24: #{_lambda_.3} parent=5 // pred_fallthru
      _
    %p136 = scmp.le.s32.totalorder 1, %s9
    %p137 = scmp.lt.s32.totalorder %s9, 3
    %p138 = pnand %p136, %p137
    %p139 = pneg %p138
    // Predicated region
    $region29: #{_lambda_.3} parent=5 // pred_check
      _
    $region30: #{_lambda_.3} parent=5 // pred_check_branch
      %141 = sbr.rel (%p138) target = $region32
    $region31: #{_lambda_.3} parent=5 // pred_region
      %s142 = ssub.s32 %s9, 1
      %p143 = scmp.lt.s32.totalorder %s14, 1
      %s144 = scalar_select %p143, %s14, 1
      %s145 = smul.addr %s144, 84
      %s146 = smul.addr %s145, 8
      %s147 = scalar_lea.vmem %s0, %s146
      %p148 = pneg %p35
      %p149 = pneg %p32
      %p150 = pneg %p56
      %p151 = pneg %p53
      %p152 = pneg %p77
      %p153 = pneg %p74
      %p154 = pneg %p103
      %p155 = pneg %p100
      %p156 = scmp.lt.s32.totalorder %s14, 1
      %s157 = scalar_select %p156, %s14, 1
      %s158 = smul.addr %s157, 20
      %s159 = smul.addr %s158, 8
      %s160 = scalar_lea.vmem %s3, %s159
      %p161 = scmp.lt.s32.totalorder %s14, 1
      %s162 = scalar_select %p161, %s14, 1
      %s163 = smul.addr %s162, 84
      %s164 = smul.addr %s163, 8
      %s165 = scalar_lea.vmem %s0, %s164
      %p166 = scmp.lt.s32.totalorder %s14, 1
      %s167 = scalar_select %p166, %s14, 1
      %s168 = smul.addr %s167, 20
      %s169 = smul.addr %s168, 8
      %s170 = scalar_lea.vmem %s3, %s169
      %v171 = vld [vmem:[%s165] sm:$0xff]
      %v172 = vld [vmem:[%s165 + $0x8] sm:$0xff]
      %v173 = vld [vmem:[%s165 + $0x10] sm:$0xff]
      %v174 = vld [vmem:[%s165 + $0x18] sm:$0xff]
      %v175 = vld [vmem:[%s165 + $0x20] sm:$0xff]
      %v176 = vld [vmem:[%s165 + $0x28] sm:$0xff]
      %v177 = vld [vmem:[%s165 + $0x30] sm:$0xff]
      %v178 = vld [vmem:[%s165 + $0x38] sm:$0xff]
      %v179 = vld [vmem:[%s165 + $0x40] sm:$0xff]
      %v180 = vld [vmem:[%s165 + $0x48] sm:$0xff]
      %v181 = vld [vmem:[%s165 + $0x50] sm:$0xff]
      %v182 = vld [vmem:[%s165 + $0x58] sm:$0xff]
      %v183 = vld [vmem:[%s165 + $0x60] sm:$0xff]
      %v184 = vld [vmem:[%s165 + $0x68] sm:$0xff]
      %v185 = vld [vmem:[%s165 + $0x70] sm:$0xff]
      %v186 = vld [vmem:[%s165 + $0x78] sm:$0xff]
      %v187 = vld [vmem:[%s165 + $0x80] sm:$0xff]
      %v188 = vld [vmem:[%s165 + $0x88] sm:$0xff]
      %v189 = vld [vmem:[%s165 + $0x90] sm:$0xff]
      %v190 = vld [vmem:[%s165 + $0x98] sm:$0xff]
      %191 = vst [vmem:[#allocation2] sm:$0xff] %v171
      %192 = vst [vmem:[#allocation2 + $0x8] sm:$0xff] %v172
      %193 = vst [vmem:[#allocation2 + $0x10] sm:$0xff] %v173
      %194 = vst [vmem:[#allocation2 + $0x18] sm:$0xff] %v174
      %195 = vst [vmem:[#allocation2 + $0x20] sm:$0xff] %v175
      %196 = vst [vmem:[#allocation2 + $0x28] sm:$0xff] %v176
      %197 = vst [vmem:[#allocation2 + $0x30] sm:$0xff] %v177
      %198 = vst [vmem:[#allocation2 + $0x38] sm:$0xff] %v178
      %199 = vst [vmem:[#allocation2 + $0x40] sm:$0xff] %v179
      %200 = vst [vmem:[#allocation2 + $0x48] sm:$0xff] %v180
      %201 = vst [vmem:[#allocation2 + $0x50] sm:$0xff] %v181
      %202 = vst [vmem:[#allocation2 + $0x58] sm:$0xff] %v182
      %203 = vst [vmem:[#allocation2 + $0x60] sm:$0xff] %v183
      %204 = vst [vmem:[#allocation2 + $0x68] sm:$0xff] %v184
      %205 = vst [vmem:[#allocation2 + $0x70] sm:$0xff] %v185
      %206 = vst [vmem:[#allocation2 + $0x78] sm:$0xff] %v186
      %207 = vst [vmem:[#allocation2 + $0x80] sm:$0xff] %v187
      %208 = vst [vmem:[#allocation2 + $0x88] sm:$0xff] %v188
      %209 = vst [vmem:[#allocation2 + $0x90] sm:$0xff] %v189
      %210 = vst [vmem:[#allocation2 + $0x98] sm:$0xff] %v190
      %v211 = vld [vmem:[%s165] sm:$0xff]
      %v212 = vld [vmem:[%s165 + $0x8] sm:$0xff]
      %v213 = vld [vmem:[%s165 + $0x10] sm:$0xff]
      %v214 = vld [vmem:[%s165 + $0x18] sm:$0xff]
      %v215 = vld [vmem:[%s165 + $0x20] sm:$0xff]
      %v216 = vld [vmem:[%s165 + $0x28] sm:$0xff]
      %v217 = vld [vmem:[%s165 + $0x30] sm:$0xff]
      %v218 = vld [vmem:[%s165 + $0x38] sm:$0xff]
      %v219 = vld [vmem:[%s165 + $0x40] sm:$0xff]
      %v220 = vld [vmem:[%s165 + $0x48] sm:$0xff]
      %v221 = vld [vmem:[%s165 + $0x50] sm:$0xff]
      %v222 = vld [vmem:[%s165 + $0x58] sm:$0xff]
      %v223 = vld [vmem:[%s165 + $0x60] sm:$0xff]
      %v224 = vld [vmem:[%s165 + $0x68] sm:$0xff]
      %v225 = vld [vmem:[%s165 + $0x70] sm:$0xff]
      %v226 = vld [vmem:[%s165 + $0x78] sm:$0xff]
      %v227 = vld [vmem:[%s165 + $0x80] sm:$0xff]
      %v228 = vld [vmem:[%s165 + $0x88] sm:$0xff]
      %v229 = vld [vmem:[%s165 + $0x90] sm:$0xff]
      %v230 = vld [vmem:[%s165 + $0x98] sm:$0xff]
      %v231 = vld [vmem:[%s165 + $0xa0] sm:$0xff]
      %253 = vrot.lane.b32.xlu0 %v211, 127
      %v254 = vpop.permute.xlu0 %253
      %255 = vrot.lane.b32.xlu0 %v212, 127
      %v256 = vpop.permute.xlu0 %255
      %257 = vrot.lane.b32.xlu0 %v213, 127
      %v258 = vpop.permute.xlu0 %257
      %259 = vrot.lane.b32.xlu0 %v214, 127
      %v260 = vpop.permute.xlu0 %259
      %261 = vrot.lane.b32.xlu0 %v215, 127
      %v262 = vpop.permute.xlu0 %261
      %263 = vrot.lane.b32.xlu0 %v216, 127
      %v264 = vpop.permute.xlu0 %263
      %265 = vrot.lane.b32.xlu0 %v217, 127
      %v266 = vpop.permute.xlu0 %265
      %267 = vrot.lane.b32.xlu0 %v218, 127
      %v268 = vpop.permute.xlu0 %267
      %269 = vrot.lane.b32.xlu0 %v219, 127
      %v270 = vpop.permute.xlu0 %269
      %271 = vrot.lane.b32.xlu0 %v220, 127
      %v272 = vpop.permute.xlu0 %271
      %273 = vrot.lane.b32.xlu0 %v221, 127
      %v274 = vpop.permute.xlu0 %273
      %275 = vrot.lane.b32.xlu0 %v222, 127
      %v276 = vpop.permute.xlu0 %275
      %277 = vrot.lane.b32.xlu0 %v223, 127
      %v278 = vpop.permute.xlu0 %277
      %279 = vrot.lane.b32.xlu0 %v224, 127
      %v280 = vpop.permute.xlu0 %279
      %281 = vrot.lane.b32.xlu0 %v225, 127
      %v282 = vpop.permute.xlu0 %281
      %283 = vrot.lane.b32.xlu0 %v226, 127
      %v284 = vpop.permute.xlu0 %283
      %285 = vrot.lane.b32.xlu0 %v227, 127
      %v286 = vpop.permute.xlu0 %285
      %287 = vrot.lane.b32.xlu0 %v228, 127
      %v288 = vpop.permute.xlu0 %287
      %289 = vrot.lane.b32.xlu0 %v229, 127
      %v290 = vpop.permute.xlu0 %289
      %291 = vrot.lane.b32.xlu0 %v230, 127
      %v292 = vpop.permute.xlu0 %291
      %293 = vrot.lane.b32.xlu0 %v231, 127
      %v294 = vpop.permute.xlu0 %293
      %vm295 = vcmask 1039360
      %v296 = vsel %vm295, %v254, %v256
      %v297 = vsel %vm295, %v256, %v258
      %v298 = vsel %vm295, %v258, %v260
      %v299 = vsel %vm295, %v260, %v262
      %v300 = vsel %vm295, %v262, %v264
      %v301 = vsel %vm295, %v264, %v266
      %v302 = vsel %vm295, %v266, %v268
      %v303 = vsel %vm295, %v268, %v270
      %v304 = vsel %vm295, %v270, %v272
      %v305 = vsel %vm295, %v272, %v274
      %v306 = vsel %vm295, %v274, %v276
      %v307 = vsel %vm295, %v276, %v278
      %v308 = vsel %vm295, %v278, %v280
      %v309 = vsel %vm295, %v280, %v282
      %v310 = vsel %vm295, %v282, %v284
      %v311 = vsel %vm295, %v284, %v286
      %v312 = vsel %vm295, %v286, %v288
      %v313 = vsel %vm295, %v288, %v290
      %v314 = vsel %vm295, %v290, %v292
      %v315 = vsel %vm295, %v292, %v294
      %336 = vst [vmem:[#allocation2 + $0xa0] sm:$0xff] %v296
      %337 = vst [vmem:[#allocation2 + $0xa8] sm:$0xff] %v297
      %338 = vst [vmem:[#allocation2 + $0xb0] sm:$0xff] %v298
      %339 = vst [vmem:[#allocation2 + $0xb8] sm:$0xff] %v299
      %340 = vst [vmem:[#allocation2 + $0xc0] sm:$0xff] %v300
      %341 = vst [vmem:[#allocation2 + $0xc8] sm:$0xff] %v301
      %342 = vst [vmem:[#allocation2 + $0xd0] sm:$0xff] %v302
      %343 = vst [vmem:[#allocation2 + $0xd8] sm:$0xff] %v303
      %344 = vst [vmem:[#allocation2 + $0xe0] sm:$0xff] %v304
      %345 = vst [vmem:[#allocation2 + $0xe8] sm:$0xff] %v305
      %346 = vst [vmem:[#allocation2 + $0xf0] sm:$0xff] %v306
      %347 = vst [vmem:[#allocation2 + $0xf8] sm:$0xff] %v307
      %348 = vst [vmem:[#allocation2 + $0x100] sm:$0xff] %v308
      %349 = vst [vmem:[#allocation2 + $0x108] sm:$0xff] %v309
      %350 = vst [vmem:[#allocation2 + $0x110] sm:$0xff] %v310
      %351 = vst [vmem:[#allocation2 + $0x118] sm:$0xff] %v311
      %352 = vst [vmem:[#allocation2 + $0x120] sm:$0xff] %v312
      %353 = vst [vmem:[#allocation2 + $0x128] sm:$0xff] %v313
      %354 = vst [vmem:[#allocation2 + $0x130] sm:$0xff] %v314
      %355 = vst [vmem:[#allocation2 + $0x138] sm:$0xff] %v315
      %v356 = vld [vmem:[%s165] sm:$0xff]
      %v357 = vld [vmem:[%s165 + $0x8] sm:$0xff]
      %v358 = vld [vmem:[%s165 + $0x10] sm:$0xff]
      %v359 = vld [vmem:[%s165 + $0x18] sm:$0xff]
      %v360 = vld [vmem:[%s165 + $0x20] sm:$0xff]
      %v361 = vld [vmem:[%s165 + $0x28] sm:$0xff]
      %v362 = vld [vmem:[%s165 + $0x30] sm:$0xff]
      %v363 = vld [vmem:[%s165 + $0x38] sm:$0xff]
      %v364 = vld [vmem:[%s165 + $0x40] sm:$0xff]
      %v365 = vld [vmem:[%s165 + $0x48] sm:$0xff]
      %v366 = vld [vmem:[%s165 + $0x50] sm:$0xff]
      %v367 = vld [vmem:[%s165 + $0x58] sm:$0xff]
      %v368 = vld [vmem:[%s165 + $0x60] sm:$0xff]
      %v369 = vld [vmem:[%s165 + $0x68] sm:$0xff]
      %v370 = vld [vmem:[%s165 + $0x70] sm:$0xff]
      %v371 = vld [vmem:[%s165 + $0x78] sm:$0xff]
      %v372 = vld [vmem:[%s165 + $0x80] sm:$0xff]
      %v373 = vld [vmem:[%s165 + $0x88] sm:$0xff]
      %v374 = vld [vmem:[%s165 + $0x90] sm:$0xff]
      %v375 = vld [vmem:[%s165 + $0x98] sm:$0xff]
      %v376 = vld [vmem:[%s165 + $0xa0] sm:$0xff]
      %398 = vrot.lane.b32.xlu0 %v356, 77
      %v399 = vpop.permute.xlu0 %398
      %400 = vrot.lane.b32.xlu0 %v357, 77
      %v401 = vpop.permute.xlu0 %400
      %402 = vrot.lane.b32.xlu0 %v358, 77
      %v403 = vpop.permute.xlu0 %402
      %404 = vrot.lane.b32.xlu0 %v359, 77
      %v405 = vpop.permute.xlu0 %404
      %406 = vrot.lane.b32.xlu0 %v360, 77
      %v407 = vpop.permute.xlu0 %406
      %408 = vrot.lane.b32.xlu0 %v361, 77
      %v409 = vpop.permute.xlu0 %408
      %410 = vrot.lane.b32.xlu0 %v362, 77
      %v411 = vpop.permute.xlu0 %410
      %412 = vrot.lane.b32.xlu0 %v363, 77
      %v413 = vpop.permute.xlu0 %412
      %414 = vrot.lane.b32.xlu0 %v364, 77
      %v415 = vpop.permute.xlu0 %414
      %416 = vrot.lane.b32.xlu0 %v365, 77
      %v417 = vpop.permute.xlu0 %416
      %418 = vrot.lane.b32.xlu0 %v366, 77
      %v419 = vpop.permute.xlu0 %418
      %420 = vrot.lane.b32.xlu0 %v367, 77
      %v421 = vpop.permute.xlu0 %420
      %422 = vrot.lane.b32.xlu0 %v368, 77
      %v423 = vpop.permute.xlu0 %422
      %424 = vrot.lane.b32.xlu0 %v369, 77
      %v425 = vpop.permute.xlu0 %424
      %426 = vrot.lane.b32.xlu0 %v370, 77
      %v427 = vpop.permute.xlu0 %426
      %428 = vrot.lane.b32.xlu0 %v371, 77
      %v429 = vpop.permute.xlu0 %428
      %430 = vrot.lane.b32.xlu0 %v372, 77
      %v431 = vpop.permute.xlu0 %430
      %432 = vrot.lane.b32.xlu0 %v373, 77
      %v433 = vpop.permute.xlu0 %432
      %434 = vrot.lane.b32.xlu0 %v374, 77
      %v435 = vpop.permute.xlu0 %434
      %436 = vrot.lane.b32.xlu0 %v375, 77
      %v437 = vpop.permute.xlu0 %436
      %438 = vrot.lane.b32.xlu0 %v376, 77
      %v439 = vpop.permute.xlu0 %438
      %vm440 = vcmask 629760
      %v441 = vsel %vm440, %v399, %v401
      %v442 = vsel %vm440, %v401, %v403
      %v443 = vsel %vm440, %v403, %v405
      %v444 = vsel %vm440, %v405, %v407
      %v445 = vsel %vm440, %v407, %v409
      %v446 = vsel %vm440, %v409, %v411
      %v447 = vsel %vm440, %v411, %v413
      %v448 = vsel %vm440, %v413, %v415
      %v449 = vsel %vm440, %v415, %v417
      %v450 = vsel %vm440, %v417, %v419
      %v451 = vsel %vm440, %v419, %v421
      %v452 = vsel %vm440, %v421, %v423
      %v453 = vsel %vm440, %v423, %v425
      %v454 = vsel %vm440, %v425, %v427
      %v455 = vsel %vm440, %v427, %v429
      %v456 = vsel %vm440, %v429, %v431
      %v457 = vsel %vm440, %v431, %v433
      %v458 = vsel %vm440, %v433, %v435
      %v459 = vsel %vm440, %v435, %v437
      %v460 = vsel %vm440, %v437, %v439
      %481 = vst [vmem:[#allocation2 + $0x140] sm:$0xff] %v441
      %482 = vst [vmem:[#allocation2 + $0x148] sm:$0xff] %v442
      %483 = vst [vmem:[#allocation2 + $0x150] sm:$0xff] %v443
      %484 = vst [vmem:[#allocation2 + $0x158] sm:$0xff] %v444
      %485 = vst [vmem:[#allocation2 + $0x160] sm:$0xff] %v445
      %486 = vst [vmem:[#allocation2 + $0x168] sm:$0xff] %v446
      %487 = vst [vmem:[#allocation2 + $0x170] sm:$0xff] %v447
      %488 = vst [vmem:[#allocation2 + $0x178] sm:$0xff] %v448
      %489 = vst [vmem:[#allocation2 + $0x180] sm:$0xff] %v449
      %490 = vst [vmem:[#allocation2 + $0x188] sm:$0xff] %v450
      %491 = vst [vmem:[#allocation2 + $0x190] sm:$0xff] %v451
      %492 = vst [vmem:[#allocation2 + $0x198] sm:$0xff] %v452
      %493 = vst [vmem:[#allocation2 + $0x1a0] sm:$0xff] %v453
      %494 = vst [vmem:[#allocation2 + $0x1a8] sm:$0xff] %v454
      %495 = vst [vmem:[#allocation2 + $0x1b0] sm:$0xff] %v455
      %496 = vst [vmem:[#allocation2 + $0x1b8] sm:$0xff] %v456
      %497 = vst [vmem:[#allocation2 + $0x1c0] sm:$0xff] %v457
      %498 = vst [vmem:[#allocation2 + $0x1c8] sm:$0xff] %v458
      %499 = vst [vmem:[#allocation2 + $0x1d0] sm:$0xff] %v459
      %500 = vst [vmem:[#allocation2 + $0x1d8] sm:$0xff] %v460
      %v501 = vld [vmem:[%s165] sm:$0xff]
      %v502 = vld [vmem:[%s165 + $0x8] sm:$0xff]
      %v503 = vld [vmem:[%s165 + $0x10] sm:$0xff]
      %v504 = vld [vmem:[%s165 + $0x18] sm:$0xff]
      %v505 = vld [vmem:[%s165 + $0x20] sm:$0xff]
      %v506 = vld [vmem:[%s165 + $0x28] sm:$0xff]
      %v507 = vld [vmem:[%s165 + $0x30] sm:$0xff]
      %v508 = vld [vmem:[%s165 + $0x38] sm:$0xff]
      %v509 = vld [vmem:[%s165 + $0x40] sm:$0xff]
      %v510 = vld [vmem:[%s165 + $0x48] sm:$0xff]
      %v511 = vld [vmem:[%s165 + $0x50] sm:$0xff]
      %v512 = vld [vmem:[%s165 + $0x58] sm:$0xff]
      %v513 = vld [vmem:[%s165 + $0x60] sm:$0xff]
      %v514 = vld [vmem:[%s165 + $0x68] sm:$0xff]
      %v515 = vld [vmem:[%s165 + $0x70] sm:$0xff]
      %v516 = vld [vmem:[%s165 + $0x78] sm:$0xff]
      %v517 = vld [vmem:[%s165 + $0x80] sm:$0xff]
      %v518 = vld [vmem:[%s165 + $0x88] sm:$0xff]
      %v519 = vld [vmem:[%s165 + $0x90] sm:$0xff]
      %v520 = vld [vmem:[%s165 + $0x98] sm:$0xff]
      %v521 = vld [vmem:[%s165 + $0xa0] sm:$0xff]
      %543 = vrot.lane.b32.xlu0 %v501, 76
      %v544 = vpop.permute.xlu0 %543
      %545 = vrot.lane.b32.xlu0 %v502, 76
      %v546 = vpop.permute.xlu0 %545
      %547 = vrot.lane.b32.xlu0 %v503, 76
      %v548 = vpop.permute.xlu0 %547
      %549 = vrot.lane.b32.xlu0 %v504, 76
      %v550 = vpop.permute.xlu0 %549
      %551 = vrot.lane.b32.xlu0 %v505, 76
      %v552 = vpop.permute.xlu0 %551
      %553 = vrot.lane.b32.xlu0 %v506, 76
      %v554 = vpop.permute.xlu0 %553
      %555 = vrot.lane.b32.xlu0 %v507, 76
      %v556 = vpop.permute.xlu0 %555
      %557 = vrot.lane.b32.xlu0 %v508, 76
      %v558 = vpop.permute.xlu0 %557
      %559 = vrot.lane.b32.xlu0 %v509, 76
      %v560 = vpop.permute.xlu0 %559
      %561 = vrot.lane.b32.xlu0 %v510, 76
      %v562 = vpop.permute.xlu0 %561
      %563 = vrot.lane.b32.xlu0 %v511, 76
      %v564 = vpop.permute.xlu0 %563
      %565 = vrot.lane.b32.xlu0 %v512, 76
      %v566 = vpop.permute.xlu0 %565
      %567 = vrot.lane.b32.xlu0 %v513, 76
      %v568 = vpop.permute.xlu0 %567
      %569 = vrot.lane.b32.xlu0 %v514, 76
      %v570 = vpop.permute.xlu0 %569
      %571 = vrot.lane.b32.xlu0 %v515, 76
      %v572 = vpop.permute.xlu0 %571
      %573 = vrot.lane.b32.xlu0 %v516, 76
      %v574 = vpop.permute.xlu0 %573
      %575 = vrot.lane.b32.xlu0 %v517, 76
      %v576 = vpop.permute.xlu0 %575
      %577 = vrot.lane.b32.xlu0 %v518, 76
      %v578 = vpop.permute.xlu0 %577
      %579 = vrot.lane.b32.xlu0 %v519, 76
      %v580 = vpop.permute.xlu0 %579
      %581 = vrot.lane.b32.xlu0 %v520, 76
      %v582 = vpop.permute.xlu0 %581
      %583 = vrot.lane.b32.xlu0 %v521, 76
      %v584 = vpop.permute.xlu0 %583
      %vm585 = vcmask 621568
      %v586 = vsel %vm585, %v544, %v546
      %v587 = vsel %vm585, %v546, %v548
      %v588 = vsel %vm585, %v548, %v550
      %v589 = vsel %vm585, %v550, %v552
      %v590 = vsel %vm585, %v552, %v554
      %v591 = vsel %vm585, %v554, %v556
      %v592 = vsel %vm585, %v556, %v558
      %v593 = vsel %vm585, %v558, %v560
      %v594 = vsel %vm585, %v560, %v562
      %v595 = vsel %vm585, %v562, %v564
      %v596 = vsel %vm585, %v564, %v566
      %v597 = vsel %vm585, %v566, %v568
      %v598 = vsel %vm585, %v568, %v570
      %v599 = vsel %vm585, %v570, %v572
      %v600 = vsel %vm585, %v572, %v574
      %v601 = vsel %vm585, %v574, %v576
      %v602 = vsel %vm585, %v576, %v578
      %v603 = vsel %vm585, %v578, %v580
      %v604 = vsel %vm585, %v580, %v582
      %v605 = vsel %vm585, %v582, %v584
      %626 = vst [vmem:[#allocation2 + $0x1e0] sm:$0xff] %v586
      %627 = vst [vmem:[#allocation2 + $0x1e8] sm:$0xff] %v587
      %628 = vst [vmem:[#allocation2 + $0x1f0] sm:$0xff] %v588
      %629 = vst [vmem:[#allocation2 + $0x1f8] sm:$0xff] %v589
      %630 = vst [vmem:[#allocation2 + $0x200] sm:$0xff] %v590
      %631 = vst [vmem:[#allocation2 + $0x208] sm:$0xff] %v591
      %632 = vst [vmem:[#allocation2 + $0x210] sm:$0xff] %v592
      %633 = vst [vmem:[#allocation2 + $0x218] sm:$0xff] %v593
      %634 = vst [vmem:[#allocation2 + $0x220] sm:$0xff] %v594
      %635 = vst [vmem:[#allocation2 + $0x228] sm:$0xff] %v595
      %636 = vst [vmem:[#allocation2 + $0x230] sm:$0xff] %v596
      %637 = vst [vmem:[#allocation2 + $0x238] sm:$0xff] %v597
      %638 = vst [vmem:[#allocation2 + $0x240] sm:$0xff] %v598
      %639 = vst [vmem:[#allocation2 + $0x248] sm:$0xff] %v599
      %640 = vst [vmem:[#allocation2 + $0x250] sm:$0xff] %v600
      %641 = vst [vmem:[#allocation2 + $0x258] sm:$0xff] %v601
      %642 = vst [vmem:[#allocation2 + $0x260] sm:$0xff] %v602
      %643 = vst [vmem:[#allocation2 + $0x268] sm:$0xff] %v603
      %644 = vst [vmem:[#allocation2 + $0x270] sm:$0xff] %v604
      %645 = vst [vmem:[#allocation2 + $0x278] sm:$0xff] %v605
      %v646 = vld [vmem:[%s165 + $0xa8] sm:$0xff]
      %v647 = vld [vmem:[%s165 + $0xb0] sm:$0xff]
      %v648 = vld [vmem:[%s165 + $0xb8] sm:$0xff]
      %v649 = vld [vmem:[%s165 + $0xc0] sm:$0xff]
      %v650 = vld [vmem:[%s165 + $0xc8] sm:$0xff]
      %v651 = vld [vmem:[%s165 + $0xd0] sm:$0xff]
      %v652 = vld [vmem:[%s165 + $0xd8] sm:$0xff]
      %v653 = vld [vmem:[%s165 + $0xe0] sm:$0xff]
      %v654 = vld [vmem:[%s165 + $0xe8] sm:$0xff]
      %v655 = vld [vmem:[%s165 + $0xf0] sm:$0xff]
      %v656 = vld [vmem:[%s165 + $0xf8] sm:$0xff]
      %v657 = vld [vmem:[%s165 + $0x100] sm:$0xff]
      %v658 = vld [vmem:[%s165 + $0x108] sm:$0xff]
      %v659 = vld [vmem:[%s165 + $0x110] sm:$0xff]
      %v660 = vld [vmem:[%s165 + $0x118] sm:$0xff]
      %v661 = vld [vmem:[%s165 + $0x120] sm:$0xff]
      %v662 = vld [vmem:[%s165 + $0x128] sm:$0xff]
      %v663 = vld [vmem:[%s165 + $0x130] sm:$0xff]
      %v664 = vld [vmem:[%s165 + $0x138] sm:$0xff]
      %v665 = vld [vmem:[%s165 + $0x140] sm:$0xff]
      %666 = vst [vmem:[#allocation2 + $0x280] sm:$0xff] %v646
      %667 = vst [vmem:[#allocation2 + $0x288] sm:$0xff] %v647
      %668 = vst [vmem:[#allocation2 + $0x290] sm:$0xff] %v648
      %669 = vst [vmem:[#allocation2 + $0x298] sm:$0xff] %v649
      %670 = vst [vmem:[#allocation2 + $0x2a0] sm:$0xff] %v650
      %671 = vst [vmem:[#allocation2 + $0x2a8] sm:$0xff] %v651
      %672 = vst [vmem:[#allocation2 + $0x2b0] sm:$0xff] %v652
      %673 = vst [vmem:[#allocation2 + $0x2b8] sm:$0xff] %v653
      %674 = vst [vmem:[#allocation2 + $0x2c0] sm:$0xff] %v654
      %675 = vst [vmem:[#allocation2 + $0x2c8] sm:$0xff] %v655
      %676 = vst [vmem:[#allocation2 + $0x2d0] sm:$0xff] %v656
      %677 = vst [vmem:[#allocation2 + $0x2d8] sm:$0xff] %v657
      %678 = vst [vmem:[#allocation2 + $0x2e0] sm:$0xff] %v658
      %679 = vst [vmem:[#allocation2 + $0x2e8] sm:$0xff] %v659
      %680 = vst [vmem:[#allocation2 + $0x2f0] sm:$0xff] %v660
      %681 = vst [vmem:[#allocation2 + $0x2f8] sm:$0xff] %v661
      %682 = vst [vmem:[#allocation2 + $0x300] sm:$0xff] %v662
      %683 = vst [vmem:[#allocation2 + $0x308] sm:$0xff] %v663
      %684 = vst [vmem:[#allocation2 + $0x310] sm:$0xff] %v664
      %685 = vst [vmem:[#allocation2 + $0x318] sm:$0xff] %v665
      %v686 = vld [vmem:[%s165 + $0xa8] sm:$0xff]
      %v687 = vld [vmem:[%s165 + $0xb0] sm:$0xff]
      %v688 = vld [vmem:[%s165 + $0xb8] sm:$0xff]
      %v689 = vld [vmem:[%s165 + $0xc0] sm:$0xff]
      %v690 = vld [vmem:[%s165 + $0xc8] sm:$0xff]
      %v691 = vld [vmem:[%s165 + $0xd0] sm:$0xff]
      %v692 = vld [vmem:[%s165 + $0xd8] sm:$0xff]
      %v693 = vld [vmem:[%s165 + $0xe0] sm:$0xff]
      %v694 = vld [vmem:[%s165 + $0xe8] sm:$0xff]
      %v695 = vld [vmem:[%s165 + $0xf0] sm:$0xff]
      %v696 = vld [vmem:[%s165 + $0xf8] sm:$0xff]
      %v697 = vld [vmem:[%s165 + $0x100] sm:$0xff]
      %v698 = vld [vmem:[%s165 + $0x108] sm:$0xff]
      %v699 = vld [vmem:[%s165 + $0x110] sm:$0xff]
      %v700 = vld [vmem:[%s165 + $0x118] sm:$0xff]
      %v701 = vld [vmem:[%s165 + $0x120] sm:$0xff]
      %v702 = vld [vmem:[%s165 + $0x128] sm:$0xff]
      %v703 = vld [vmem:[%s165 + $0x130] sm:$0xff]
      %v704 = vld [vmem:[%s165 + $0x138] sm:$0xff]
      %v705 = vld [vmem:[%s165 + $0x140] sm:$0xff]
      %v706 = vld [vmem:[%s165 + $0x148] sm:$0xff]
      %728 = vrot.lane.b32.xlu0 %v686, 127
      %v729 = vpop.permute.xlu0 %728
      %730 = vrot.lane.b32.xlu0 %v687, 127
      %v731 = vpop.permute.xlu0 %730
      %732 = vrot.lane.b32.xlu0 %v688, 127
      %v733 = vpop.permute.xlu0 %732
      %734 = vrot.lane.b32.xlu0 %v689, 127
      %v735 = vpop.permute.xlu0 %734
      %736 = vrot.lane.b32.xlu0 %v690, 127
      %v737 = vpop.permute.xlu0 %736
      %738 = vrot.lane.b32.xlu0 %v691, 127
      %v739 = vpop.permute.xlu0 %738
      %740 = vrot.lane.b32.xlu0 %v692, 127
      %v741 = vpop.permute.xlu0 %740
      %742 = vrot.lane.b32.xlu0 %v693, 127
      %v743 = vpop.permute.xlu0 %742
      %744 = vrot.lane.b32.xlu0 %v694, 127
      %v745 = vpop.permute.xlu0 %744
      %746 = vrot.lane.b32.xlu0 %v695, 127
      %v747 = vpop.permute.xlu0 %746
      %748 = vrot.lane.b32.xlu0 %v696, 127
      %v749 = vpop.permute.xlu0 %748
      %750 = vrot.lane.b32.xlu0 %v697, 127
      %v751 = vpop.permute.xlu0 %750
      %752 = vrot.lane.b32.xlu0 %v698, 127
      %v753 = vpop.permute.xlu0 %752
      %754 = vrot.lane.b32.xlu0 %v699, 127
      %v755 = vpop.permute.xlu0 %754
      %756 = vrot.lane.b32.xlu0 %v700, 127
      %v757 = vpop.permute.xlu0 %756
      %758 = vrot.lane.b32.xlu0 %v701, 127
      %v759 = vpop.permute.xlu0 %758
      %760 = vrot.lane.b32.xlu0 %v702, 127
      %v761 = vpop.permute.xlu0 %760
      %762 = vrot.lane.b32.xlu0 %v703, 127
      %v763 = vpop.permute.xlu0 %762
      %764 = vrot.lane.b32.xlu0 %v704, 127
      %v765 = vpop.permute.xlu0 %764
      %766 = vrot.lane.b32.xlu0 %v705, 127
      %v767 = vpop.permute.xlu0 %766
      %768 = vrot.lane.b32.xlu0 %v706, 127
      %v769 = vpop.permute.xlu0 %768
      %v770 = vsel %vm295, %v729, %v731
      %v771 = vsel %vm295, %v731, %v733
      %v772 = vsel %vm295, %v733, %v735
      %v773 = vsel %vm295, %v735, %v737
      %v774 = vsel %vm295, %v737, %v739
      %v775 = vsel %vm295, %v739, %v741
      %v776 = vsel %vm295, %v741, %v743
      %v777 = vsel %vm295, %v743, %v745
      %v778 = vsel %vm295, %v745, %v747
      %v779 = vsel %vm295, %v747, %v749
      %v780 = vsel %vm295, %v749, %v751
      %v781 = vsel %vm295, %v751, %v753
      %v782 = vsel %vm295, %v753, %v755
      %v783 = vsel %vm295, %v755, %v757
      %v784 = vsel %vm295, %v757, %v759
      %v785 = vsel %vm295, %v759, %v761
      %v786 = vsel %vm295, %v761, %v763
      %v787 = vsel %vm295, %v763, %v765
      %v788 = vsel %vm295, %v765, %v767
      %v789 = vsel %vm295, %v767, %v769
      %810 = vst [vmem:[#allocation2 + $0x320] sm:$0xff] %v770
      %811 = vst [vmem:[#allocation2 + $0x328] sm:$0xff] %v771
      %812 = vst [vmem:[#allocation2 + $0x330] sm:$0xff] %v772
      %813 = vst [vmem:[#allocation2 + $0x338] sm:$0xff] %v773
      %814 = vst [vmem:[#allocation2 + $0x340] sm:$0xff] %v774
      %815 = vst [vmem:[#allocation2 + $0x348] sm:$0xff] %v775
      %816 = vst [vmem:[#allocation2 + $0x350] sm:$0xff] %v776
      %817 = vst [vmem:[#allocation2 + $0x358] sm:$0xff] %v777
      %818 = vst [vmem:[#allocation2 + $0x360] sm:$0xff] %v778
      %819 = vst [vmem:[#allocation2 + $0x368] sm:$0xff] %v779
      %820 = vst [vmem:[#allocation2 + $0x370] sm:$0xff] %v780
      %821 = vst [vmem:[#allocation2 + $0x378] sm:$0xff] %v781
      %822 = vst [vmem:[#allocation2 + $0x380] sm:$0xff] %v782
      %823 = vst [vmem:[#allocation2 + $0x388] sm:$0xff] %v783
      %824 = vst [vmem:[#allocation2 + $0x390] sm:$0xff] %v784
      %825 = vst [vmem:[#allocation2 + $0x398] sm:$0xff] %v785
      %826 = vst [vmem:[#allocation2 + $0x3a0] sm:$0xff] %v786
      %827 = vst [vmem:[#allocation2 + $0x3a8] sm:$0xff] %v787
      %828 = vst [vmem:[#allocation2 + $0x3b0] sm:$0xff] %v788
      %829 = vst [vmem:[#allocation2 + $0x3b8] sm:$0xff] %v789
      %v830 = vld [vmem:[%s165 + $0xa8] sm:$0xff]
      %v831 = vld [vmem:[%s165 + $0xb0] sm:$0xff]
      %v832 = vld [vmem:[%s165 + $0xb8] sm:$0xff]
      %v833 = vld [vmem:[%s165 + $0xc0] sm:$0xff]
      %v834 = vld [vmem:[%s165 + $0xc8] sm:$0xff]
      %v835 = vld [vmem:[%s165 + $0xd0] sm:$0xff]
      %v836 = vld [vmem:[%s165 + $0xd8] sm:$0xff]
      %v837 = vld [vmem:[%s165 + $0xe0] sm:$0xff]
      %v838 = vld [vmem:[%s165 + $0xe8] sm:$0xff]
      %v839 = vld [vmem:[%s165 + $0xf0] sm:$0xff]
      %v840 = vld [vmem:[%s165 + $0xf8] sm:$0xff]
      %v841 = vld [vmem:[%s165 + $0x100] sm:$0xff]
      %v842 = vld [vmem:[%s165 + $0x108] sm:$0xff]
      %v843 = vld [vmem:[%s165 + $0x110] sm:$0xff]
      %v844 = vld [vmem:[%s165 + $0x118] sm:$0xff]
      %v845 = vld [vmem:[%s165 + $0x120] sm:$0xff]
      %v846 = vld [vmem:[%s165 + $0x128] sm:$0xff]
      %v847 = vld [vmem:[%s165 + $0x130] sm:$0xff]
      %v848 = vld [vmem:[%s165 + $0x138] sm:$0xff]
      %v849 = vld [vmem:[%s165 + $0x140] sm:$0xff]
      %v850 = vld [vmem:[%s165 + $0x148] sm:$0xff]
      %872 = vrot.lane.b32.xlu0 %v830, 77
      %v873 = vpop.permute.xlu0 %872
      %874 = vrot.lane.b32.xlu0 %v831, 77
      %v875 = vpop.permute.xlu0 %874
      %876 = vrot.lane.b32.xlu0 %v832, 77
      %v877 = vpop.permute.xlu0 %876
      %878 = vrot.lane.b32.xlu0 %v833, 77
      %v879 = vpop.permute.xlu0 %878
      %880 = vrot.lane.b32.xlu0 %v834, 77
      %v881 = vpop.permute.xlu0 %880
      %882 = vrot.lane.b32.xlu0 %v835, 77
      %v883 = vpop.permute.xlu0 %882
      %884 = vrot.lane.b32.xlu0 %v836, 77
      %v885 = vpop.permute.xlu0 %884
      %886 = vrot.lane.b32.xlu0 %v837, 77
      %v887 = vpop.permute.xlu0 %886
      %888 = vrot.lane.b32.xlu0 %v838, 77
      %v889 = vpop.permute.xlu0 %888
      %890 = vrot.lane.b32.xlu0 %v839, 77
      %v891 = vpop.permute.xlu0 %890
      %892 = vrot.lane.b32.xlu0 %v840, 77
      %v893 = vpop.permute.xlu0 %892
      %894 = vrot.lane.b32.xlu0 %v841, 77
      %v895 = vpop.permute.xlu0 %894
      %896 = vrot.lane.b32.xlu0 %v842, 77
      %v897 = vpop.permute.xlu0 %896
      %898 = vrot.lane.b32.xlu0 %v843, 77
      %v899 = vpop.permute.xlu0 %898
      %900 = vrot.lane.b32.xlu0 %v844, 77
      %v901 = vpop.permute.xlu0 %900
      %902 = vrot.lane.b32.xlu0 %v845, 77
      %v903 = vpop.permute.xlu0 %902
      %904 = vrot.lane.b32.xlu0 %v846, 77
      %v905 = vpop.permute.xlu0 %904
      %906 = vrot.lane.b32.xlu0 %v847, 77
      %v907 = vpop.permute.xlu0 %906
      %908 = vrot.lane.b32.xlu0 %v848, 77
      %v909 = vpop.permute.xlu0 %908
      %910 = vrot.lane.b32.xlu0 %v849, 77
      %v911 = vpop.permute.xlu0 %910
      %912 = vrot.lane.b32.xlu0 %v850, 77
      %v913 = vpop.permute.xlu0 %912
      %v914 = vsel %vm440, %v873, %v875
      %v915 = vsel %vm440, %v875, %v877
      %v916 = vsel %vm440, %v877, %v879
      %v917 = vsel %vm440, %v879, %v881
      %v918 = vsel %vm440, %v881, %v883
      %v919 = vsel %vm440, %v883, %v885
      %v920 = vsel %vm440, %v885, %v887
      %v921 = vsel %vm440, %v887, %v889
      %v922 = vsel %vm440, %v889, %v891
      %v923 = vsel %vm440, %v891, %v893
      %v924 = vsel %vm440, %v893, %v895
      %v925 = vsel %vm440, %v895, %v897
      %v926 = vsel %vm440, %v897, %v899
      %v927 = vsel %vm440, %v899, %v901
      %v928 = vsel %vm440, %v901, %v903
      %v929 = vsel %vm440, %v903, %v905
      %v930 = vsel %vm440, %v905, %v907
      %v931 = vsel %vm440, %v907, %v909
      %v932 = vsel %vm440, %v909, %v911
      %v933 = vsel %vm440, %v911, %v913
      %954 = vst [vmem:[#allocation2 + $0x3c0] sm:$0xff] %v914
      %955 = vst [vmem:[#allocation2 + $0x3c8] sm:$0xff] %v915
      %956 = vst [vmem:[#allocation2 + $0x3d0] sm:$0xff] %v916
      %957 = vst [vmem:[#allocation2 + $0x3d8] sm:$0xff] %v917
      %958 = vst [vmem:[#allocation2 + $0x3e0] sm:$0xff] %v918
      %959 = vst [vmem:[#allocation2 + $0x3e8] sm:$0xff] %v919
      %960 = vst [vmem:[#allocation2 + $0x3f0] sm:$0xff] %v920
      %961 = vst [vmem:[#allocation2 + $0x3f8] sm:$0xff] %v921
      %962 = vst [vmem:[#allocation2 + $0x400] sm:$0xff] %v922
      %963 = vst [vmem:[#allocation2 + $0x408] sm:$0xff] %v923
      %964 = vst [vmem:[#allocation2 + $0x410] sm:$0xff] %v924
      %965 = vst [vmem:[#allocation2 + $0x418] sm:$0xff] %v925
      %966 = vst [vmem:[#allocation2 + $0x420] sm:$0xff] %v926
      %967 = vst [vmem:[#allocation2 + $0x428] sm:$0xff] %v927
      %968 = vst [vmem:[#allocation2 + $0x430] sm:$0xff] %v928
      %969 = vst [vmem:[#allocation2 + $0x438] sm:$0xff] %v929
      %970 = vst [vmem:[#allocation2 + $0x440] sm:$0xff] %v930
      %971 = vst [vmem:[#allocation2 + $0x448] sm:$0xff] %v931
      %972 = vst [vmem:[#allocation2 + $0x450] sm:$0xff] %v932
      %973 = vst [vmem:[#allocation2 + $0x458] sm:$0xff] %v933
      %v974 = vld [vmem:[%s165 + $0xa8] sm:$0xff]
      %v975 = vld [vmem:[%s165 + $0xb0] sm:$0xff]
      %v976 = vld [vmem:[%s165 + $0xb8] sm:$0xff]
      %v977 = vld [vmem:[%s165 + $0xc0] sm:$0xff]
      %v978 = vld [vmem:[%s165 + $0xc8] sm:$0xff]
      %v979 = vld [vmem:[%s165 + $0xd0] sm:$0xff]
      %v980 = vld [vmem:[%s165 + $0xd8] sm:$0xff]
      %v981 = vld [vmem:[%s165 + $0xe0] sm:$0xff]
      %v982 = vld [vmem:[%s165 + $0xe8] sm:$0xff]
      %v983 = vld [vmem:[%s165 + $0xf0] sm:$0xff]
      %v984 = vld [vmem:[%s165 + $0xf8] sm:$0xff]
      %v985 = vld [vmem:[%s165 + $0x100] sm:$0xff]
      %v986 = vld [vmem:[%s165 + $0x108] sm:$0xff]
      %v987 = vld [vmem:[%s165 + $0x110] sm:$0xff]
      %v988 = vld [vmem:[%s165 + $0x118] sm:$0xff]
      %v989 = vld [vmem:[%s165 + $0x120] sm:$0xff]
      %v990 = vld [vmem:[%s165 + $0x128] sm:$0xff]
      %v991 = vld [vmem:[%s165 + $0x130] sm:$0xff]
      %v992 = vld [vmem:[%s165 + $0x138] sm:$0xff]
      %v993 = vld [vmem:[%s165 + $0x140] sm:$0xff]
      %v994 = vld [vmem:[%s165 + $0x148] sm:$0xff]
      %1016 = vrot.lane.b32.xlu0 %v974, 76
      %v1017 = vpop.permute.xlu0 %1016
      %1018 = vrot.lane.b32.xlu0 %v975, 76
      %v1019 = vpop.permute.xlu0 %1018
      %1020 = vrot.lane.b32.xlu0 %v976, 76
      %v1021 = vpop.permute.xlu0 %1020
      %1022 = vrot.lane.b32.xlu0 %v977, 76
      %v1023 = vpop.permute.xlu0 %1022
      %1024 = vrot.lane.b32.xlu0 %v978, 76
      %v1025 = vpop.permute.xlu0 %1024
      %1026 = vrot.lane.b32.xlu0 %v979, 76
      %v1027 = vpop.permute.xlu0 %1026
      %1028 = vrot.lane.b32.xlu0 %v980, 76
      %v1029 = vpop.permute.xlu0 %1028
      %1030 = vrot.lane.b32.xlu0 %v981, 76
      %v1031 = vpop.permute.xlu0 %1030
      %1032 = vrot.lane.b32.xlu0 %v982, 76
      %v1033 = vpop.permute.xlu0 %1032
      %1034 = vrot.lane.b32.xlu0 %v983, 76
      %v1035 = vpop.permute.xlu0 %1034
      %1036 = vrot.lane.b32.xlu0 %v984, 76
      %v1037 = vpop.permute.xlu0 %1036
      %1038 = vrot.lane.b32.xlu0 %v985, 76
      %v1039 = vpop.permute.xlu0 %1038
      %1040 = vrot.lane.b32.xlu0 %v986, 76
      %v1041 = vpop.permute.xlu0 %1040
      %1042 = vrot.lane.b32.xlu0 %v987, 76
      %v1043 = vpop.permute.xlu0 %1042
      %1044 = vrot.lane.b32.xlu0 %v988, 76
      %v1045 = vpop.permute.xlu0 %1044
      %1046 = vrot.lane.b32.xlu0 %v989, 76
      %v1047 = vpop.permute.xlu0 %1046
      %1048 = vrot.lane.b32.xlu0 %v990, 76
      %v1049 = vpop.permute.xlu0 %1048
      %1050 = vrot.lane.b32.xlu0 %v991, 76
      %v1051 = vpop.permute.xlu0 %1050
      %1052 = vrot.lane.b32.xlu0 %v992, 76
      %v1053 = vpop.permute.xlu0 %1052
      %1054 = vrot.lane.b32.xlu0 %v993, 76
      %v1055 = vpop.permute.xlu0 %1054
      %1056 = vrot.lane.b32.xlu0 %v994, 76
      %v1057 = vpop.permute.xlu0 %1056
      %v1058 = vsel %vm585, %v1017, %v1019
      %v1059 = vsel %vm585, %v1019, %v1021
      %v1060 = vsel %vm585, %v1021, %v1023
      %v1061 = vsel %vm585, %v1023, %v1025
      %v1062 = vsel %vm585, %v1025, %v1027
      %v1063 = vsel %vm585, %v1027, %v1029
      %v1064 = vsel %vm585, %v1029, %v1031
      %v1065 = vsel %vm585, %v1031, %v1033
      %v1066 = vsel %vm585, %v1033, %v1035
      %v1067 = vsel %vm585, %v1035, %v1037
      %v1068 = vsel %vm585, %v1037, %v1039
      %v1069 = vsel %vm585, %v1039, %v1041
      %v1070 = vsel %vm585, %v1041, %v1043
      %v1071 = vsel %vm585, %v1043, %v1045
      %v1072 = vsel %vm585, %v1045, %v1047
      %v1073 = vsel %vm585, %v1047, %v1049
      %v1074 = vsel %vm585, %v1049, %v1051
      %v1075 = vsel %vm585, %v1051, %v1053
      %v1076 = vsel %vm585, %v1053, %v1055
      %v1077 = vsel %vm585, %v1055, %v1057
      %1098 = vst [vmem:[#allocation2 + $0x460] sm:$0xff] %v1058
      %1099 = vst [vmem:[#allocation2 + $0x468] sm:$0xff] %v1059
      %1100 = vst [vmem:[#allocation2 + $0x470] sm:$0xff] %v1060
      %1101 = vst [vmem:[#allocation2 + $0x478] sm:$0xff] %v1061
      %1102 = vst [vmem:[#allocation2 + $0x480] sm:$0xff] %v1062
      %1103 = vst [vmem:[#allocation2 + $0x488] sm:$0xff] %v1063
      %1104 = vst [vmem:[#allocation2 + $0x490] sm:$0xff] %v1064
      %1105 = vst [vmem:[#allocation2 + $0x498] sm:$0xff] %v1065
      %1106 = vst [vmem:[#allocation2 + $0x4a0] sm:$0xff] %v1066
      %1107 = vst [vmem:[#allocation2 + $0x4a8] sm:$0xff] %v1067
      %1108 = vst [vmem:[#allocation2 + $0x4b0] sm:$0xff] %v1068
      %1109 = vst [vmem:[#allocation2 + $0x4b8] sm:$0xff] %v1069
      %1110 = vst [vmem:[#allocation2 + $0x4c0] sm:$0xff] %v1070
      %1111 = vst [vmem:[#allocation2 + $0x4c8] sm:$0xff] %v1071
      %1112 = vst [vmem:[#allocation2 + $0x4d0] sm:$0xff] %v1072
      %1113 = vst [vmem:[#allocation2 + $0x4d8] sm:$0xff] %v1073
      %1114 = vst [vmem:[#allocation2 + $0x4e0] sm:$0xff] %v1074
      %1115 = vst [vmem:[#allocation2 + $0x4e8] sm:$0xff] %v1075
      %1116 = vst [vmem:[#allocation2 + $0x4f0] sm:$0xff] %v1076
      %1117 = vst [vmem:[#allocation2 + $0x4f8] sm:$0xff] %v1077
      %v1118 = vld [vmem:[%s165 + $0x150] sm:$0xff]
      %v1119 = vld [vmem:[%s165 + $0x158] sm:$0xff]
      %v1120 = vld [vmem:[%s165 + $0x160] sm:$0xff]
      %v1121 = vld [vmem:[%s165 + $0x168] sm:$0xff]
      %v1122 = vld [vmem:[%s165 + $0x170] sm:$0xff]
      %v1123 = vld [vmem:[%s165 + $0x178] sm:$0xff]
      %v1124 = vld [vmem:[%s165 + $0x180] sm:$0xff]
      %v1125 = vld [vmem:[%s165 + $0x188] sm:$0xff]
      %v1126 = vld [vmem:[%s165 + $0x190] sm:$0xff]
      %v1127 = vld [vmem:[%s165 + $0x198] sm:$0xff]
      %v1128 = vld [vmem:[%s165 + $0x1a0] sm:$0xff]
      %v1129 = vld [vmem:[%s165 + $0x1a8] sm:$0xff]
      %v1130 = vld [vmem:[%s165 + $0x1b0] sm:$0xff]
      %v1131 = vld [vmem:[%s165 + $0x1b8] sm:$0xff]
      %v1132 = vld [vmem:[%s165 + $0x1c0] sm:$0xff]
      %v1133 = vld [vmem:[%s165 + $0x1c8] sm:$0xff]
      %v1134 = vld [vmem:[%s165 + $0x1d0] sm:$0xff]
      %v1135 = vld [vmem:[%s165 + $0x1d8] sm:$0xff]
      %v1136 = vld [vmem:[%s165 + $0x1e0] sm:$0xff]
      %v1137 = vld [vmem:[%s165 + $0x1e8] sm:$0xff]
      %1138 = vst [vmem:[#allocation2 + $0x500] sm:$0xff] %v1118
      %1139 = vst [vmem:[#allocation2 + $0x508] sm:$0xff] %v1119
      %1140 = vst [vmem:[#allocation2 + $0x510] sm:$0xff] %v1120
      %1141 = vst [vmem:[#allocation2 + $0x518] sm:$0xff] %v1121
      %1142 = vst [vmem:[#allocation2 + $0x520] sm:$0xff] %v1122
      %1143 = vst [vmem:[#allocation2 + $0x528] sm:$0xff] %v1123
      %1144 = vst [vmem:[#allocation2 + $0x530] sm:$0xff] %v1124
      %1145 = vst [vmem:[#allocation2 + $0x538] sm:$0xff] %v1125
      %1146 = vst [vmem:[#allocation2 + $0x540] sm:$0xff] %v1126
      %1147 = vst [vmem:[#allocation2 + $0x548] sm:$0xff] %v1127
      %1148 = vst [vmem:[#allocation2 + $0x550] sm:$0xff] %v1128
      %1149 = vst [vmem:[#allocation2 + $0x558] sm:$0xff] %v1129
      %1150 = vst [vmem:[#allocation2 + $0x560] sm:$0xff] %v1130
      %1151 = vst [vmem:[#allocation2 + $0x568] sm:$0xff] %v1131
      %1152 = vst [vmem:[#allocation2 + $0x570] sm:$0xff] %v1132
      %1153 = vst [vmem:[#allocation2 + $0x578] sm:$0xff] %v1133
      %1154 = vst [vmem:[#allocation2 + $0x580] sm:$0xff] %v1134
      %1155 = vst [vmem:[#allocation2 + $0x588] sm:$0xff] %v1135
      %1156 = vst [vmem:[#allocation2 + $0x590] sm:$0xff] %v1136
      %1157 = vst [vmem:[#allocation2 + $0x598] sm:$0xff] %v1137
      %v1158 = vld [vmem:[%s165 + $0x150] sm:$0xff]
      %v1159 = vld [vmem:[%s165 + $0x158] sm:$0xff]
      %v1160 = vld [vmem:[%s165 + $0x160] sm:$0xff]
      %v1161 = vld [vmem:[%s165 + $0x168] sm:$0xff]
      %v1162 = vld [vmem:[%s165 + $0x170] sm:$0xff]
      %v1163 = vld [vmem:[%s165 + $0x178] sm:$0xff]
      %v1164 = vld [vmem:[%s165 + $0x180] sm:$0xff]
      %v1165 = vld [vmem:[%s165 + $0x188] sm:$0xff]
      %v1166 = vld [vmem:[%s165 + $0x190] sm:$0xff]
      %v1167 = vld [vmem:[%s165 + $0x198] sm:$0xff]
      %v1168 = vld [vmem:[%s165 + $0x1a0] sm:$0xff]
      %v1169 = vld [vmem:[%s165 + $0x1a8] sm:$0xff]
      %v1170 = vld [vmem:[%s165 + $0x1b0] sm:$0xff]
      %v1171 = vld [vmem:[%s165 + $0x1b8] sm:$0xff]
      %v1172 = vld [vmem:[%s165 + $0x1c0] sm:$0xff]
      %v1173 = vld [vmem:[%s165 + $0x1c8] sm:$0xff]
      %v1174 = vld [vmem:[%s165 + $0x1d0] sm:$0xff]
      %v1175 = vld [vmem:[%s165 + $0x1d8] sm:$0xff]
      %v1176 = vld [vmem:[%s165 + $0x1e0] sm:$0xff]
      %v1177 = vld [vmem:[%s165 + $0x1e8] sm:$0xff]
      %v1178 = vld [vmem:[%s165 + $0x1f0] sm:$0xff]
      %1200 = vrot.lane.b32.xlu0 %v1158, 127
      %v1201 = vpop.permute.xlu0 %1200
      %1202 = vrot.lane.b32.xlu0 %v1159, 127
      %v1203 = vpop.permute.xlu0 %1202
      %1204 = vrot.lane.b32.xlu0 %v1160, 127
      %v1205 = vpop.permute.xlu0 %1204
      %1206 = vrot.lane.b32.xlu0 %v1161, 127
      %v1207 = vpop.permute.xlu0 %1206
      %1208 = vrot.lane.b32.xlu0 %v1162, 127
      %v1209 = vpop.permute.xlu0 %1208
      %1210 = vrot.lane.b32.xlu0 %v1163, 127
      %v1211 = vpop.permute.xlu0 %1210
      %1212 = vrot.lane.b32.xlu0 %v1164, 127
      %v1213 = vpop.permute.xlu0 %1212
      %1214 = vrot.lane.b32.xlu0 %v1165, 127
      %v1215 = vpop.permute.xlu0 %1214
      %1216 = vrot.lane.b32.xlu0 %v1166, 127
      %v1217 = vpop.permute.xlu0 %1216
      %1218 = vrot.lane.b32.xlu0 %v1167, 127
      %v1219 = vpop.permute.xlu0 %1218
      %1220 = vrot.lane.b32.xlu0 %v1168, 127
      %v1221 = vpop.permute.xlu0 %1220
      %1222 = vrot.lane.b32.xlu0 %v1169, 127
      %v1223 = vpop.permute.xlu0 %1222
      %1224 = vrot.lane.b32.xlu0 %v1170, 127
      %v1225 = vpop.permute.xlu0 %1224
      %1226 = vrot.lane.b32.xlu0 %v1171, 127
      %v1227 = vpop.permute.xlu0 %1226
      %1228 = vrot.lane.b32.xlu0 %v1172, 127
      %v1229 = vpop.permute.xlu0 %1228
      %1230 = vrot.lane.b32.xlu0 %v1173, 127
      %v1231 = vpop.permute.xlu0 %1230
      %1232 = vrot.lane.b32.xlu0 %v1174, 127
      %v1233 = vpop.permute.xlu0 %1232
      %1234 = vrot.lane.b32.xlu0 %v1175, 127
      %v1235 = vpop.permute.xlu0 %1234
      %1236 = vrot.lane.b32.xlu0 %v1176, 127
      %v1237 = vpop.permute.xlu0 %1236
      %1238 = vrot.lane.b32.xlu0 %v1177, 127
      %v1239 = vpop.permute.xlu0 %1238
      %1240 = vrot.lane.b32.xlu0 %v1178, 127
      %v1241 = vpop.permute.xlu0 %1240
      %v1242 = vsel %vm295, %v1201, %v1203
      %v1243 = vsel %vm295, %v1203, %v1205
      %v1244 = vsel %vm295, %v1205, %v1207
      %v1245 = vsel %vm295, %v1207, %v1209
      %v1246 = vsel %vm295, %v1209, %v1211
      %v1247 = vsel %vm295, %v1211, %v1213
      %v1248 = vsel %vm295, %v1213, %v1215
      %v1249 = vsel %vm295, %v1215, %v1217
      %v1250 = vsel %vm295, %v1217, %v1219
      %v1251 = vsel %vm295, %v1219, %v1221
      %v1252 = vsel %vm295, %v1221, %v1223
      %v1253 = vsel %vm295, %v1223, %v1225
      %v1254 = vsel %vm295, %v1225, %v1227
      %v1255 = vsel %vm295, %v1227, %v1229
      %v1256 = vsel %vm295, %v1229, %v1231
      %v1257 = vsel %vm295, %v1231, %v1233
      %v1258 = vsel %vm295, %v1233, %v1235
      %v1259 = vsel %vm295, %v1235, %v1237
      %v1260 = vsel %vm295, %v1237, %v1239
      %v1261 = vsel %vm295, %v1239, %v1241
      %1282 = vst [vmem:[#allocation2 + $0x5a0] sm:$0xff] %v1242
      %1283 = vst [vmem:[#allocation2 + $0x5a8] sm:$0xff] %v1243
      %1284 = vst [vmem:[#allocation2 + $0x5b0] sm:$0xff] %v1244
      %1285 = vst [vmem:[#allocation2 + $0x5b8] sm:$0xff] %v1245
      %1286 = vst [vmem:[#allocation2 + $0x5c0] sm:$0xff] %v1246
      %1287 = vst [vmem:[#allocation2 + $0x5c8] sm:$0xff] %v1247
      %1288 = vst [vmem:[#allocation2 + $0x5d0] sm:$0xff] %v1248
      %1289 = vst [vmem:[#allocation2 + $0x5d8] sm:$0xff] %v1249
      %1290 = vst [vmem:[#allocation2 + $0x5e0] sm:$0xff] %v1250
      %1291 = vst [vmem:[#allocation2 + $0x5e8] sm:$0xff] %v1251
      %1292 = vst [vmem:[#allocation2 + $0x5f0] sm:$0xff] %v1252
      %1293 = vst [vmem:[#allocation2 + $0x5f8] sm:$0xff] %v1253
      %1294 = vst [vmem:[#allocation2 + $0x600] sm:$0xff] %v1254
      %1295 = vst [vmem:[#allocation2 + $0x608] sm:$0xff] %v1255
      %1296 = vst [vmem:[#allocation2 + $0x610] sm:$0xff] %v1256
      %1297 = vst [vmem:[#allocation2 + $0x618] sm:$0xff] %v1257
      %1298 = vst [vmem:[#allocation2 + $0x620] sm:$0xff] %v1258
      %1299 = vst [vmem:[#allocation2 + $0x628] sm:$0xff] %v1259
      %1300 = vst [vmem:[#allocation2 + $0x630] sm:$0xff] %v1260
      %1301 = vst [vmem:[#allocation2 + $0x638] sm:$0xff] %v1261
      %v1302 = vld [vmem:[%s165 + $0x150] sm:$0xff]
      %v1303 = vld [vmem:[%s165 + $0x158] sm:$0xff]
      %v1304 = vld [vmem:[%s165 + $0x160] sm:$0xff]
      %v1305 = vld [vmem:[%s165 + $0x168] sm:$0xff]
      %v1306 = vld [vmem:[%s165 + $0x170] sm:$0xff]
      %v1307 = vld [vmem:[%s165 + $0x178] sm:$0xff]
      %v1308 = vld [vmem:[%s165 + $0x180] sm:$0xff]
      %v1309 = vld [vmem:[%s165 + $0x188] sm:$0xff]
      %v1310 = vld [vmem:[%s165 + $0x190] sm:$0xff]
      %v1311 = vld [vmem:[%s165 + $0x198] sm:$0xff]
      %v1312 = vld [vmem:[%s165 + $0x1a0] sm:$0xff]
      %v1313 = vld [vmem:[%s165 + $0x1a8] sm:$0xff]
      %v1314 = vld [vmem:[%s165 + $0x1b0] sm:$0xff]
      %v1315 = vld [vmem:[%s165 + $0x1b8] sm:$0xff]
      %v1316 = vld [vmem:[%s165 + $0x1c0] sm:$0xff]
      %v1317 = vld [vmem:[%s165 + $0x1c8] sm:$0xff]
      %v1318 = vld [vmem:[%s165 + $0x1d0] sm:$0xff]
      %v1319 = vld [vmem:[%s165 + $0x1d8] sm:$0xff]
      %v1320 = vld [vmem:[%s165 + $0x1e0] sm:$0xff]
      %v1321 = vld [vmem:[%s165 + $0x1e8] sm:$0xff]
      %v1322 = vld [vmem:[%s165 + $0x1f0] sm:$0xff]
      %1344 = vrot.lane.b32.xlu0 %v1302, 77
      %v1345 = vpop.permute.xlu0 %1344
      %1346 = vrot.lane.b32.xlu0 %v1303, 77
      %v1347 = vpop.permute.xlu0 %1346
      %1348 = vrot.lane.b32.xlu0 %v1304, 77
      %v1349 = vpop.permute.xlu0 %1348
      %1350 = vrot.lane.b32.xlu0 %v1305, 77
      %v1351 = vpop.permute.xlu0 %1350
      %1352 = vrot.lane.b32.xlu0 %v1306, 77
      %v1353 = vpop.permute.xlu0 %1352
      %1354 = vrot.lane.b32.xlu0 %v1307, 77
      %v1355 = vpop.permute.xlu0 %1354
      %1356 = vrot.lane.b32.xlu0 %v1308, 77
      %v1357 = vpop.permute.xlu0 %1356
      %1358 = vrot.lane.b32.xlu0 %v1309, 77
      %v1359 = vpop.permute.xlu0 %1358
      %1360 = vrot.lane.b32.xlu0 %v1310, 77
      %v1361 = vpop.permute.xlu0 %1360
      %1362 = vrot.lane.b32.xlu0 %v1311, 77
      %v1363 = vpop.permute.xlu0 %1362
      %1364 = vrot.lane.b32.xlu0 %v1312, 77
      %v1365 = vpop.permute.xlu0 %1364
      %1366 = vrot.lane.b32.xlu0 %v1313, 77
      %v1367 = vpop.permute.xlu0 %1366
      %1368 = vrot.lane.b32.xlu0 %v1314, 77
      %v1369 = vpop.permute.xlu0 %1368
      %1370 = vrot.lane.b32.xlu0 %v1315, 77
      %v1371 = vpop.permute.xlu0 %1370
      %1372 = vrot.lane.b32.xlu0 %v1316, 77
      %v1373 = vpop.permute.xlu0 %1372
      %1374 = vrot.lane.b32.xlu0 %v1317, 77
      %v1375 = vpop.permute.xlu0 %1374
      %1376 = vrot.lane.b32.xlu0 %v1318, 77
      %v1377 = vpop.permute.xlu0 %1376
      %1378 = vrot.lane.b32.xlu0 %v1319, 77
      %v1379 = vpop.permute.xlu0 %1378
      %1380 = vrot.lane.b32.xlu0 %v1320, 77
      %v1381 = vpop.permute.xlu0 %1380
      %1382 = vrot.lane.b32.xlu0 %v1321, 77
      %v1383 = vpop.permute.xlu0 %1382
      %1384 = vrot.lane.b32.xlu0 %v1322, 77
      %v1385 = vpop.permute.xlu0 %1384
      %v1386 = vsel %vm440, %v1345, %v1347
      %v1387 = vsel %vm440, %v1347, %v1349
      %v1388 = vsel %vm440, %v1349, %v1351
      %v1389 = vsel %vm440, %v1351, %v1353
      %v1390 = vsel %vm440, %v1353, %v1355
      %v1391 = vsel %vm440, %v1355, %v1357
      %v1392 = vsel %vm440, %v1357, %v1359
      %v1393 = vsel %vm440, %v1359, %v1361
      %v1394 = vsel %vm440, %v1361, %v1363
      %v1395 = vsel %vm440, %v1363, %v1365
      %v1396 = vsel %vm440, %v1365, %v1367
      %v1397 = vsel %vm440, %v1367, %v1369
      %v1398 = vsel %vm440, %v1369, %v1371
      %v1399 = vsel %vm440, %v1371, %v1373
      %v1400 = vsel %vm440, %v1373, %v1375
      %v1401 = vsel %vm440, %v1375, %v1377
      %v1402 = vsel %vm440, %v1377, %v1379
      %v1403 = vsel %vm440, %v1379, %v1381
      %v1404 = vsel %vm440, %v1381, %v1383
      %v1405 = vsel %vm440, %v1383, %v1385
      %1426 = vst [vmem:[#allocation2 + $0x640] sm:$0xff] %v1386
      %1427 = vst [vmem:[#allocation2 + $0x648] sm:$0xff] %v1387
      %1428 = vst [vmem:[#allocation2 + $0x650] sm:$0xff] %v1388
      %1429 = vst [vmem:[#allocation2 + $0x658] sm:$0xff] %v1389
      %1430 = vst [vmem:[#allocation2 + $0x660] sm:$0xff] %v1390
      %1431 = vst [vmem:[#allocation2 + $0x668] sm:$0xff] %v1391
      %1432 = vst [vmem:[#allocation2 + $0x670] sm:$0xff] %v1392
      %1433 = vst [vmem:[#allocation2 + $0x678] sm:$0xff] %v1393
      %1434 = vst [vmem:[#allocation2 + $0x680] sm:$0xff] %v1394
      %1435 = vst [vmem:[#allocation2 + $0x688] sm:$0xff] %v1395
      %1436 = vst [vmem:[#allocation2 + $0x690] sm:$0xff] %v1396
      %1437 = vst [vmem:[#allocation2 + $0x698] sm:$0xff] %v1397
      %1438 = vst [vmem:[#allocation2 + $0x6a0] sm:$0xff] %v1398
      %1439 = vst [vmem:[#allocation2 + $0x6a8] sm:$0xff] %v1399
      %1440 = vst [vmem:[#allocation2 + $0x6b0] sm:$0xff] %v1400
      %1441 = vst [vmem:[#allocation2 + $0x6b8] sm:$0xff] %v1401
      %1442 = vst [vmem:[#allocation2 + $0x6c0] sm:$0xff] %v1402
      %1443 = vst [vmem:[#allocation2 + $0x6c8] sm:$0xff] %v1403
      %1444 = vst [vmem:[#allocation2 + $0x6d0] sm:$0xff] %v1404
      %1445 = vst [vmem:[#allocation2 + $0x6d8] sm:$0xff] %v1405
      %v1446 = vld [vmem:[%s165 + $0x150] sm:$0xff]
      %v1447 = vld [vmem:[%s165 + $0x158] sm:$0xff]
      %v1448 = vld [vmem:[%s165 + $0x160] sm:$0xff]
      %v1449 = vld [vmem:[%s165 + $0x168] sm:$0xff]
      %v1450 = vld [vmem:[%s165 + $0x170] sm:$0xff]
      %v1451 = vld [vmem:[%s165 + $0x178] sm:$0xff]
      %v1452 = vld [vmem:[%s165 + $0x180] sm:$0xff]
      %v1453 = vld [vmem:[%s165 + $0x188] sm:$0xff]
      %v1454 = vld [vmem:[%s165 + $0x190] sm:$0xff]
      %v1455 = vld [vmem:[%s165 + $0x198] sm:$0xff]
      %v1456 = vld [vmem:[%s165 + $0x1a0] sm:$0xff]
      %v1457 = vld [vmem:[%s165 + $0x1a8] sm:$0xff]
      %v1458 = vld [vmem:[%s165 + $0x1b0] sm:$0xff]
      %v1459 = vld [vmem:[%s165 + $0x1b8] sm:$0xff]
      %v1460 = vld [vmem:[%s165 + $0x1c0] sm:$0xff]
      %v1461 = vld [vmem:[%s165 + $0x1c8] sm:$0xff]
      %v1462 = vld [vmem:[%s165 + $0x1d0] sm:$0xff]
      %v1463 = vld [vmem:[%s165 + $0x1d8] sm:$0xff]
      %v1464 = vld [vmem:[%s165 + $0x1e0] sm:$0xff]
      %v1465 = vld [vmem:[%s165 + $0x1e8] sm:$0xff]
      %v1466 = vld [vmem:[%s165 + $0x1f0] sm:$0xff]
      %1488 = vrot.lane.b32.xlu0 %v1446, 76
      %v1489 = vpop.permute.xlu0 %1488
      %1490 = vrot.lane.b32.xlu0 %v1447, 76
      %v1491 = vpop.permute.xlu0 %1490
      %1492 = vrot.lane.b32.xlu0 %v1448, 76
      %v1493 = vpop.permute.xlu0 %1492
      %1494 = vrot.lane.b32.xlu0 %v1449, 76
      %v1495 = vpop.permute.xlu0 %1494
      %1496 = vrot.lane.b32.xlu0 %v1450, 76
      %v1497 = vpop.permute.xlu0 %1496
      %1498 = vrot.lane.b32.xlu0 %v1451, 76
      %v1499 = vpop.permute.xlu0 %1498
      %1500 = vrot.lane.b32.xlu0 %v1452, 76
      %v1501 = vpop.permute.xlu0 %1500
      %1502 = vrot.lane.b32.xlu0 %v1453, 76
      %v1503 = vpop.permute.xlu0 %1502
      %1504 = vrot.lane.b32.xlu0 %v1454, 76
      %v1505 = vpop.permute.xlu0 %1504
      %1506 = vrot.lane.b32.xlu0 %v1455, 76
      %v1507 = vpop.permute.xlu0 %1506
      %1508 = vrot.lane.b32.xlu0 %v1456, 76
      %v1509 = vpop.permute.xlu0 %1508
      %1510 = vrot.lane.b32.xlu0 %v1457, 76
      %v1511 = vpop.permute.xlu0 %1510
      %1512 = vrot.lane.b32.xlu0 %v1458, 76
      %v1513 = vpop.permute.xlu0 %1512
      %1514 = vrot.lane.b32.xlu0 %v1459, 76
      %v1515 = vpop.permute.xlu0 %1514
      %1516 = vrot.lane.b32.xlu0 %v1460, 76
      %v1517 = vpop.permute.xlu0 %1516
      %1518 = vrot.lane.b32.xlu0 %v1461, 76
      %v1519 = vpop.permute.xlu0 %1518
      %1520 = vrot.lane.b32.xlu0 %v1462, 76
      %v1521 = vpop.permute.xlu0 %1520
      %1522 = vrot.lane.b32.xlu0 %v1463, 76
      %v1523 = vpop.permute.xlu0 %1522
      %1524 = vrot.lane.b32.xlu0 %v1464, 76
      %v1525 = vpop.permute.xlu0 %1524
      %1526 = vrot.lane.b32.xlu0 %v1465, 76
      %v1527 = vpop.permute.xlu0 %1526
      %1528 = vrot.lane.b32.xlu0 %v1466, 76
      %v1529 = vpop.permute.xlu0 %1528
      %v1530 = vsel %vm585, %v1489, %v1491
      %v1531 = vsel %vm585, %v1491, %v1493
      %v1532 = vsel %vm585, %v1493, %v1495
      %v1533 = vsel %vm585, %v1495, %v1497
      %v1534 = vsel %vm585, %v1497, %v1499
      %v1535 = vsel %vm585, %v1499, %v1501
      %v1536 = vsel %vm585, %v1501, %v1503
      %v1537 = vsel %vm585, %v1503, %v1505
      %v1538 = vsel %vm585, %v1505, %v1507
      %v1539 = vsel %vm585, %v1507, %v1509
      %v1540 = vsel %vm585, %v1509, %v1511
      %v1541 = vsel %vm585, %v1511, %v1513
      %v1542 = vsel %vm585, %v1513, %v1515
      %v1543 = vsel %vm585, %v1515, %v1517
      %v1544 = vsel %vm585, %v1517, %v1519
      %v1545 = vsel %vm585, %v1519, %v1521
      %v1546 = vsel %vm585, %v1521, %v1523
      %v1547 = vsel %vm585, %v1523, %v1525
      %v1548 = vsel %vm585, %v1525, %v1527
      %v1549 = vsel %vm585, %v1527, %v1529
      %1570 = vst [vmem:[#allocation2 + $0x6e0] sm:$0xff] %v1530
      %1571 = vst [vmem:[#allocation2 + $0x6e8] sm:$0xff] %v1531
      %1572 = vst [vmem:[#allocation2 + $0x6f0] sm:$0xff] %v1532
      %1573 = vst [vmem:[#allocation2 + $0x6f8] sm:$0xff] %v1533
      %1574 = vst [vmem:[#allocation2 + $0x700] sm:$0xff] %v1534
      %1575 = vst [vmem:[#allocation2 + $0x708] sm:$0xff] %v1535
      %1576 = vst [vmem:[#allocation2 + $0x710] sm:$0xff] %v1536
      %1577 = vst [vmem:[#allocation2 + $0x718] sm:$0xff] %v1537
      %1578 = vst [vmem:[#allocation2 + $0x720] sm:$0xff] %v1538
      %1579 = vst [vmem:[#allocation2 + $0x728] sm:$0xff] %v1539
      %1580 = vst [vmem:[#allocation2 + $0x730] sm:$0xff] %v1540
      %1581 = vst [vmem:[#allocation2 + $0x738] sm:$0xff] %v1541
      %1582 = vst [vmem:[#allocation2 + $0x740] sm:$0xff] %v1542
      %1583 = vst [vmem:[#allocation2 + $0x748] sm:$0xff] %v1543
      %1584 = vst [vmem:[#allocation2 + $0x750] sm:$0xff] %v1544
      %1585 = vst [vmem:[#allocation2 + $0x758] sm:$0xff] %v1545
      %1586 = vst [vmem:[#allocation2 + $0x760] sm:$0xff] %v1546
      %1587 = vst [vmem:[#allocation2 + $0x768] sm:$0xff] %v1547
      %1588 = vst [vmem:[#allocation2 + $0x770] sm:$0xff] %v1548
      %1589 = vst [vmem:[#allocation2 + $0x778] sm:$0xff] %v1549
      %v1590 = vld [vmem:[%s165 + $0x1f8] sm:$0xff]
      %v1591 = vld [vmem:[%s165 + $0x200] sm:$0xff]
      %v1592 = vld [vmem:[%s165 + $0x208] sm:$0xff]
      %v1593 = vld [vmem:[%s165 + $0x210] sm:$0xff]
      %v1594 = vld [vmem:[%s165 + $0x218] sm:$0xff]
      %v1595 = vld [vmem:[%s165 + $0x220] sm:$0xff]
      %v1596 = vld [vmem:[%s165 + $0x228] sm:$0xff]
      %v1597 = vld [vmem:[%s165 + $0x230] sm:$0xff]
      %v1598 = vld [vmem:[%s165 + $0x238] sm:$0xff]
      %v1599 = vld [vmem:[%s165 + $0x240] sm:$0xff]
      %v1600 = vld [vmem:[%s165 + $0x248] sm:$0xff]
      %v1601 = vld [vmem:[%s165 + $0x250] sm:$0xff]
      %v1602 = vld [vmem:[%s165 + $0x258] sm:$0xff]
      %v1603 = vld [vmem:[%s165 + $0x260] sm:$0xff]
      %v1604 = vld [vmem:[%s165 + $0x268] sm:$0xff]
      %v1605 = vld [vmem:[%s165 + $0x270] sm:$0xff]
      %v1606 = vld [vmem:[%s165 + $0x278] sm:$0xff]
      %v1607 = vld [vmem:[%s165 + $0x280] sm:$0xff]
      %v1608 = vld [vmem:[%s165 + $0x288] sm:$0xff]
      %v1609 = vld [vmem:[%s165 + $0x290] sm:$0xff]
      %1610 = vst [vmem:[#allocation2 + $0x780] sm:$0xff] %v1590
      %1611 = vst [vmem:[#allocation2 + $0x788] sm:$0xff] %v1591
      %1612 = vst [vmem:[#allocation2 + $0x790] sm:$0xff] %v1592
      %1613 = vst [vmem:[#allocation2 + $0x798] sm:$0xff] %v1593
      %1614 = vst [vmem:[#allocation2 + $0x7a0] sm:$0xff] %v1594
      %1615 = vst [vmem:[#allocation2 + $0x7a8] sm:$0xff] %v1595
      %1616 = vst [vmem:[#allocation2 + $0x7b0] sm:$0xff] %v1596
      %1617 = vst [vmem:[#allocation2 + $0x7b8] sm:$0xff] %v1597
      %1618 = vst [vmem:[#allocation2 + $0x7c0] sm:$0xff] %v1598
      %1619 = vst [vmem:[#allocation2 + $0x7c8] sm:$0xff] %v1599
      %1620 = vst [vmem:[#allocation2 + $0x7d0] sm:$0xff] %v1600
      %1621 = vst [vmem:[#allocation2 + $0x7d8] sm:$0xff] %v1601
      %1622 = vst [vmem:[#allocation2 + $0x7e0] sm:$0xff] %v1602
      %1623 = vst [vmem:[#allocation2 + $0x7e8] sm:$0xff] %v1603
      %1624 = vst [vmem:[#allocation2 + $0x7f0] sm:$0xff] %v1604
      %1625 = vst [vmem:[#allocation2 + $0x7f8] sm:$0xff] %v1605
      %1626 = vst [vmem:[#allocation2 + $0x800] sm:$0xff] %v1606
      %1627 = vst [vmem:[#allocation2 + $0x808] sm:$0xff] %v1607
      %1628 = vst [vmem:[#allocation2 + $0x810] sm:$0xff] %v1608
      %1629 = vst [vmem:[#allocation2 + $0x818] sm:$0xff] %v1609
      %v1630 = vld [vmem:[%s165 + $0x1f8] sm:$0xff]
      %v1631 = vld [vmem:[%s165 + $0x200] sm:$0xff]
      %v1632 = vld [vmem:[%s165 + $0x208] sm:$0xff]
      %v1633 = vld [vmem:[%s165 + $0x210] sm:$0xff]
      %v1634 = vld [vmem:[%s165 + $0x218] sm:$0xff]
      %v1635 = vld [vmem:[%s165 + $0x220] sm:$0xff]
      %v1636 = vld [vmem:[%s165 + $0x228] sm:$0xff]
      %v1637 = vld [vmem:[%s165 + $0x230] sm:$0xff]
      %v1638 = vld [vmem:[%s165 + $0x238] sm:$0xff]
      %v1639 = vld [vmem:[%s165 + $0x240] sm:$0xff]
      %v1640 = vld [vmem:[%s165 + $0x248] sm:$0xff]
      %v1641 = vld [vmem:[%s165 + $0x250] sm:$0xff]
      %v1642 = vld [vmem:[%s165 + $0x258] sm:$0xff]
      %v1643 = vld [vmem:[%s165 + $0x260] sm:$0xff]
      %v1644 = vld [vmem:[%s165 + $0x268] sm:$0xff]
      %v1645 = vld [vmem:[%s165 + $0x270] sm:$0xff]
      %v1646 = vld [vmem:[%s165 + $0x278] sm:$0xff]
      %v1647 = vld [vmem:[%s165 + $0x280] sm:$0xff]
      %v1648 = vld [vmem:[%s165 + $0x288] sm:$0xff]
      %v1649 = vld [vmem:[%s165 + $0x290] sm:$0xff]
      %v1650 = vld [vmem:[%s165 + $0x298] sm:$0xff]
      %1672 = vrot.lane.b32.xlu0 %v1630, 127
      %v1673 = vpop.permute.xlu0 %1672
      %1674 = vrot.lane.b32.xlu0 %v1631, 127
      %v1675 = vpop.permute.xlu0 %1674
      %1676 = vrot.lane.b32.xlu0 %v1632, 127
      %v1677 = vpop.permute.xlu0 %1676
      %1678 = vrot.lane.b32.xlu0 %v1633, 127
      %v1679 = vpop.permute.xlu0 %1678
      %1680 = vrot.lane.b32.xlu0 %v1634, 127
      %v1681 = vpop.permute.xlu0 %1680
      %1682 = vrot.lane.b32.xlu0 %v1635, 127
      %v1683 = vpop.permute.xlu0 %1682
      %1684 = vrot.lane.b32.xlu0 %v1636, 127
      %v1685 = vpop.permute.xlu0 %1684
      %1686 = vrot.lane.b32.xlu0 %v1637, 127
      %v1687 = vpop.permute.xlu0 %1686
      %1688 = vrot.lane.b32.xlu0 %v1638, 127
      %v1689 = vpop.permute.xlu0 %1688
      %1690 = vrot.lane.b32.xlu0 %v1639, 127
      %v1691 = vpop.permute.xlu0 %1690
      %1692 = vrot.lane.b32.xlu0 %v1640, 127
      %v1693 = vpop.permute.xlu0 %1692
      %1694 = vrot.lane.b32.xlu0 %v1641, 127
      %v1695 = vpop.permute.xlu0 %1694
      %1696 = vrot.lane.b32.xlu0 %v1642, 127
      %v1697 = vpop.permute.xlu0 %1696
      %1698 = vrot.lane.b32.xlu0 %v1643, 127
      %v1699 = vpop.permute.xlu0 %1698
      %1700 = vrot.lane.b32.xlu0 %v1644, 127
      %v1701 = vpop.permute.xlu0 %1700
      %1702 = vrot.lane.b32.xlu0 %v1645, 127
      %v1703 = vpop.permute.xlu0 %1702
      %1704 = vrot.lane.b32.xlu0 %v1646, 127
      %v1705 = vpop.permute.xlu0 %1704
      %1706 = vrot.lane.b32.xlu0 %v1647, 127
      %v1707 = vpop.permute.xlu0 %1706
      %1708 = vrot.lane.b32.xlu0 %v1648, 127
      %v1709 = vpop.permute.xlu0 %1708
      %1710 = vrot.lane.b32.xlu0 %v1649, 127
      %v1711 = vpop.permute.xlu0 %1710
      %1712 = vrot.lane.b32.xlu0 %v1650, 127
      %v1713 = vpop.permute.xlu0 %1712
      %v1714 = vsel %vm295, %v1673, %v1675
      %v1715 = vsel %vm295, %v1675, %v1677
      %v1716 = vsel %vm295, %v1677, %v1679
      %v1717 = vsel %vm295, %v1679, %v1681
      %v1718 = vsel %vm295, %v1681, %v1683
      %v1719 = vsel %vm295, %v1683, %v1685
      %v1720 = vsel %vm295, %v1685, %v1687
      %v1721 = vsel %vm295, %v1687, %v1689
      %v1722 = vsel %vm295, %v1689, %v1691
      %v1723 = vsel %vm295, %v1691, %v1693
      %v1724 = vsel %vm295, %v1693, %v1695
      %v1725 = vsel %vm295, %v1695, %v1697
      %v1726 = vsel %vm295, %v1697, %v1699
      %v1727 = vsel %vm295, %v1699, %v1701
      %v1728 = vsel %vm295, %v1701, %v1703
      %v1729 = vsel %vm295, %v1703, %v1705
      %v1730 = vsel %vm295, %v1705, %v1707
      %v1731 = vsel %vm295, %v1707, %v1709
      %v1732 = vsel %vm295, %v1709, %v1711
      %v1733 = vsel %vm295, %v1711, %v1713
      %1754 = vst [vmem:[#allocation2 + $0x820] sm:$0xff] %v1714
      %1755 = vst [vmem:[#allocation2 + $0x828] sm:$0xff] %v1715
      %1756 = vst [vmem:[#allocation2 + $0x830] sm:$0xff] %v1716
      %1757 = vst [vmem:[#allocation2 + $0x838] sm:$0xff] %v1717
      %1758 = vst [vmem:[#allocation2 + $0x840] sm:$0xff] %v1718
      %1759 = vst [vmem:[#allocation2 + $0x848] sm:$0xff] %v1719
      %1760 = vst [vmem:[#allocation2 + $0x850] sm:$0xff] %v1720
      %1761 = vst [vmem:[#allocation2 + $0x858] sm:$0xff] %v1721
      %1762 = vst [vmem:[#allocation2 + $0x860] sm:$0xff] %v1722
      %1763 = vst [vmem:[#allocation2 + $0x868] sm:$0xff] %v1723
      %1764 = vst [vmem:[#allocation2 + $0x870] sm:$0xff] %v1724
      %1765 = vst [vmem:[#allocation2 + $0x878] sm:$0xff] %v1725
      %1766 = vst [vmem:[#allocation2 + $0x880] sm:$0xff] %v1726
      %1767 = vst [vmem:[#allocation2 + $0x888] sm:$0xff] %v1727
      %1768 = vst [vmem:[#allocation2 + $0x890] sm:$0xff] %v1728
      %1769 = vst [vmem:[#allocation2 + $0x898] sm:$0xff] %v1729
      %1770 = vst [vmem:[#allocation2 + $0x8a0] sm:$0xff] %v1730
      %1771 = vst [vmem:[#allocation2 + $0x8a8] sm:$0xff] %v1731
      %1772 = vst [vmem:[#allocation2 + $0x8b0] sm:$0xff] %v1732
      %1773 = vst [vmem:[#allocation2 + $0x8b8] sm:$0xff] %v1733
      %v1774 = vld [vmem:[%s165 + $0x1f8] sm:$0xff]
      %v1775 = vld [vmem:[%s165 + $0x200] sm:$0xff]
      %v1776 = vld [vmem:[%s165 + $0x208] sm:$0xff]
      %v1777 = vld [vmem:[%s165 + $0x210] sm:$0xff]
      %v1778 = vld [vmem:[%s165 + $0x218] sm:$0xff]
      %v1779 = vld [vmem:[%s165 + $0x220] sm:$0xff]
      %v1780 = vld [vmem:[%s165 + $0x228] sm:$0xff]
      %v1781 = vld [vmem:[%s165 + $0x230] sm:$0xff]
      %v1782 = vld [vmem:[%s165 + $0x238] sm:$0xff]
      %v1783 = vld [vmem:[%s165 + $0x240] sm:$0xff]
      %v1784 = vld [vmem:[%s165 + $0x248] sm:$0xff]
      %v1785 = vld [vmem:[%s165 + $0x250] sm:$0xff]
      %v1786 = vld [vmem:[%s165 + $0x258] sm:$0xff]
      %v1787 = vld [vmem:[%s165 + $0x260] sm:$0xff]
      %v1788 = vld [vmem:[%s165 + $0x268] sm:$0xff]
      %v1789 = vld [vmem:[%s165 + $0x270] sm:$0xff]
      %v1790 = vld [vmem:[%s165 + $0x278] sm:$0xff]
      %v1791 = vld [vmem:[%s165 + $0x280] sm:$0xff]
      %v1792 = vld [vmem:[%s165 + $0x288] sm:$0xff]
      %v1793 = vld [vmem:[%s165 + $0x290] sm:$0xff]
      %v1794 = vld [vmem:[%s165 + $0x298] sm:$0xff]
      %1816 = vrot.lane.b32.xlu0 %v1774, 77
      %v1817 = vpop.permute.xlu0 %1816
      %1818 = vrot.lane.b32.xlu0 %v1775, 77
      %v1819 = vpop.permute.xlu0 %1818
      %1820 = vrot.lane.b32.xlu0 %v1776, 77
      %v1821 = vpop.permute.xlu0 %1820
      %1822 = vrot.lane.b32.xlu0 %v1777, 77
      %v1823 = vpop.permute.xlu0 %1822
      %1824 = vrot.lane.b32.xlu0 %v1778, 77
      %v1825 = vpop.permute.xlu0 %1824
      %1826 = vrot.lane.b32.xlu0 %v1779, 77
      %v1827 = vpop.permute.xlu0 %1826
      %1828 = vrot.lane.b32.xlu0 %v1780, 77
      %v1829 = vpop.permute.xlu0 %1828
      %1830 = vrot.lane.b32.xlu0 %v1781, 77
      %v1831 = vpop.permute.xlu0 %1830
      %1832 = vrot.lane.b32.xlu0 %v1782, 77
      %v1833 = vpop.permute.xlu0 %1832
      %1834 = vrot.lane.b32.xlu0 %v1783, 77
      %v1835 = vpop.permute.xlu0 %1834
      %1836 = vrot.lane.b32.xlu0 %v1784, 77
      %v1837 = vpop.permute.xlu0 %1836
      %1838 = vrot.lane.b32.xlu0 %v1785, 77
      %v1839 = vpop.permute.xlu0 %1838
      %1840 = vrot.lane.b32.xlu0 %v1786, 77
      %v1841 = vpop.permute.xlu0 %1840
      %1842 = vrot.lane.b32.xlu0 %v1787, 77
      %v1843 = vpop.permute.xlu0 %1842
      %1844 = vrot.lane.b32.xlu0 %v1788, 77
      %v1845 = vpop.permute.xlu0 %1844
      %1846 = vrot.lane.b32.xlu0 %v1789, 77
      %v1847 = vpop.permute.xlu0 %1846
      %1848 = vrot.lane.b32.xlu0 %v1790, 77
      %v1849 = vpop.permute.xlu0 %1848
      %1850 = vrot.lane.b32.xlu0 %v1791, 77
      %v1851 = vpop.permute.xlu0 %1850
      %1852 = vrot.lane.b32.xlu0 %v1792, 77
      %v1853 = vpop.permute.xlu0 %1852
      %1854 = vrot.lane.b32.xlu0 %v1793, 77
      %v1855 = vpop.permute.xlu0 %1854
      %1856 = vrot.lane.b32.xlu0 %v1794, 77
      %v1857 = vpop.permute.xlu0 %1856
      %v1858 = vsel %vm440, %v1817, %v1819
      %v1859 = vsel %vm440, %v1819, %v1821
      %v1860 = vsel %vm440, %v1821, %v1823
      %v1861 = vsel %vm440, %v1823, %v1825
      %v1862 = vsel %vm440, %v1825, %v1827
      %v1863 = vsel %vm440, %v1827, %v1829
      %v1864 = vsel %vm440, %v1829, %v1831
      %v1865 = vsel %vm440, %v1831, %v1833
      %v1866 = vsel %vm440, %v1833, %v1835
      %v1867 = vsel %vm440, %v1835, %v1837
      %v1868 = vsel %vm440, %v1837, %v1839
      %v1869 = vsel %vm440, %v1839, %v1841
      %v1870 = vsel %vm440, %v1841, %v1843
      %v1871 = vsel %vm440, %v1843, %v1845
      %v1872 = vsel %vm440, %v1845, %v1847
      %v1873 = vsel %vm440, %v1847, %v1849
      %v1874 = vsel %vm440, %v1849, %v1851
      %v1875 = vsel %vm440, %v1851, %v1853
      %v1876 = vsel %vm440, %v1853, %v1855
      %v1877 = vsel %vm440, %v1855, %v1857
      %1898 = vst [vmem:[#allocation2 + $0x8c0] sm:$0xff] %v1858
      %1899 = vst [vmem:[#allocation2 + $0x8c8] sm:$0xff] %v1859
      %1900 = vst [vmem:[#allocation2 + $0x8d0] sm:$0xff] %v1860
      %1901 = vst [vmem:[#allocation2 + $0x8d8] sm:$0xff] %v1861
      %1902 = vst [vmem:[#allocation2 + $0x8e0] sm:$0xff] %v1862
      %1903 = vst [vmem:[#allocation2 + $0x8e8] sm:$0xff] %v1863
      %1904 = vst [vmem:[#allocation2 + $0x8f0] sm:$0xff] %v1864
      %1905 = vst [vmem:[#allocation2 + $0x8f8] sm:$0xff] %v1865
      %1906 = vst [vmem:[#allocation2 + $0x900] sm:$0xff] %v1866
      %1907 = vst [vmem:[#allocation2 + $0x908] sm:$0xff] %v1867
      %1908 = vst [vmem:[#allocation2 + $0x910] sm:$0xff] %v1868
      %1909 = vst [vmem:[#allocation2 + $0x918] sm:$0xff] %v1869
      %1910 = vst [vmem:[#allocation2 + $0x920] sm:$0xff] %v1870
      %1911 = vst [vmem:[#allocation2 + $0x928] sm:$0xff] %v1871
      %1912 = vst [vmem:[#allocation2 + $0x930] sm:$0xff] %v1872
      %1913 = vst [vmem:[#allocation2 + $0x938] sm:$0xff] %v1873
      %1914 = vst [vmem:[#allocation2 + $0x940] sm:$0xff] %v1874
      %1915 = vst [vmem:[#allocation2 + $0x948] sm:$0xff] %v1875
      %1916 = vst [vmem:[#allocation2 + $0x950] sm:$0xff] %v1876
      %1917 = vst [vmem:[#allocation2 + $0x958] sm:$0xff] %v1877
      %v1918 = vld [vmem:[%s165 + $0x1f8] sm:$0xff]
      %v1919 = vld [vmem:[%s165 + $0x200] sm:$0xff]
      %v1920 = vld [vmem:[%s165 + $0x208] sm:$0xff]
      %v1921 = vld [vmem:[%s165 + $0x210] sm:$0xff]
      %v1922 = vld [vmem:[%s165 + $0x218] sm:$0xff]
      %v1923 = vld [vmem:[%s165 + $0x220] sm:$0xff]
      %v1924 = vld [vmem:[%s165 + $0x228] sm:$0xff]
      %v1925 = vld [vmem:[%s165 + $0x230] sm:$0xff]
      %v1926 = vld [vmem:[%s165 + $0x238] sm:$0xff]
      %v1927 = vld [vmem:[%s165 + $0x240] sm:$0xff]
      %v1928 = vld [vmem:[%s165 + $0x248] sm:$0xff]
      %v1929 = vld [vmem:[%s165 + $0x250] sm:$0xff]
      %v1930 = vld [vmem:[%s165 + $0x258] sm:$0xff]
      %v1931 = vld [vmem:[%s165 + $0x260] sm:$0xff]
      %v1932 = vld [vmem:[%s165 + $0x268] sm:$0xff]
      %v1933 = vld [vmem:[%s165 + $0x270] sm:$0xff]
      %v1934 = vld [vmem:[%s165 + $0x278] sm:$0xff]
      %v1935 = vld [vmem:[%s165 + $0x280] sm:$0xff]
      %v1936 = vld [vmem:[%s165 + $0x288] sm:$0xff]
      %v1937 = vld [vmem:[%s165 + $0x290] sm:$0xff]
      %v1938 = vld [vmem:[%s165 + $0x298] sm:$0xff]
      %1960 = vrot.lane.b32.xlu0 %v1918, 76
      %v1961 = vpop.permute.xlu0 %1960
      %1962 = vrot.lane.b32.xlu0 %v1919, 76
      %v1963 = vpop.permute.xlu0 %1962
      %1964 = vrot.lane.b32.xlu0 %v1920, 76
      %v1965 = vpop.permute.xlu0 %1964
      %1966 = vrot.lane.b32.xlu0 %v1921, 76
      %v1967 = vpop.permute.xlu0 %1966
      %1968 = vrot.lane.b32.xlu0 %v1922, 76
      %v1969 = vpop.permute.xlu0 %1968
      %1970 = vrot.lane.b32.xlu0 %v1923, 76
      %v1971 = vpop.permute.xlu0 %1970
      %1972 = vrot.lane.b32.xlu0 %v1924, 76
      %v1973 = vpop.permute.xlu0 %1972
      %1974 = vrot.lane.b32.xlu0 %v1925, 76
      %v1975 = vpop.permute.xlu0 %1974
      %1976 = vrot.lane.b32.xlu0 %v1926, 76
      %v1977 = vpop.permute.xlu0 %1976
      %1978 = vrot.lane.b32.xlu0 %v1927, 76
      %v1979 = vpop.permute.xlu0 %1978
      %1980 = vrot.lane.b32.xlu0 %v1928, 76
      %v1981 = vpop.permute.xlu0 %1980
      %1982 = vrot.lane.b32.xlu0 %v1929, 76
      %v1983 = vpop.permute.xlu0 %1982
      %1984 = vrot.lane.b32.xlu0 %v1930, 76
      %v1985 = vpop.permute.xlu0 %1984
      %1986 = vrot.lane.b32.xlu0 %v1931, 76
      %v1987 = vpop.permute.xlu0 %1986
      %1988 = vrot.lane.b32.xlu0 %v1932, 76
      %v1989 = vpop.permute.xlu0 %1988
      %1990 = vrot.lane.b32.xlu0 %v1933, 76
      %v1991 = vpop.permute.xlu0 %1990
      %1992 = vrot.lane.b32.xlu0 %v1934, 76
      %v1993 = vpop.permute.xlu0 %1992
      %1994 = vrot.lane.b32.xlu0 %v1935, 76
      %v1995 = vpop.permute.xlu0 %1994
      %1996 = vrot.lane.b32.xlu0 %v1936, 76
      %v1997 = vpop.permute.xlu0 %1996
      %1998 = vrot.lane.b32.xlu0 %v1937, 76
      %v1999 = vpop.permute.xlu0 %1998
      %2000 = vrot.lane.b32.xlu0 %v1938, 76
      %v2001 = vpop.permute.xlu0 %2000
      %v2002 = vsel %vm585, %v1961, %v1963
      %v2003 = vsel %vm585, %v1963, %v1965
      %v2004 = vsel %vm585, %v1965, %v1967
      %v2005 = vsel %vm585, %v1967, %v1969
      %v2006 = vsel %vm585, %v1969, %v1971
      %v2007 = vsel %vm585, %v1971, %v1973
      %v2008 = vsel %vm585, %v1973, %v1975
      %v2009 = vsel %vm585, %v1975, %v1977
      %v2010 = vsel %vm585, %v1977, %v1979
      %v2011 = vsel %vm585, %v1979, %v1981
      %v2012 = vsel %vm585, %v1981, %v1983
      %v2013 = vsel %vm585, %v1983, %v1985
      %v2014 = vsel %vm585, %v1985, %v1987
      %v2015 = vsel %vm585, %v1987, %v1989
      %v2016 = vsel %vm585, %v1989, %v1991
      %v2017 = vsel %vm585, %v1991, %v1993
      %v2018 = vsel %vm585, %v1993, %v1995
      %v2019 = vsel %vm585, %v1995, %v1997
      %v2020 = vsel %vm585, %v1997, %v1999
      %v2021 = vsel %vm585, %v1999, %v2001
      %2042 = vst [vmem:[#allocation2 + $0x960] sm:$0xff] %v2002
      %2043 = vst [vmem:[#allocation2 + $0x968] sm:$0xff] %v2003
      %2044 = vst [vmem:[#allocation2 + $0x970] sm:$0xff] %v2004
      %2045 = vst [vmem:[#allocation2 + $0x978] sm:$0xff] %v2005
      %2046 = vst [vmem:[#allocation2 + $0x980] sm:$0xff] %v2006
      %2047 = vst [vmem:[#allocation2 + $0x988] sm:$0xff] %v2007
      %2048 = vst [vmem:[#allocation2 + $0x990] sm:$0xff] %v2008
      %2049 = vst [vmem:[#allocation2 + $0x998] sm:$0xff] %v2009
      %2050 = vst [vmem:[#allocation2 + $0x9a0] sm:$0xff] %v2010
      %2051 = vst [vmem:[#allocation2 + $0x9a8] sm:$0xff] %v2011
      %2052 = vst [vmem:[#allocation2 + $0x9b0] sm:$0xff] %v2012
      %2053 = vst [vmem:[#allocation2 + $0x9b8] sm:$0xff] %v2013
      %2054 = vst [vmem:[#allocation2 + $0x9c0] sm:$0xff] %v2014
      %2055 = vst [vmem:[#allocation2 + $0x9c8] sm:$0xff] %v2015
      %2056 = vst [vmem:[#allocation2 + $0x9d0] sm:$0xff] %v2016
      %2057 = vst [vmem:[#allocation2 + $0x9d8] sm:$0xff] %v2017
      %2058 = vst [vmem:[#allocation2 + $0x9e0] sm:$0xff] %v2018
      %2059 = vst [vmem:[#allocation2 + $0x9e8] sm:$0xff] %v2019
      %2060 = vst [vmem:[#allocation2 + $0x9f0] sm:$0xff] %v2020
      %2061 = vst [vmem:[#allocation2 + $0x9f8] sm:$0xff] %v2021
      %v2062 = vld [vmem:[%s1] sm:$0xff]
      %v2063 = vld [vmem:[%s1 + $0x8] sm:$0xff]
      %v2064 = vld [vmem:[%s1 + $0x10] sm:$0xff]
      %v2065 = vld [vmem:[%s1 + $0x18] sm:$0xff]
      %v2066 = vld [vmem:[#allocation2] sm:$0xff]
      %v2067 = vld [vmem:[#allocation2 + $0x8] sm:$0xff]
      %v2068 = vld [vmem:[#allocation2 + $0x10] sm:$0xff]
      %v2069 = vld [vmem:[#allocation2 + $0x18] sm:$0xff]
      %v2070 = vld [vmem:[#allocation2 + $0x20] sm:$0xff]
      %v2071 = vld [vmem:[#allocation2 + $0x28] sm:$0xff]
      %v2072 = vld [vmem:[#allocation2 + $0x30] sm:$0xff]
      %v2073 = vld [vmem:[#allocation2 + $0x38] sm:$0xff]
      %v2074 = vld [vmem:[#allocation2 + $0x40] sm:$0xff]
      %v2075 = vld [vmem:[#allocation2 + $0x48] sm:$0xff]
      %v2076 = vld [vmem:[#allocation2 + $0x50] sm:$0xff]
      %v2077 = vld [vmem:[#allocation2 + $0x58] sm:$0xff]
      %v2078 = vld [vmem:[#allocation2 + $0x60] sm:$0xff]
      %v2079 = vld [vmem:[#allocation2 + $0x68] sm:$0xff]
      %v2080 = vld [vmem:[#allocation2 + $0x70] sm:$0xff]
      %v2081 = vld [vmem:[#allocation2 + $0x78] sm:$0xff]
      %v2082 = vld [vmem:[#allocation2 + $0x80] sm:$0xff]
      %v2083 = vld [vmem:[#allocation2 + $0x88] sm:$0xff]
      %v2084 = vld [vmem:[#allocation2 + $0x90] sm:$0xff]
      %v2085 = vld [vmem:[#allocation2 + $0x98] sm:$0xff]
      %v2086 = vld [vmem:[#allocation2 + $0xa0] sm:$0xff]
      %v2087 = vld [vmem:[#allocation2 + $0xa8] sm:$0xff]
      %v2088 = vld [vmem:[#allocation2 + $0xb0] sm:$0xff]
      %v2089 = vld [vmem:[#allocation2 + $0xb8] sm:$0xff]
      %v2090 = vld [vmem:[#allocation2 + $0xc0] sm:$0xff]
      %v2091 = vld [vmem:[#allocation2 + $0xc8] sm:$0xff]
      %v2092 = vld [vmem:[#allocation2 + $0xd0] sm:$0xff]
      %v2093 = vld [vmem:[#allocation2 + $0xd8] sm:$0xff]
      %v2094 = vld [vmem:[#allocation2 + $0xe0] sm:$0xff]
      %v2095 = vld [vmem:[#allocation2 + $0xe8] sm:$0xff]
      %v2096 = vld [vmem:[#allocation2 + $0xf0] sm:$0xff]
      %v2097 = vld [vmem:[#allocation2 + $0xf8] sm:$0xff]
      %v2098 = vld [vmem:[#allocation2 + $0x100] sm:$0xff]
      %v2099 = vld [vmem:[#allocation2 + $0x108] sm:$0xff]
      %v2100 = vld [vmem:[#allocation2 + $0x110] sm:$0xff]
      %v2101 = vld [vmem:[#allocation2 + $0x118] sm:$0xff]
      %v2102 = vld [vmem:[#allocation2 + $0x120] sm:$0xff]
      %v2103 = vld [vmem:[#allocation2 + $0x128] sm:$0xff]
      %v2104 = vld [vmem:[#allocation2 + $0x130] sm:$0xff]
      %v2105 = vld [vmem:[#allocation2 + $0x138] sm:$0xff]
      %v2106 = vld [vmem:[#allocation2 + $0x140] sm:$0xff]
      %v2107 = vld [vmem:[#allocation2 + $0x148] sm:$0xff]
      %v2108 = vld [vmem:[#allocation2 + $0x150] sm:$0xff]
      %v2109 = vld [vmem:[#allocation2 + $0x158] sm:$0xff]
      %v2110 = vld [vmem:[#allocation2 + $0x160] sm:$0xff]
      %v2111 = vld [vmem:[#allocation2 + $0x168] sm:$0xff]
      %v2112 = vld [vmem:[#allocation2 + $0x170] sm:$0xff]
      %v2113 = vld [vmem:[#allocation2 + $0x178] sm:$0xff]
      %v2114 = vld [vmem:[#allocation2 + $0x180] sm:$0xff]
      %v2115 = vld [vmem:[#allocation2 + $0x188] sm:$0xff]
      %v2116 = vld [vmem:[#allocation2 + $0x190] sm:$0xff]
      %v2117 = vld [vmem:[#allocation2 + $0x198] sm:$0xff]
      %v2118 = vld [vmem:[#allocation2 + $0x1a0] sm:$0xff]
      %v2119 = vld [vmem:[#allocation2 + $0x1a8] sm:$0xff]
      %v2120 = vld [vmem:[#allocation2 + $0x1b0] sm:$0xff]
      %v2121 = vld [vmem:[#allocation2 + $0x1b8] sm:$0xff]
      %v2122 = vld [vmem:[#allocation2 + $0x1c0] sm:$0xff]
      %v2123 = vld [vmem:[#allocation2 + $0x1c8] sm:$0xff]
      %v2124 = vld [vmem:[#allocation2 + $0x1d0] sm:$0xff]
      %v2125 = vld [vmem:[#allocation2 + $0x1d8] sm:$0xff]
      %v2126 = vld [vmem:[#allocation2 + $0x1e0] sm:$0xff]
      %v2127 = vld [vmem:[#allocation2 + $0x1e8] sm:$0xff]
      %v2128 = vld [vmem:[#allocation2 + $0x1f0] sm:$0xff]
      %v2129 = vld [vmem:[#allocation2 + $0x1f8] sm:$0xff]
      %v2130 = vld [vmem:[#allocation2 + $0x200] sm:$0xff]
      %v2131 = vld [vmem:[#allocation2 + $0x208] sm:$0xff]
      %v2132 = vld [vmem:[#allocation2 + $0x210] sm:$0xff]
      %v2133 = vld [vmem:[#allocation2 + $0x218] sm:$0xff]
      %v2134 = vld [vmem:[#allocation2 + $0x220] sm:$0xff]
      %v2135 = vld [vmem:[#allocation2 + $0x228] sm:$0xff]
      %v2136 = vld [vmem:[#allocation2 + $0x230] sm:$0xff]
      %v2137 = vld [vmem:[#allocation2 + $0x238] sm:$0xff]
      %v2138 = vld [vmem:[#allocation2 + $0x240] sm:$0xff]
      %v2139 = vld [vmem:[#allocation2 + $0x248] sm:$0xff]
      %v2140 = vld [vmem:[#allocation2 + $0x250] sm:$0xff]
      %v2141 = vld [vmem:[#allocation2 + $0x258] sm:$0xff]
      %v2142 = vld [vmem:[#allocation2 + $0x260] sm:$0xff]
      %v2143 = vld [vmem:[#allocation2 + $0x268] sm:$0xff]
      %v2144 = vld [vmem:[#allocation2 + $0x270] sm:$0xff]
      %v2145 = vld [vmem:[#allocation2 + $0x278] sm:$0xff]
      %v2146 = vld [vmem:[#allocation2 + $0x280] sm:$0xff]
      %v2147 = vld [vmem:[#allocation2 + $0x288] sm:$0xff]
      %v2148 = vld [vmem:[#allocation2 + $0x290] sm:$0xff]
      %v2149 = vld [vmem:[#allocation2 + $0x298] sm:$0xff]
      %v2150 = vld [vmem:[#allocation2 + $0x2a0] sm:$0xff]
      %v2151 = vld [vmem:[#allocation2 + $0x2a8] sm:$0xff]
      %v2152 = vld [vmem:[#allocation2 + $0x2b0] sm:$0xff]
      %v2153 = vld [vmem:[#allocation2 + $0x2b8] sm:$0xff]
      %v2154 = vld [vmem:[#allocation2 + $0x2c0] sm:$0xff]
      %v2155 = vld [vmem:[#allocation2 + $0x2c8] sm:$0xff]
      %v2156 = vld [vmem:[#allocation2 + $0x2d0] sm:$0xff]
      %v2157 = vld [vmem:[#allocation2 + $0x2d8] sm:$0xff]
      %v2158 = vld [vmem:[#allocation2 + $0x2e0] sm:$0xff]
      %v2159 = vld [vmem:[#allocation2 + $0x2e8] sm:$0xff]
      %v2160 = vld [vmem:[#allocation2 + $0x2f0] sm:$0xff]
      %v2161 = vld [vmem:[#allocation2 + $0x2f8] sm:$0xff]
      %v2162 = vld [vmem:[#allocation2 + $0x300] sm:$0xff]
      %v2163 = vld [vmem:[#allocation2 + $0x308] sm:$0xff]
      %v2164 = vld [vmem:[#allocation2 + $0x310] sm:$0xff]
      %v2165 = vld [vmem:[#allocation2 + $0x318] sm:$0xff]
      %v2166 = vld [vmem:[#allocation2 + $0x320] sm:$0xff]
      %v2167 = vld [vmem:[#allocation2 + $0x328] sm:$0xff]
      %v2168 = vld [vmem:[#allocation2 + $0x330] sm:$0xff]
      %v2169 = vld [vmem:[#allocation2 + $0x338] sm:$0xff]
      %v2170 = vld [vmem:[#allocation2 + $0x340] sm:$0xff]
      %v2171 = vld [vmem:[#allocation2 + $0x348] sm:$0xff]
      %v2172 = vld [vmem:[#allocation2 + $0x350] sm:$0xff]
      %v2173 = vld [vmem:[#allocation2 + $0x358] sm:$0xff]
      %v2174 = vld [vmem:[#allocation2 + $0x360] sm:$0xff]
      %v2175 = vld [vmem:[#allocation2 + $0x368] sm:$0xff]
      %v2176 = vld [vmem:[#allocation2 + $0x370] sm:$0xff]
      %v2177 = vld [vmem:[#allocation2 + $0x378] sm:$0xff]
      %v2178 = vld [vmem:[#allocation2 + $0x380] sm:$0xff]
      %v2179 = vld [vmem:[#allocation2 + $0x388] sm:$0xff]
      %v2180 = vld [vmem:[#allocation2 + $0x390] sm:$0xff]
      %v2181 = vld [vmem:[#allocation2 + $0x398] sm:$0xff]
      %v2182 = vld [vmem:[#allocation2 + $0x3a0] sm:$0xff]
      %v2183 = vld [vmem:[#allocation2 + $0x3a8] sm:$0xff]
      %v2184 = vld [vmem:[#allocation2 + $0x3b0] sm:$0xff]
      %v2185 = vld [vmem:[#allocation2 + $0x3b8] sm:$0xff]
      %v2186 = vld [vmem:[#allocation2 + $0x3c0] sm:$0xff]
      %v2187 = vld [vmem:[#allocation2 + $0x3c8] sm:$0xff]
      %v2188 = vld [vmem:[#allocation2 + $0x3d0] sm:$0xff]
      %v2189 = vld [vmem:[#allocation2 + $0x3d8] sm:$0xff]
      %v2190 = vld [vmem:[#allocation2 + $0x3e0] sm:$0xff]
      %v2191 = vld [vmem:[#allocation2 + $0x3e8] sm:$0xff]
      %v2192 = vld [vmem:[#allocation2 + $0x3f0] sm:$0xff]
      %v2193 = vld [vmem:[#allocation2 + $0x3f8] sm:$0xff]
      %v2194 = vld [vmem:[#allocation2 + $0x400] sm:$0xff]
      %v2195 = vld [vmem:[#allocation2 + $0x408] sm:$0xff]
      %v2196 = vld [vmem:[#allocation2 + $0x410] sm:$0xff]
      %v2197 = vld [vmem:[#allocation2 + $0x418] sm:$0xff]
      %v2198 = vld [vmem:[#allocation2 + $0x420] sm:$0xff]
      %v2199 = vld [vmem:[#allocation2 + $0x428] sm:$0xff]
      %v2200 = vld [vmem:[#allocation2 + $0x430] sm:$0xff]
      %v2201 = vld [vmem:[#allocation2 + $0x438] sm:$0xff]
      %v2202 = vld [vmem:[#allocation2 + $0x440] sm:$0xff]
      %v2203 = vld [vmem:[#allocation2 + $0x448] sm:$0xff]
      %v2204 = vld [vmem:[#allocation2 + $0x450] sm:$0xff]
      %v2205 = vld [vmem:[#allocation2 + $0x458] sm:$0xff]
      %v2206 = vld [vmem:[#allocation2 + $0x460] sm:$0xff]
      %v2207 = vld [vmem:[#allocation2 + $0x468] sm:$0xff]
      %v2208 = vld [vmem:[#allocation2 + $0x470] sm:$0xff]
      %v2209 = vld [vmem:[#allocation2 + $0x478] sm:$0xff]
      %v2210 = vld [vmem:[#allocation2 + $0x480] sm:$0xff]
      %v2211 = vld [vmem:[#allocation2 + $0x488] sm:$0xff]
      %v2212 = vld [vmem:[#allocation2 + $0x490] sm:$0xff]
      %v2213 = vld [vmem:[#allocation2 + $0x498] sm:$0xff]
      %v2214 = vld [vmem:[#allocation2 + $0x4a0] sm:$0xff]
      %v2215 = vld [vmem:[#allocation2 + $0x4a8] sm:$0xff]
      %v2216 = vld [vmem:[#allocation2 + $0x4b0] sm:$0xff]
      %v2217 = vld [vmem:[#allocation2 + $0x4b8] sm:$0xff]
      %v2218 = vld [vmem:[#allocation2 + $0x4c0] sm:$0xff]
      %v2219 = vld [vmem:[#allocation2 + $0x4c8] sm:$0xff]
      %v2220 = vld [vmem:[#allocation2 + $0x4d0] sm:$0xff]
      %v2221 = vld [vmem:[#allocation2 + $0x4d8] sm:$0xff]
      %v2222 = vld [vmem:[#allocation2 + $0x4e0] sm:$0xff]
      %v2223 = vld [vmem:[#allocation2 + $0x4e8] sm:$0xff]
      %v2224 = vld [vmem:[#allocation2 + $0x4f0] sm:$0xff]
      %v2225 = vld [vmem:[#allocation2 + $0x4f8] sm:$0xff]
      %v2226 = vld [vmem:[#allocation2 + $0x500] sm:$0xff]
      %v2227 = vld [vmem:[#allocation2 + $0x508] sm:$0xff]
      %v2228 = vld [vmem:[#allocation2 + $0x510] sm:$0xff]
      %v2229 = vld [vmem:[#allocation2 + $0x518] sm:$0xff]
      %v2230 = vld [vmem:[#allocation2 + $0x520] sm:$0xff]
      %v2231 = vld [vmem:[#allocation2 + $0x528] sm:$0xff]
      %v2232 = vld [vmem:[#allocation2 + $0x530] sm:$0xff]
      %v2233 = vld [vmem:[#allocation2 + $0x538] sm:$0xff]
      %v2234 = vld [vmem:[#allocation2 + $0x540] sm:$0xff]
      %v2235 = vld [vmem:[#allocation2 + $0x548] sm:$0xff]
      %v2236 = vld [vmem:[#allocation2 + $0x550] sm:$0xff]
      %v2237 = vld [vmem:[#allocation2 + $0x558] sm:$0xff]
      %v2238 = vld [vmem:[#allocation2 + $0x560] sm:$0xff]
      %v2239 = vld [vmem:[#allocation2 + $0x568] sm:$0xff]
      %v2240 = vld [vmem:[#allocation2 + $0x570] sm:$0xff]
      %v2241 = vld [vmem:[#allocation2 + $0x578] sm:$0xff]
      %v2242 = vld [vmem:[#allocation2 + $0x580] sm:$0xff]
      %v2243 = vld [vmem:[#allocation2 + $0x588] sm:$0xff]
      %v2244 = vld [vmem:[#allocation2 + $0x590] sm:$0xff]
      %v2245 = vld [vmem:[#allocation2 + $0x598] sm:$0xff]
      %v2246 = vld [vmem:[#allocation2 + $0x5a0] sm:$0xff]
      %v2247 = vld [vmem:[#allocation2 + $0x5a8] sm:$0xff]
      %v2248 = vld [vmem:[#allocation2 + $0x5b0] sm:$0xff]
      %v2249 = vld [vmem:[#allocation2 + $0x5b8] sm:$0xff]
      %v2250 = vld [vmem:[#allocation2 + $0x5c0] sm:$0xff]
      %v2251 = vld [vmem:[#allocation2 + $0x5c8] sm:$0xff]
      %v2252 = vld [vmem:[#allocation2 + $0x5d0] sm:$0xff]
      %v2253 = vld [vmem:[#allocation2 + $0x5d8] sm:$0xff]
      %v2254 = vld [vmem:[#allocation2 + $0x5e0] sm:$0xff]
      %v2255 = vld [vmem:[#allocation2 + $0x5e8] sm:$0xff]
      %v2256 = vld [vmem:[#allocation2 + $0x5f0] sm:$0xff]
      %v2257 = vld [vmem:[#allocation2 + $0x5f8] sm:$0xff]
      %v2258 = vld [vmem:[#allocation2 + $0x600] sm:$0xff]
      %v2259 = vld [vmem:[#allocation2 + $0x608] sm:$0xff]
      %v2260 = vld [vmem:[#allocation2 + $0x610] sm:$0xff]
      %v2261 = vld [vmem:[#allocation2 + $0x618] sm:$0xff]
      %v2262 = vld [vmem:[#allocation2 + $0x620] sm:$0xff]
      %v2263 = vld [vmem:[#allocation2 + $0x628] sm:$0xff]
      %v2264 = vld [vmem:[#allocation2 + $0x630] sm:$0xff]
      %v2265 = vld [vmem:[#allocation2 + $0x638] sm:$0xff]
      %v2266 = vld [vmem:[#allocation2 + $0x640] sm:$0xff]
      %v2267 = vld [vmem:[#allocation2 + $0x648] sm:$0xff]
      %v2268 = vld [vmem:[#allocation2 + $0x650] sm:$0xff]
      %v2269 = vld [vmem:[#allocation2 + $0x658] sm:$0xff]
      %v2270 = vld [vmem:[#allocation2 + $0x660] sm:$0xff]
      %v2271 = vld [vmem:[#allocation2 + $0x668] sm:$0xff]
      %v2272 = vld [vmem:[#allocation2 + $0x670] sm:$0xff]
      %v2273 = vld [vmem:[#allocation2 + $0x678] sm:$0xff]
      %v2274 = vld [vmem:[#allocation2 + $0x680] sm:$0xff]
      %v2275 = vld [vmem:[#allocation2 + $0x688] sm:$0xff]
      %v2276 = vld [vmem:[#allocation2 + $0x690] sm:$0xff]
      %v2277 = vld [vmem:[#allocation2 + $0x698] sm:$0xff]
      %v2278 = vld [vmem:[#allocation2 + $0x6a0] sm:$0xff]
      %v2279 = vld [vmem:[#allocation2 + $0x6a8] sm:$0xff]
      %v2280 = vld [vmem:[#allocation2 + $0x6b0] sm:$0xff]
      %v2281 = vld [vmem:[#allocation2 + $0x6b8] sm:$0xff]
      %v2282 = vld [vmem:[#allocation2 + $0x6c0] sm:$0xff]
      %v2283 = vld [vmem:[#allocation2 + $0x6c8] sm:$0xff]
      %v2284 = vld [vmem:[#allocation2 + $0x6d0] sm:$0xff]
      %v2285 = vld [vmem:[#allocation2 + $0x6d8] sm:$0xff]
      %v2286 = vld [vmem:[#allocation2 + $0x6e0] sm:$0xff]
      %v2287 = vld [vmem:[#allocation2 + $0x6e8] sm:$0xff]
      %v2288 = vld [vmem:[#allocation2 + $0x6f0] sm:$0xff]
      %v2289 = vld [vmem:[#allocation2 + $0x6f8] sm:$0xff]
      %v2290 = vld [vmem:[#allocation2 + $0x700] sm:$0xff]
      %v2291 = vld [vmem:[#allocation2 + $0x708] sm:$0xff]
      %v2292 = vld [vmem:[#allocation2 + $0x710] sm:$0xff]
      %v2293 = vld [vmem:[#allocation2 + $0x718] sm:$0xff]
      %v2294 = vld [vmem:[#allocation2 + $0x720] sm:$0xff]
      %v2295 = vld [vmem:[#allocation2 + $0x728] sm:$0xff]
      %v2296 = vld [vmem:[#allocation2 + $0x730] sm:$0xff]
      %v2297 = vld [vmem:[#allocation2 + $0x738] sm:$0xff]
      %v2298 = vld [vmem:[#allocation2 + $0x740] sm:$0xff]
      %v2299 = vld [vmem:[#allocation2 + $0x748] sm:$0xff]
      %v2300 = vld [vmem:[#allocation2 + $0x750] sm:$0xff]
      %v2301 = vld [vmem:[#allocation2 + $0x758] sm:$0xff]
      %v2302 = vld [vmem:[#allocation2 + $0x760] sm:$0xff]
      %v2303 = vld [vmem:[#allocation2 + $0x768] sm:$0xff]
      %v2304 = vld [vmem:[#allocation2 + $0x770] sm:$0xff]
      %v2305 = vld [vmem:[#allocation2 + $0x778] sm:$0xff]
      %v2306 = vld [vmem:[#allocation2 + $0x780] sm:$0xff]
      %v2307 = vld [vmem:[#allocation2 + $0x788] sm:$0xff]
      %v2308 = vld [vmem:[#allocation2 + $0x790] sm:$0xff]
      %v2309 = vld [vmem:[#allocation2 + $0x798] sm:$0xff]
      %v2310 = vld [vmem:[#allocation2 + $0x7a0] sm:$0xff]
      %v2311 = vld [vmem:[#allocation2 + $0x7a8] sm:$0xff]
      %v2312 = vld [vmem:[#allocation2 + $0x7b0] sm:$0xff]
      %v2313 = vld [vmem:[#allocation2 + $0x7b8] sm:$0xff]
      %v2314 = vld [vmem:[#allocation2 + $0x7c0] sm:$0xff]
      %v2315 = vld [vmem:[#allocation2 + $0x7c8] sm:$0xff]
      %v2316 = vld [vmem:[#allocation2 + $0x7d0] sm:$0xff]
      %v2317 = vld [vmem:[#allocation2 + $0x7d8] sm:$0xff]
      %v2318 = vld [vmem:[#allocation2 + $0x7e0] sm:$0xff]
      %v2319 = vld [vmem:[#allocation2 + $0x7e8] sm:$0xff]
      %v2320 = vld [vmem:[#allocation2 + $0x7f0] sm:$0xff]
      %v2321 = vld [vmem:[#allocation2 + $0x7f8] sm:$0xff]
      %v2322 = vld [vmem:[#allocation2 + $0x800] sm:$0xff]
      %v2323 = vld [vmem:[#allocation2 + $0x808] sm:$0xff]
      %v2324 = vld [vmem:[#allocation2 + $0x810] sm:$0xff]
      %v2325 = vld [vmem:[#allocation2 + $0x818] sm:$0xff]
      %v2326 = vld [vmem:[#allocation2 + $0x820] sm:$0xff]
      %v2327 = vld [vmem:[#allocation2 + $0x828] sm:$0xff]
      %v2328 = vld [vmem:[#allocation2 + $0x830] sm:$0xff]
      %v2329 = vld [vmem:[#allocation2 + $0x838] sm:$0xff]
      %v2330 = vld [vmem:[#allocation2 + $0x840] sm:$0xff]
      %v2331 = vld [vmem:[#allocation2 + $0x848] sm:$0xff]
      %v2332 = vld [vmem:[#allocation2 + $0x850] sm:$0xff]
      %v2333 = vld [vmem:[#allocation2 + $0x858] sm:$0xff]
      %v2334 = vld [vmem:[#allocation2 + $0x860] sm:$0xff]
      %v2335 = vld [vmem:[#allocation2 + $0x868] sm:$0xff]
      %v2336 = vld [vmem:[#allocation2 + $0x870] sm:$0xff]
      %v2337 = vld [vmem:[#allocation2 + $0x878] sm:$0xff]
      %v2338 = vld [vmem:[#allocation2 + $0x880] sm:$0xff]
      %v2339 = vld [vmem:[#allocation2 + $0x888] sm:$0xff]
      %v2340 = vld [vmem:[#allocation2 + $0x890] sm:$0xff]
      %v2341 = vld [vmem:[#allocation2 + $0x898] sm:$0xff]
      %v2342 = vld [vmem:[#allocation2 + $0x8a0] sm:$0xff]
      %v2343 = vld [vmem:[#allocation2 + $0x8a8] sm:$0xff]
      %v2344 = vld [vmem:[#allocation2 + $0x8b0] sm:$0xff]
      %v2345 = vld [vmem:[#allocation2 + $0x8b8] sm:$0xff]
      %v2346 = vld [vmem:[#allocation2 + $0x8c0] sm:$0xff]
      %v2347 = vld [vmem:[#allocation2 + $0x8c8] sm:$0xff]
      %v2348 = vld [vmem:[#allocation2 + $0x8d0] sm:$0xff]
      %v2349 = vld [vmem:[#allocation2 + $0x8d8] sm:$0xff]
      %v2350 = vld [vmem:[#allocation2 + $0x8e0] sm:$0xff]
      %v2351 = vld [vmem:[#allocation2 + $0x8e8] sm:$0xff]
      %v2352 = vld [vmem:[#allocation2 + $0x8f0] sm:$0xff]
      %v2353 = vld [vmem:[#allocation2 + $0x8f8] sm:$0xff]
      %v2354 = vld [vmem:[#allocation2 + $0x900] sm:$0xff]
      %v2355 = vld [vmem:[#allocation2 + $0x908] sm:$0xff]
      %v2356 = vld [vmem:[#allocation2 + $0x910] sm:$0xff]
      %v2357 = vld [vmem:[#allocation2 + $0x918] sm:$0xff]
      %v2358 = vld [vmem:[#allocation2 + $0x920] sm:$0xff]
      %v2359 = vld [vmem:[#allocation2 + $0x928] sm:$0xff]
      %v2360 = vld [vmem:[#allocation2 + $0x930] sm:$0xff]
      %v2361 = vld [vmem:[#allocation2 + $0x938] sm:$0xff]
      %v2362 = vld [vmem:[#allocation2 + $0x940] sm:$0xff]
      %v2363 = vld [vmem:[#allocation2 + $0x948] sm:$0xff]
      %v2364 = vld [vmem:[#allocation2 + $0x950] sm:$0xff]
      %v2365 = vld [vmem:[#allocation2 + $0x958] sm:$0xff]
      %v2366 = vld [vmem:[#allocation2 + $0x960] sm:$0xff]
      %v2367 = vld [vmem:[#allocation2 + $0x968] sm:$0xff]
      %v2368 = vld [vmem:[#allocation2 + $0x970] sm:$0xff]
      %v2369 = vld [vmem:[#allocation2 + $0x978] sm:$0xff]
      %v2370 = vld [vmem:[#allocation2 + $0x980] sm:$0xff]
      %v2371 = vld [vmem:[#allocation2 + $0x988] sm:$0xff]
      %v2372 = vld [vmem:[#allocation2 + $0x990] sm:$0xff]
      %v2373 = vld [vmem:[#allocation2 + $0x998] sm:$0xff]
      %v2374 = vld [vmem:[#allocation2 + $0x9a0] sm:$0xff]
      %v2375 = vld [vmem:[#allocation2 + $0x9a8] sm:$0xff]
      %v2376 = vld [vmem:[#allocation2 + $0x9b0] sm:$0xff]
      %v2377 = vld [vmem:[#allocation2 + $0x9b8] sm:$0xff]
      %v2378 = vld [vmem:[#allocation2 + $0x9c0] sm:$0xff]
      %v2379 = vld [vmem:[#allocation2 + $0x9c8] sm:$0xff]
      %v2380 = vld [vmem:[#allocation2 + $0x9d0] sm:$0xff]
      %v2381 = vld [vmem:[#allocation2 + $0x9d8] sm:$0xff]
      %v2382 = vld [vmem:[#allocation2 + $0x9e0] sm:$0xff]
      %v2383 = vld [vmem:[#allocation2 + $0x9e8] sm:$0xff]
      %v2384 = vld [vmem:[#allocation2 + $0x9f0] sm:$0xff]
      %v2385 = vld [vmem:[#allocation2 + $0x9f8] sm:$0xff]
      %2386 = vmatprep.subr.mxu0 %v2067
      %2387 = vmatpush1.msra.mxu0 %v2066
      %2388 = vmatprep.subr.mxu0 %v2087
      %2389 = vmatpush1.msra.mxu0 %v2086
      %2390 = vmatprep.subr.mxu0 %v2107
      %2391 = vmatpush1.msra.mxu0 %v2106
      %2392 = vmatprep.subr.mxu0 %v2127
      %2393 = vmatpush1.msra.mxu0 %v2126
      %2394 = vmatprep.subr.mxu0 %v2147
      %2395 = vmatpush1.msra.mxu0 %v2146
      %2396 = vmatprep.subr.mxu0 %v2167
      %2397 = vmatpush1.msra.mxu0 %v2166
      %2398 = vmatprep.subr.mxu0 %v2187
      %2399 = vmatpush1.msra.mxu0 %v2186
      %2400 = vmatprep.subr.mxu0 %v2207
      %2401 = vmatpush1.msra.mxu0 %v2206
      %2402 = vmatprep.subr.mxu0 %v2227
      %2403 = vmatpush1.msra.mxu0 %v2226
      %2404 = vmatprep.subr.mxu0 %v2247
      %2405 = vmatpush1.msra.mxu0 %v2246
      %2406 = vmatprep.subr.mxu0 %v2267
      %2407 = vmatpush1.msra.mxu0 %v2266
      %2408 = vmatprep.subr.mxu0 %v2287
      %2409 = vmatpush1.msra.mxu0 %v2286
      %2410 = vmatprep.subr.mxu0 %v2307
      %2411 = vmatpush1.msra.mxu0 %v2306
      %2412 = vmatprep.subr.mxu0 %v2327
      %2413 = vmatpush1.msra.mxu0 %v2326
      %2414 = vmatprep.subr.mxu0 %v2347
      %2415 = vmatpush1.msra.mxu0 %v2346
      %2416 = vmatprep.subr.mxu0 %v2367
      %2417 = vmatpush1.msra.mxu0 %v2366
      %2418 = vmatprep.subr.mxu0 0.0
      %2419 = vmatpush1.msra.mxu0 0.0
      %2420 = vmatprep.subr.mxu0 0.0
      %2421 = vmatpush1.msra.mxu0 0.0
      %2422 = vmatprep.subr.mxu0 0.0
      %2423 = vmatpush1.msra.mxu0 0.0
      %2424 = vmatprep.subr.mxu0 0.0
      %2425 = vmatpush1.msra.mxu0 0.0
      %2426 = vmatprep.subr.mxu0 0.0
      %2427 = vmatpush1.msra.mxu0 0.0
      %2428 = vmatprep.subr.mxu0 0.0
      %2429 = vmatpush1.msra.mxu0 0.0
      %2430 = vmatprep.subr.mxu0 0.0
      %2431 = vmatpush1.msra.mxu0 0.0
      %2432 = vmatprep.subr.mxu0 0.0
      %2433 = vmatpush1.msra.mxu0 0.0
      %2434 = vmatprep.subr.mxu0 0.0
      %2435 = vmatpush1.msra.mxu0 0.0
      %2436 = vmatprep.subr.mxu0 0.0
      %2437 = vmatpush1.msra.mxu0 0.0
      %2438 = vmatprep.subr.mxu0 0.0
      %2439 = vmatpush1.msra.mxu0 0.0
      %2440 = vmatprep.subr.mxu0 0.0
      %2441 = vmatpush1.msra.mxu0 0.0
      %2442 = vmatprep.subr.mxu0 0.0
      %2443 = vmatpush1.msra.mxu0 0.0
      %2444 = vmatprep.subr.mxu0 0.0
      %2445 = vmatpush1.msra.mxu0 0.0
      %2446 = vmatprep.subr.mxu0 0.0
      %2447 = vmatpush1.msra.mxu0 0.0
      %2448 = vmatprep.subr.mxu0 0.0
      %2449 = vmatpush1.msra.mxu0 0.0
      %2450 = vmatprep.mubr.f32.mxu0 0.0
      %2451 = vmatmul.mubr.f32.gmra.mrb[0].mxu0 %v2062
      %v2452 = vpop.f32.mrb[0].mxu0
      %v2453 = vadd.f32 0.0, %v2452
      %v2454 = vpop.f32.mrb[0].mxu0
      %v2455 = vadd.f32 0.0, %v2454
      %2456 = vmatprep.mubr.f32.mxu0 0.0
      %2457 = vmatmul.mubr.f32.gmra.mrb[0].mxu0 %v2063
      %v2458 = vpop.f32.mrb[0].mxu0
      %v2459 = vadd.f32 0.0, %v2458
      %v2460 = vpop.f32.mrb[0].mxu0
      %v2461 = vadd.f32 0.0, %v2460
      %2462 = vmatprep.mubr.f32.mxu0 0.0
      %2463 = vmatmul.mubr.f32.gmra.mrb[0].mxu0 %v2064
      %v2464 = vpop.f32.mrb[0].mxu0
      %v2465 = vadd.f32 0.0, %v2464
      %v2466 = vpop.f32.mrb[0].mxu0
      %v2467 = vadd.f32 0.0, %v2466
      %2468 = vmatprep.mubr.f32.mxu0 0.0
      %2469 = vmatmul.mubr.f32.gmra.mrb[0].mxu0 %v2065
      %v2470 = vpop.f32.mrb[0].mxu0
      %v2471 = vadd.f32 0.0, %v2470
      %v2472 = vpop.f32.mrb[0].mxu0
      %v2473 = vadd.f32 0.0, %v2472
      %2474 = vdwg.mxu0
      %2475 = vmatprep.subr.mxu0 %v2069
      %2476 = vmatpush1.msra.mxu0 %v2068
      %2477 = vmatprep.subr.mxu0 %v2089
      %2478 = vmatpush1.msra.mxu0 %v2088
      %2479 = vmatprep.subr.mxu0 %v2109
      %2480 = vmatpush1.msra.mxu0 %v2108
      %2481 = vmatprep.subr.mxu0 %v2129
      %2482 = vmatpush1.msra.mxu0 %v2128
      %2483 = vmatprep.subr.mxu0 %v2149
      %2484 = vmatpush1.msra.mxu0 %v2148
      %2485 = vmatprep.subr.mxu0 %v2169
      %2486 = vmatpush1.msra.mxu0 %v2168
      %2487 = vmatprep.subr.mxu0 %v2189
      %2488 = vmatpush1.msra.mxu0 %v2188
      %2489 = vmatprep.subr.mxu0 %v2209
      %2490 = vmatpush1.msra.mxu0 %v2208
      %2491 = vmatprep.subr.mxu0 %v2229
      %2492 = vmatpush1.msra.mxu0 %v2228
      %2493 = vmatprep.subr.mxu0 %v2249
      %2494 = vmatpush1.msra.mxu0 %v2248
      %2495 = vmatprep.subr.mxu0 %v2269
      %2496 = vmatpush1.msra.mxu0 %v2268
      %2497 = vmatprep.subr.mxu0 %v2289
      %2498 = vmatpush1.msra.mxu0 %v2288
      %2499 = vmatprep.subr.mxu0 %v2309
      %2500 = vmatpush1.msra.mxu0 %v2308
      %2501 = vmatprep.subr.mxu0 %v2329
      %2502 = vmatpush1.msra.mxu0 %v2328
      %2503 = vmatprep.subr.mxu0 %v2349
      %2504 = vmatpush1.msra.mxu0 %v2348
      %2505 = vmatprep.subr.mxu0 %v2369
      %2506 = vmatpush1.msra.mxu0 %v2368
      %2507 = vmatprep.subr.mxu0 0.0
      %2508 = vmatpush1.msra.mxu0 0.0
      %2509 = vmatprep.subr.mxu0 0.0
      %2510 = vmatpush1.msra.mxu0 0.0
      %2511 = vmatprep.subr.mxu0 0.0
      %2512 = vmatpush1.msra.mxu0 0.0
      %2513 = vmatprep.subr.mxu0 0.0
      %2514 = vmatpush1.msra.mxu0 0.0
      %2515 = vmatprep.subr.mxu0 0.0
      %2516 = vmatpush1.msra.mxu0 0.0
      %2517 = vmatprep.subr.mxu0 0.0
      %2518 = vmatpush1.msra.mxu0 0.0
      %2519 = vmatprep.subr.mxu0 0.0
      %2520 = vmatpush1.msra.mxu0 0.0
      %2521 = vmatprep.subr.mxu0 0.0
      %2522 = vmatpush1.msra.mxu0 0.0
      %2523 = vmatprep.subr.mxu0 0.0
      %2524 = vmatpush1.msra.mxu0 0.0
      %2525 = vmatprep.subr.mxu0 0.0
      %2526 = vmatpush1.msra.mxu0 0.0
      %2527 = vmatprep.subr.mxu0 0.0
      %2528 = vmatpush1.msra.mxu0 0.0
      %2529 = vmatprep.subr.mxu0 0.0
      %2530 = vmatpush1.msra.mxu0 0.0
      %2531 = vmatprep.subr.mxu0 0.0
      %2532 = vmatpush1.msra.mxu0 0.0
      %2533 = vmatprep.subr.mxu0 0.0
      %2534 = vmatpush1.msra.mxu0 0.0
      %2535 = vmatprep.subr.mxu0 0.0
      %2536 = vmatpush1.msra.mxu0 0.0
      %2537 = vmatprep.subr.mxu0 0.0
      %2538 = vmatpush1.msra.mxu0 0.0
      %2539 = vmatprep.mubr.f32.mxu0 0.0
      %2540 = vmatmul.mubr.f32.gmra.mrb[0].mxu0 %v2062
      %v2541 = vpop.f32.mrb[0].mxu0
      %v2542 = vadd.f32 0.0, %v2541
      %v2543 = vpop.f32.mrb[0].mxu0
      %v2544 = vadd.f32 0.0, %v2543
      %2545 = vmatprep.mubr.f32.mxu0 0.0
      %2546 = vmatmul.mubr.f32.gmra.mrb[0].mxu0 %v2063
      %v2547 = vpop.f32.mrb[0].mxu0
      %v2548 = vadd.f32 0.0, %v2547
      %v2549 = vpop.f32.mrb[0].mxu0
      %v2550 = vadd.f32 0.0, %v2549
      %2551 = vmatprep.mubr.f32.mxu0 0.0
      %2552 = vmatmul.mubr.f32.gmra.mrb[0].mxu0 %v2064
      %v2553 = vpop.f32.mrb[0].mxu0
      %v2554 = vadd.f32 0.0, %v2553
      %v2555 = vpop.f32.mrb[0].mxu0
      %v2556 = vadd.f32 0.0, %v2555
      %2557 = vmatprep.mubr.f32.mxu0 0.0
      %2558 = vmatmul.mubr.f32.gmra.mrb[0].mxu0 %v2065
      %v2559 = vpop.f32.mrb[0].mxu0
      %v2560 = vadd.f32 0.0, %v2559
      %v2561 = vpop.f32.mrb[0].mxu0
      %v2562 = vadd.f32 0.0, %v2561
      %2563 = vdwg.mxu0
      %2564 = vmatprep.subr.mxu0 %v2071
      %2565 = vmatpush1.msra.mxu0 %v2070
      %2566 = vmatprep.subr.mxu0 %v2091
      %2567 = vmatpush1.msra.mxu0 %v2090
      %2568 = vmatprep.subr.mxu0 %v2111
      %2569 = vmatpush1.msra.mxu0 %v2110
      %2570 = vmatprep.subr.mxu0 %v2131
      %2571 = vmatpush1.msra.mxu0 %v2130
      %2572 = vmatprep.subr.mxu0 %v2151
      %2573 = vmatpush1.msra.mxu0 %v2150
      %2574 = vmatprep.subr.mxu0 %v2171
      %2575 = vmatpush1.msra.mxu0 %v2170
      %2576 = vmatprep.subr.mxu0 %v2191
      %2577 = vmatpush1.msra.mxu0 %v2190
      %2578 = vmatprep.subr.mxu0 %v2211
      %2579 = vmatpush1.msra.mxu0 %v2210
      %2580 = vmatprep.subr.mxu0 %v2231
      %2581 = vmatpush1.msra.mxu0 %v2230
      %2582 = vmatprep.subr.mxu0 %v2251
      %2583 = vmatpush1.msra.mxu0 %v2250
      %2584 = vmatprep.subr.mxu0 %v2271
      %2585 = vmatpush1.msra.mxu0 %v2270
      %2586 = vmatprep.subr.mxu0 %v2291
      %2587 = vmatpush1.msra.mxu0 %v2290
      %2588 = vmatprep.subr.mxu0 %v2311
      %2589 = vmatpush1.msra.mxu0 %v2310
      %2590 = vmatprep.subr.mxu0 %v2331
      %2591 = vmatpush1.msra.mxu0 %v2330
      %2592 = vmatprep.subr.mxu0 %v2351
      %2593 = vmatpush1.msra.mxu0 %v2350
      %2594 = vmatprep.subr.mxu0 %v2371
      %2595 = vmatpush1.msra.mxu0 %v2370
      %2596 = vmatprep.subr.mxu0 0.0
      %2597 = vmatpush1.msra.mxu0 0.0
      %2598 = vmatprep.subr.mxu0 0.0
      %2599 = vmatpush1.msra.mxu0 0.0
      %2600 = vmatprep.subr.mxu0 0.0
      %2601 = vmatpush1.msra.mxu0 0.0
      %2602 = vmatprep.subr.mxu0 0.0
      %2603 = vmatpush1.msra.mxu0 0.0
      %2604 = vmatprep.subr.mxu0 0.0
      %2605 = vmatpush1.msra.mxu0 0.0
      %2606 = vmatprep.subr.mxu0 0.0
      %2607 = vmatpush1.msra.mxu0 0.0
      %2608 = vmatprep.subr.mxu0 0.0
      %2609 = vmatpush1.msra.mxu0 0.0
      %2610 = vmatprep.subr.mxu0 0.0
      %2611 = vmatpush1.msra.mxu0 0.0
      %2612 = vmatprep.subr.mxu0 0.0
      %2613 = vmatpush1.msra.mxu0 0.0
      %2614 = vmatprep.subr.mxu0 0.0
      %2615 = vmatpush1.msra.mxu0 0.0
      %2616 = vmatprep.subr.mxu0 0.0
      %2617 = vmatpush1.msra.mxu0 0.0
      %2618 = vmatprep.subr.mxu0 0.0
      %2619 = vmatpush1.msra.mxu0 0.0
      %2620 = vmatprep.subr.mxu0 0.0
      %2621 = vmatpush1.msra.mxu0 0.0
      %2622 = vmatprep.subr.mxu0 0.0
      %2623 = vmatpush1.msra.mxu0 0.0
      %2624 = vmatprep.subr.mxu0 0.0
      %2625 = vmatpush1.msra.mxu0 0.0
      %2626 = vmatprep.subr.mxu0 0.0
      %2627 = vmatpush1.msra.mxu0 0.0
      %2628 = vmatprep.mubr.f32.mxu0 0.0
      %2629 = vmatmul.mubr.f32.gmra.mrb[0].mxu0 %v2062
      %v2630 = vpop.f32.mrb[0].mxu0
      %v2631 = vadd.f32 0.0, %v2630
      %v2632 = vpop.f32.mrb[0].mxu0
      %v2633 = vadd.f32 0.0, %v2632
      %2634 = vmatprep.mubr.f32.mxu0 0.0
      %2635 = vmatmul.mubr.f32.gmra.mrb[0].mxu0 %v2063
      %v2636 = vpop.f32.mrb[0].mxu0
      %v2637 = vadd.f32 0.0, %v2636
      %v2638 = vpop.f32.mrb[0].mxu0
      %v2639 = vadd.f32 0.0, %v2638
      %2640 = vmatprep.mubr.f32.mxu0 0.0
      %2641 = vmatmul.mubr.f32.gmra.mrb[0].mxu0 %v2064
      %v2642 = vpop.f32.mrb[0].mxu0
      %v2643 = vadd.f32 0.0, %v2642
      %v2644 = vpop.f32.mrb[0].mxu0
      %v2645 = vadd.f32 0.0, %v2644
      %2646 = vmatprep.mubr.f32.mxu0 0.0
      %2647 = vmatmul.mubr.f32.gmra.mrb[0].mxu0 %v2065
      %v2648 = vpop.f32.mrb[0].mxu0
      %v2649 = vadd.f32 0.0, %v2648
      %v2650 = vpop.f32.mrb[0].mxu0
      %v2651 = vadd.f32 0.0, %v2650
      %2652 = vdwg.mxu0
      %2653 = vmatprep.subr.mxu0 %v2073
      %2654 = vmatpush1.msra.mxu0 %v2072
      %2655 = vmatprep.subr.mxu0 %v2093
      %2656 = vmatpush1.msra.mxu0 %v2092
      %2657 = vmatprep.subr.mxu0 %v2113
      %2658 = vmatpush1.msra.mxu0 %v2112
      %2659 = vmatprep.subr.mxu0 %v2133
      %2660 = vmatpush1.msra.mxu0 %v2132
      %2661 = vmatprep.subr.mxu0 %v2153
      %2662 = vmatpush1.msra.mxu0 %v2152
      %2663 = vmatprep.subr.mxu0 %v2173
      %2664 = vmatpush1.msra.mxu0 %v2172
      %2665 = vmatprep.subr.mxu0 %v2193
      %2666 = vmatpush1.msra.mxu0 %v2192
      %2667 = vmatprep.subr.mxu0 %v2213
      %2668 = vmatpush1.msra.mxu0 %v2212
      %2669 = vmatprep.subr.mxu0 %v2233
      %2670 = vmatpush1.msra.mxu0 %v2232
      %2671 = vmatprep.subr.mxu0 %v2253
      %2672 = vmatpush1.msra.mxu0 %v2252
      %2673 = vmatprep.subr.mxu0 %v2273
      %2674 = vmatpush1.msra.mxu0 %v2272
      %2675 = vmatprep.subr.mxu0 %v2293
      %2676 = vmatpush1.msra.mxu0 %v2292
      %2677 = vmatprep.subr.mxu0 %v2313
      %2678 = vmatpush1.msra.mxu0 %v2312
      %2679 = vmatprep.subr.mxu0 %v2333
      %2680 = vmatpush1.msra.mxu0 %v2332
      %2681 = vmatprep.subr.mxu0 %v2353
      %2682 = vmatpush1.msra.mxu0 %v2352
      %2683 = vmatprep.subr.mxu0 %v2373
      %2684 = vmatpush1.msra.mxu0 %v2372
      %2685 = vmatprep.subr.mxu0 0.0
      %2686 = vmatpush1.msra.mxu0 0.0
      %2687 = vmatprep.subr.mxu0 0.0
      %2688 = vmatpush1.msra.mxu0 0.0
      %2689 = vmatprep.subr.mxu0 0.0
      %2690 = vmatpush1.msra.mxu0 0.0
      %2691 = vmatprep.subr.mxu0 0.0
      %2692 = vmatpush1.msra.mxu0 0.0
      %2693 = vmatprep.subr.mxu0 0.0
      %2694 = vmatpush1.msra.mxu0 0.0
      %2695 = vmatprep.subr.mxu0 0.0
      %2696 = vmatpush1.msra.mxu0 0.0
      %2697 = vmatprep.subr.mxu0 0.0
      %2698 = vmatpush1.msra.mxu0 0.0
      %2699 = vmatprep.subr.mxu0 0.0
      %2700 = vmatpush1.msra.mxu0 0.0
      %2701 = vmatprep.subr.mxu0 0.0
      %2702 = vmatpush1.msra.mxu0 0.0
      %2703 = vmatprep.subr.mxu0 0.0
      %2704 = vmatpush1.msra.mxu0 0.0
      %2705 = vmatprep.subr.mxu0 0.0
      %2706 = vmatpush1.msra.mxu0 0.0
      %2707 = vmatprep.subr.mxu0 0.0
      %2708 = vmatpush1.msra.mxu0 0.0
      %2709 = vmatprep.subr.mxu0 0.0
      %2710 = vmatpush1.msra.mxu0 0.0
      %2711 = vmatprep.subr.mxu0 0.0
      %2712 = vmatpush1.msra.mxu0 0.0
      %2713 = vmatprep.subr.mxu0 0.0
      %2714 = vmatpush1.msra.mxu0 0.0
      %2715 = vmatprep.subr.mxu0 0.0
      %2716 = vmatpush1.msra.mxu0 0.0
      %2717 = vmatprep.mubr.f32.mxu0 0.0
      %2718 = vmatmul.mubr.f32.gmra.mrb[0].mxu0 %v2062
      %v2719 = vpop.f32.mrb[0].mxu0
      %v2720 = vadd.f32 0.0, %v2719
      %v2721 = vpop.f32.mrb[0].mxu0
      %v2722 = vadd.f32 0.0, %v2721
      %2723 = vmatprep.mubr.f32.mxu0 0.0
      %2724 = vmatmul.mubr.f32.gmra.mrb[0].mxu0 %v2063
      %v2725 = vpop.f32.mrb[0].mxu0
      %v2726 = vadd.f32 0.0, %v2725
      %v2727 = vpop.f32.mrb[0].mxu0
      %v2728 = vadd.f32 0.0, %v2727
      %2729 = vmatprep.mubr.f32.mxu0 0.0
      %2730 = vmatmul.mubr.f32.gmra.mrb[0].mxu0 %v2064
      %v2731 = vpop.f32.mrb[0].mxu0
      %v2732 = vadd.f32 0.0, %v2731
      %v2733 = vpop.f32.mrb[0].mxu0
      %v2734 = vadd.f32 0.0, %v2733
      %2735 = vmatprep.mubr.f32.mxu0 0.0
      %2736 = vmatmul.mubr.f32.gmra.mrb[0].mxu0 %v2065
      %v2737 = vpop.f32.mrb[0].mxu0
      %v2738 = vadd.f32 0.0, %v2737
      %v2739 = vpop.f32.mrb[0].mxu0
      %v2740 = vadd.f32 0.0, %v2739
      %2741 = vdwg.mxu0
      %2742 = vmatprep.subr.mxu0 %v2075
      %2743 = vmatpush1.msra.mxu0 %v2074
      %2744 = vmatprep.subr.mxu0 %v2095
      %2745 = vmatpush1.msra.mxu0 %v2094
      %2746 = vmatprep.subr.mxu0 %v2115
      %2747 = vmatpush1.msra.mxu0 %v2114
      %2748 = vmatprep.subr.mxu0 %v2135
      %2749 = vmatpush1.msra.mxu0 %v2134
      %2750 = vmatprep.subr.mxu0 %v2155
      %2751 = vmatpush1.msra.mxu0 %v2154
      %2752 = vmatprep.subr.mxu0 %v2175
      %2753 = vmatpush1.msra.mxu0 %v2174
      %2754 = vmatprep.subr.mxu0 %v2195
      %2755 = vmatpush1.msra.mxu0 %v2194
      %2756 = vmatprep.subr.mxu0 %v2215
      %2757 = vmatpush1.msra.mxu0 %v2214
      %2758 = vmatprep.subr.mxu0 %v2235
      %2759 = vmatpush1.msra.mxu0 %v2234
      %2760 = vmatprep.subr.mxu0 %v2255
      %2761 = vmatpush1.msra.mxu0 %v2254
      %2762 = vmatprep.subr.mxu0 %v2275
      %2763 = vmatpush1.msra.mxu0 %v2274
      %2764 = vmatprep.subr.mxu0 %v2295
      %2765 = vmatpush1.msra.mxu0 %v2294
      %2766 = vmatprep.subr.mxu0 %v2315
      %2767 = vmatpush1.msra.mxu0 %v2314
      %2768 = vmatprep.subr.mxu0 %v2335
      %2769 = vmatpush1.msra.mxu0 %v2334
      %2770 = vmatprep.subr.mxu0 %v2355
      %2771 = vmatpush1.msra.mxu0 %v2354
      %2772 = vmatprep.subr.mxu0 %v2375
      %2773 = vmatpush1.msra.mxu0 %v2374
      %2774 = vmatprep.subr.mxu0 0.0
      %2775 = vmatpush1.msra.mxu0 0.0
      %2776 = vmatprep.subr.mxu0 0.0
      %2777 = vmatpush1.msra.mxu0 0.0
      %2778 = vmatprep.subr.mxu0 0.0
      %2779 = vmatpush1.msra.mxu0 0.0
      %2780 = vmatprep.subr.mxu0 0.0
      %2781 = vmatpush1.msra.mxu0 0.0
      %2782 = vmatprep.subr.mxu0 0.0
      %2783 = vmatpush1.msra.mxu0 0.0
      %2784 = vmatprep.subr.mxu0 0.0
      %2785 = vmatpush1.msra.mxu0 0.0
      %2786 = vmatprep.subr.mxu0 0.0
      %2787 = vmatpush1.msra.mxu0 0.0
      %2788 = vmatprep.subr.mxu0 0.0
      %2789 = vmatpush1.msra.mxu0 0.0
      %2790 = vmatprep.subr.mxu0 0.0
      %2791 = vmatpush1.msra.mxu0 0.0
      %2792 = vmatprep.subr.mxu0 0.0
      %2793 = vmatpush1.msra.mxu0 0.0
      %2794 = vmatprep.subr.mxu0 0.0
      %2795 = vmatpush1.msra.mxu0 0.0
      %2796 = vmatprep.subr.mxu0 0.0
      %2797 = vmatpush1.msra.mxu0 0.0
      %2798 = vmatprep.subr.mxu0 0.0
      %2799 = vmatpush1.msra.mxu0 0.0
      %2800 = vmatprep.subr.mxu0 0.0
      %2801 = vmatpush1.msra.mxu0 0.0
      %2802 = vmatprep.subr.mxu0 0.0
      %2803 = vmatpush1.msra.mxu0 0.0
      %2804 = vmatprep.subr.mxu0 0.0
      %2805 = vmatpush1.msra.mxu0 0.0
      %2806 = vmatprep.mubr.f32.mxu0 0.0
      %2807 = vmatmul.mubr.f32.gmra.mrb[0].mxu0 %v2062
      %v2808 = vpop.f32.mrb[0].mxu0
      %v2809 = vadd.f32 0.0, %v2808
      %v2810 = vpop.f32.mrb[0].mxu0
      %v2811 = vadd.f32 0.0, %v2810
      %2812 = vmatprep.mubr.f32.mxu0 0.0
      %2813 = vmatmul.mubr.f32.gmra.mrb[0].mxu0 %v2063
      %v2814 = vpop.f32.mrb[0].mxu0
      %v2815 = vadd.f32 0.0, %v2814
      %v2816 = vpop.f32.mrb[0].mxu0
      %v2817 = vadd.f32 0.0, %v2816
      %2818 = vmatprep.mubr.f32.mxu0 0.0
      %2819 = vmatmul.mubr.f32.gmra.mrb[0].mxu0 %v2064
      %v2820 = vpop.f32.mrb[0].mxu0
      %v2821 = vadd.f32 0.0, %v2820
      %v2822 = vpop.f32.mrb[0].mxu0
      %v2823 = vadd.f32 0.0, %v2822
      %2824 = vmatprep.mubr.f32.mxu0 0.0
      %2825 = vmatmul.mubr.f32.gmra.mrb[0].mxu0 %v2065
      %v2826 = vpop.f32.mrb[0].mxu0
      %v2827 = vadd.f32 0.0, %v2826
      %v2828 = vpop.f32.mrb[0].mxu0
      %v2829 = vadd.f32 0.0, %v2828
      %2830 = vdwg.mxu0
      %2831 = vmatprep.subr.mxu0 %v2077
      %2832 = vmatpush1.msra.mxu0 %v2076
      %2833 = vmatprep.subr.mxu0 %v2097
      %2834 = vmatpush1.msra.mxu0 %v2096
      %2835 = vmatprep.subr.mxu0 %v2117
      %2836 = vmatpush1.msra.mxu0 %v2116
      %2837 = vmatprep.subr.mxu0 %v2137
      %2838 = vmatpush1.msra.mxu0 %v2136
      %2839 = vmatprep.subr.mxu0 %v2157
      %2840 = vmatpush1.msra.mxu0 %v2156
      %2841 = vmatprep.subr.mxu0 %v2177
      %2842 = vmatpush1.msra.mxu0 %v2176
      %2843 = vmatprep.subr.mxu0 %v2197
      %2844 = vmatpush1.msra.mxu0 %v2196
      %2845 = vmatprep.subr.mxu0 %v2217
      %2846 = vmatpush1.msra.mxu0 %v2216
      %2847 = vmatprep.subr.mxu0 %v2237
      %2848 = vmatpush1.msra.mxu0 %v2236
      %2849 = vmatprep.subr.mxu0 %v2257
      %2850 = vmatpush1.msra.mxu0 %v2256
      %2851 = vmatprep.subr.mxu0 %v2277
      %2852 = vmatpush1.msra.mxu0 %v2276
      %2853 = vmatprep.subr.mxu0 %v2297
      %2854 = vmatpush1.msra.mxu0 %v2296
      %2855 = vmatprep.subr.mxu0 %v2317
      %2856 = vmatpush1.msra.mxu0 %v2316
      %2857 = vmatprep.subr.mxu0 %v2337
      %2858 = vmatpush1.msra.mxu0 %v2336
      %2859 = vmatprep.subr.mxu0 %v2357
      %2860 = vmatpush1.msra.mxu0 %v2356
      %2861 = vmatprep.subr.mxu0 %v2377
      %2862 = vmatpush1.msra.mxu0 %v2376
      %2863 = vmatprep.subr.mxu0 0.0
      %2864 = vmatpush1.msra.mxu0 0.0
      %2865 = vmatprep.subr.mxu0 0.0
      %2866 = vmatpush1.msra.mxu0 0.0
      %2867 = vmatprep.subr.mxu0 0.0
      %2868 = vmatpush1.msra.mxu0 0.0
      %2869 = vmatprep.subr.mxu0 0.0
      %2870 = vmatpush1.msra.mxu0 0.0
      %2871 = vmatprep.subr.mxu0 0.0
      %2872 = vmatpush1.msra.mxu0 0.0
      %2873 = vmatprep.subr.mxu0 0.0
      %2874 = vmatpush1.msra.mxu0 0.0
      %2875 = vmatprep.subr.mxu0 0.0
      %2876 = vmatpush1.msra.mxu0 0.0
      %2877 = vmatprep.subr.mxu0 0.0
      %2878 = vmatpush1.msra.mxu0 0.0
      %2879 = vmatprep.subr.mxu0 0.0
      %2880 = vmatpush1.msra.mxu0 0.0
      %2881 = vmatprep.subr.mxu0 0.0
      %2882 = vmatpush1.msra.mxu0 0.0
      %2883 = vmatprep.subr.mxu0 0.0
      %2884 = vmatpush1.msra.mxu0 0.0
      %2885 = vmatprep.subr.mxu0 0.0
      %2886 = vmatpush1.msra.mxu0 0.0
      %2887 = vmatprep.subr.mxu0 0.0
      %2888 = vmatpush1.msra.mxu0 0.0
      %2889 = vmatprep.subr.mxu0 0.0
      %2890 = vmatpush1.msra.mxu0 0.0
      %2891 = vmatprep.subr.mxu0 0.0
      %2892 = vmatpush1.msra.mxu0 0.0
      %2893 = vmatprep.subr.mxu0 0.0
      %2894 = vmatpush1.msra.mxu0 0.0
      %2895 = vmatprep.mubr.f32.mxu0 0.0
      %2896 = vmatmul.mubr.f32.gmra.mrb[0].mxu0 %v2062
      %v2897 = vpop.f32.mrb[0].mxu0
      %v2898 = vadd.f32 0.0, %v2897
      %v2899 = vpop.f32.mrb[0].mxu0
      %v2900 = vadd.f32 0.0, %v2899
      %2901 = vmatprep.mubr.f32.mxu0 0.0
      %2902 = vmatmul.mubr.f32.gmra.mrb[0].mxu0 %v2063
      %v2903 = vpop.f32.mrb[0].mxu0
      %v2904 = vadd.f32 0.0, %v2903
      %v2905 = vpop.f32.mrb[0].mxu0
      %v2906 = vadd.f32 0.0, %v2905
      %2907 = vmatprep.mubr.f32.mxu0 0.0
      %2908 = vmatmul.mubr.f32.gmra.mrb[0].mxu0 %v2064
      %v2909 = vpop.f32.mrb[0].mxu0
      %v2910 = vadd.f32 0.0, %v2909
      %v2911 = vpop.f32.mrb[0].mxu0
      %v2912 = vadd.f32 0.0, %v2911
      %2913 = vmatprep.mubr.f32.mxu0 0.0
      %2914 = vmatmul.mubr.f32.gmra.mrb[0].mxu0 %v2065
      %v2915 = vpop.f32.mrb[0].mxu0
      %v2916 = vadd.f32 0.0, %v2915
      %v2917 = vpop.f32.mrb[0].mxu0
      %v2918 = vadd.f32 0.0, %v2917
      %2919 = vdwg.mxu0
      %2920 = vmatprep.subr.mxu0 %v2079
      %2921 = vmatpush1.msra.mxu0 %v2078
      %2922 = vmatprep.subr.mxu0 %v2099
      %2923 = vmatpush1.msra.mxu0 %v2098
      %2924 = vmatprep.subr.mxu0 %v2119
      %2925 = vmatpush1.msra.mxu0 %v2118
      %2926 = vmatprep.subr.mxu0 %v2139
      %2927 = vmatpush1.msra.mxu0 %v2138
      %2928 = vmatprep.subr.mxu0 %v2159
      %2929 = vmatpush1.msra.mxu0 %v2158
      %2930 = vmatprep.subr.mxu0 %v2179
      %2931 = vmatpush1.msra.mxu0 %v2178
      %2932 = vmatprep.subr.mxu0 %v2199
      %2933 = vmatpush1.msra.mxu0 %v2198
      %2934 = vmatprep.subr.mxu0 %v2219
      %2935 = vmatpush1.msra.mxu0 %v2218
      %2936 = vmatprep.subr.mxu0 %v2239
      %2937 = vmatpush1.msra.mxu0 %v2238
      %2938 = vmatprep.subr.mxu0 %v2259
      %2939 = vmatpush1.msra.mxu0 %v2258
      %2940 = vmatprep.subr.mxu0 %v2279
      %2941 = vmatpush1.msra.mxu0 %v2278
      %2942 = vmatprep.subr.mxu0 %v2299
      %2943 = vmatpush1.msra.mxu0 %v2298
      %2944 = vmatprep.subr.mxu0 %v2319
      %2945 = vmatpush1.msra.mxu0 %v2318
      %2946 = vmatprep.subr.mxu0 %v2339
      %2947 = vmatpush1.msra.mxu0 %v2338
      %2948 = vmatprep.subr.mxu0 %v2359
      %2949 = vmatpush1.msra.mxu0 %v2358
      %2950 = vmatprep.subr.mxu0 %v2379
      %2951 = vmatpush1.msra.mxu0 %v2378
      %2952 = vmatprep.subr.mxu0 0.0
      %2953 = vmatpush1.msra.mxu0 0.0
      %2954 = vmatprep.subr.mxu0 0.0
      %2955 = vmatpush1.msra.mxu0 0.0
      %2956 = vmatprep.subr.mxu0 0.0
      %2957 = vmatpush1.msra.mxu0 0.0
      %2958 = vmatprep.subr.mxu0 0.0
      %2959 = vmatpush1.msra.mxu0 0.0
      %2960 = vmatprep.subr.mxu0 0.0
      %2961 = vmatpush1.msra.mxu0 0.0
      %2962 = vmatprep.subr.mxu0 0.0
      %2963 = vmatpush1.msra.mxu0 0.0
      %2964 = vmatprep.subr.mxu0 0.0
      %2965 = vmatpush1.msra.mxu0 0.0
      %2966 = vmatprep.subr.mxu0 0.0
      %2967 = vmatpush1.msra.mxu0 0.0
      %2968 = vmatprep.subr.mxu0 0.0
      %2969 = vmatpush1.msra.mxu0 0.0
      %2970 = vmatprep.subr.mxu0 0.0
      %2971 = vmatpush1.msra.mxu0 0.0
      %2972 = vmatprep.subr.mxu0 0.0
      %2973 = vmatpush1.msra.mxu0 0.0
      %2974 = vmatprep.subr.mxu0 0.0
      %2975 = vmatpush1.msra.mxu0 0.0
      %2976 = vmatprep.subr.mxu0 0.0
      %2977 = vmatpush1.msra.mxu0 0.0
      %2978 = vmatprep.subr.mxu0 0.0
      %2979 = vmatpush1.msra.mxu0 0.0
      %2980 = vmatprep.subr.mxu0 0.0
      %2981 = vmatpush1.msra.mxu0 0.0
      %2982 = vmatprep.subr.mxu0 0.0
      %2983 = vmatpush1.msra.mxu0 0.0
      %2984 = vmatprep.mubr.f32.mxu0 0.0
      %2985 = vmatmul.mubr.f32.gmra.mrb[0].mxu0 %v2062
      %v2986 = vpop.f32.mrb[0].mxu0
      %v2987 = vadd.f32 0.0, %v2986
      %v2988 = vpop.f32.mrb[0].mxu0
      %v2989 = vadd.f32 0.0, %v2988
      %2990 = vmatprep.mubr.f32.mxu0 0.0
      %2991 = vmatmul.mubr.f32.gmra.mrb[0].mxu0 %v2063
      %v2992 = vpop.f32.mrb[0].mxu0
      %v2993 = vadd.f32 0.0, %v2992
      %v2994 = vpop.f32.mrb[0].mxu0
      %v2995 = vadd.f32 0.0, %v2994
      %2996 = vmatprep.mubr.f32.mxu0 0.0
      %2997 = vmatmul.mubr.f32.gmra.mrb[0].mxu0 %v2064
      %v2998 = vpop.f32.mrb[0].mxu0
      %v2999 = vadd.f32 0.0, %v2998
      %v3000 = vpop.f32.mrb[0].mxu0
      %v3001 = vadd.f32 0.0, %v3000
      %3002 = vmatprep.mubr.f32.mxu0 0.0
      %3003 = vmatmul.mubr.f32.gmra.mrb[0].mxu0 %v2065
      %v3004 = vpop.f32.mrb[0].mxu0
      %v3005 = vadd.f32 0.0, %v3004
      %v3006 = vpop.f32.mrb[0].mxu0
      %v3007 = vadd.f32 0.0, %v3006
      %3008 = vdwg.mxu0
      %3009 = vmatprep.subr.mxu0 %v2081
      %3010 = vmatpush1.msra.mxu0 %v2080
      %3011 = vmatprep.subr.mxu0 %v2101
      %3012 = vmatpush1.msra.mxu0 %v2100
      %3013 = vmatprep.subr.mxu0 %v2121
      %3014 = vmatpush1.msra.mxu0 %v2120
      %3015 = vmatprep.subr.mxu0 %v2141
      %3016 = vmatpush1.msra.mxu0 %v2140
      %3017 = vmatprep.subr.mxu0 %v2161
      %3018 = vmatpush1.msra.mxu0 %v2160
      %3019 = vmatprep.subr.mxu0 %v2181
      %3020 = vmatpush1.msra.mxu0 %v2180
      %3021 = vmatprep.subr.mxu0 %v2201
      %3022 = vmatpush1.msra.mxu0 %v2200
      %3023 = vmatprep.subr.mxu0 %v2221
      %3024 = vmatpush1.msra.mxu0 %v2220
      %3025 = vmatprep.subr.mxu0 %v2241
      %3026 = vmatpush1.msra.mxu0 %v2240
      %3027 = vmatprep.subr.mxu0 %v2261
      %3028 = vmatpush1.msra.mxu0 %v2260
      %3029 = vmatprep.subr.mxu0 %v2281
      %3030 = vmatpush1.msra.mxu0 %v2280
      %3031 = vmatprep.subr.mxu0 %v2301
      %3032 = vmatpush1.msra.mxu0 %v2300
      %3033 = vmatprep.subr.mxu0 %v2321
      %3034 = vmatpush1.msra.mxu0 %v2320
      %3035 = vmatprep.subr.mxu0 %v2341
      %3036 = vmatpush1.msra.mxu0 %v2340
      %3037 = vmatprep.subr.mxu0 %v2361
      %3038 = vmatpush1.msra.mxu0 %v2360
      %3039 = vmatprep.subr.mxu0 %v2381
      %3040 = vmatpush1.msra.mxu0 %v2380
      %3041 = vmatprep.subr.mxu0 0.0
      %3042 = vmatpush1.msra.mxu0 0.0
      %3043 = vmatprep.subr.mxu0 0.0
      %3044 = vmatpush1.msra.mxu0 0.0
      %3045 = vmatprep.subr.mxu0 0.0
      %3046 = vmatpush1.msra.mxu0 0.0
      %3047 = vmatprep.subr.mxu0 0.0
      %3048 = vmatpush1.msra.mxu0 0.0
      %3049 = vmatprep.subr.mxu0 0.0
      %3050 = vmatpush1.msra.mxu0 0.0
      %3051 = vmatprep.subr.mxu0 0.0
      %3052 = vmatpush1.msra.mxu0 0.0
      %3053 = vmatprep.subr.mxu0 0.0
      %3054 = vmatpush1.msra.mxu0 0.0
      %3055 = vmatprep.subr.mxu0 0.0
      %3056 = vmatpush1.msra.mxu0 0.0
      %3057 = vmatprep.subr.mxu0 0.0
      %3058 = vmatpush1.msra.mxu0 0.0
      %3059 = vmatprep.subr.mxu0 0.0
      %3060 = vmatpush1.msra.mxu0 0.0
      %3061 = vmatprep.subr.mxu0 0.0
      %3062 = vmatpush1.msra.mxu0 0.0
      %3063 = vmatprep.subr.mxu0 0.0
      %3064 = vmatpush1.msra.mxu0 0.0
      %3065 = vmatprep.subr.mxu0 0.0
      %3066 = vmatpush1.msra.mxu0 0.0
      %3067 = vmatprep.subr.mxu0 0.0
      %3068 = vmatpush1.msra.mxu0 0.0
      %3069 = vmatprep.subr.mxu0 0.0
      %3070 = vmatpush1.msra.mxu0 0.0
      %3071 = vmatprep.subr.mxu0 0.0
      %3072 = vmatpush1.msra.mxu0 0.0
      %3073 = vmatprep.mubr.f32.mxu0 0.0
      %3074 = vmatmul.mubr.f32.gmra.mrb[0].mxu0 %v2062
      %v3075 = vpop.f32.mrb[0].mxu0
      %v3076 = vadd.f32 0.0, %v3075
      %v3077 = vpop.f32.mrb[0].mxu0
      %v3078 = vadd.f32 0.0, %v3077
      %3079 = vmatprep.mubr.f32.mxu0 0.0
      %3080 = vmatmul.mubr.f32.gmra.mrb[0].mxu0 %v2063
      %v3081 = vpop.f32.mrb[0].mxu0
      %v3082 = vadd.f32 0.0, %v3081
      %v3083 = vpop.f32.mrb[0].mxu0
      %v3084 = vadd.f32 0.0, %v3083
      %3085 = vmatprep.mubr.f32.mxu0 0.0
      %3086 = vmatmul.mubr.f32.gmra.mrb[0].mxu0 %v2064
      %v3087 = vpop.f32.mrb[0].mxu0
      %v3088 = vadd.f32 0.0, %v3087
      %v3089 = vpop.f32.mrb[0].mxu0
      %v3090 = vadd.f32 0.0, %v3089
      %3091 = vmatprep.mubr.f32.mxu0 0.0
      %3092 = vmatmul.mubr.f32.gmra.mrb[0].mxu0 %v2065
      %v3093 = vpop.f32.mrb[0].mxu0
      %v3094 = vadd.f32 0.0, %v3093
      %v3095 = vpop.f32.mrb[0].mxu0
      %v3096 = vadd.f32 0.0, %v3095
      %3097 = vdwg.mxu0
      %3098 = vmatprep.subr.mxu0 %v2083
      %3099 = vmatpush1.msra.mxu0 %v2082
      %3100 = vmatprep.subr.mxu0 %v2103
      %3101 = vmatpush1.msra.mxu0 %v2102
      %3102 = vmatprep.subr.mxu0 %v2123
      %3103 = vmatpush1.msra.mxu0 %v2122
      %3104 = vmatprep.subr.mxu0 %v2143
      %3105 = vmatpush1.msra.mxu0 %v2142
      %3106 = vmatprep.subr.mxu0 %v2163
      %3107 = vmatpush1.msra.mxu0 %v2162
      %3108 = vmatprep.subr.mxu0 %v2183
      %3109 = vmatpush1.msra.mxu0 %v2182
      %3110 = vmatprep.subr.mxu0 %v2203
      %3111 = vmatpush1.msra.mxu0 %v2202
      %3112 = vmatprep.subr.mxu0 %v2223
      %3113 = vmatpush1.msra.mxu0 %v2222
      %3114 = vmatprep.subr.mxu0 %v2243
      %3115 = vmatpush1.msra.mxu0 %v2242
      %3116 = vmatprep.subr.mxu0 %v2263
      %3117 = vmatpush1.msra.mxu0 %v2262
      %3118 = vmatprep.subr.mxu0 %v2283
      %3119 = vmatpush1.msra.mxu0 %v2282
      %3120 = vmatprep.subr.mxu0 %v2303
      %3121 = vmatpush1.msra.mxu0 %v2302
      %3122 = vmatprep.subr.mxu0 %v2323
      %3123 = vmatpush1.msra.mxu0 %v2322
      %3124 = vmatprep.subr.mxu0 %v2343
      %3125 = vmatpush1.msra.mxu0 %v2342
      %3126 = vmatprep.subr.mxu0 %v2363
      %3127 = vmatpush1.msra.mxu0 %v2362
      %3128 = vmatprep.subr.mxu0 %v2383
      %3129 = vmatpush1.msra.mxu0 %v2382
      %3130 = vmatprep.subr.mxu0 0.0
      %3131 = vmatpush1.msra.mxu0 0.0
      %3132 = vmatprep.subr.mxu0 0.0
      %3133 = vmatpush1.msra.mxu0 0.0
      %3134 = vmatprep.subr.mxu0 0.0
      %3135 = vmatpush1.msra.mxu0 0.0
      %3136 = vmatprep.subr.mxu0 0.0
      %3137 = vmatpush1.msra.mxu0 0.0
      %3138 = vmatprep.subr.mxu0 0.0
      %3139 = vmatpush1.msra.mxu0 0.0
      %3140 = vmatprep.subr.mxu0 0.0
      %3141 = vmatpush1.msra.mxu0 0.0
      %3142 = vmatprep.subr.mxu0 0.0
      %3143 = vmatpush1.msra.mxu0 0.0
      %3144 = vmatprep.subr.mxu0 0.0
      %3145 = vmatpush1.msra.mxu0 0.0
      %3146 = vmatprep.subr.mxu0 0.0
      %3147 = vmatpush1.msra.mxu0 0.0
      %3148 = vmatprep.subr.mxu0 0.0
      %3149 = vmatpush1.msra.mxu0 0.0
      %3150 = vmatprep.subr.mxu0 0.0
      %3151 = vmatpush1.msra.mxu0 0.0
      %3152 = vmatprep.subr.mxu0 0.0
      %3153 = vmatpush1.msra.mxu0 0.0
      %3154 = vmatprep.subr.mxu0 0.0
      %3155 = vmatpush1.msra.mxu0 0.0
      %3156 = vmatprep.subr.mxu0 0.0
      %3157 = vmatpush1.msra.mxu0 0.0
      %3158 = vmatprep.subr.mxu0 0.0
      %3159 = vmatpush1.msra.mxu0 0.0
      %3160 = vmatprep.subr.mxu0 0.0
      %3161 = vmatpush1.msra.mxu0 0.0
      %3162 = vmatprep.mubr.f32.mxu0 0.0
      %3163 = vmatmul.mubr.f32.gmra.mrb[0].mxu0 %v2062
      %v3164 = vpop.f32.mrb[0].mxu0
      %v3165 = vadd.f32 0.0, %v3164
      %v3166 = vpop.f32.mrb[0].mxu0
      %v3167 = vadd.f32 0.0, %v3166
      %3168 = vmatprep.mubr.f32.mxu0 0.0
      %3169 = vmatmul.mubr.f32.gmra.mrb[0].mxu0 %v2063
      %v3170 = vpop.f32.mrb[0].mxu0
      %v3171 = vadd.f32 0.0, %v3170
      %v3172 = vpop.f32.mrb[0].mxu0
      %v3173 = vadd.f32 0.0, %v3172
      %3174 = vmatprep.mubr.f32.mxu0 0.0
      %3175 = vmatmul.mubr.f32.gmra.mrb[0].mxu0 %v2064
      %v3176 = vpop.f32.mrb[0].mxu0
      %v3177 = vadd.f32 0.0, %v3176
      %v3178 = vpop.f32.mrb[0].mxu0
      %v3179 = vadd.f32 0.0, %v3178
      %3180 = vmatprep.mubr.f32.mxu0 0.0
      %3181 = vmatmul.mubr.f32.gmra.mrb[0].mxu0 %v2065
      %v3182 = vpop.f32.mrb[0].mxu0
      %v3183 = vadd.f32 0.0, %v3182
      %v3184 = vpop.f32.mrb[0].mxu0
      %v3185 = vadd.f32 0.0, %v3184
      %3186 = vdwg.mxu0
      %3187 = vmatprep.subr.mxu0 %v2085
      %3188 = vmatpush1.msra.mxu0 %v2084
      %3189 = vmatprep.subr.mxu0 %v2105
      %3190 = vmatpush1.msra.mxu0 %v2104
      %3191 = vmatprep.subr.mxu0 %v2125
      %3192 = vmatpush1.msra.mxu0 %v2124
      %3193 = vmatprep.subr.mxu0 %v2145
      %3194 = vmatpush1.msra.mxu0 %v2144
      %3195 = vmatprep.subr.mxu0 %v2165
      %3196 = vmatpush1.msra.mxu0 %v2164
      %3197 = vmatprep.subr.mxu0 %v2185
      %3198 = vmatpush1.msra.mxu0 %v2184
      %3199 = vmatprep.subr.mxu0 %v2205
      %3200 = vmatpush1.msra.mxu0 %v2204
      %3201 = vmatprep.subr.mxu0 %v2225
      %3202 = vmatpush1.msra.mxu0 %v2224
      %3203 = vmatprep.subr.mxu0 %v2245
      %3204 = vmatpush1.msra.mxu0 %v2244
      %3205 = vmatprep.subr.mxu0 %v2265
      %3206 = vmatpush1.msra.mxu0 %v2264
      %3207 = vmatprep.subr.mxu0 %v2285
      %3208 = vmatpush1.msra.mxu0 %v2284
      %3209 = vmatprep.subr.mxu0 %v2305
      %3210 = vmatpush1.msra.mxu0 %v2304
      %3211 = vmatprep.subr.mxu0 %v2325
      %3212 = vmatpush1.msra.mxu0 %v2324
      %3213 = vmatprep.subr.mxu0 %v2345
      %3214 = vmatpush1.msra.mxu0 %v2344
      %3215 = vmatprep.subr.mxu0 %v2365
      %3216 = vmatpush1.msra.mxu0 %v2364
      %3217 = vmatprep.subr.mxu0 %v2385
      %3218 = vmatpush1.msra.mxu0 %v2384
      %3219 = vmatprep.subr.mxu0 0.0
      %3220 = vmatpush1.msra.mxu0 0.0
      %3221 = vmatprep.subr.mxu0 0.0
      %3222 = vmatpush1.msra.mxu0 0.0
      %3223 = vmatprep.subr.mxu0 0.0
      %3224 = vmatpush1.msra.mxu0 0.0
      %3225 = vmatprep.subr.mxu0 0.0
      %3226 = vmatpush1.msra.mxu0 0.0
      %3227 = vmatprep.subr.mxu0 0.0
      %3228 = vmatpush1.msra.mxu0 0.0
      %3229 = vmatprep.subr.mxu0 0.0
      %3230 = vmatpush1.msra.mxu0 0.0
      %3231 = vmatprep.subr.mxu0 0.0
      %3232 = vmatpush1.msra.mxu0 0.0
      %3233 = vmatprep.subr.mxu0 0.0
      %3234 = vmatpush1.msra.mxu0 0.0
      %3235 = vmatprep.subr.mxu0 0.0
      %3236 = vmatpush1.msra.mxu0 0.0
      %3237 = vmatprep.subr.mxu0 0.0
      %3238 = vmatpush1.msra.mxu0 0.0
      %3239 = vmatprep.subr.mxu0 0.0
      %3240 = vmatpush1.msra.mxu0 0.0
      %3241 = vmatprep.subr.mxu0 0.0
      %3242 = vmatpush1.msra.mxu0 0.0
      %3243 = vmatprep.subr.mxu0 0.0
      %3244 = vmatpush1.msra.mxu0 0.0
      %3245 = vmatprep.subr.mxu0 0.0
      %3246 = vmatpush1.msra.mxu0 0.0
      %3247 = vmatprep.subr.mxu0 0.0
      %3248 = vmatpush1.msra.mxu0 0.0
      %3249 = vmatprep.subr.mxu0 0.0
      %3250 = vmatpush1.msra.mxu0 0.0
      %3251 = vmatprep.mubr.f32.mxu0 0.0
      %3252 = vmatmul.mubr.f32.gmra.mrb[0].mxu0 %v2062
      %v3253 = vpop.f32.mrb[0].mxu0
      %v3254 = vadd.f32 0.0, %v3253
      %v3255 = vpop.f32.mrb[0].mxu0
      %v3256 = vadd.f32 0.0, %v3255
      %3257 = vmatprep.mubr.f32.mxu0 0.0
      %3258 = vmatmul.mubr.f32.gmra.mrb[0].mxu0 %v2063
      %v3259 = vpop.f32.mrb[0].mxu0
      %v3260 = vadd.f32 0.0, %v3259
      %v3261 = vpop.f32.mrb[0].mxu0
      %v3262 = vadd.f32 0.0, %v3261
      %3263 = vmatprep.mubr.f32.mxu0 0.0
      %3264 = vmatmul.mubr.f32.gmra.mrb[0].mxu0 %v2064
      %v3265 = vpop.f32.mrb[0].mxu0
      %v3266 = vadd.f32 0.0, %v3265
      %v3267 = vpop.f32.mrb[0].mxu0
      %v3268 = vadd.f32 0.0, %v3267
      %3269 = vmatprep.mubr.f32.mxu0 0.0
      %3270 = vmatmul.mubr.f32.gmra.mrb[0].mxu0 %v2065
      %v3271 = vpop.f32.mrb[0].mxu0
      %v3272 = vadd.f32 0.0, %v3271
      %v3273 = vpop.f32.mrb[0].mxu0
      %v3274 = vadd.f32 0.0, %v3273
      %3275 = vdwg.mxu0
      %v3276 = vmax.f32 %v2453, %v2459
      %v3277 = vmax.f32 %v2455, %v2461
      %v3278 = vmax.f32 %v2542, %v2548
      %v3279 = vmax.f32 %v2544, %v2550
      %v3280 = vmax.f32 %v2631, %v2637
      %v3281 = vmax.f32 %v2633, %v2639
      %v3282 = vmax.f32 %v2720, %v2726
      %v3283 = vmax.f32 %v2722, %v2728
      %v3284 = vmax.f32 %v2809, %v2815
      %v3285 = vmax.f32 %v2811, %v2817
      %v3286 = vmax.f32 %v2898, %v2904
      %v3287 = vmax.f32 %v2900, %v2906
      %v3288 = vmax.f32 %v2987, %v2993
      %v3289 = vmax.f32 %v2989, %v2995
      %v3290 = vmax.f32 %v3076, %v3082
      %v3291 = vmax.f32 %v3078, %v3084
      %v3292 = vmax.f32 %v3165, %v3171
      %v3293 = vmax.f32 %v3167, %v3173
      %v3294 = vmax.f32 %v3254, %v3260
      %v3295 = vmax.f32 %v3256, %v3262
      %v3296 = vmax.f32 %v2465, %v2471
      %v3297 = vmax.f32 %v2467, %v2473
      %v3298 = vmax.f32 %v2554, %v2560
      %v3299 = vmax.f32 %v2556, %v2562
      %v3300 = vmax.f32 %v2643, %v2649
      %v3301 = vmax.f32 %v2645, %v2651
      %v3302 = vmax.f32 %v2732, %v2738
      %v3303 = vmax.f32 %v2734, %v2740
      %v3304 = vmax.f32 %v2821, %v2827
      %v3305 = vmax.f32 %v2823, %v2829
      %v3306 = vmax.f32 %v2910, %v2916
      %v3307 = vmax.f32 %v2912, %v2918
      %v3308 = vmax.f32 %v2999, %v3005
      %v3309 = vmax.f32 %v3001, %v3007
      %v3310 = vmax.f32 %v3088, %v3094
      %v3311 = vmax.f32 %v3090, %v3096
      %v3312 = vmax.f32 %v3177, %v3183
      %v3313 = vmax.f32 %v3179, %v3185
      %v3314 = vmax.f32 %v3266, %v3272
      %v3315 = vmax.f32 %v3268, %v3274
      %v3316 = vmax.f32 %v3276, %v3296
      %v3317 = vmax.f32 %v3277, %v3297
      %v3318 = vmax.f32 %v3278, %v3298
      %v3319 = vmax.f32 %v3279, %v3299
      %v3320 = vmax.f32 %v3280, %v3300
      %v3321 = vmax.f32 %v3281, %v3301
      %v3322 = vmax.f32 %v3282, %v3302
      %v3323 = vmax.f32 %v3283, %v3303
      %v3324 = vmax.f32 %v3284, %v3304
      %v3325 = vmax.f32 %v3285, %v3305
      %v3326 = vmax.f32 %v3286, %v3306
      %v3327 = vmax.f32 %v3287, %v3307
      %v3328 = vmax.f32 %v3288, %v3308
      %v3329 = vmax.f32 %v3289, %v3309
      %v3330 = vmax.f32 %v3290, %v3310
      %v3331 = vmax.f32 %v3291, %v3311
      %v3332 = vmax.f32 %v3292, %v3312
      %v3333 = vmax.f32 %v3293, %v3313
      %v3334 = vmax.f32 %v3294, %v3314
      %v3335 = vmax.f32 %v3295, %v3315
      %v3336 = vld [vmem:[%s2] sm:$0xff]
      %3338 = vset.pattern.permute.xlu0 0
      %3339 = vperm.xlu0 %3338, %v3336
      %v3340 = vpop.permute.xlu0 %3339
      %v3342 = vadd.f32 %v3316, %v3340
      %v3343 = vadd.f32 %v3317, %v3340
      %v3344 = vadd.f32 %v3318, %v3340
      %v3345 = vadd.f32 %v3319, %v3340
      %v3346 = vadd.f32 %v3320, %v3340
      %v3347 = vadd.f32 %v3321, %v3340
      %v3348 = vadd.f32 %v3322, %v3340
      %v3349 = vadd.f32 %v3323, %v3340
      %v3350 = vadd.f32 %v3324, %v3340
      %v3351 = vadd.f32 %v3325, %v3340
      %v3352 = vadd.f32 %v3326, %v3340
      %v3353 = vadd.f32 %v3327, %v3340
      %v3354 = vadd.f32 %v3328, %v3340
      %v3355 = vadd.f32 %v3329, %v3340
      %v3356 = vadd.f32 %v3330, %v3340
      %v3357 = vadd.f32 %v3331, %v3340
      %v3358 = vadd.f32 %v3332, %v3340
      %v3359 = vadd.f32 %v3333, %v3340
      %v3360 = vadd.f32 %v3334, %v3340
      %v3361 = vadd.f32 %v3335, %v3340
      %v3362 = vmax.f32 %v3342, 0.0
      %v3363 = vmax.f32 %v3343, 0.0
      %v3364 = vmax.f32 %v3344, 0.0
      %v3365 = vmax.f32 %v3345, 0.0
      %v3366 = vmax.f32 %v3346, 0.0
      %v3367 = vmax.f32 %v3347, 0.0
      %v3368 = vmax.f32 %v3348, 0.0
      %v3369 = vmax.f32 %v3349, 0.0
      %v3370 = vmax.f32 %v3350, 0.0
      %v3371 = vmax.f32 %v3351, 0.0
      %v3372 = vmax.f32 %v3352, 0.0
      %v3373 = vmax.f32 %v3353, 0.0
      %v3374 = vmax.f32 %v3354, 0.0
      %v3375 = vmax.f32 %v3355, 0.0
      %v3376 = vmax.f32 %v3356, 0.0
      %v3377 = vmax.f32 %v3357, 0.0
      %v3378 = vmax.f32 %v3358, 0.0
      %v3379 = vmax.f32 %v3359, 0.0
      %v3380 = vmax.f32 %v3360, 0.0
      %v3381 = vmax.f32 %v3361, 0.0
      %3382 = vst [vmem:[%s170] sm:$0xff] %v3362
      %3383 = vst [vmem:[%s170 + $0x8] sm:$0xff] %v3363
      %3384 = vst [vmem:[%s170 + $0x10] sm:$0xff] %v3364
      %3385 = vst [vmem:[%s170 + $0x18] sm:$0xff] %v3365
      %3386 = vst [vmem:[%s170 + $0x20] sm:$0xff] %v3366
      %3387 = vst [vmem:[%s170 + $0x28] sm:$0xff] %v3367
      %3388 = vst [vmem:[%s170 + $0x30] sm:$0xff] %v3368
      %3389 = vst [vmem:[%s170 + $0x38] sm:$0xff] %v3369
      %3390 = vst [vmem:[%s170 + $0x40] sm:$0xff] %v3370
      %3391 = vst [vmem:[%s170 + $0x48] sm:$0xff] %v3371
      %3392 = vst [vmem:[%s170 + $0x50] sm:$0xff] %v3372
      %3393 = vst [vmem:[%s170 + $0x58] sm:$0xff] %v3373
      %3394 = vst [vmem:[%s170 + $0x60] sm:$0xff] %v3374
      %3395 = vst [vmem:[%s170 + $0x68] sm:$0xff] %v3375
      %3396 = vst [vmem:[%s170 + $0x70] sm:$0xff] %v3376
      %3397 = vst [vmem:[%s170 + $0x78] sm:$0xff] %v3377
      %3398 = vst [vmem:[%s170 + $0x80] sm:$0xff] %v3378
      %3399 = vst [vmem:[%s170 + $0x88] sm:$0xff] %v3379
      %3400 = vst [vmem:[%s170 + $0x90] sm:$0xff] %v3380
      %3401 = vst [vmem:[%s170 + $0x98] sm:$0xff] %v3381
      %p3402 = scmp.lt.s32.totalorder %s14, 1
      %s3403 = scalar_select %p3402, %s14, 1
      %s3404 = smul.addr %s3403, 20
      %s3405 = smul.addr %s3404, 8
      %s3406 = scalar_lea.vmem %s3, %s3405
      // Predicated region
      $region33: #{_lambda_.3} parent=31 // pred_check
        %p3407 = pneg %p100
      $region34: #{_lambda_.3} parent=31 // pred_check_branch
        %3409 = sbr.rel (%p3407) target = $region36
      $region35: #{_lambda_.3} parent=31 // pred_region
        _
      $region36: #{_lambda_.3} parent=31 // pred_fallthru
        _
    $region32: #{_lambda_.3} parent=5 // pred_fallthru
      _
    %p3410 = scmp.le.s32.totalorder 2, %s9
    // Predicated region
    $region37: #{_lambda_.3} parent=5 // pred_check
      %p3411 = pneg %p3410
    $region38: #{_lambda_.3} parent=5 // pred_check_branch
      %3413 = sbr.rel (%p3411) target = $region40
    $region39: #{_lambda_.3} parent=5 // pred_region
      %s3414 = ssub.s32 %s9, 2
      // Predicated region
      $region41: #{_lambda_.3} parent=39 // pred_check
        %p3415 = pneg %p106
      $region42: #{_lambda_.3} parent=39 // pred_check_branch
        %3417 = sbr.rel (%p3415) target = $region44
      $region43: #{_lambda_.3} parent=39 // pred_region
        %p3418 = scmp.lt.s32.totalorder %s15, 1
        %s3419 = scalar_select %p3418, %s15, 1
        %s3420 = smul.addr %s3419, 20
        %s3421 = smul.addr %s3420, 8
        %s3422 = scalar_lea.vmem %s3, %s3421
      $region44: #{_lambda_.3} parent=39 // pred_fallthru
        _
    $region40: #{_lambda_.3} parent=5 // pred_fallthru
      _
  $region6: #{_lambda_.3} parent=0 // loop_footer
    %s13 = sadd.s32 1, %s9
  $region7: #{_lambda_.3} parent=0 // loop_footer_branch
    %8 = sbr.rel target = $region3
  $region8: #{_lambda_.3} parent=0 // loop_exit
    _

// kernel: _lambda_.4
$region0: #{_lambda_.4}
  #allocation0 [shape = 'u32[]', space=smem, size = 0x4, offset = 0x4, fixed_abs, tag = 'smem constant byte address 0x4 - core index']
  #allocation1 [shape = 'u32[144,128]{1,0:T(1,128)}', space=vmem, size = 0x12000, scoped, tag = 'internal scratch']
  #allocation2 [shape = 'f32[128,768]{1,0:T(8,128)}', space=vmem, size = 0x60000, scoped, tag = 'scratch operand']
  %s0 = inlined_call_operand.vmem [shape: f32[2,32,896], index: 0, kind: input, shape index: {}]
  %s1 = inlined_call_operand.vmem [shape: f32[64,128], index: 1, kind: input, shape index: {}]
  %s2 = inlined_call_operand.vmem [shape: f32[16,1], index: 2, kind: input, shape index: {}]
  %s3 = inlined_call_operand.vmem [shape: f32[2,16,768], index: 3, kind: output, shape index: {}]
  %s4 = sld [smem:[#allocation0]]
  $region45: #{_lambda_.4} parent=0
    _
  %s6 = ssub.s32 1, %s4
  %s7 = scalar_select 0, %s6, %s4
  loop: start=0, step=1, limit=4
  $region2: #{_lambda_.4} parent=0 // loop_pre_header
    _
  $region3: #{_lambda_.4} parent=0 // loop_header
    %s9 = sphi 0, %s13
    %p10 = scmp.ge.s32.totalorder %s9, 4
    %s19 = sphi 0, %s21
    %s22 = sphi 0, %s19
    %s23 = sphi 0, %s22
    %s39 = sphi 0, %s23
    %s43 = sphi 0, %s43
    %s45 = sphi 0, %s43
    %s46 = sphi 0, %s45
    %s60 = sphi 0, %s46
    %s64 = sphi 0, %s64
    %s66 = sphi 0, %s64
    %s67 = sphi 0, %s66
    %s81 = sphi 0, %s67
    %s87 = sphi 0, %s89
    %s90 = sphi 0, %s87
    %s91 = sphi 0, %s90
    %s107 = sphi 0, %s91
  $region4: #{_lambda_.4} parent=0 // loop_header_branch
    %12 = sbr.rel (%p10) target = $region8
  $region5: #{_lambda_.4} parent=0 // loop_body
    %s14 = ssub.s32 %s9, 1
    %s15 = ssub.s32 %s9, 2
    %s16 = sadd.s32 %s9, 1
    %s17 = ssub.s32 %s9, %s16
    %p18 = scmp.eq.s32.totalorder %s17, 0
    %s20 = sadd.s32 %s19, 1
    %s21 = scalar_select %p18, %s19, %s20
    %p24 = pneg %p18
    %p25 = scmp.eq.s32.totalorder %s9, 1
    %p26 = por %p24, %p25
    %p27 = scmp.ne.s32.totalorder %s19, %s22
    %p28 = scmp.eq.s32.totalorder %s9, 0
    %p29 = por %p27, %p28
    %p30 = scmp.ne.s32.totalorder %s19, %s22
    %p31 = scmp.eq.s32.totalorder %s14, 1
    %p32 = por %p30, %p31
    %p33 = scmp.ne.s32.totalorder %s22, %s23
    %p34 = scmp.eq.s32.totalorder %s14, 0
    %p35 = por %p33, %p34
    %p36 = scmp.ne.s32.totalorder %s22, %s23
    %p37 = scmp.eq.s32.totalorder %s15, 1
    %p38 = por %p36, %p37
    %p40 = scmp.ne.s32.totalorder %s23, %s39
    %p41 = scmp.eq.s32.totalorder %s15, 0
    %p42 = por %p40, %p41
    %s44 = sadd.s32 %s43, 1
    %p47 = scmp.eq.s32.totalorder %s9, 1
    %p48 = scmp.ne.s32.totalorder %s43, %s45
    %p49 = scmp.eq.s32.totalorder %s9, 0
    %p50 = por %p48, %p49
    %p51 = scmp.ne.s32.totalorder %s43, %s45
    %p52 = scmp.eq.s32.totalorder %s14, 1
    %p53 = por %p51, %p52
    %p54 = scmp.ne.s32.totalorder %s45, %s46
    %p55 = scmp.eq.s32.totalorder %s14, 0
    %p56 = por %p54, %p55
    %p57 = scmp.ne.s32.totalorder %s45, %s46
    %p58 = scmp.eq.s32.totalorder %s15, 1
    %p59 = por %p57, %p58
    %p61 = scmp.ne.s32.totalorder %s46, %s60
    %p62 = scmp.eq.s32.totalorder %s15, 0
    %p63 = por %p61, %p62
    %s65 = sadd.s32 %s64, 1
    %p68 = scmp.eq.s32.totalorder %s9, 1
    %p69 = scmp.ne.s32.totalorder %s64, %s66
    %p70 = scmp.eq.s32.totalorder %s9, 0
    %p71 = por %p69, %p70
    %p72 = scmp.ne.s32.totalorder %s64, %s66
    %p73 = scmp.eq.s32.totalorder %s14, 1
    %p74 = por %p72, %p73
    %p75 = scmp.ne.s32.totalorder %s66, %s67
    %p76 = scmp.eq.s32.totalorder %s14, 0
    %p77 = por %p75, %p76
    %p78 = scmp.ne.s32.totalorder %s66, %s67
    %p79 = scmp.eq.s32.totalorder %s15, 1
    %p80 = por %p78, %p79
    %p82 = scmp.ne.s32.totalorder %s67, %s81
    %p83 = scmp.eq.s32.totalorder %s15, 0
    %p84 = por %p82, %p83
    %s85 = ssub.s32 %s9, %s16
    %p86 = scmp.eq.s32.totalorder %s85, 0
    %s88 = sadd.s32 %s87, 1
    %s89 = scalar_select %p86, %s87, %s88
    %p92 = pneg %p86
    %p93 = scmp.eq.s32.totalorder %s9, 1
    %p94 = por %p92, %p93
    %p95 = scmp.ne.s32.totalorder %s87, %s90
    %p96 = scmp.eq.s32.totalorder %s9, 0
    %p97 = por %p95, %p96
    %p98 = scmp.ne.s32.totalorder %s87, %s90
    %p99 = scmp.eq.s32.totalorder %s14, 1
    %p100 = por %p98, %p99
    %p101 = scmp.ne.s32.totalorder %s90, %s91
    %p102 = scmp.eq.s32.totalorder %s14, 0
    %p103 = por %p101, %p102
    %p104 = scmp.ne.s32.totalorder %s90, %s91
    %p105 = scmp.eq.s32.totalorder %s15, 1
    %p106 = por %p104, %p105
    %p108 = scmp.ne.s32.totalorder %s91, %s107
    %p109 = scmp.eq.s32.totalorder %s15, 0
    %p110 = por %p108, %p109
    %p111 = scmp.le.s32.totalorder 1, %s9
    %p112 = scmp.lt.s32.totalorder %s9, 3
    %p113 = pnand %p111, %p112
    %p114 = pneg %p113
    // Predicated region
    $region9: #{_lambda_.4} parent=5 // pred_check
      _
    $region10: #{_lambda_.4} parent=5 // pred_check_branch
      %116 = sbr.rel (%p113) target = $region12
    $region11: #{_lambda_.4} parent=5 // pred_region
      %s117 = ssub.s32 %s9, 1
      // Predicated region
      $region13: #{_lambda_.4} parent=11 // pred_check
        %p118 = pneg %p56
      $region14: #{_lambda_.4} parent=11 // pred_check_branch
        %120 = sbr.rel (%p118) target = $region16
      $region15: #{_lambda_.4} parent=11 // pred_region
        _
      $region16: #{_lambda_.4} parent=11 // pred_fallthru
        _
      // Predicated region
      $region17: #{_lambda_.4} parent=11 // pred_check
        %p121 = pneg %p77
      $region18: #{_lambda_.4} parent=11 // pred_check_branch
        %123 = sbr.rel (%p121) target = $region20
      $region19: #{_lambda_.4} parent=11 // pred_region
        _
      $region20: #{_lambda_.4} parent=11 // pred_fallthru
        _
    $region12: #{_lambda_.4} parent=5 // pred_fallthru
      _
    %p124 = scmp.lt.s32.totalorder %s9, 2
    // Predicated region
    $region21: #{_lambda_.4} parent=5 // pred_check
      %p125 = pneg %p124
    $region22: #{_lambda_.4} parent=5 // pred_check_branch
      %127 = sbr.rel (%p125) target = $region24
    $region23: #{_lambda_.4} parent=5 // pred_region
      // Predicated region
      $region25: #{_lambda_.4} parent=23 // pred_check
        %p128 = pneg %p29
      $region26: #{_lambda_.4} parent=23 // pred_check_branch
        %130 = sbr.rel (%p128) target = $region28
      $region27: #{_lambda_.4} parent=23 // pred_region
        %p131 = scmp.lt.s32.totalorder %s9, 1
        %s132 = scalar_select %p131, %s9, 1
        %s133 = smul.addr %s132, 28
        %s134 = smul.addr %s133, 8
        %s135 = scalar_lea.vmem %s0, %s134
      $region28: #{_lambda_.4} parent=23 // pred_fallthru
        _
    $region24: #{_lambda_.4} parent=5 // pred_fallthru
      _
    %p136 = scmp.le.s32.totalorder 1, %s9
    %p137 = scmp.lt.s32.totalorder %s9, 3
    %p138 = pnand %p136, %p137
    %p139 = pneg %p138
    // Predicated region
    $region29: #{_lambda_.4} parent=5 // pred_check
      _
    $region30: #{_lambda_.4} parent=5 // pred_check_branch
      %141 = sbr.rel (%p138) target = $region32
    $region31: #{_lambda_.4} parent=5 // pred_region
      %s142 = ssub.s32 %s9, 1
      %p143 = scmp.lt.s32.totalorder %s14, 1
      %s144 = scalar_select %p143, %s14, 1
      %s145 = smul.addr %s144, 28
      %s146 = smul.addr %s145, 8
      %s147 = scalar_lea.vmem %s0, %s146
      %p148 = pneg %p35
      %p149 = pneg %p32
      %p150 = pneg %p56
      %p151 = pneg %p53
      %p152 = pneg %p77
      %p153 = pneg %p74
      %p154 = pneg %p103
      %p155 = pneg %p100
      %p156 = scmp.lt.s32.totalorder %s14, 1
      %s157 = scalar_select %p156, %s14, 1
      %s158 = smul.addr %s157, 12
      %s159 = smul.addr %s158, 8
      %s160 = scalar_lea.vmem %s3, %s159
      %p161 = scmp.lt.s32.totalorder %s14, 1
      %s162 = scalar_select %p161, %s14, 1
      %s163 = smul.addr %s162, 28
      %s164 = smul.addr %s163, 8
      %s165 = scalar_lea.vmem %s0, %s164
      %p166 = scmp.lt.s32.totalorder %s14, 1
      %s167 = scalar_select %p166, %s14, 1
      %s168 = smul.addr %s167, 12
      %s169 = smul.addr %s168, 8
      %s170 = scalar_lea.vmem %s3, %s169
      %v171 = vld [vmem:[%s165] sm:$0xff]
      %v172 = vld [vmem:[%s165 + $0x8] sm:$0xff]
      %v173 = vld [vmem:[%s165 + $0x10] sm:$0xff]
      %v174 = vld [vmem:[%s165 + $0x18] sm:$0xff]
      %v175 = vld [vmem:[%s165 + $0x20] sm:$0xff]
      %v176 = vld [vmem:[%s165 + $0x28] sm:$0xff]
      %177 = vst [vmem:[#allocation2] sm:$0xff] %v171
      %178 = vst [vmem:[#allocation2 + $0x8] sm:$0xff] %v172
      %179 = vst [vmem:[#allocation2 + $0x10] sm:$0xff] %v173
      %180 = vst [vmem:[#allocation2 + $0x18] sm:$0xff] %v174
      %181 = vst [vmem:[#allocation2 + $0x20] sm:$0xff] %v175
      %182 = vst [vmem:[#allocation2 + $0x28] sm:$0xff] %v176
      %v183 = vld [vmem:[%s165] sm:$0xff]
      %v184 = vld [vmem:[%s165 + $0x8] sm:$0xff]
      %v185 = vld [vmem:[%s165 + $0x10] sm:$0xff]
      %v186 = vld [vmem:[%s165 + $0x18] sm:$0xff]
      %v187 = vld [vmem:[%s165 + $0x20] sm:$0xff]
      %v188 = vld [vmem:[%s165 + $0x28] sm:$0xff]
      %v189 = vld [vmem:[%s165 + $0x30] sm:$0xff]
      %197 = vrot.lane.b32.xlu0 %v183, 127
      %v198 = vpop.permute.xlu0 %197
      %199 = vrot.lane.b32.xlu0 %v184, 127
      %v200 = vpop.permute.xlu0 %199
      %201 = vrot.lane.b32.xlu0 %v185, 127
      %v202 = vpop.permute.xlu0 %201
      %203 = vrot.lane.b32.xlu0 %v186, 127
      %v204 = vpop.permute.xlu0 %203
      %205 = vrot.lane.b32.xlu0 %v187, 127
      %v206 = vpop.permute.xlu0 %205
      %207 = vrot.lane.b32.xlu0 %v188, 127
      %v208 = vpop.permute.xlu0 %207
      %209 = vrot.lane.b32.xlu0 %v189, 127
      %v210 = vpop.permute.xlu0 %209
      %vm211 = vcmask 1039360
      %v212 = vsel %vm211, %v198, %v200
      %v213 = vsel %vm211, %v200, %v202
      %v214 = vsel %vm211, %v202, %v204
      %v215 = vsel %vm211, %v204, %v206
      %v216 = vsel %vm211, %v206, %v208
      %v217 = vsel %vm211, %v208, %v210
      %224 = vst [vmem:[#allocation2 + $0x30] sm:$0xff] %v212
      %225 = vst [vmem:[#allocation2 + $0x38] sm:$0xff] %v213
      %226 = vst [vmem:[#allocation2 + $0x40] sm:$0xff] %v214
      %227 = vst [vmem:[#allocation2 + $0x48] sm:$0xff] %v215
      %228 = vst [vmem:[#allocation2 + $0x50] sm:$0xff] %v216
      %229 = vst [vmem:[#allocation2 + $0x58] sm:$0xff] %v217
      %v230 = vld [vmem:[%s165] sm:$0xff]
      %v231 = vld [vmem:[%s165 + $0x8] sm:$0xff]
      %v232 = vld [vmem:[%s165 + $0x10] sm:$0xff]
      %v233 = vld [vmem:[%s165 + $0x18] sm:$0xff]
      %v234 = vld [vmem:[%s165 + $0x20] sm:$0xff]
      %v235 = vld [vmem:[%s165 + $0x28] sm:$0xff]
      %v236 = vld [vmem:[%s165 + $0x30] sm:$0xff]
      %244 = vrot.lane.b32.xlu0 %v230, 102
      %v245 = vpop.permute.xlu0 %244
      %246 = vrot.lane.b32.xlu0 %v231, 102
      %v247 = vpop.permute.xlu0 %246
      %248 = vrot.lane.b32.xlu0 %v232, 102
      %v249 = vpop.permute.xlu0 %248
      %250 = vrot.lane.b32.xlu0 %v233, 102
      %v251 = vpop.permute.xlu0 %250
      %252 = vrot.lane.b32.xlu0 %v234, 102
      %v253 = vpop.permute.xlu0 %252
      %254 = vrot.lane.b32.xlu0 %v235, 102
      %v255 = vpop.permute.xlu0 %254
      %256 = vrot.lane.b32.xlu0 %v236, 102
      %v257 = vpop.permute.xlu0 %256
      %vm258 = vcmask 834560
      %v259 = vsel %vm258, %v245, %v247
      %v260 = vsel %vm258, %v247, %v249
      %v261 = vsel %vm258, %v249, %v251
      %v262 = vsel %vm258, %v251, %v253
      %v263 = vsel %vm258, %v253, %v255
      %v264 = vsel %vm258, %v255, %v257
      %271 = vst [vmem:[#allocation2 + $0x60] sm:$0xff] %v259
      %272 = vst [vmem:[#allocation2 + $0x68] sm:$0xff] %v260
      %273 = vst [vmem:[#allocation2 + $0x70] sm:$0xff] %v261
      %274 = vst [vmem:[#allocation2 + $0x78] sm:$0xff] %v262
      %275 = vst [vmem:[#allocation2 + $0x80] sm:$0xff] %v263
      %276 = vst [vmem:[#allocation2 + $0x88] sm:$0xff] %v264
      %v277 = vld [vmem:[%s165] sm:$0xff]
      %v278 = vld [vmem:[%s165 + $0x8] sm:$0xff]
      %v279 = vld [vmem:[%s165 + $0x10] sm:$0xff]
      %v280 = vld [vmem:[%s165 + $0x18] sm:$0xff]
      %v281 = vld [vmem:[%s165 + $0x20] sm:$0xff]
      %v282 = vld [vmem:[%s165 + $0x28] sm:$0xff]
      %v283 = vld [vmem:[%s165 + $0x30] sm:$0xff]
      %291 = vrot.lane.b32.xlu0 %v277, 101
      %v292 = vpop.permute.xlu0 %291
      %293 = vrot.lane.b32.xlu0 %v278, 101
      %v294 = vpop.permute.xlu0 %293
      %295 = vrot.lane.b32.xlu0 %v279, 101
      %v296 = vpop.permute.xlu0 %295
      %297 = vrot.lane.b32.xlu0 %v280, 101
      %v298 = vpop.permute.xlu0 %297
      %299 = vrot.lane.b32.xlu0 %v281, 101
      %v300 = vpop.permute.xlu0 %299
      %301 = vrot.lane.b32.xlu0 %v282, 101
      %v302 = vpop.permute.xlu0 %301
      %303 = vrot.lane.b32.xlu0 %v283, 101
      %v304 = vpop.permute.xlu0 %303
      %vm305 = vcmask 826368
      %v306 = vsel %vm305, %v292, %v294
      %v307 = vsel %vm305, %v294, %v296
      %v308 = vsel %vm305, %v296, %v298
      %v309 = vsel %vm305, %v298, %v300
      %v310 = vsel %vm305, %v300, %v302
      %v311 = vsel %vm305, %v302, %v304
      %318 = vst [vmem:[#allocation2 + $0x90] sm:$0xff] %v306
      %319 = vst [vmem:[#allocation2 + $0x98] sm:$0xff] %v307
      %320 = vst [vmem:[#allocation2 + $0xa0] sm:$0xff] %v308
      %321 = vst [vmem:[#allocation2 + $0xa8] sm:$0xff] %v309
      %322 = vst [vmem:[#allocation2 + $0xb0] sm:$0xff] %v310
      %323 = vst [vmem:[#allocation2 + $0xb8] sm:$0xff] %v311
      %v324 = vld [vmem:[%s165 + $0x38] sm:$0xff]
      %v325 = vld [vmem:[%s165 + $0x40] sm:$0xff]
      %v326 = vld [vmem:[%s165 + $0x48] sm:$0xff]
      %v327 = vld [vmem:[%s165 + $0x50] sm:$0xff]
      %v328 = vld [vmem:[%s165 + $0x58] sm:$0xff]
      %v329 = vld [vmem:[%s165 + $0x60] sm:$0xff]
      %330 = vst [vmem:[#allocation2 + $0xc0] sm:$0xff] %v324
      %331 = vst [vmem:[#allocation2 + $0xc8] sm:$0xff] %v325
      %332 = vst [vmem:[#allocation2 + $0xd0] sm:$0xff] %v326
      %333 = vst [vmem:[#allocation2 + $0xd8] sm:$0xff] %v327
      %334 = vst [vmem:[#allocation2 + $0xe0] sm:$0xff] %v328
      %335 = vst [vmem:[#allocation2 + $0xe8] sm:$0xff] %v329
      %v336 = vld [vmem:[%s165 + $0x38] sm:$0xff]
      %v337 = vld [vmem:[%s165 + $0x40] sm:$0xff]
      %v338 = vld [vmem:[%s165 + $0x48] sm:$0xff]
      %v339 = vld [vmem:[%s165 + $0x50] sm:$0xff]
      %v340 = vld [vmem:[%s165 + $0x58] sm:$0xff]
      %v341 = vld [vmem:[%s165 + $0x60] sm:$0xff]
      %v342 = vld [vmem:[%s165 + $0x68] sm:$0xff]
      %350 = vrot.lane.b32.xlu0 %v336, 127
      %v351 = vpop.permute.xlu0 %350
      %352 = vrot.lane.b32.xlu0 %v337, 127
      %v353 = vpop.permute.xlu0 %352
      %354 = vrot.lane.b32.xlu0 %v338, 127
      %v355 = vpop.permute.xlu0 %354
      %356 = vrot.lane.b32.xlu0 %v339, 127
      %v357 = vpop.permute.xlu0 %356
      %358 = vrot.lane.b32.xlu0 %v340, 127
      %v359 = vpop.permute.xlu0 %358
      %360 = vrot.lane.b32.xlu0 %v341, 127
      %v361 = vpop.permute.xlu0 %360
      %362 = vrot.lane.b32.xlu0 %v342, 127
      %v363 = vpop.permute.xlu0 %362
      %v364 = vsel %vm211, %v351, %v353
      %v365 = vsel %vm211, %v353, %v355
      %v366 = vsel %vm211, %v355, %v357
      %v367 = vsel %vm211, %v357, %v359
      %v368 = vsel %vm211, %v359, %v361
      %v369 = vsel %vm211, %v361, %v363
      %376 = vst [vmem:[#allocation2 + $0xf0] sm:$0xff] %v364
      %377 = vst [vmem:[#allocation2 + $0xf8] sm:$0xff] %v365
      %378 = vst [vmem:[#allocation2 + $0x100] sm:$0xff] %v366
      %379 = vst [vmem:[#allocation2 + $0x108] sm:$0xff] %v367
      %380 = vst [vmem:[#allocation2 + $0x110] sm:$0xff] %v368
      %381 = vst [vmem:[#allocation2 + $0x118] sm:$0xff] %v369
      %v382 = vld [vmem:[%s165 + $0x38] sm:$0xff]
      %v383 = vld [vmem:[%s165 + $0x40] sm:$0xff]
      %v384 = vld [vmem:[%s165 + $0x48] sm:$0xff]
      %v385 = vld [vmem:[%s165 + $0x50] sm:$0xff]
      %v386 = vld [vmem:[%s165 + $0x58] sm:$0xff]
      %v387 = vld [vmem:[%s165 + $0x60] sm:$0xff]
      %v388 = vld [vmem:[%s165 + $0x68] sm:$0xff]
      %396 = vrot.lane.b32.xlu0 %v382, 102
      %v397 = vpop.permute.xlu0 %396
      %398 = vrot.lane.b32.xlu0 %v383, 102
      %v399 = vpop.permute.xlu0 %398
      %400 = vrot.lane.b32.xlu0 %v384, 102
      %v401 = vpop.permute.xlu0 %400
      %402 = vrot.lane.b32.xlu0 %v385, 102
      %v403 = vpop.permute.xlu0 %402
      %404 = vrot.lane.b32.xlu0 %v386, 102
      %v405 = vpop.permute.xlu0 %404
      %406 = vrot.lane.b32.xlu0 %v387, 102
      %v407 = vpop.permute.xlu0 %406
      %408 = vrot.lane.b32.xlu0 %v388, 102
      %v409 = vpop.permute.xlu0 %408
      %v410 = vsel %vm258, %v397, %v399
      %v411 = vsel %vm258, %v399, %v401
      %v412 = vsel %vm258, %v401, %v403
      %v413 = vsel %vm258, %v403, %v405
      %v414 = vsel %vm258, %v405, %v407
      %v415 = vsel %vm258, %v407, %v409
      %422 = vst [vmem:[#allocation2 + $0x120] sm:$0xff] %v410
      %423 = vst [vmem:[#allocation2 + $0x128] sm:$0xff] %v411
      %424 = vst [vmem:[#allocation2 + $0x130] sm:$0xff] %v412
      %425 = vst [vmem:[#allocation2 + $0x138] sm:$0xff] %v413
      %426 = vst [vmem:[#allocation2 + $0x140] sm:$0xff] %v414
      %427 = vst [vmem:[#allocation2 + $0x148] sm:$0xff] %v415
      %v428 = vld [vmem:[%s165 + $0x38] sm:$0xff]
      %v429 = vld [vmem:[%s165 + $0x40] sm:$0xff]
      %v430 = vld [vmem:[%s165 + $0x48] sm:$0xff]
      %v431 = vld [vmem:[%s165 + $0x50] sm:$0xff]
      %v432 = vld [vmem:[%s165 + $0x58] sm:$0xff]
      %v433 = vld [vmem:[%s165 + $0x60] sm:$0xff]
      %v434 = vld [vmem:[%s165 + $0x68] sm:$0xff]
      %442 = vrot.lane.b32.xlu0 %v428, 101
      %v443 = vpop.permute.xlu0 %442
      %444 = vrot.lane.b32.xlu0 %v429, 101
      %v445 = vpop.permute.xlu0 %444
      %446 = vrot.lane.b32.xlu0 %v430, 101
      %v447 = vpop.permute.xlu0 %446
      %448 = vrot.lane.b32.xlu0 %v431, 101
      %v449 = vpop.permute.xlu0 %448
      %450 = vrot.lane.b32.xlu0 %v432, 101
      %v451 = vpop.permute.xlu0 %450
      %452 = vrot.lane.b32.xlu0 %v433, 101
      %v453 = vpop.permute.xlu0 %452
      %454 = vrot.lane.b32.xlu0 %v434, 101
      %v455 = vpop.permute.xlu0 %454
      %v456 = vsel %vm305, %v443, %v445
      %v457 = vsel %vm305, %v445, %v447
      %v458 = vsel %vm305, %v447, %v449
      %v459 = vsel %vm305, %v449, %v451
      %v460 = vsel %vm305, %v451, %v453
      %v461 = vsel %vm305, %v453, %v455
      %468 = vst [vmem:[#allocation2 + $0x150] sm:$0xff] %v456
      %469 = vst [vmem:[#allocation2 + $0x158] sm:$0xff] %v457
      %470 = vst [vmem:[#allocation2 + $0x160] sm:$0xff] %v458
      %471 = vst [vmem:[#allocation2 + $0x168] sm:$0xff] %v459
      %472 = vst [vmem:[#allocation2 + $0x170] sm:$0xff] %v460
      %473 = vst [vmem:[#allocation2 + $0x178] sm:$0xff] %v461
      %v474 = vld [vmem:[%s165 + $0x70] sm:$0xff]
      %v475 = vld [vmem:[%s165 + $0x78] sm:$0xff]
      %v476 = vld [vmem:[%s165 + $0x80] sm:$0xff]
      %v477 = vld [vmem:[%s165 + $0x88] sm:$0xff]
      %v478 = vld [vmem:[%s165 + $0x90] sm:$0xff]
      %v479 = vld [vmem:[%s165 + $0x98] sm:$0xff]
      %480 = vst [vmem:[#allocation2 + $0x180] sm:$0xff] %v474
      %481 = vst [vmem:[#allocation2 + $0x188] sm:$0xff] %v475
      %482 = vst [vmem:[#allocation2 + $0x190] sm:$0xff] %v476
      %483 = vst [vmem:[#allocation2 + $0x198] sm:$0xff] %v477
      %484 = vst [vmem:[#allocation2 + $0x1a0] sm:$0xff] %v478
      %485 = vst [vmem:[#allocation2 + $0x1a8] sm:$0xff] %v479
      %v486 = vld [vmem:[%s165 + $0x70] sm:$0xff]
      %v487 = vld [vmem:[%s165 + $0x78] sm:$0xff]
      %v488 = vld [vmem:[%s165 + $0x80] sm:$0xff]
      %v489 = vld [vmem:[%s165 + $0x88] sm:$0xff]
      %v490 = vld [vmem:[%s165 + $0x90] sm:$0xff]
      %v491 = vld [vmem:[%s165 + $0x98] sm:$0xff]
      %v492 = vld [vmem:[%s165 + $0xa0] sm:$0xff]
      %500 = vrot.lane.b32.xlu0 %v486, 127
      %v501 = vpop.permute.xlu0 %500
      %502 = vrot.lane.b32.xlu0 %v487, 127
      %v503 = vpop.permute.xlu0 %502
      %504 = vrot.lane.b32.xlu0 %v488, 127
      %v505 = vpop.permute.xlu0 %504
      %506 = vrot.lane.b32.xlu0 %v489, 127
      %v507 = vpop.permute.xlu0 %506
      %508 = vrot.lane.b32.xlu0 %v490, 127
      %v509 = vpop.permute.xlu0 %508
      %510 = vrot.lane.b32.xlu0 %v491, 127
      %v511 = vpop.permute.xlu0 %510
      %512 = vrot.lane.b32.xlu0 %v492, 127
      %v513 = vpop.permute.xlu0 %512
      %v514 = vsel %vm211, %v501, %v503
      %v515 = vsel %vm211, %v503, %v505
      %v516 = vsel %vm211, %v505, %v507
      %v517 = vsel %vm211, %v507, %v509
      %v518 = vsel %vm211, %v509, %v511
      %v519 = vsel %vm211, %v511, %v513
      %526 = vst [vmem:[#allocation2 + $0x1b0] sm:$0xff] %v514
      %527 = vst [vmem:[#allocation2 + $0x1b8] sm:$0xff] %v515
      %528 = vst [vmem:[#allocation2 + $0x1c0] sm:$0xff] %v516
      %529 = vst [vmem:[#allocation2 + $0x1c8] sm:$0xff] %v517
      %530 = vst [vmem:[#allocation2 + $0x1d0] sm:$0xff] %v518
      %531 = vst [vmem:[#allocation2 + $0x1d8] sm:$0xff] %v519
      %v532 = vld [vmem:[%s165 + $0x70] sm:$0xff]
      %v533 = vld [vmem:[%s165 + $0x78] sm:$0xff]
      %v534 = vld [vmem:[%s165 + $0x80] sm:$0xff]
      %v535 = vld [vmem:[%s165 + $0x88] sm:$0xff]
      %v536 = vld [vmem:[%s165 + $0x90] sm:$0xff]
      %v537 = vld [vmem:[%s165 + $0x98] sm:$0xff]
      %v538 = vld [vmem:[%s165 + $0xa0] sm:$0xff]
      %546 = vrot.lane.b32.xlu0 %v532, 102
      %v547 = vpop.permute.xlu0 %546
      %548 = vrot.lane.b32.xlu0 %v533, 102
      %v549 = vpop.permute.xlu0 %548
      %550 = vrot.lane.b32.xlu0 %v534, 102
      %v551 = vpop.permute.xlu0 %550
      %552 = vrot.lane.b32.xlu0 %v535, 102
      %v553 = vpop.permute.xlu0 %552
      %554 = vrot.lane.b32.xlu0 %v536, 102
      %v555 = vpop.permute.xlu0 %554
      %556 = vrot.lane.b32.xlu0 %v537, 102
      %v557 = vpop.permute.xlu0 %556
      %558 = vrot.lane.b32.xlu0 %v538, 102
      %v559 = vpop.permute.xlu0 %558
      %v560 = vsel %vm258, %v547, %v549
      %v561 = vsel %vm258, %v549, %v551
      %v562 = vsel %vm258, %v551, %v553
      %v563 = vsel %vm258, %v553, %v555
      %v564 = vsel %vm258, %v555, %v557
      %v565 = vsel %vm258, %v557, %v559
      %572 = vst [vmem:[#allocation2 + $0x1e0] sm:$0xff] %v560
      %573 = vst [vmem:[#allocation2 + $0x1e8] sm:$0xff] %v561
      %574 = vst [vmem:[#allocation2 + $0x1f0] sm:$0xff] %v562
      %575 = vst [vmem:[#allocation2 + $0x1f8] sm:$0xff] %v563
      %576 = vst [vmem:[#allocation2 + $0x200] sm:$0xff] %v564
      %577 = vst [vmem:[#allocation2 + $0x208] sm:$0xff] %v565
      %v578 = vld [vmem:[%s165 + $0x70] sm:$0xff]
      %v579 = vld [vmem:[%s165 + $0x78] sm:$0xff]
      %v580 = vld [vmem:[%s165 + $0x80] sm:$0xff]
      %v581 = vld [vmem:[%s165 + $0x88] sm:$0xff]
      %v582 = vld [vmem:[%s165 + $0x90] sm:$0xff]
      %v583 = vld [vmem:[%s165 + $0x98] sm:$0xff]
      %v584 = vld [vmem:[%s165 + $0xa0] sm:$0xff]
      %592 = vrot.lane.b32.xlu0 %v578, 101
      %v593 = vpop.permute.xlu0 %592
      %594 = vrot.lane.b32.xlu0 %v579, 101
      %v595 = vpop.permute.xlu0 %594
      %596 = vrot.lane.b32.xlu0 %v580, 101
      %v597 = vpop.permute.xlu0 %596
      %598 = vrot.lane.b32.xlu0 %v581, 101
      %v599 = vpop.permute.xlu0 %598
      %600 = vrot.lane.b32.xlu0 %v582, 101
      %v601 = vpop.permute.xlu0 %600
      %602 = vrot.lane.b32.xlu0 %v583, 101
      %v603 = vpop.permute.xlu0 %602
      %604 = vrot.lane.b32.xlu0 %v584, 101
      %v605 = vpop.permute.xlu0 %604
      %v606 = vsel %vm305, %v593, %v595
      %v607 = vsel %vm305, %v595, %v597
      %v608 = vsel %vm305, %v597, %v599
      %v609 = vsel %vm305, %v599, %v601
      %v610 = vsel %vm305, %v601, %v603
      %v611 = vsel %vm305, %v603, %v605
      %618 = vst [vmem:[#allocation2 + $0x210] sm:$0xff] %v606
      %619 = vst [vmem:[#allocation2 + $0x218] sm:$0xff] %v607
      %620 = vst [vmem:[#allocation2 + $0x220] sm:$0xff] %v608
      %621 = vst [vmem:[#allocation2 + $0x228] sm:$0xff] %v609
      %622 = vst [vmem:[#allocation2 + $0x230] sm:$0xff] %v610
      %623 = vst [vmem:[#allocation2 + $0x238] sm:$0xff] %v611
      %v624 = vld [vmem:[%s165 + $0xa8] sm:$0xff]
      %v625 = vld [vmem:[%s165 + $0xb0] sm:$0xff]
      %v626 = vld [vmem:[%s165 + $0xb8] sm:$0xff]
      %v627 = vld [vmem:[%s165 + $0xc0] sm:$0xff]
      %v628 = vld [vmem:[%s165 + $0xc8] sm:$0xff]
      %v629 = vld [vmem:[%s165 + $0xd0] sm:$0xff]
      %630 = vst [vmem:[#allocation2 + $0x240] sm:$0xff] %v624
      %631 = vst [vmem:[#allocation2 + $0x248] sm:$0xff] %v625
      %632 = vst [vmem:[#allocation2 + $0x250] sm:$0xff] %v626
      %633 = vst [vmem:[#allocation2 + $0x258] sm:$0xff] %v627
      %634 = vst [vmem:[#allocation2 + $0x260] sm:$0xff] %v628
      %635 = vst [vmem:[#allocation2 + $0x268] sm:$0xff] %v629
      %v636 = vld [vmem:[%s165 + $0xa8] sm:$0xff]
      %v637 = vld [vmem:[%s165 + $0xb0] sm:$0xff]
      %v638 = vld [vmem:[%s165 + $0xb8] sm:$0xff]
      %v639 = vld [vmem:[%s165 + $0xc0] sm:$0xff]
      %v640 = vld [vmem:[%s165 + $0xc8] sm:$0xff]
      %v641 = vld [vmem:[%s165 + $0xd0] sm:$0xff]
      %v642 = vld [vmem:[%s165 + $0xd8] sm:$0xff]
      %650 = vrot.lane.b32.xlu0 %v636, 127
      %v651 = vpop.permute.xlu0 %650
      %652 = vrot.lane.b32.xlu0 %v637, 127
      %v653 = vpop.permute.xlu0 %652
      %654 = vrot.lane.b32.xlu0 %v638, 127
      %v655 = vpop.permute.xlu0 %654
      %656 = vrot.lane.b32.xlu0 %v639, 127
      %v657 = vpop.permute.xlu0 %656
      %658 = vrot.lane.b32.xlu0 %v640, 127
      %v659 = vpop.permute.xlu0 %658
      %660 = vrot.lane.b32.xlu0 %v641, 127
      %v661 = vpop.permute.xlu0 %660
      %662 = vrot.lane.b32.xlu0 %v642, 127
      %v663 = vpop.permute.xlu0 %662
      %v664 = vsel %vm211, %v651, %v653
      %v665 = vsel %vm211, %v653, %v655
      %v666 = vsel %vm211, %v655, %v657
      %v667 = vsel %vm211, %v657, %v659
      %v668 = vsel %vm211, %v659, %v661
      %v669 = vsel %vm211, %v661, %v663
      %676 = vst [vmem:[#allocation2 + $0x270] sm:$0xff] %v664
      %677 = vst [vmem:[#allocation2 + $0x278] sm:$0xff] %v665
      %678 = vst [vmem:[#allocation2 + $0x280] sm:$0xff] %v666
      %679 = vst [vmem:[#allocation2 + $0x288] sm:$0xff] %v667
      %680 = vst [vmem:[#allocation2 + $0x290] sm:$0xff] %v668
      %681 = vst [vmem:[#allocation2 + $0x298] sm:$0xff] %v669
      %v682 = vld [vmem:[%s165 + $0xa8] sm:$0xff]
      %v683 = vld [vmem:[%s165 + $0xb0] sm:$0xff]
      %v684 = vld [vmem:[%s165 + $0xb8] sm:$0xff]
      %v685 = vld [vmem:[%s165 + $0xc0] sm:$0xff]
      %v686 = vld [vmem:[%s165 + $0xc8] sm:$0xff]
      %v687 = vld [vmem:[%s165 + $0xd0] sm:$0xff]
      %v688 = vld [vmem:[%s165 + $0xd8] sm:$0xff]
      %696 = vrot.lane.b32.xlu0 %v682, 102
      %v697 = vpop.permute.xlu0 %696
      %698 = vrot.lane.b32.xlu0 %v683, 102
      %v699 = vpop.permute.xlu0 %698
      %700 = vrot.lane.b32.xlu0 %v684, 102
      %v701 = vpop.permute.xlu0 %700
      %702 = vrot.lane.b32.xlu0 %v685, 102
      %v703 = vpop.permute.xlu0 %702
      %704 = vrot.lane.b32.xlu0 %v686, 102
      %v705 = vpop.permute.xlu0 %704
      %706 = vrot.lane.b32.xlu0 %v687, 102
      %v707 = vpop.permute.xlu0 %706
      %708 = vrot.lane.b32.xlu0 %v688, 102
      %v709 = vpop.permute.xlu0 %708
      %v710 = vsel %vm258, %v697, %v699
      %v711 = vsel %vm258, %v699, %v701
      %v712 = vsel %vm258, %v701, %v703
      %v713 = vsel %vm258, %v703, %v705
      %v714 = vsel %vm258, %v705, %v707
      %v715 = vsel %vm258, %v707, %v709
      %722 = vst [vmem:[#allocation2 + $0x2a0] sm:$0xff] %v710
      %723 = vst [vmem:[#allocation2 + $0x2a8] sm:$0xff] %v711
      %724 = vst [vmem:[#allocation2 + $0x2b0] sm:$0xff] %v712
      %725 = vst [vmem:[#allocation2 + $0x2b8] sm:$0xff] %v713
      %726 = vst [vmem:[#allocation2 + $0x2c0] sm:$0xff] %v714
      %727 = vst [vmem:[#allocation2 + $0x2c8] sm:$0xff] %v715
      %v728 = vld [vmem:[%s165 + $0xa8] sm:$0xff]
      %v729 = vld [vmem:[%s165 + $0xb0] sm:$0xff]
      %v730 = vld [vmem:[%s165 + $0xb8] sm:$0xff]
      %v731 = vld [vmem:[%s165 + $0xc0] sm:$0xff]
      %v732 = vld [vmem:[%s165 + $0xc8] sm:$0xff]
      %v733 = vld [vmem:[%s165 + $0xd0] sm:$0xff]
      %v734 = vld [vmem:[%s165 + $0xd8] sm:$0xff]
      %742 = vrot.lane.b32.xlu0 %v728, 101
      %v743 = vpop.permute.xlu0 %742
      %744 = vrot.lane.b32.xlu0 %v729, 101
      %v745 = vpop.permute.xlu0 %744
      %746 = vrot.lane.b32.xlu0 %v730, 101
      %v747 = vpop.permute.xlu0 %746
      %748 = vrot.lane.b32.xlu0 %v731, 101
      %v749 = vpop.permute.xlu0 %748
      %750 = vrot.lane.b32.xlu0 %v732, 101
      %v751 = vpop.permute.xlu0 %750
      %752 = vrot.lane.b32.xlu0 %v733, 101
      %v753 = vpop.permute.xlu0 %752
      %754 = vrot.lane.b32.xlu0 %v734, 101
      %v755 = vpop.permute.xlu0 %754
      %v756 = vsel %vm305, %v743, %v745
      %v757 = vsel %vm305, %v745, %v747
      %v758 = vsel %vm305, %v747, %v749
      %v759 = vsel %vm305, %v749, %v751
      %v760 = vsel %vm305, %v751, %v753
      %v761 = vsel %vm305, %v753, %v755
      %768 = vst [vmem:[#allocation2 + $0x2d0] sm:$0xff] %v756
      %769 = vst [vmem:[#allocation2 + $0x2d8] sm:$0xff] %v757
      %770 = vst [vmem:[#allocation2 + $0x2e0] sm:$0xff] %v758
      %771 = vst [vmem:[#allocation2 + $0x2e8] sm:$0xff] %v759
      %772 = vst [vmem:[#allocation2 + $0x2f0] sm:$0xff] %v760
      %773 = vst [vmem:[#allocation2 + $0x2f8] sm:$0xff] %v761
      %v774 = vld [vmem:[%s1] sm:$0xff]
      %v775 = vld [vmem:[%s1 + $0x8] sm:$0xff]
      %v776 = vld [vmem:[%s1 + $0x10] sm:$0xff]
      %v777 = vld [vmem:[%s1 + $0x18] sm:$0xff]
      %v778 = vld [vmem:[%s1 + $0x20] sm:$0xff]
      %v779 = vld [vmem:[%s1 + $0x28] sm:$0xff]
      %v780 = vld [vmem:[%s1 + $0x30] sm:$0xff]
      %v781 = vld [vmem:[%s1 + $0x38] sm:$0xff]
      %v782 = vld [vmem:[#allocation2] sm:$0xff]
      %v783 = vld [vmem:[#allocation2 + $0x8] sm:$0xff]
      %v784 = vld [vmem:[#allocation2 + $0x10] sm:$0xff]
      %v785 = vld [vmem:[#allocation2 + $0x18] sm:$0xff]
      %v786 = vld [vmem:[#allocation2 + $0x20] sm:$0xff]
      %v787 = vld [vmem:[#allocation2 + $0x28] sm:$0xff]
      %v788 = vld [vmem:[#allocation2 + $0x30] sm:$0xff]
      %v789 = vld [vmem:[#allocation2 + $0x38] sm:$0xff]
      %v790 = vld [vmem:[#allocation2 + $0x40] sm:$0xff]
      %v791 = vld [vmem:[#allocation2 + $0x48] sm:$0xff]
      %v792 = vld [vmem:[#allocation2 + $0x50] sm:$0xff]
      %v793 = vld [vmem:[#allocation2 + $0x58] sm:$0xff]
      %v794 = vld [vmem:[#allocation2 + $0x60] sm:$0xff]
      %v795 = vld [vmem:[#allocation2 + $0x68] sm:$0xff]
      %v796 = vld [vmem:[#allocation2 + $0x70] sm:$0xff]
      %v797 = vld [vmem:[#allocation2 + $0x78] sm:$0xff]
      %v798 = vld [vmem:[#allocation2 + $0x80] sm:$0xff]
      %v799 = vld [vmem:[#allocation2 + $0x88] sm:$0xff]
      %v800 = vld [vmem:[#allocation2 + $0x90] sm:$0xff]
      %v801 = vld [vmem:[#allocation2 + $0x98] sm:$0xff]
      %v802 = vld [vmem:[#allocation2 + $0xa0] sm:$0xff]
      %v803 = vld [vmem:[#allocation2 + $0xa8] sm:$0xff]
      %v804 = vld [vmem:[#allocation2 + $0xb0] sm:$0xff]
      %v805 = vld [vmem:[#allocation2 + $0xb8] sm:$0xff]
      %v806 = vld [vmem:[#allocation2 + $0xc0] sm:$0xff]
      %v807 = vld [vmem:[#allocation2 + $0xc8] sm:$0xff]
      %v808 = vld [vmem:[#allocation2 + $0xd0] sm:$0xff]
      %v809 = vld [vmem:[#allocation2 + $0xd8] sm:$0xff]
      %v810 = vld [vmem:[#allocation2 + $0xe0] sm:$0xff]
      %v811 = vld [vmem:[#allocation2 + $0xe8] sm:$0xff]
      %v812 = vld [vmem:[#allocation2 + $0xf0] sm:$0xff]
      %v813 = vld [vmem:[#allocation2 + $0xf8] sm:$0xff]
      %v814 = vld [vmem:[#allocation2 + $0x100] sm:$0xff]
      %v815 = vld [vmem:[#allocation2 + $0x108] sm:$0xff]
      %v816 = vld [vmem:[#allocation2 + $0x110] sm:$0xff]
      %v817 = vld [vmem:[#allocation2 + $0x118] sm:$0xff]
      %v818 = vld [vmem:[#allocation2 + $0x120] sm:$0xff]
      %v819 = vld [vmem:[#allocation2 + $0x128] sm:$0xff]
      %v820 = vld [vmem:[#allocation2 + $0x130] sm:$0xff]
      %v821 = vld [vmem:[#allocation2 + $0x138] sm:$0xff]
      %v822 = vld [vmem:[#allocation2 + $0x140] sm:$0xff]
      %v823 = vld [vmem:[#allocation2 + $0x148] sm:$0xff]
      %v824 = vld [vmem:[#allocation2 + $0x150] sm:$0xff]
      %v825 = vld [vmem:[#allocation2 + $0x158] sm:$0xff]
      %v826 = vld [vmem:[#allocation2 + $0x160] sm:$0xff]
      %v827 = vld [vmem:[#allocation2 + $0x168] sm:$0xff]
      %v828 = vld [vmem:[#allocation2 + $0x170] sm:$0xff]
      %v829 = vld [vmem:[#allocation2 + $0x178] sm:$0xff]
      %v830 = vld [vmem:[#allocation2 + $0x180] sm:$0xff]
      %v831 = vld [vmem:[#allocation2 + $0x188] sm:$0xff]
      %v832 = vld [vmem:[#allocation2 + $0x190] sm:$0xff]
      %v833 = vld [vmem:[#allocation2 + $0x198] sm:$0xff]
      %v834 = vld [vmem:[#allocation2 + $0x1a0] sm:$0xff]
      %v835 = vld [vmem:[#allocation2 + $0x1a8] sm:$0xff]
      %v836 = vld [vmem:[#allocation2 + $0x1b0] sm:$0xff]
      %v837 = vld [vmem:[#allocation2 + $0x1b8] sm:$0xff]
      %v838 = vld [vmem:[#allocation2 + $0x1c0] sm:$0xff]
      %v839 = vld [vmem:[#allocation2 + $0x1c8] sm:$0xff]
      %v840 = vld [vmem:[#allocation2 + $0x1d0] sm:$0xff]
      %v841 = vld [vmem:[#allocation2 + $0x1d8] sm:$0xff]
      %v842 = vld [vmem:[#allocation2 + $0x1e0] sm:$0xff]
      %v843 = vld [vmem:[#allocation2 + $0x1e8] sm:$0xff]
      %v844 = vld [vmem:[#allocation2 + $0x1f0] sm:$0xff]
      %v845 = vld [vmem:[#allocation2 + $0x1f8] sm:$0xff]
      %v846 = vld [vmem:[#allocation2 + $0x200] sm:$0xff]
      %v847 = vld [vmem:[#allocation2 + $0x208] sm:$0xff]
      %v848 = vld [vmem:[#allocation2 + $0x210] sm:$0xff]
      %v849 = vld [vmem:[#allocation2 + $0x218] sm:$0xff]
      %v850 = vld [vmem:[#allocation2 + $0x220] sm:$0xff]
      %v851 = vld [vmem:[#allocation2 + $0x228] sm:$0xff]
      %v852 = vld [vmem:[#allocation2 + $0x230] sm:$0xff]
      %v853 = vld [vmem:[#allocation2 + $0x238] sm:$0xff]
      %v854 = vld [vmem:[#allocation2 + $0x240] sm:$0xff]
      %v855 = vld [vmem:[#allocation2 + $0x248] sm:$0xff]
      %v856 = vld [vmem:[#allocation2 + $0x250] sm:$0xff]
      %v857 = vld [vmem:[#allocation2 + $0x258] sm:$0xff]
      %v858 = vld [vmem:[#allocation2 + $0x260] sm:$0xff]
      %v859 = vld [vmem:[#allocation2 + $0x268] sm:$0xff]
      %v860 = vld [vmem:[#allocation2 + $0x270] sm:$0xff]
      %v861 = vld [vmem:[#allocation2 + $0x278] sm:$0xff]
      %v862 = vld [vmem:[#allocation2 + $0x280] sm:$0xff]
      %v863 = vld [vmem:[#allocation2 + $0x288] sm:$0xff]
      %v864 = vld [vmem:[#allocation2 + $0x290] sm:$0xff]
      %v865 = vld [vmem:[#allocation2 + $0x298] sm:$0xff]
      %v866 = vld [vmem:[#allocation2 + $0x2a0] sm:$0xff]
      %v867 = vld [vmem:[#allocation2 + $0x2a8] sm:$0xff]
      %v868 = vld [vmem:[#allocation2 + $0x2b0] sm:$0xff]
      %v869 = vld [vmem:[#allocation2 + $0x2b8] sm:$0xff]
      %v870 = vld [vmem:[#allocation2 + $0x2c0] sm:$0xff]
      %v871 = vld [vmem:[#allocation2 + $0x2c8] sm:$0xff]
      %v872 = vld [vmem:[#allocation2 + $0x2d0] sm:$0xff]
      %v873 = vld [vmem:[#allocation2 + $0x2d8] sm:$0xff]
      %v874 = vld [vmem:[#allocation2 + $0x2e0] sm:$0xff]
      %v875 = vld [vmem:[#allocation2 + $0x2e8] sm:$0xff]
      %v876 = vld [vmem:[#allocation2 + $0x2f0] sm:$0xff]
      %v877 = vld [vmem:[#allocation2 + $0x2f8] sm:$0xff]
      %878 = vmatprep.subr.mxu0 %v783
      %879 = vmatpush1.msra.mxu0 %v782
      %880 = vmatprep.subr.mxu0 %v789
      %881 = vmatpush1.msra.mxu0 %v788
      %882 = vmatprep.subr.mxu0 %v795
      %883 = vmatpush1.msra.mxu0 %v794
      %884 = vmatprep.subr.mxu0 %v801
      %885 = vmatpush1.msra.mxu0 %v800
      %886 = vmatprep.subr.mxu0 %v807
      %887 = vmatpush1.msra.mxu0 %v806
      %888 = vmatprep.subr.mxu0 %v813
      %889 = vmatpush1.msra.mxu0 %v812
      %890 = vmatprep.subr.mxu0 %v819
      %891 = vmatpush1.msra.mxu0 %v818
      %892 = vmatprep.subr.mxu0 %v825
      %893 = vmatpush1.msra.mxu0 %v824
      %894 = vmatprep.subr.mxu0 %v831
      %895 = vmatpush1.msra.mxu0 %v830
      %896 = vmatprep.subr.mxu0 %v837
      %897 = vmatpush1.msra.mxu0 %v836
      %898 = vmatprep.subr.mxu0 %v843
      %899 = vmatpush1.msra.mxu0 %v842
      %900 = vmatprep.subr.mxu0 %v849
      %901 = vmatpush1.msra.mxu0 %v848
      %902 = vmatprep.subr.mxu0 %v855
      %903 = vmatpush1.msra.mxu0 %v854
      %904 = vmatprep.subr.mxu0 %v861
      %905 = vmatpush1.msra.mxu0 %v860
      %906 = vmatprep.subr.mxu0 %v867
      %907 = vmatpush1.msra.mxu0 %v866
      %908 = vmatprep.subr.mxu0 %v873
      %909 = vmatpush1.msra.mxu0 %v872
      %910 = vmatprep.subr.mxu0 0.0
      %911 = vmatpush1.msra.mxu0 0.0
      %912 = vmatprep.subr.mxu0 0.0
      %913 = vmatpush1.msra.mxu0 0.0
      %914 = vmatprep.subr.mxu0 0.0
      %915 = vmatpush1.msra.mxu0 0.0
      %916 = vmatprep.subr.mxu0 0.0
      %917 = vmatpush1.msra.mxu0 0.0
      %918 = vmatprep.subr.mxu0 0.0
      %919 = vmatpush1.msra.mxu0 0.0
      %920 = vmatprep.subr.mxu0 0.0
      %921 = vmatpush1.msra.mxu0 0.0
      %922 = vmatprep.subr.mxu0 0.0
      %923 = vmatpush1.msra.mxu0 0.0
      %924 = vmatprep.subr.mxu0 0.0
      %925 = vmatpush1.msra.mxu0 0.0
      %926 = vmatprep.subr.mxu0 0.0
      %927 = vmatpush1.msra.mxu0 0.0
      %928 = vmatprep.subr.mxu0 0.0
      %929 = vmatpush1.msra.mxu0 0.0
      %930 = vmatprep.subr.mxu0 0.0
      %931 = vmatpush1.msra.mxu0 0.0
      %932 = vmatprep.subr.mxu0 0.0
      %933 = vmatpush1.msra.mxu0 0.0
      %934 = vmatprep.subr.mxu0 0.0
      %935 = vmatpush1.msra.mxu0 0.0
      %936 = vmatprep.subr.mxu0 0.0
      %937 = vmatpush1.msra.mxu0 0.0
      %938 = vmatprep.subr.mxu0 0.0
      %939 = vmatpush1.msra.mxu0 0.0
      %940 = vmatprep.subr.mxu0 0.0
      %941 = vmatpush1.msra.mxu0 0.0
      %942 = vmatprep.mubr.f32.mxu0 0.0
      %943 = vmatmul.mubr.f32.gmra.mrb[0].mxu0 %v774
      %v944 = vpop.f32.mrb[0].mxu0
      %v945 = vadd.f32 0.0, %v944
      %v946 = vpop.f32.mrb[0].mxu0
      %v947 = vadd.f32 0.0, %v946
      %948 = vmatprep.mubr.f32.mxu0 0.0
      %949 = vmatmul.mubr.f32.gmra.mrb[0].mxu0 %v775
      %v950 = vpop.f32.mrb[0].mxu0
      %v951 = vadd.f32 0.0, %v950
      %v952 = vpop.f32.mrb[0].mxu0
      %v953 = vadd.f32 0.0, %v952
      %954 = vmatprep.mubr.f32.mxu0 0.0
      %955 = vmatmul.mubr.f32.gmra.mrb[0].mxu0 %v776
      %v956 = vpop.f32.mrb[0].mxu0
      %v957 = vadd.f32 0.0, %v956
      %v958 = vpop.f32.mrb[0].mxu0
      %v959 = vadd.f32 0.0, %v958
      %960 = vmatprep.mubr.f32.mxu0 0.0
      %961 = vmatmul.mubr.f32.gmra.mrb[0].mxu0 %v777
      %v962 = vpop.f32.mrb[0].mxu0
      %v963 = vadd.f32 0.0, %v962
      %v964 = vpop.f32.mrb[0].mxu0
      %v965 = vadd.f32 0.0, %v964
      %966 = vmatprep.mubr.f32.mxu0 0.0
      %967 = vmatmul.mubr.f32.gmra.mrb[0].mxu0 %v778
      %v968 = vpop.f32.mrb[0].mxu0
      %v969 = vadd.f32 0.0, %v968
      %v970 = vpop.f32.mrb[0].mxu0
      %v971 = vadd.f32 0.0, %v970
      %972 = vmatprep.mubr.f32.mxu0 0.0
      %973 = vmatmul.mubr.f32.gmra.mrb[0].mxu0 %v779
      %v974 = vpop.f32.mrb[0].mxu0
      %v975 = vadd.f32 0.0, %v974
      %v976 = vpop.f32.mrb[0].mxu0
      %v977 = vadd.f32 0.0, %v976
      %978 = vmatprep.mubr.f32.mxu0 0.0
      %979 = vmatmul.mubr.f32.gmra.mrb[0].mxu0 %v780
      %v980 = vpop.f32.mrb[0].mxu0
      %v981 = vadd.f32 0.0, %v980
      %v982 = vpop.f32.mrb[0].mxu0
      %v983 = vadd.f32 0.0, %v982
      %984 = vmatprep.mubr.f32.mxu0 0.0
      %985 = vmatmul.mubr.f32.gmra.mrb[0].mxu0 %v781
      %v986 = vpop.f32.mrb[0].mxu0
      %v987 = vadd.f32 0.0, %v986
      %v988 = vpop.f32.mrb[0].mxu0
      %v989 = vadd.f32 0.0, %v988
      %990 = vdwg.mxu0
      %991 = vmatprep.subr.mxu0 %v785
      %992 = vmatpush1.msra.mxu0 %v784
      %993 = vmatprep.subr.mxu0 %v791
      %994 = vmatpush1.msra.mxu0 %v790
      %995 = vmatprep.subr.mxu0 %v797
      %996 = vmatpush1.msra.mxu0 %v796
      %997 = vmatprep.subr.mxu0 %v803
      %998 = vmatpush1.msra.mxu0 %v802
      %999 = vmatprep.subr.mxu0 %v809
      %1000 = vmatpush1.msra.mxu0 %v808
      %1001 = vmatprep.subr.mxu0 %v815
      %1002 = vmatpush1.msra.mxu0 %v814
      %1003 = vmatprep.subr.mxu0 %v821
      %1004 = vmatpush1.msra.mxu0 %v820
      %1005 = vmatprep.subr.mxu0 %v827
      %1006 = vmatpush1.msra.mxu0 %v826
      %1007 = vmatprep.subr.mxu0 %v833
      %1008 = vmatpush1.msra.mxu0 %v832
      %1009 = vmatprep.subr.mxu0 %v839
      %1010 = vmatpush1.msra.mxu0 %v838
      %1011 = vmatprep.subr.mxu0 %v845
      %1012 = vmatpush1.msra.mxu0 %v844
      %1013 = vmatprep.subr.mxu0 %v851
      %1014 = vmatpush1.msra.mxu0 %v850
      %1015 = vmatprep.subr.mxu0 %v857
      %1016 = vmatpush1.msra.mxu0 %v856
      %1017 = vmatprep.subr.mxu0 %v863
      %1018 = vmatpush1.msra.mxu0 %v862
      %1019 = vmatprep.subr.mxu0 %v869
      %1020 = vmatpush1.msra.mxu0 %v868
      %1021 = vmatprep.subr.mxu0 %v875
      %1022 = vmatpush1.msra.mxu0 %v874
      %1023 = vmatprep.subr.mxu0 0.0
      %1024 = vmatpush1.msra.mxu0 0.0
      %1025 = vmatprep.subr.mxu0 0.0
      %1026 = vmatpush1.msra.mxu0 0.0
      %1027 = vmatprep.subr.mxu0 0.0
      %1028 = vmatpush1.msra.mxu0 0.0
      %1029 = vmatprep.subr.mxu0 0.0
      %1030 = vmatpush1.msra.mxu0 0.0
      %1031 = vmatprep.subr.mxu0 0.0
      %1032 = vmatpush1.msra.mxu0 0.0
      %1033 = vmatprep.subr.mxu0 0.0
      %1034 = vmatpush1.msra.mxu0 0.0
      %1035 = vmatprep.subr.mxu0 0.0
      %1036 = vmatpush1.msra.mxu0 0.0
      %1037 = vmatprep.subr.mxu0 0.0
      %1038 = vmatpush1.msra.mxu0 0.0
      %1039 = vmatprep.subr.mxu0 0.0
      %1040 = vmatpush1.msra.mxu0 0.0
      %1041 = vmatprep.subr.mxu0 0.0
      %1042 = vmatpush1.msra.mxu0 0.0
      %1043 = vmatprep.subr.mxu0 0.0
      %1044 = vmatpush1.msra.mxu0 0.0
      %1045 = vmatprep.subr.mxu0 0.0
      %1046 = vmatpush1.msra.mxu0 0.0
      %1047 = vmatprep.subr.mxu0 0.0
      %1048 = vmatpush1.msra.mxu0 0.0
      %1049 = vmatprep.subr.mxu0 0.0
      %1050 = vmatpush1.msra.mxu0 0.0
      %1051 = vmatprep.subr.mxu0 0.0
      %1052 = vmatpush1.msra.mxu0 0.0
      %1053 = vmatprep.subr.mxu0 0.0
      %1054 = vmatpush1.msra.mxu0 0.0
      %1055 = vmatprep.mubr.f32.mxu0 0.0
      %1056 = vmatmul.mubr.f32.gmra.mrb[0].mxu0 %v774
      %v1057 = vpop.f32.mrb[0].mxu0
      %v1058 = vadd.f32 0.0, %v1057
      %v1059 = vpop.f32.mrb[0].mxu0
      %v1060 = vadd.f32 0.0, %v1059
      %1061 = vmatprep.mubr.f32.mxu0 0.0
      %1062 = vmatmul.mubr.f32.gmra.mrb[0].mxu0 %v775
      %v1063 = vpop.f32.mrb[0].mxu0
      %v1064 = vadd.f32 0.0, %v1063
      %v1065 = vpop.f32.mrb[0].mxu0
      %v1066 = vadd.f32 0.0, %v1065
      %1067 = vmatprep.mubr.f32.mxu0 0.0
      %1068 = vmatmul.mubr.f32.gmra.mrb[0].mxu0 %v776
      %v1069 = vpop.f32.mrb[0].mxu0
      %v1070 = vadd.f32 0.0, %v1069
      %v1071 = vpop.f32.mrb[0].mxu0
      %v1072 = vadd.f32 0.0, %v1071
      %1073 = vmatprep.mubr.f32.mxu0 0.0
      %1074 = vmatmul.mubr.f32.gmra.mrb[0].mxu0 %v777
      %v1075 = vpop.f32.mrb[0].mxu0
      %v1076 = vadd.f32 0.0, %v1075
      %v1077 = vpop.f32.mrb[0].mxu0
      %v1078 = vadd.f32 0.0, %v1077
      %1079 = vmatprep.mubr.f32.mxu0 0.0
      %1080 = vmatmul.mubr.f32.gmra.mrb[0].mxu0 %v778
      %v1081 = vpop.f32.mrb[0].mxu0
      %v1082 = vadd.f32 0.0, %v1081
      %v1083 = vpop.f32.mrb[0].mxu0
      %v1084 = vadd.f32 0.0, %v1083
      %1085 = vmatprep.mubr.f32.mxu0 0.0
      %1086 = vmatmul.mubr.f32.gmra.mrb[0].mxu0 %v779
      %v1087 = vpop.f32.mrb[0].mxu0
      %v1088 = vadd.f32 0.0, %v1087
      %v1089 = vpop.f32.mrb[0].mxu0
      %v1090 = vadd.f32 0.0, %v1089
      %1091 = vmatprep.mubr.f32.mxu0 0.0
      %1092 = vmatmul.mubr.f32.gmra.mrb[0].mxu0 %v780
      %v1093 = vpop.f32.mrb[0].mxu0
      %v1094 = vadd.f32 0.0, %v1093
      %v1095 = vpop.f32.mrb[0].mxu0
      %v1096 = vadd.f32 0.0, %v1095
      %1097 = vmatprep.mubr.f32.mxu0 0.0
      %1098 = vmatmul.mubr.f32.gmra.mrb[0].mxu0 %v781
      %v1099 = vpop.f32.mrb[0].mxu0
      %v1100 = vadd.f32 0.0, %v1099
      %v1101 = vpop.f32.mrb[0].mxu0
      %v1102 = vadd.f32 0.0, %v1101
      %1103 = vdwg.mxu0
      %1104 = vmatprep.subr.mxu0 %v787
      %1105 = vmatpush1.msra.mxu0 %v786
      %1106 = vmatprep.subr.mxu0 %v793
      %1107 = vmatpush1.msra.mxu0 %v792
      %1108 = vmatprep.subr.mxu0 %v799
      %1109 = vmatpush1.msra.mxu0 %v798
      %1110 = vmatprep.subr.mxu0 %v805
      %1111 = vmatpush1.msra.mxu0 %v804
      %1112 = vmatprep.subr.mxu0 %v811
      %1113 = vmatpush1.msra.mxu0 %v810
      %1114 = vmatprep.subr.mxu0 %v817
      %1115 = vmatpush1.msra.mxu0 %v816
      %1116 = vmatprep.subr.mxu0 %v823
      %1117 = vmatpush1.msra.mxu0 %v822
      %1118 = vmatprep.subr.mxu0 %v829
      %1119 = vmatpush1.msra.mxu0 %v828
      %1120 = vmatprep.subr.mxu0 %v835
      %1121 = vmatpush1.msra.mxu0 %v834
      %1122 = vmatprep.subr.mxu0 %v841
      %1123 = vmatpush1.msra.mxu0 %v840
      %1124 = vmatprep.subr.mxu0 %v847
      %1125 = vmatpush1.msra.mxu0 %v846
      %1126 = vmatprep.subr.mxu0 %v853
      %1127 = vmatpush1.msra.mxu0 %v852
      %1128 = vmatprep.subr.mxu0 %v859
      %1129 = vmatpush1.msra.mxu0 %v858
      %1130 = vmatprep.subr.mxu0 %v865
      %1131 = vmatpush1.msra.mxu0 %v864
      %1132 = vmatprep.subr.mxu0 %v871
      %1133 = vmatpush1.msra.mxu0 %v870
      %1134 = vmatprep.subr.mxu0 %v877
      %1135 = vmatpush1.msra.mxu0 %v876
      %1136 = vmatprep.subr.mxu0 0.0
      %1137 = vmatpush1.msra.mxu0 0.0
      %1138 = vmatprep.subr.mxu0 0.0
      %1139 = vmatpush1.msra.mxu0 0.0
      %1140 = vmatprep.subr.mxu0 0.0
      %1141 = vmatpush1.msra.mxu0 0.0
      %1142 = vmatprep.subr.mxu0 0.0
      %1143 = vmatpush1.msra.mxu0 0.0
      %1144 = vmatprep.subr.mxu0 0.0
      %1145 = vmatpush1.msra.mxu0 0.0
      %1146 = vmatprep.subr.mxu0 0.0
      %1147 = vmatpush1.msra.mxu0 0.0
      %1148 = vmatprep.subr.mxu0 0.0
      %1149 = vmatpush1.msra.mxu0 0.0
      %1150 = vmatprep.subr.mxu0 0.0
      %1151 = vmatpush1.msra.mxu0 0.0
      %1152 = vmatprep.subr.mxu0 0.0
      %1153 = vmatpush1.msra.mxu0 0.0
      %1154 = vmatprep.subr.mxu0 0.0
      %1155 = vmatpush1.msra.mxu0 0.0
      %1156 = vmatprep.subr.mxu0 0.0
      %1157 = vmatpush1.msra.mxu0 0.0
      %1158 = vmatprep.subr.mxu0 0.0
      %1159 = vmatpush1.msra.mxu0 0.0
      %1160 = vmatprep.subr.mxu0 0.0
      %1161 = vmatpush1.msra.mxu0 0.0
      %1162 = vmatprep.subr.mxu0 0.0
      %1163 = vmatpush1.msra.mxu0 0.0
      %1164 = vmatprep.subr.mxu0 0.0
      %1165 = vmatpush1.msra.mxu0 0.0
      %1166 = vmatprep.subr.mxu0 0.0
      %1167 = vmatpush1.msra.mxu0 0.0
      %1168 = vmatprep.mubr.f32.mxu0 0.0
      %1169 = vmatmul.mubr.f32.gmra.mrb[0].mxu0 %v774
      %v1170 = vpop.f32.mrb[0].mxu0
      %v1171 = vadd.f32 0.0, %v1170
      %v1172 = vpop.f32.mrb[0].mxu0
      %v1173 = vadd.f32 0.0, %v1172
      %1174 = vmatprep.mubr.f32.mxu0 0.0
      %1175 = vmatmul.mubr.f32.gmra.mrb[0].mxu0 %v775
      %v1176 = vpop.f32.mrb[0].mxu0
      %v1177 = vadd.f32 0.0, %v1176
      %v1178 = vpop.f32.mrb[0].mxu0
      %v1179 = vadd.f32 0.0, %v1178
      %1180 = vmatprep.mubr.f32.mxu0 0.0
      %1181 = vmatmul.mubr.f32.gmra.mrb[0].mxu0 %v776
      %v1182 = vpop.f32.mrb[0].mxu0
      %v1183 = vadd.f32 0.0, %v1182
      %v1184 = vpop.f32.mrb[0].mxu0
      %v1185 = vadd.f32 0.0, %v1184
      %1186 = vmatprep.mubr.f32.mxu0 0.0
      %1187 = vmatmul.mubr.f32.gmra.mrb[0].mxu0 %v777
      %v1188 = vpop.f32.mrb[0].mxu0
      %v1189 = vadd.f32 0.0, %v1188
      %v1190 = vpop.f32.mrb[0].mxu0
      %v1191 = vadd.f32 0.0, %v1190
      %1192 = vmatprep.mubr.f32.mxu0 0.0
      %1193 = vmatmul.mubr.f32.gmra.mrb[0].mxu0 %v778
      %v1194 = vpop.f32.mrb[0].mxu0
      %v1195 = vadd.f32 0.0, %v1194
      %v1196 = vpop.f32.mrb[0].mxu0
      %v1197 = vadd.f32 0.0, %v1196
      %1198 = vmatprep.mubr.f32.mxu0 0.0
      %1199 = vmatmul.mubr.f32.gmra.mrb[0].mxu0 %v779
      %v1200 = vpop.f32.mrb[0].mxu0
      %v1201 = vadd.f32 0.0, %v1200
      %v1202 = vpop.f32.mrb[0].mxu0
      %v1203 = vadd.f32 0.0, %v1202
      %1204 = vmatprep.mubr.f32.mxu0 0.0
      %1205 = vmatmul.mubr.f32.gmra.mrb[0].mxu0 %v780
      %v1206 = vpop.f32.mrb[0].mxu0
      %v1207 = vadd.f32 0.0, %v1206
      %v1208 = vpop.f32.mrb[0].mxu0
      %v1209 = vadd.f32 0.0, %v1208
      %1210 = vmatprep.mubr.f32.mxu0 0.0
      %1211 = vmatmul.mubr.f32.gmra.mrb[0].mxu0 %v781
      %v1212 = vpop.f32.mrb[0].mxu0
      %v1213 = vadd.f32 0.0, %v1212
      %v1214 = vpop.f32.mrb[0].mxu0
      %v1215 = vadd.f32 0.0, %v1214
      %1216 = vdwg.mxu0
      %v1217 = vmax.f32 %v945, %v957
      %v1218 = vmax.f32 %v947, %v959
      %v1219 = vmax.f32 %v1058, %v1070
      %v1220 = vmax.f32 %v1060, %v1072
      %v1221 = vmax.f32 %v1171, %v1183
      %v1222 = vmax.f32 %v1173, %v1185
      %v1223 = vmax.f32 %v951, %v963
      %v1224 = vmax.f32 %v953, %v965
      %v1225 = vmax.f32 %v1064, %v1076
      %v1226 = vmax.f32 %v1066, %v1078
      %v1227 = vmax.f32 %v1177, %v1189
      %v1228 = vmax.f32 %v1179, %v1191
      %v1229 = vmax.f32 %v969, %v981
      %v1230 = vmax.f32 %v971, %v983
      %v1231 = vmax.f32 %v1082, %v1094
      %v1232 = vmax.f32 %v1084, %v1096
      %v1233 = vmax.f32 %v1195, %v1207
      %v1234 = vmax.f32 %v1197, %v1209
      %v1235 = vmax.f32 %v975, %v987
      %v1236 = vmax.f32 %v977, %v989
      %v1237 = vmax.f32 %v1088, %v1100
      %v1238 = vmax.f32 %v1090, %v1102
      %v1239 = vmax.f32 %v1201, %v1213
      %v1240 = vmax.f32 %v1203, %v1215
      %v1241 = vmax.f32 %v1217, %v1229
      %v1242 = vmax.f32 %v1218, %v1230
      %v1243 = vmax.f32 %v1219, %v1231
      %v1244 = vmax.f32 %v1220, %v1232
      %v1245 = vmax.f32 %v1221, %v1233
      %v1246 = vmax.f32 %v1222, %v1234
      %v1247 = vmax.f32 %v1223, %v1235
      %v1248 = vmax.f32 %v1224, %v1236
      %v1249 = vmax.f32 %v1225, %v1237
      %v1250 = vmax.f32 %v1226, %v1238
      %v1251 = vmax.f32 %v1227, %v1239
      %v1252 = vmax.f32 %v1228, %v1240
      %v1253 = vld [vmem:[%s2] sm:$0xff]
      %v1254 = vld [vmem:[%s2 + $0x8] sm:$0xff]
      %1256 = vset.pattern.permute.xlu0 0
      %1257 = vperm.xlu0 %1256, %v1253
      %v1258 = vpop.permute.xlu0 %1257
      %1261 = vset.pattern.permute.xlu0 0
      %1262 = vperm.xlu0 %1261, %v1254
      %v1263 = vpop.permute.xlu0 %1262
      %v1265 = vadd.f32 %v1241, %v1258
      %v1266 = vadd.f32 %v1242, %v1258
      %v1267 = vadd.f32 %v1243, %v1258
      %v1268 = vadd.f32 %v1244, %v1258
      %v1269 = vadd.f32 %v1245, %v1258
      %v1270 = vadd.f32 %v1246, %v1258
      %v1271 = vadd.f32 %v1247, %v1263
      %v1272 = vadd.f32 %v1248, %v1263
      %v1273 = vadd.f32 %v1249, %v1263
      %v1274 = vadd.f32 %v1250, %v1263
      %v1275 = vadd.f32 %v1251, %v1263
      %v1276 = vadd.f32 %v1252, %v1263
      %v1277 = vmax.f32 %v1265, 0.0
      %v1278 = vmax.f32 %v1266, 0.0
      %v1279 = vmax.f32 %v1267, 0.0
      %v1280 = vmax.f32 %v1268, 0.0
      %v1281 = vmax.f32 %v1269, 0.0
      %v1282 = vmax.f32 %v1270, 0.0
      %v1283 = vmax.f32 %v1271, 0.0
      %v1284 = vmax.f32 %v1272, 0.0
      %v1285 = vmax.f32 %v1273, 0.0
      %v1286 = vmax.f32 %v1274, 0.0
      %v1287 = vmax.f32 %v1275, 0.0
      %v1288 = vmax.f32 %v1276, 0.0
      %1289 = vst [vmem:[%s170] sm:$0xff] %v1277
      %1290 = vst [vmem:[%s170 + $0x8] sm:$0xff] %v1278
      %1291 = vst [vmem:[%s170 + $0x10] sm:$0xff] %v1279
      %1292 = vst [vmem:[%s170 + $0x18] sm:$0xff] %v1280
      %1293 = vst [vmem:[%s170 + $0x20] sm:$0xff] %v1281
      %1294 = vst [vmem:[%s170 + $0x28] sm:$0xff] %v1282
      %1295 = vst [vmem:[%s170 + $0x30] sm:$0xff] %v1283
      %1296 = vst [vmem:[%s170 + $0x38] sm:$0xff] %v1284
      %1297 = vst [vmem:[%s170 + $0x40] sm:$0xff] %v1285
      %1298 = vst [vmem:[%s170 + $0x48] sm:$0xff] %v1286
      %1299 = vst [vmem:[%s170 + $0x50] sm:$0xff] %v1287
      %1300 = vst [vmem:[%s170 + $0x58] sm:$0xff] %v1288
      %p1301 = scmp.lt.s32.totalorder %s14, 1
      %s1302 = scalar_select %p1301, %s14, 1
      %s1303 = smul.addr %s1302, 12
      %s1304 = smul.addr %s1303, 8
      %s1305 = scalar_lea.vmem %s3, %s1304
      // Predicated region
      $region33: #{_lambda_.4} parent=31 // pred_check
        %p1306 = pneg %p100
      $region34: #{_lambda_.4} parent=31 // pred_check_branch
        %1308 = sbr.rel (%p1306) target = $region36
      $region35: #{_lambda_.4} parent=31 // pred_region
        _
      $region36: #{_lambda_.4} parent=31 // pred_fallthru
        _
    $region32: #{_lambda_.4} parent=5 // pred_fallthru
      _
    %p1309 = scmp.le.s32.totalorder 2, %s9
    // Predicated region
    $region37: #{_lambda_.4} parent=5 // pred_check
      %p1310 = pneg %p1309
    $region38: #{_lambda_.4} parent=5 // pred_check_branch
      %1312 = sbr.rel (%p1310) target = $region40
    $region39: #{_lambda_.4} parent=5 // pred_region
      %s1313 = ssub.s32 %s9, 2
      // Predicated region
      $region41: #{_lambda_.4} parent=39 // pred_check
        %p1314 = pneg %p106
      $region42: #{_lambda_.4} parent=39 // pred_check_branch
        %1316 = sbr.rel (%p1314) target = $region44
      $region43: #{_lambda_.4} parent=39 // pred_region
        %p1317 = scmp.lt.s32.totalorder %s15, 1
        %s1318 = scalar_select %p1317, %s15, 1
        %s1319 = smul.addr %s1318, 12
        %s1320 = smul.addr %s1319, 8
        %s1321 = scalar_lea.vmem %s3, %s1320
      $region44: #{_lambda_.4} parent=39 // pred_fallthru
        _
    $region40: #{_lambda_.4} parent=5 // pred_fallthru
      _
  $region6: #{_lambda_.4} parent=0 // loop_footer
    %s13 = sadd.s32 1, %s9
  $region7: #{_lambda_.4} parent=0 // loop_footer_branch
    %8 = sbr.rel target = $region3
  $region8: #{_lambda_.4} parent=0 // loop_exit
    _

// kernel: _lambda_.5
$region0: #{_lambda_.5}
  #allocation0 [shape = 'u32[]', space=smem, size = 0x4, offset = 0x4, fixed_abs, tag = 'smem constant byte address 0x4 - core index']
  #allocation1 [shape = 'u32[144,128]{1,0:T(1,128)}', space=vmem, size = 0x12000, scoped, tag = 'internal scratch']
  %s0 = inlined_call_operand.vmem [shape: f32[2,10000], index: 0, kind: input, shape index: {}]
  %s1 = inlined_call_operand.vmem [shape: f32[10000,128], index: 1, kind: input, shape index: {}]
  %s2 = inlined_call_operand.vmem [shape: f32[1,128], index: 2, kind: input, shape index: {}]
  %s3 = inlined_call_operand.vmem [shape: f32[128,10], index: 3, kind: input, shape index: {}]
  %s4 = inlined_call_operand.vmem [shape: f32[1,10], index: 4, kind: input, shape index: {}]
  %s5 = inlined_call_operand.hbm [shape: f32[2,10], index: 5, kind: output, shape index: {}]
  %s6 = sld [smem:[#allocation0]]
  $region30: #{_lambda_.5} parent=0
    _
  %s8 = ssub.s32 1, %s6
  %s9 = scalar_select 0, %s8, %s6
  $region1: #{_lambda_.5} parent=0
    #allocation2 [shape = 'u8[1024]{0}', space=vmem, size = 0x400, scoped, tag = 'output window, operand 0, single buffered']
    #allocation3 [shape = 's32[1]{0}', space=sflag, size = 0x4, scoped, tag = 'scoped memory for _lambda_.5']
    %10 = vsyncpa [#allocation3], 0
    // Predicated region
    $region2: #{_lambda_.5} parent=1 // pred_check
      _
    $region3: #{_lambda_.5} parent=1 // pred_check_branch
      %12 = sbr.rel (0) target = $region5
    $region4: #{_lambda_.5} parent=1 // pred_region
      _
    $region5: #{_lambda_.5} parent=1 // pred_fallthru
      _
    // Predicated region
    $region6: #{_lambda_.5} parent=1 // pred_check
      _
    $region7: #{_lambda_.5} parent=1 // pred_check_branch
      %14 = sbr.rel (0) target = $region9
    $region8: #{_lambda_.5} parent=1 // pred_region
      _
    $region9: #{_lambda_.5} parent=1 // pred_fallthru
      _
    // Predicated region
    $region10: #{_lambda_.5} parent=1 // pred_check
      _
    $region11: #{_lambda_.5} parent=1 // pred_check_branch
      %16 = sbr.rel (0) target = $region13
    $region12: #{_lambda_.5} parent=1 // pred_region
      _
    $region13: #{_lambda_.5} parent=1 // pred_fallthru
      _
    // Predicated region
    $region14: #{_lambda_.5} parent=1 // pred_check
      _
    $region15: #{_lambda_.5} parent=1 // pred_check_branch
      %18 = sbr.rel (0) target = $region17
    $region16: #{_lambda_.5} parent=1 // pred_region
      _
    $region17: #{_lambda_.5} parent=1 // pred_fallthru
      _
    // Predicated region
    $region18: #{_lambda_.5} parent=1 // pred_check
      _
    $region19: #{_lambda_.5} parent=1 // pred_check_branch
      %20 = sbr.rel (0) target = $region21
    $region20: #{_lambda_.5} parent=1 // pred_region
      _
    $region21: #{_lambda_.5} parent=1 // pred_fallthru
      _
    %v21 = vld [vmem:[%s0] sm:$0xff]
    %v22 = vld [vmem:[%s0 + $0x8] sm:$0xff]
    %v23 = vld [vmem:[%s0 + $0x10] sm:$0xff]
    %v24 = vld [vmem:[%s0 + $0x18] sm:$0xff]
    %v25 = vld [vmem:[%s0 + $0x20] sm:$0xff]
    %v26 = vld [vmem:[%s0 + $0x28] sm:$0xff]
    %v27 = vld [vmem:[%s0 + $0x30] sm:$0xff]
    %v28 = vld [vmem:[%s0 + $0x38] sm:$0xff]
    %v29 = vld [vmem:[%s0 + $0x40] sm:$0xff]
    %v30 = vld [vmem:[%s0 + $0x48] sm:$0xff]
    %v31 = vld [vmem:[%s0 + $0x50] sm:$0xff]
    %v32 = vld [vmem:[%s0 + $0x58] sm:$0xff]
    %v33 = vld [vmem:[%s0 + $0x60] sm:$0xff]
    %v34 = vld [vmem:[%s0 + $0x68] sm:$0xff]
    %v35 = vld [vmem:[%s0 + $0x70] sm:$0xff]
    %v36 = vld [vmem:[%s0 + $0x78] sm:$0xff]
    %v37 = vld [vmem:[%s0 + $0x80] sm:$0xff]
    %v38 = vld [vmem:[%s0 + $0x88] sm:$0xff]
    %v39 = vld [vmem:[%s0 + $0x90] sm:$0xff]
    %v40 = vld [vmem:[%s0 + $0x98] sm:$0x3f]
    %v41 = vld [vmem:[%s1] sm:$0xff]
    %v42 = vld [vmem:[%s1 + $0x8] sm:$0xff]
    %v43 = vld [vmem:[%s1 + $0x10] sm:$0xff]
    %v44 = vld [vmem:[%s1 + $0x18] sm:$0xff]
    %v45 = vld [vmem:[%s1 + $0x20] sm:$0xff]
    %v46 = vld [vmem:[%s1 + $0x28] sm:$0xff]
    %v47 = vld [vmem:[%s1 + $0x30] sm:$0xff]
    %v48 = vld [vmem:[%s1 + $0x38] sm:$0xff]
    %v49 = vld [vmem:[%s1 + $0x40] sm:$0xff]
    %v50 = vld [vmem:[%s1 + $0x48] sm:$0xff]
    %v51 = vld [vmem:[%s1 + $0x50] sm:$0xff]
    %v52 = vld [vmem:[%s1 + $0x58] sm:$0xff]
    %v53 = vld [vmem:[%s1 + $0x60] sm:$0xff]
    %v54 = vld [vmem:[%s1 + $0x68] sm:$0xff]
    %v55 = vld [vmem:[%s1 + $0x70] sm:$0xff]
    %v56 = vld [vmem:[%s1 + $0x78] sm:$0xff]
    %v57 = vld [vmem:[%s1 + $0x80] sm:$0xff]
    %v58 = vld [vmem:[%s1 + $0x88] sm:$0xff]
    %v59 = vld [vmem:[%s1 + $0x90] sm:$0xff]
    %v60 = vld [vmem:[%s1 + $0x98] sm:$0xff]
    %v61 = vld [vmem:[%s1 + $0xa0] sm:$0xff]
    %v62 = vld [vmem:[%s1 + $0xa8] sm:$0xff]
    %v63 = vld [vmem:[%s1 + $0xb0] sm:$0xff]
    %v64 = vld [vmem:[%s1 + $0xb8] sm:$0xff]
    %v65 = vld [vmem:[%s1 + $0xc0] sm:$0xff]
    %v66 = vld [vmem:[%s1 + $0xc8] sm:$0xff]
    %v67 = vld [vmem:[%s1 + $0xd0] sm:$0xff]
    %v68 = vld [vmem:[%s1 + $0xd8] sm:$0xff]
    %v69 = vld [vmem:[%s1 + $0xe0] sm:$0xff]
    %v70 = vld [vmem:[%s1 + $0xe8] sm:$0xff]
    %v71 = vld [vmem:[%s1 + $0xf0] sm:$0xff]
    %v72 = vld [vmem:[%s1 + $0xf8] sm:$0xff]
    %v73 = vld [vmem:[%s1 + $0x100] sm:$0xff]
    %v74 = vld [vmem:[%s1 + $0x108] sm:$0xff]
    %v75 = vld [vmem:[%s1 + $0x110] sm:$0xff]
    %v76 = vld [vmem:[%s1 + $0x118] sm:$0xff]
    %v77 = vld [vmem:[%s1 + $0x120] sm:$0xff]
    %v78 = vld [vmem:[%s1 + $0x128] sm:$0xff]
    %v79 = vld [vmem:[%s1 + $0x130] sm:$0xff]
    %v80 = vld [vmem:[%s1 + $0x138] sm:$0xff]
    %v81 = vld [vmem:[%s1 + $0x140] sm:$0xff]
    %v82 = vld [vmem:[%s1 + $0x148] sm:$0xff]
    %v83 = vld [vmem:[%s1 + $0x150] sm:$0xff]
    %v84 = vld [vmem:[%s1 + $0x158] sm:$0xff]
    %v85 = vld [vmem:[%s1 + $0x160] sm:$0xff]
    %v86 = vld [vmem:[%s1 + $0x168] sm:$0xff]
    %v87 = vld [vmem:[%s1 + $0x170] sm:$0xff]
    %v88 = vld [vmem:[%s1 + $0x178] sm:$0xff]
    %v89 = vld [vmem:[%s1 + $0x180] sm:$0xff]
    %v90 = vld [vmem:[%s1 + $0x188] sm:$0xff]
    %v91 = vld [vmem:[%s1 + $0x190] sm:$0xff]
    %v92 = vld [vmem:[%s1 + $0x198] sm:$0xff]
    %v93 = vld [vmem:[%s1 + $0x1a0] sm:$0xff]
    %v94 = vld [vmem:[%s1 + $0x1a8] sm:$0xff]
    %v95 = vld [vmem:[%s1 + $0x1b0] sm:$0xff]
    %v96 = vld [vmem:[%s1 + $0x1b8] sm:$0xff]
    %v97 = vld [vmem:[%s1 + $0x1c0] sm:$0xff]
    %v98 = vld [vmem:[%s1 + $0x1c8] sm:$0xff]
    %v99 = vld [vmem:[%s1 + $0x1d0] sm:$0xff]
    %v100 = vld [vmem:[%s1 + $0x1d8] sm:$0xff]
    %v101 = vld [vmem:[%s1 + $0x1e0] sm:$0xff]
    %v102 = vld [vmem:[%s1 + $0x1e8] sm:$0xff]
    %v103 = vld [vmem:[%s1 + $0x1f0] sm:$0xff]
    %v104 = vld [vmem:[%s1 + $0x1f8] sm:$0xff]
    %v105 = vld [vmem:[%s1 + $0x200] sm:$0xff]
    %v106 = vld [vmem:[%s1 + $0x208] sm:$0xff]
    %v107 = vld [vmem:[%s1 + $0x210] sm:$0xff]
    %v108 = vld [vmem:[%s1 + $0x218] sm:$0xff]
    %v109 = vld [vmem:[%s1 + $0x220] sm:$0xff]
    %v110 = vld [vmem:[%s1 + $0x228] sm:$0xff]
    %v111 = vld [vmem:[%s1 + $0x230] sm:$0xff]
    %v112 = vld [vmem:[%s1 + $0x238] sm:$0xff]
    %v113 = vld [vmem:[%s1 + $0x240] sm:$0xff]
    %v114 = vld [vmem:[%s1 + $0x248] sm:$0xff]
    %v115 = vld [vmem:[%s1 + $0x250] sm:$0xff]
    %v116 = vld [vmem:[%s1 + $0x258] sm:$0xff]
    %v117 = vld [vmem:[%s1 + $0x260] sm:$0xff]
    %v118 = vld [vmem:[%s1 + $0x268] sm:$0xff]
    %v119 = vld [vmem:[%s1 + $0x270] sm:$0xff]
    %v120 = vld [vmem:[%s1 + $0x278] sm:$0xff]
    %v121 = vld [vmem:[%s1 + $0x280] sm:$0xff]
    %v122 = vld [vmem:[%s1 + $0x288] sm:$0xff]
    %v123 = vld [vmem:[%s1 + $0x290] sm:$0xff]
    %v124 = vld [vmem:[%s1 + $0x298] sm:$0xff]
    %v125 = vld [vmem:[%s1 + $0x2a0] sm:$0xff]
    %v126 = vld [vmem:[%s1 + $0x2a8] sm:$0xff]
    %v127 = vld [vmem:[%s1 + $0x2b0] sm:$0xff]
    %v128 = vld [vmem:[%s1 + $0x2b8] sm:$0xff]
    %v129 = vld [vmem:[%s1 + $0x2c0] sm:$0xff]
    %v130 = vld [vmem:[%s1 + $0x2c8] sm:$0xff]
    %v131 = vld [vmem:[%s1 + $0x2d0] sm:$0xff]
    %v132 = vld [vmem:[%s1 + $0x2d8] sm:$0xff]
    %v133 = vld [vmem:[%s1 + $0x2e0] sm:$0xff]
    %v134 = vld [vmem:[%s1 + $0x2e8] sm:$0xff]
    %v135 = vld [vmem:[%s1 + $0x2f0] sm:$0xff]
    %v136 = vld [vmem:[%s1 + $0x2f8] sm:$0xff]
    %v137 = vld [vmem:[%s1 + $0x300] sm:$0xff]
    %v138 = vld [vmem:[%s1 + $0x308] sm:$0xff]
    %v139 = vld [vmem:[%s1 + $0x310] sm:$0xff]
    %v140 = vld [vmem:[%s1 + $0x318] sm:$0xff]
    %v141 = vld [vmem:[%s1 + $0x320] sm:$0xff]
    %v142 = vld [vmem:[%s1 + $0x328] sm:$0xff]
    %v143 = vld [vmem:[%s1 + $0x330] sm:$0xff]
    %v144 = vld [vmem:[%s1 + $0x338] sm:$0xff]
    %v145 = vld [vmem:[%s1 + $0x340] sm:$0xff]
    %v146 = vld [vmem:[%s1 + $0x348] sm:$0xff]
    %v147 = vld [vmem:[%s1 + $0x350] sm:$0xff]
    %v148 = vld [vmem:[%s1 + $0x358] sm:$0xff]
    %v149 = vld [vmem:[%s1 + $0x360] sm:$0xff]
    %v150 = vld [vmem:[%s1 + $0x368] sm:$0xff]
    %v151 = vld [vmem:[%s1 + $0x370] sm:$0xff]
    %v152 = vld [vmem:[%s1 + $0x378] sm:$0xff]
    %v153 = vld [vmem:[%s1 + $0x380] sm:$0xff]
    %v154 = vld [vmem:[%s1 + $0x388] sm:$0xff]
    %v155 = vld [vmem:[%s1 + $0x390] sm:$0xff]
    %v156 = vld [vmem:[%s1 + $0x398] sm:$0xff]
    %v157 = vld [vmem:[%s1 + $0x3a0] sm:$0xff]
    %v158 = vld [vmem:[%s1 + $0x3a8] sm:$0xff]
    %v159 = vld [vmem:[%s1 + $0x3b0] sm:$0xff]
    %v160 = vld [vmem:[%s1 + $0x3b8] sm:$0xff]
    %v161 = vld [vmem:[%s1 + $0x3c0] sm:$0xff]
    %v162 = vld [vmem:[%s1 + $0x3c8] sm:$0xff]
    %v163 = vld [vmem:[%s1 + $0x3d0] sm:$0xff]
    %v164 = vld [vmem:[%s1 + $0x3d8] sm:$0xff]
    %v165 = vld [vmem:[%s1 + $0x3e0] sm:$0xff]
    %v166 = vld [vmem:[%s1 + $0x3e8] sm:$0xff]
    %v167 = vld [vmem:[%s1 + $0x3f0] sm:$0xff]
    %v168 = vld [vmem:[%s1 + $0x3f8] sm:$0xff]
    %v169 = vld [vmem:[%s1 + $0x400] sm:$0xff]
    %v170 = vld [vmem:[%s1 + $0x408] sm:$0xff]
    %v171 = vld [vmem:[%s1 + $0x410] sm:$0xff]
    %v172 = vld [vmem:[%s1 + $0x418] sm:$0xff]
    %v173 = vld [vmem:[%s1 + $0x420] sm:$0xff]
    %v174 = vld [vmem:[%s1 + $0x428] sm:$0xff]
    %v175 = vld [vmem:[%s1 + $0x430] sm:$0xff]
    %v176 = vld [vmem:[%s1 + $0x438] sm:$0xff]
    %v177 = vld [vmem:[%s1 + $0x440] sm:$0xff]
    %v178 = vld [vmem:[%s1 + $0x448] sm:$0xff]
    %v179 = vld [vmem:[%s1 + $0x450] sm:$0xff]
    %v180 = vld [vmem:[%s1 + $0x458] sm:$0xff]
    %v181 = vld [vmem:[%s1 + $0x460] sm:$0xff]
    %v182 = vld [vmem:[%s1 + $0x468] sm:$0xff]
    %v183 = vld [vmem:[%s1 + $0x470] sm:$0xff]
    %v184 = vld [vmem:[%s1 + $0x478] sm:$0xff]
    %v185 = vld [vmem:[%s1 + $0x480] sm:$0xff]
    %v186 = vld [vmem:[%s1 + $0x488] sm:$0xff]
    %v187 = vld [vmem:[%s1 + $0x490] sm:$0xff]
    %v188 = vld [vmem:[%s1 + $0x498] sm:$0xff]
    %v189 = vld [vmem:[%s1 + $0x4a0] sm:$0xff]
    %v190 = vld [vmem:[%s1 + $0x4a8] sm:$0xff]
    %v191 = vld [vmem:[%s1 + $0x4b0] sm:$0xff]
    %v192 = vld [vmem:[%s1 + $0x4b8] sm:$0xff]
    %v193 = vld [vmem:[%s1 + $0x4c0] sm:$0xff]
    %v194 = vld [vmem:[%s1 + $0x4c8] sm:$0xff]
    %v195 = vld [vmem:[%s1 + $0x4d0] sm:$0xff]
    %v196 = vld [vmem:[%s1 + $0x4d8] sm:$0xff]
    %v197 = vld [vmem:[%s1 + $0x4e0] sm:$0xff]
    %v198 = vld [vmem:[%s1 + $0x4e8] sm:$0xff]
    %v199 = vld [vmem:[%s1 + $0x4f0] sm:$0xff]
    %v200 = vld [vmem:[%s1 + $0x4f8] sm:$0xff]
    %v201 = vld [vmem:[%s1 + $0x500] sm:$0xff]
    %v202 = vld [vmem:[%s1 + $0x508] sm:$0xff]
    %v203 = vld [vmem:[%s1 + $0x510] sm:$0xff]
    %v204 = vld [vmem:[%s1 + $0x518] sm:$0xff]
    %v205 = vld [vmem:[%s1 + $0x520] sm:$0xff]
    %v206 = vld [vmem:[%s1 + $0x528] sm:$0xff]
    %v207 = vld [vmem:[%s1 + $0x530] sm:$0xff]
    %v208 = vld [vmem:[%s1 + $0x538] sm:$0xff]
    %v209 = vld [vmem:[%s1 + $0x540] sm:$0xff]
    %v210 = vld [vmem:[%s1 + $0x548] sm:$0xff]
    %v211 = vld [vmem:[%s1 + $0x550] sm:$0xff]
    %v212 = vld [vmem:[%s1 + $0x558] sm:$0xff]
    %v213 = vld [vmem:[%s1 + $0x560] sm:$0xff]
    %v214 = vld [vmem:[%s1 + $0x568] sm:$0xff]
    %v215 = vld [vmem:[%s1 + $0x570] sm:$0xff]
    %v216 = vld [vmem:[%s1 + $0x578] sm:$0xff]
    %v217 = vld [vmem:[%s1 + $0x580] sm:$0xff]
    %v218 = vld [vmem:[%s1 + $0x588] sm:$0xff]
    %v219 = vld [vmem:[%s1 + $0x590] sm:$0xff]
    %v220 = vld [vmem:[%s1 + $0x598] sm:$0xff]
    %v221 = vld [vmem:[%s1 + $0x5a0] sm:$0xff]
    %v222 = vld [vmem:[%s1 + $0x5a8] sm:$0xff]
    %v223 = vld [vmem:[%s1 + $0x5b0] sm:$0xff]
    %v224 = vld [vmem:[%s1 + $0x5b8] sm:$0xff]
    %v225 = vld [vmem:[%s1 + $0x5c0] sm:$0xff]
    %v226 = vld [vmem:[%s1 + $0x5c8] sm:$0xff]
    %v227 = vld [vmem:[%s1 + $0x5d0] sm:$0xff]
    %v228 = vld [vmem:[%s1 + $0x5d8] sm:$0xff]
    %v229 = vld [vmem:[%s1 + $0x5e0] sm:$0xff]
    %v230 = vld [vmem:[%s1 + $0x5e8] sm:$0xff]
    %v231 = vld [vmem:[%s1 + $0x5f0] sm:$0xff]
    %v232 = vld [vmem:[%s1 + $0x5f8] sm:$0xff]
    %v233 = vld [vmem:[%s1 + $0x600] sm:$0xff]
    %v234 = vld [vmem:[%s1 + $0x608] sm:$0xff]
    %v235 = vld [vmem:[%s1 + $0x610] sm:$0xff]
    %v236 = vld [vmem:[%s1 + $0x618] sm:$0xff]
    %v237 = vld [vmem:[%s1 + $0x620] sm:$0xff]
    %v238 = vld [vmem:[%s1 + $0x628] sm:$0xff]
    %v239 = vld [vmem:[%s1 + $0x630] sm:$0xff]
    %v240 = vld [vmem:[%s1 + $0x638] sm:$0xff]
    %v241 = vld [vmem:[%s1 + $0x640] sm:$0xff]
    %v242 = vld [vmem:[%s1 + $0x648] sm:$0xff]
    %v243 = vld [vmem:[%s1 + $0x650] sm:$0xff]
    %v244 = vld [vmem:[%s1 + $0x658] sm:$0xff]
    %v245 = vld [vmem:[%s1 + $0x660] sm:$0xff]
    %v246 = vld [vmem:[%s1 + $0x668] sm:$0xff]
    %v247 = vld [vmem:[%s1 + $0x670] sm:$0xff]
    %v248 = vld [vmem:[%s1 + $0x678] sm:$0xff]
    %v249 = vld [vmem:[%s1 + $0x680] sm:$0xff]
    %v250 = vld [vmem:[%s1 + $0x688] sm:$0xff]
    %v251 = vld [vmem:[%s1 + $0x690] sm:$0xff]
    %v252 = vld [vmem:[%s1 + $0x698] sm:$0xff]
    %v253 = vld [vmem:[%s1 + $0x6a0] sm:$0xff]
    %v254 = vld [vmem:[%s1 + $0x6a8] sm:$0xff]
    %v255 = vld [vmem:[%s1 + $0x6b0] sm:$0xff]
    %v256 = vld [vmem:[%s1 + $0x6b8] sm:$0xff]
    %v257 = vld [vmem:[%s1 + $0x6c0] sm:$0xff]
    %v258 = vld [vmem:[%s1 + $0x6c8] sm:$0xff]
    %v259 = vld [vmem:[%s1 + $0x6d0] sm:$0xff]
    %v260 = vld [vmem:[%s1 + $0x6d8] sm:$0xff]
    %v261 = vld [vmem:[%s1 + $0x6e0] sm:$0xff]
    %v262 = vld [vmem:[%s1 + $0x6e8] sm:$0xff]
    %v263 = vld [vmem:[%s1 + $0x6f0] sm:$0xff]
    %v264 = vld [vmem:[%s1 + $0x6f8] sm:$0xff]
    %v265 = vld [vmem:[%s1 + $0x700] sm:$0xff]
    %v266 = vld [vmem:[%s1 + $0x708] sm:$0xff]
    %v267 = vld [vmem:[%s1 + $0x710] sm:$0xff]
    %v268 = vld [vmem:[%s1 + $0x718] sm:$0xff]
    %v269 = vld [vmem:[%s1 + $0x720] sm:$0xff]
    %v270 = vld [vmem:[%s1 + $0x728] sm:$0xff]
    %v271 = vld [vmem:[%s1 + $0x730] sm:$0xff]
    %v272 = vld [vmem:[%s1 + $0x738] sm:$0xff]
    %v273 = vld [vmem:[%s1 + $0x740] sm:$0xff]
    %v274 = vld [vmem:[%s1 + $0x748] sm:$0xff]
    %v275 = vld [vmem:[%s1 + $0x750] sm:$0xff]
    %v276 = vld [vmem:[%s1 + $0x758] sm:$0xff]
    %v277 = vld [vmem:[%s1 + $0x760] sm:$0xff]
    %v278 = vld [vmem:[%s1 + $0x768] sm:$0xff]
    %v279 = vld [vmem:[%s1 + $0x770] sm:$0xff]
    %v280 = vld [vmem:[%s1 + $0x778] sm:$0xff]
    %v281 = vld [vmem:[%s1 + $0x780] sm:$0xff]
    %v282 = vld [vmem:[%s1 + $0x788] sm:$0xff]
    %v283 = vld [vmem:[%s1 + $0x790] sm:$0xff]
    %v284 = vld [vmem:[%s1 + $0x798] sm:$0xff]
    %v285 = vld [vmem:[%s1 + $0x7a0] sm:$0xff]
    %v286 = vld [vmem:[%s1 + $0x7a8] sm:$0xff]
    %v287 = vld [vmem:[%s1 + $0x7b0] sm:$0xff]
    %v288 = vld [vmem:[%s1 + $0x7b8] sm:$0xff]
    %v289 = vld [vmem:[%s1 + $0x7c0] sm:$0xff]
    %v290 = vld [vmem:[%s1 + $0x7c8] sm:$0xff]
    %v291 = vld [vmem:[%s1 + $0x7d0] sm:$0xff]
    %v292 = vld [vmem:[%s1 + $0x7d8] sm:$0xff]
    %v293 = vld [vmem:[%s1 + $0x7e0] sm:$0xff]
    %v294 = vld [vmem:[%s1 + $0x7e8] sm:$0xff]
    %v295 = vld [vmem:[%s1 + $0x7f0] sm:$0xff]
    %v296 = vld [vmem:[%s1 + $0x7f8] sm:$0xff]
    %v297 = vld [vmem:[%s1 + $0x800] sm:$0xff]
    %v298 = vld [vmem:[%s1 + $0x808] sm:$0xff]
    %v299 = vld [vmem:[%s1 + $0x810] sm:$0xff]
    %v300 = vld [vmem:[%s1 + $0x818] sm:$0xff]
    %v301 = vld [vmem:[%s1 + $0x820] sm:$0xff]
    %v302 = vld [vmem:[%s1 + $0x828] sm:$0xff]
    %v303 = vld [vmem:[%s1 + $0x830] sm:$0xff]
    %v304 = vld [vmem:[%s1 + $0x838] sm:$0xff]
    %v305 = vld [vmem:[%s1 + $0x840] sm:$0xff]
    %v306 = vld [vmem:[%s1 + $0x848] sm:$0xff]
    %v307 = vld [vmem:[%s1 + $0x850] sm:$0xff]
    %v308 = vld [vmem:[%s1 + $0x858] sm:$0xff]
    %v309 = vld [vmem:[%s1 + $0x860] sm:$0xff]
    %v310 = vld [vmem:[%s1 + $0x868] sm:$0xff]
    %v311 = vld [vmem:[%s1 + $0x870] sm:$0xff]
    %v312 = vld [vmem:[%s1 + $0x878] sm:$0xff]
    %v313 = vld [vmem:[%s1 + $0x880] sm:$0xff]
    %v314 = vld [vmem:[%s1 + $0x888] sm:$0xff]
    %v315 = vld [vmem:[%s1 + $0x890] sm:$0xff]
    %v316 = vld [vmem:[%s1 + $0x898] sm:$0xff]
    %v317 = vld [vmem:[%s1 + $0x8a0] sm:$0xff]
    %v318 = vld [vmem:[%s1 + $0x8a8] sm:$0xff]
    %v319 = vld [vmem:[%s1 + $0x8b0] sm:$0xff]
    %v320 = vld [vmem:[%s1 + $0x8b8] sm:$0xff]
    %v321 = vld [vmem:[%s1 + $0x8c0] sm:$0xff]
    %v322 = vld [vmem:[%s1 + $0x8c8] sm:$0xff]
    %v323 = vld [vmem:[%s1 + $0x8d0] sm:$0xff]
    %v324 = vld [vmem:[%s1 + $0x8d8] sm:$0xff]
    %v325 = vld [vmem:[%s1 + $0x8e0] sm:$0xff]
    %v326 = vld [vmem:[%s1 + $0x8e8] sm:$0xff]
    %v327 = vld [vmem:[%s1 + $0x8f0] sm:$0xff]
    %v328 = vld [vmem:[%s1 + $0x8f8] sm:$0xff]
    %v329 = vld [vmem:[%s1 + $0x900] sm:$0xff]
    %v330 = vld [vmem:[%s1 + $0x908] sm:$0xff]
    %v331 = vld [vmem:[%s1 + $0x910] sm:$0xff]
    %v332 = vld [vmem:[%s1 + $0x918] sm:$0xff]
    %v333 = vld [vmem:[%s1 + $0x920] sm:$0xff]
    %v334 = vld [vmem:[%s1 + $0x928] sm:$0xff]
    %v335 = vld [vmem:[%s1 + $0x930] sm:$0xff]
    %v336 = vld [vmem:[%s1 + $0x938] sm:$0xff]
    %v337 = vld [vmem:[%s1 + $0x940] sm:$0xff]
    %v338 = vld [vmem:[%s1 + $0x948] sm:$0xff]
    %v339 = vld [vmem:[%s1 + $0x950] sm:$0xff]
    %v340 = vld [vmem:[%s1 + $0x958] sm:$0xff]
    %v341 = vld [vmem:[%s1 + $0x960] sm:$0xff]
    %v342 = vld [vmem:[%s1 + $0x968] sm:$0xff]
    %v343 = vld [vmem:[%s1 + $0x970] sm:$0xff]
    %v344 = vld [vmem:[%s1 + $0x978] sm:$0xff]
    %v345 = vld [vmem:[%s1 + $0x980] sm:$0xff]
    %v346 = vld [vmem:[%s1 + $0x988] sm:$0xff]
    %v347 = vld [vmem:[%s1 + $0x990] sm:$0xff]
    %v348 = vld [vmem:[%s1 + $0x998] sm:$0xff]
    %v349 = vld [vmem:[%s1 + $0x9a0] sm:$0xff]
    %v350 = vld [vmem:[%s1 + $0x9a8] sm:$0xff]
    %v351 = vld [vmem:[%s1 + $0x9b0] sm:$0xff]
    %v352 = vld [vmem:[%s1 + $0x9b8] sm:$0xff]
    %v353 = vld [vmem:[%s1 + $0x9c0] sm:$0xff]
    %v354 = vld [vmem:[%s1 + $0x9c8] sm:$0xff]
    %v355 = vld [vmem:[%s1 + $0x9d0] sm:$0xff]
    %v356 = vld [vmem:[%s1 + $0x9d8] sm:$0xff]
    %v357 = vld [vmem:[%s1 + $0x9e0] sm:$0xff]
    %v358 = vld [vmem:[%s1 + $0x9e8] sm:$0xff]
    %v359 = vld [vmem:[%s1 + $0x9f0] sm:$0xff]
    %v360 = vld [vmem:[%s1 + $0x9f8] sm:$0xff]
    %v361 = vld [vmem:[%s1 + $0xa00] sm:$0xff]
    %v362 = vld [vmem:[%s1 + $0xa08] sm:$0xff]
    %v363 = vld [vmem:[%s1 + $0xa10] sm:$0xff]
    %v364 = vld [vmem:[%s1 + $0xa18] sm:$0xff]
    %v365 = vld [vmem:[%s1 + $0xa20] sm:$0xff]
    %v366 = vld [vmem:[%s1 + $0xa28] sm:$0xff]
    %v367 = vld [vmem:[%s1 + $0xa30] sm:$0xff]
    %v368 = vld [vmem:[%s1 + $0xa38] sm:$0xff]
    %v369 = vld [vmem:[%s1 + $0xa40] sm:$0xff]
    %v370 = vld [vmem:[%s1 + $0xa48] sm:$0xff]
    %v371 = vld [vmem:[%s1 + $0xa50] sm:$0xff]
    %v372 = vld [vmem:[%s1 + $0xa58] sm:$0xff]
    %v373 = vld [vmem:[%s1 + $0xa60] sm:$0xff]
    %v374 = vld [vmem:[%s1 + $0xa68] sm:$0xff]
    %v375 = vld [vmem:[%s1 + $0xa70] sm:$0xff]
    %v376 = vld [vmem:[%s1 + $0xa78] sm:$0xff]
    %v377 = vld [vmem:[%s1 + $0xa80] sm:$0xff]
    %v378 = vld [vmem:[%s1 + $0xa88] sm:$0xff]
    %v379 = vld [vmem:[%s1 + $0xa90] sm:$0xff]
    %v380 = vld [vmem:[%s1 + $0xa98] sm:$0xff]
    %v381 = vld [vmem:[%s1 + $0xaa0] sm:$0xff]
    %v382 = vld [vmem:[%s1 + $0xaa8] sm:$0xff]
    %v383 = vld [vmem:[%s1 + $0xab0] sm:$0xff]
    %v384 = vld [vmem:[%s1 + $0xab8] sm:$0xff]
    %v385 = vld [vmem:[%s1 + $0xac0] sm:$0xff]
    %v386 = vld [vmem:[%s1 + $0xac8] sm:$0xff]
    %v387 = vld [vmem:[%s1 + $0xad0] sm:$0xff]
    %v388 = vld [vmem:[%s1 + $0xad8] sm:$0xff]
    %v389 = vld [vmem:[%s1 + $0xae0] sm:$0xff]
    %v390 = vld [vmem:[%s1 + $0xae8] sm:$0xff]
    %v391 = vld [vmem:[%s1 + $0xaf0] sm:$0xff]
    %v392 = vld [vmem:[%s1 + $0xaf8] sm:$0xff]
    %v393 = vld [vmem:[%s1 + $0xb00] sm:$0xff]
    %v394 = vld [vmem:[%s1 + $0xb08] sm:$0xff]
    %v395 = vld [vmem:[%s1 + $0xb10] sm:$0xff]
    %v396 = vld [vmem:[%s1 + $0xb18] sm:$0xff]
    %v397 = vld [vmem:[%s1 + $0xb20] sm:$0xff]
    %v398 = vld [vmem:[%s1 + $0xb28] sm:$0xff]
    %v399 = vld [vmem:[%s1 + $0xb30] sm:$0xff]
    %v400 = vld [vmem:[%s1 + $0xb38] sm:$0xff]
    %v401 = vld [vmem:[%s1 + $0xb40] sm:$0xff]
    %v402 = vld [vmem:[%s1 + $0xb48] sm:$0xff]
    %v403 = vld [vmem:[%s1 + $0xb50] sm:$0xff]
    %v404 = vld [vmem:[%s1 + $0xb58] sm:$0xff]
    %v405 = vld [vmem:[%s1 + $0xb60] sm:$0xff]
    %v406 = vld [vmem:[%s1 + $0xb68] sm:$0xff]
    %v407 = vld [vmem:[%s1 + $0xb70] sm:$0xff]
    %v408 = vld [vmem:[%s1 + $0xb78] sm:$0xff]
    %v409 = vld [vmem:[%s1 + $0xb80] sm:$0xff]
    %v410 = vld [vmem:[%s1 + $0xb88] sm:$0xff]
    %v411 = vld [vmem:[%s1 + $0xb90] sm:$0xff]
    %v412 = vld [vmem:[%s1 + $0xb98] sm:$0xff]
    %v413 = vld [vmem:[%s1 + $0xba0] sm:$0xff]
    %v414 = vld [vmem:[%s1 + $0xba8] sm:$0xff]
    %v415 = vld [vmem:[%s1 + $0xbb0] sm:$0xff]
    %v416 = vld [vmem:[%s1 + $0xbb8] sm:$0xff]
    %v417 = vld [vmem:[%s1 + $0xbc0] sm:$0xff]
    %v418 = vld [vmem:[%s1 + $0xbc8] sm:$0xff]
    %v419 = vld [vmem:[%s1 + $0xbd0] sm:$0xff]
    %v420 = vld [vmem:[%s1 + $0xbd8] sm:$0xff]
    %v421 = vld [vmem:[%s1 + $0xbe0] sm:$0xff]
    %v422 = vld [vmem:[%s1 + $0xbe8] sm:$0xff]
    %v423 = vld [vmem:[%s1 + $0xbf0] sm:$0xff]
    %v424 = vld [vmem:[%s1 + $0xbf8] sm:$0xff]
    %v425 = vld [vmem:[%s1 + $0xc00] sm:$0xff]
    %v426 = vld [vmem:[%s1 + $0xc08] sm:$0xff]
    %v427 = vld [vmem:[%s1 + $0xc10] sm:$0xff]
    %v428 = vld [vmem:[%s1 + $0xc18] sm:$0xff]
    %v429 = vld [vmem:[%s1 + $0xc20] sm:$0xff]
    %v430 = vld [vmem:[%s1 + $0xc28] sm:$0xff]
    %v431 = vld [vmem:[%s1 + $0xc30] sm:$0xff]
    %v432 = vld [vmem:[%s1 + $0xc38] sm:$0xff]
    %v433 = vld [vmem:[%s1 + $0xc40] sm:$0xff]
    %v434 = vld [vmem:[%s1 + $0xc48] sm:$0xff]
    %v435 = vld [vmem:[%s1 + $0xc50] sm:$0xff]
    %v436 = vld [vmem:[%s1 + $0xc58] sm:$0xff]
    %v437 = vld [vmem:[%s1 + $0xc60] sm:$0xff]
    %v438 = vld [vmem:[%s1 + $0xc68] sm:$0xff]
    %v439 = vld [vmem:[%s1 + $0xc70] sm:$0xff]
    %v440 = vld [vmem:[%s1 + $0xc78] sm:$0xff]
    %v441 = vld [vmem:[%s1 + $0xc80] sm:$0xff]
    %v442 = vld [vmem:[%s1 + $0xc88] sm:$0xff]
    %v443 = vld [vmem:[%s1 + $0xc90] sm:$0xff]
    %v444 = vld [vmem:[%s1 + $0xc98] sm:$0xff]
    %v445 = vld [vmem:[%s1 + $0xca0] sm:$0xff]
    %v446 = vld [vmem:[%s1 + $0xca8] sm:$0xff]
    %v447 = vld [vmem:[%s1 + $0xcb0] sm:$0xff]
    %v448 = vld [vmem:[%s1 + $0xcb8] sm:$0xff]
    %v449 = vld [vmem:[%s1 + $0xcc0] sm:$0xff]
    %v450 = vld [vmem:[%s1 + $0xcc8] sm:$0xff]
    %v451 = vld [vmem:[%s1 + $0xcd0] sm:$0xff]
    %v452 = vld [vmem:[%s1 + $0xcd8] sm:$0xff]
    %v453 = vld [vmem:[%s1 + $0xce0] sm:$0xff]
    %v454 = vld [vmem:[%s1 + $0xce8] sm:$0xff]
    %v455 = vld [vmem:[%s1 + $0xcf0] sm:$0xff]
    %v456 = vld [vmem:[%s1 + $0xcf8] sm:$0xff]
    %v457 = vld [vmem:[%s1 + $0xd00] sm:$0xff]
    %v458 = vld [vmem:[%s1 + $0xd08] sm:$0xff]
    %v459 = vld [vmem:[%s1 + $0xd10] sm:$0xff]
    %v460 = vld [vmem:[%s1 + $0xd18] sm:$0xff]
    %v461 = vld [vmem:[%s1 + $0xd20] sm:$0xff]
    %v462 = vld [vmem:[%s1 + $0xd28] sm:$0xff]
    %v463 = vld [vmem:[%s1 + $0xd30] sm:$0xff]
    %v464 = vld [vmem:[%s1 + $0xd38] sm:$0xff]
    %v465 = vld [vmem:[%s1 + $0xd40] sm:$0xff]
    %v466 = vld [vmem:[%s1 + $0xd48] sm:$0xff]
    %v467 = vld [vmem:[%s1 + $0xd50] sm:$0xff]
    %v468 = vld [vmem:[%s1 + $0xd58] sm:$0xff]
    %v469 = vld [vmem:[%s1 + $0xd60] sm:$0xff]
    %v470 = vld [vmem:[%s1 + $0xd68] sm:$0xff]
    %v471 = vld [vmem:[%s1 + $0xd70] sm:$0xff]
    %v472 = vld [vmem:[%s1 + $0xd78] sm:$0xff]
    %v473 = vld [vmem:[%s1 + $0xd80] sm:$0xff]
    %v474 = vld [vmem:[%s1 + $0xd88] sm:$0xff]
    %v475 = vld [vmem:[%s1 + $0xd90] sm:$0xff]
    %v476 = vld [vmem:[%s1 + $0xd98] sm:$0xff]
    %v477 = vld [vmem:[%s1 + $0xda0] sm:$0xff]
    %v478 = vld [vmem:[%s1 + $0xda8] sm:$0xff]
    %v479 = vld [vmem:[%s1 + $0xdb0] sm:$0xff]
    %v480 = vld [vmem:[%s1 + $0xdb8] sm:$0xff]
    %v481 = vld [vmem:[%s1 + $0xdc0] sm:$0xff]
    %v482 = vld [vmem:[%s1 + $0xdc8] sm:$0xff]
    %v483 = vld [vmem:[%s1 + $0xdd0] sm:$0xff]
    %v484 = vld [vmem:[%s1 + $0xdd8] sm:$0xff]
    %v485 = vld [vmem:[%s1 + $0xde0] sm:$0xff]
    %v486 = vld [vmem:[%s1 + $0xde8] sm:$0xff]
    %v487 = vld [vmem:[%s1 + $0xdf0] sm:$0xff]
    %v488 = vld [vmem:[%s1 + $0xdf8] sm:$0xff]
    %v489 = vld [vmem:[%s1 + $0xe00] sm:$0xff]
    %v490 = vld [vmem:[%s1 + $0xe08] sm:$0xff]
    %v491 = vld [vmem:[%s1 + $0xe10] sm:$0xff]
    %v492 = vld [vmem:[%s1 + $0xe18] sm:$0xff]
    %v493 = vld [vmem:[%s1 + $0xe20] sm:$0xff]
    %v494 = vld [vmem:[%s1 + $0xe28] sm:$0xff]
    %v495 = vld [vmem:[%s1 + $0xe30] sm:$0xff]
    %v496 = vld [vmem:[%s1 + $0xe38] sm:$0xff]
    %v497 = vld [vmem:[%s1 + $0xe40] sm:$0xff]
    %v498 = vld [vmem:[%s1 + $0xe48] sm:$0xff]
    %v499 = vld [vmem:[%s1 + $0xe50] sm:$0xff]
    %v500 = vld [vmem:[%s1 + $0xe58] sm:$0xff]
    %v501 = vld [vmem:[%s1 + $0xe60] sm:$0xff]
    %v502 = vld [vmem:[%s1 + $0xe68] sm:$0xff]
    %v503 = vld [vmem:[%s1 + $0xe70] sm:$0xff]
    %v504 = vld [vmem:[%s1 + $0xe78] sm:$0xff]
    %v505 = vld [vmem:[%s1 + $0xe80] sm:$0xff]
    %v506 = vld [vmem:[%s1 + $0xe88] sm:$0xff]
    %v507 = vld [vmem:[%s1 + $0xe90] sm:$0xff]
    %v508 = vld [vmem:[%s1 + $0xe98] sm:$0xff]
    %v509 = vld [vmem:[%s1 + $0xea0] sm:$0xff]
    %v510 = vld [vmem:[%s1 + $0xea8] sm:$0xff]
    %v511 = vld [vmem:[%s1 + $0xeb0] sm:$0xff]
    %v512 = vld [vmem:[%s1 + $0xeb8] sm:$0xff]
    %v513 = vld [vmem:[%s1 + $0xec0] sm:$0xff]
    %v514 = vld [vmem:[%s1 + $0xec8] sm:$0xff]
    %v515 = vld [vmem:[%s1 + $0xed0] sm:$0xff]
    %v516 = vld [vmem:[%s1 + $0xed8] sm:$0xff]
    %v517 = vld [vmem:[%s1 + $0xee0] sm:$0xff]
    %v518 = vld [vmem:[%s1 + $0xee8] sm:$0xff]
    %v519 = vld [vmem:[%s1 + $0xef0] sm:$0xff]
    %v520 = vld [vmem:[%s1 + $0xef8] sm:$0xff]
    %v521 = vld [vmem:[%s1 + $0xf00] sm:$0xff]
    %v522 = vld [vmem:[%s1 + $0xf08] sm:$0xff]
    %v523 = vld [vmem:[%s1 + $0xf10] sm:$0xff]
    %v524 = vld [vmem:[%s1 + $0xf18] sm:$0xff]
    %v525 = vld [vmem:[%s1 + $0xf20] sm:$0xff]
    %v526 = vld [vmem:[%s1 + $0xf28] sm:$0xff]
    %v527 = vld [vmem:[%s1 + $0xf30] sm:$0xff]
    %v528 = vld [vmem:[%s1 + $0xf38] sm:$0xff]
    %v529 = vld [vmem:[%s1 + $0xf40] sm:$0xff]
    %v530 = vld [vmem:[%s1 + $0xf48] sm:$0xff]
    %v531 = vld [vmem:[%s1 + $0xf50] sm:$0xff]
    %v532 = vld [vmem:[%s1 + $0xf58] sm:$0xff]
    %v533 = vld [vmem:[%s1 + $0xf60] sm:$0xff]
    %v534 = vld [vmem:[%s1 + $0xf68] sm:$0xff]
    %v535 = vld [vmem:[%s1 + $0xf70] sm:$0xff]
    %v536 = vld [vmem:[%s1 + $0xf78] sm:$0xff]
    %v537 = vld [vmem:[%s1 + $0xf80] sm:$0xff]
    %v538 = vld [vmem:[%s1 + $0xf88] sm:$0xff]
    %v539 = vld [vmem:[%s1 + $0xf90] sm:$0xff]
    %v540 = vld [vmem:[%s1 + $0xf98] sm:$0xff]
    %v541 = vld [vmem:[%s1 + $0xfa0] sm:$0xff]
    %v542 = vld [vmem:[%s1 + $0xfa8] sm:$0xff]
    %v543 = vld [vmem:[%s1 + $0xfb0] sm:$0xff]
    %v544 = vld [vmem:[%s1 + $0xfb8] sm:$0xff]
    %v545 = vld [vmem:[%s1 + $0xfc0] sm:$0xff]
    %v546 = vld [vmem:[%s1 + $0xfc8] sm:$0xff]
    %v547 = vld [vmem:[%s1 + $0xfd0] sm:$0xff]
    %v548 = vld [vmem:[%s1 + $0xfd8] sm:$0xff]
    %v549 = vld [vmem:[%s1 + $0xfe0] sm:$0xff]
    %v550 = vld [vmem:[%s1 + $0xfe8] sm:$0xff]
    %v551 = vld [vmem:[%s1 + $0xff0] sm:$0xff]
    %v552 = vld [vmem:[%s1 + $0xff8] sm:$0xff]
    %v553 = vld [vmem:[%s1 + $0x1000] sm:$0xff]
    %v554 = vld [vmem:[%s1 + $0x1008] sm:$0xff]
    %v555 = vld [vmem:[%s1 + $0x1010] sm:$0xff]
    %v556 = vld [vmem:[%s1 + $0x1018] sm:$0xff]
    %v557 = vld [vmem:[%s1 + $0x1020] sm:$0xff]
    %v558 = vld [vmem:[%s1 + $0x1028] sm:$0xff]
    %v559 = vld [vmem:[%s1 + $0x1030] sm:$0xff]
    %v560 = vld [vmem:[%s1 + $0x1038] sm:$0xff]
    %v561 = vld [vmem:[%s1 + $0x1040] sm:$0xff]
    %v562 = vld [vmem:[%s1 + $0x1048] sm:$0xff]
    %v563 = vld [vmem:[%s1 + $0x1050] sm:$0xff]
    %v564 = vld [vmem:[%s1 + $0x1058] sm:$0xff]
    %v565 = vld [vmem:[%s1 + $0x1060] sm:$0xff]
    %v566 = vld [vmem:[%s1 + $0x1068] sm:$0xff]
    %v567 = vld [vmem:[%s1 + $0x1070] sm:$0xff]
    %v568 = vld [vmem:[%s1 + $0x1078] sm:$0xff]
    %v569 = vld [vmem:[%s1 + $0x1080] sm:$0xff]
    %v570 = vld [vmem:[%s1 + $0x1088] sm:$0xff]
    %v571 = vld [vmem:[%s1 + $0x1090] sm:$0xff]
    %v572 = vld [vmem:[%s1 + $0x1098] sm:$0xff]
    %v573 = vld [vmem:[%s1 + $0x10a0] sm:$0xff]
    %v574 = vld [vmem:[%s1 + $0x10a8] sm:$0xff]
    %v575 = vld [vmem:[%s1 + $0x10b0] sm:$0xff]
    %v576 = vld [vmem:[%s1 + $0x10b8] sm:$0xff]
    %v577 = vld [vmem:[%s1 + $0x10c0] sm:$0xff]
    %v578 = vld [vmem:[%s1 + $0x10c8] sm:$0xff]
    %v579 = vld [vmem:[%s1 + $0x10d0] sm:$0xff]
    %v580 = vld [vmem:[%s1 + $0x10d8] sm:$0xff]
    %v581 = vld [vmem:[%s1 + $0x10e0] sm:$0xff]
    %v582 = vld [vmem:[%s1 + $0x10e8] sm:$0xff]
    %v583 = vld [vmem:[%s1 + $0x10f0] sm:$0xff]
    %v584 = vld [vmem:[%s1 + $0x10f8] sm:$0xff]
    %v585 = vld [vmem:[%s1 + $0x1100] sm:$0xff]
    %v586 = vld [vmem:[%s1 + $0x1108] sm:$0xff]
    %v587 = vld [vmem:[%s1 + $0x1110] sm:$0xff]
    %v588 = vld [vmem:[%s1 + $0x1118] sm:$0xff]
    %v589 = vld [vmem:[%s1 + $0x1120] sm:$0xff]
    %v590 = vld [vmem:[%s1 + $0x1128] sm:$0xff]
    %v591 = vld [vmem:[%s1 + $0x1130] sm:$0xff]
    %v592 = vld [vmem:[%s1 + $0x1138] sm:$0xff]
    %v593 = vld [vmem:[%s1 + $0x1140] sm:$0xff]
    %v594 = vld [vmem:[%s1 + $0x1148] sm:$0xff]
    %v595 = vld [vmem:[%s1 + $0x1150] sm:$0xff]
    %v596 = vld [vmem:[%s1 + $0x1158] sm:$0xff]
    %v597 = vld [vmem:[%s1 + $0x1160] sm:$0xff]
    %v598 = vld [vmem:[%s1 + $0x1168] sm:$0xff]
    %v599 = vld [vmem:[%s1 + $0x1170] sm:$0xff]
    %v600 = vld [vmem:[%s1 + $0x1178] sm:$0xff]
    %v601 = vld [vmem:[%s1 + $0x1180] sm:$0xff]
    %v602 = vld [vmem:[%s1 + $0x1188] sm:$0xff]
    %v603 = vld [vmem:[%s1 + $0x1190] sm:$0xff]
    %v604 = vld [vmem:[%s1 + $0x1198] sm:$0xff]
    %v605 = vld [vmem:[%s1 + $0x11a0] sm:$0xff]
    %v606 = vld [vmem:[%s1 + $0x11a8] sm:$0xff]
    %v607 = vld [vmem:[%s1 + $0x11b0] sm:$0xff]
    %v608 = vld [vmem:[%s1 + $0x11b8] sm:$0xff]
    %v609 = vld [vmem:[%s1 + $0x11c0] sm:$0xff]
    %v610 = vld [vmem:[%s1 + $0x11c8] sm:$0xff]
    %v611 = vld [vmem:[%s1 + $0x11d0] sm:$0xff]
    %v612 = vld [vmem:[%s1 + $0x11d8] sm:$0xff]
    %v613 = vld [vmem:[%s1 + $0x11e0] sm:$0xff]
    %v614 = vld [vmem:[%s1 + $0x11e8] sm:$0xff]
    %v615 = vld [vmem:[%s1 + $0x11f0] sm:$0xff]
    %v616 = vld [vmem:[%s1 + $0x11f8] sm:$0xff]
    %v617 = vld [vmem:[%s1 + $0x1200] sm:$0xff]
    %v618 = vld [vmem:[%s1 + $0x1208] sm:$0xff]
    %v619 = vld [vmem:[%s1 + $0x1210] sm:$0xff]
    %v620 = vld [vmem:[%s1 + $0x1218] sm:$0xff]
    %v621 = vld [vmem:[%s1 + $0x1220] sm:$0xff]
    %v622 = vld [vmem:[%s1 + $0x1228] sm:$0xff]
    %v623 = vld [vmem:[%s1 + $0x1230] sm:$0xff]
    %v624 = vld [vmem:[%s1 + $0x1238] sm:$0xff]
    %v625 = vld [vmem:[%s1 + $0x1240] sm:$0xff]
    %v626 = vld [vmem:[%s1 + $0x1248] sm:$0xff]
    %v627 = vld [vmem:[%s1 + $0x1250] sm:$0xff]
    %v628 = vld [vmem:[%s1 + $0x1258] sm:$0xff]
    %v629 = vld [vmem:[%s1 + $0x1260] sm:$0xff]
    %v630 = vld [vmem:[%s1 + $0x1268] sm:$0xff]
    %v631 = vld [vmem:[%s1 + $0x1270] sm:$0xff]
    %v632 = vld [vmem:[%s1 + $0x1278] sm:$0xff]
    %v633 = vld [vmem:[%s1 + $0x1280] sm:$0xff]
    %v634 = vld [vmem:[%s1 + $0x1288] sm:$0xff]
    %v635 = vld [vmem:[%s1 + $0x1290] sm:$0xff]
    %v636 = vld [vmem:[%s1 + $0x1298] sm:$0xff]
    %v637 = vld [vmem:[%s1 + $0x12a0] sm:$0xff]
    %v638 = vld [vmem:[%s1 + $0x12a8] sm:$0xff]
    %v639 = vld [vmem:[%s1 + $0x12b0] sm:$0xff]
    %v640 = vld [vmem:[%s1 + $0x12b8] sm:$0xff]
    %v641 = vld [vmem:[%s1 + $0x12c0] sm:$0xff]
    %v642 = vld [vmem:[%s1 + $0x12c8] sm:$0xff]
    %v643 = vld [vmem:[%s1 + $0x12d0] sm:$0xff]
    %v644 = vld [vmem:[%s1 + $0x12d8] sm:$0xff]
    %v645 = vld [vmem:[%s1 + $0x12e0] sm:$0xff]
    %v646 = vld [vmem:[%s1 + $0x12e8] sm:$0xff]
    %v647 = vld [vmem:[%s1 + $0x12f0] sm:$0xff]
    %v648 = vld [vmem:[%s1 + $0x12f8] sm:$0xff]
    %v649 = vld [vmem:[%s1 + $0x1300] sm:$0xff]
    %v650 = vld [vmem:[%s1 + $0x1308] sm:$0xff]
    %v651 = vld [vmem:[%s1 + $0x1310] sm:$0xff]
    %v652 = vld [vmem:[%s1 + $0x1318] sm:$0xff]
    %v653 = vld [vmem:[%s1 + $0x1320] sm:$0xff]
    %v654 = vld [vmem:[%s1 + $0x1328] sm:$0xff]
    %v655 = vld [vmem:[%s1 + $0x1330] sm:$0xff]
    %v656 = vld [vmem:[%s1 + $0x1338] sm:$0xff]
    %v657 = vld [vmem:[%s1 + $0x1340] sm:$0xff]
    %v658 = vld [vmem:[%s1 + $0x1348] sm:$0xff]
    %v659 = vld [vmem:[%s1 + $0x1350] sm:$0xff]
    %v660 = vld [vmem:[%s1 + $0x1358] sm:$0xff]
    %v661 = vld [vmem:[%s1 + $0x1360] sm:$0xff]
    %v662 = vld [vmem:[%s1 + $0x1368] sm:$0xff]
    %v663 = vld [vmem:[%s1 + $0x1370] sm:$0xff]
    %v664 = vld [vmem:[%s1 + $0x1378] sm:$0xff]
    %v665 = vld [vmem:[%s1 + $0x1380] sm:$0xff]
    %v666 = vld [vmem:[%s1 + $0x1388] sm:$0xff]
    %v667 = vld [vmem:[%s1 + $0x1390] sm:$0xff]
    %v668 = vld [vmem:[%s1 + $0x1398] sm:$0xff]
    %v669 = vld [vmem:[%s1 + $0x13a0] sm:$0xff]
    %v670 = vld [vmem:[%s1 + $0x13a8] sm:$0xff]
    %v671 = vld [vmem:[%s1 + $0x13b0] sm:$0xff]
    %v672 = vld [vmem:[%s1 + $0x13b8] sm:$0xff]
    %v673 = vld [vmem:[%s1 + $0x13c0] sm:$0xff]
    %v674 = vld [vmem:[%s1 + $0x13c8] sm:$0xff]
    %v675 = vld [vmem:[%s1 + $0x13d0] sm:$0xff]
    %v676 = vld [vmem:[%s1 + $0x13d8] sm:$0xff]
    %v677 = vld [vmem:[%s1 + $0x13e0] sm:$0xff]
    %v678 = vld [vmem:[%s1 + $0x13e8] sm:$0xff]
    %v679 = vld [vmem:[%s1 + $0x13f0] sm:$0xff]
    %v680 = vld [vmem:[%s1 + $0x13f8] sm:$0xff]
    %v681 = vld [vmem:[%s1 + $0x1400] sm:$0xff]
    %v682 = vld [vmem:[%s1 + $0x1408] sm:$0xff]
    %v683 = vld [vmem:[%s1 + $0x1410] sm:$0xff]
    %v684 = vld [vmem:[%s1 + $0x1418] sm:$0xff]
    %v685 = vld [vmem:[%s1 + $0x1420] sm:$0xff]
    %v686 = vld [vmem:[%s1 + $0x1428] sm:$0xff]
    %v687 = vld [vmem:[%s1 + $0x1430] sm:$0xff]
    %v688 = vld [vmem:[%s1 + $0x1438] sm:$0xff]
    %v689 = vld [vmem:[%s1 + $0x1440] sm:$0xff]
    %v690 = vld [vmem:[%s1 + $0x1448] sm:$0xff]
    %v691 = vld [vmem:[%s1 + $0x1450] sm:$0xff]
    %v692 = vld [vmem:[%s1 + $0x1458] sm:$0xff]
    %v693 = vld [vmem:[%s1 + $0x1460] sm:$0xff]
    %v694 = vld [vmem:[%s1 + $0x1468] sm:$0xff]
    %v695 = vld [vmem:[%s1 + $0x1470] sm:$0xff]
    %v696 = vld [vmem:[%s1 + $0x1478] sm:$0xff]
    %v697 = vld [vmem:[%s1 + $0x1480] sm:$0xff]
    %v698 = vld [vmem:[%s1 + $0x1488] sm:$0xff]
    %v699 = vld [vmem:[%s1 + $0x1490] sm:$0xff]
    %v700 = vld [vmem:[%s1 + $0x1498] sm:$0xff]
    %v701 = vld [vmem:[%s1 + $0x14a0] sm:$0xff]
    %v702 = vld [vmem:[%s1 + $0x14a8] sm:$0xff]
    %v703 = vld [vmem:[%s1 + $0x14b0] sm:$0xff]
    %v704 = vld [vmem:[%s1 + $0x14b8] sm:$0xff]
    %v705 = vld [vmem:[%s1 + $0x14c0] sm:$0xff]
    %v706 = vld [vmem:[%s1 + $0x14c8] sm:$0xff]
    %v707 = vld [vmem:[%s1 + $0x14d0] sm:$0xff]
    %v708 = vld [vmem:[%s1 + $0x14d8] sm:$0xff]
    %v709 = vld [vmem:[%s1 + $0x14e0] sm:$0xff]
    %v710 = vld [vmem:[%s1 + $0x14e8] sm:$0xff]
    %v711 = vld [vmem:[%s1 + $0x14f0] sm:$0xff]
    %v712 = vld [vmem:[%s1 + $0x14f8] sm:$0xff]
    %v713 = vld [vmem:[%s1 + $0x1500] sm:$0xff]
    %v714 = vld [vmem:[%s1 + $0x1508] sm:$0xff]
    %v715 = vld [vmem:[%s1 + $0x1510] sm:$0xff]
    %v716 = vld [vmem:[%s1 + $0x1518] sm:$0xff]
    %v717 = vld [vmem:[%s1 + $0x1520] sm:$0xff]
    %v718 = vld [vmem:[%s1 + $0x1528] sm:$0xff]
    %v719 = vld [vmem:[%s1 + $0x1530] sm:$0xff]
    %v720 = vld [vmem:[%s1 + $0x1538] sm:$0xff]
    %v721 = vld [vmem:[%s1 + $0x1540] sm:$0xff]
    %v722 = vld [vmem:[%s1 + $0x1548] sm:$0xff]
    %v723 = vld [vmem:[%s1 + $0x1550] sm:$0xff]
    %v724 = vld [vmem:[%s1 + $0x1558] sm:$0xff]
    %v725 = vld [vmem:[%s1 + $0x1560] sm:$0xff]
    %v726 = vld [vmem:[%s1 + $0x1568] sm:$0xff]
    %v727 = vld [vmem:[%s1 + $0x1570] sm:$0xff]
    %v728 = vld [vmem:[%s1 + $0x1578] sm:$0xff]
    %v729 = vld [vmem:[%s1 + $0x1580] sm:$0xff]
    %v730 = vld [vmem:[%s1 + $0x1588] sm:$0xff]
    %v731 = vld [vmem:[%s1 + $0x1590] sm:$0xff]
    %v732 = vld [vmem:[%s1 + $0x1598] sm:$0xff]
    %v733 = vld [vmem:[%s1 + $0x15a0] sm:$0xff]
    %v734 = vld [vmem:[%s1 + $0x15a8] sm:$0xff]
    %v735 = vld [vmem:[%s1 + $0x15b0] sm:$0xff]
    %v736 = vld [vmem:[%s1 + $0x15b8] sm:$0xff]
    %v737 = vld [vmem:[%s1 + $0x15c0] sm:$0xff]
    %v738 = vld [vmem:[%s1 + $0x15c8] sm:$0xff]
    %v739 = vld [vmem:[%s1 + $0x15d0] sm:$0xff]
    %v740 = vld [vmem:[%s1 + $0x15d8] sm:$0xff]
    %v741 = vld [vmem:[%s1 + $0x15e0] sm:$0xff]
    %v742 = vld [vmem:[%s1 + $0x15e8] sm:$0xff]
    %v743 = vld [vmem:[%s1 + $0x15f0] sm:$0xff]
    %v744 = vld [vmem:[%s1 + $0x15f8] sm:$0xff]
    %v745 = vld [vmem:[%s1 + $0x1600] sm:$0xff]
    %v746 = vld [vmem:[%s1 + $0x1608] sm:$0xff]
    %v747 = vld [vmem:[%s1 + $0x1610] sm:$0xff]
    %v748 = vld [vmem:[%s1 + $0x1618] sm:$0xff]
    %v749 = vld [vmem:[%s1 + $0x1620] sm:$0xff]
    %v750 = vld [vmem:[%s1 + $0x1628] sm:$0xff]
    %v751 = vld [vmem:[%s1 + $0x1630] sm:$0xff]
    %v752 = vld [vmem:[%s1 + $0x1638] sm:$0xff]
    %v753 = vld [vmem:[%s1 + $0x1640] sm:$0xff]
    %v754 = vld [vmem:[%s1 + $0x1648] sm:$0xff]
    %v755 = vld [vmem:[%s1 + $0x1650] sm:$0xff]
    %v756 = vld [vmem:[%s1 + $0x1658] sm:$0xff]
    %v757 = vld [vmem:[%s1 + $0x1660] sm:$0xff]
    %v758 = vld [vmem:[%s1 + $0x1668] sm:$0xff]
    %v759 = vld [vmem:[%s1 + $0x1670] sm:$0xff]
    %v760 = vld [vmem:[%s1 + $0x1678] sm:$0xff]
    %v761 = vld [vmem:[%s1 + $0x1680] sm:$0xff]
    %v762 = vld [vmem:[%s1 + $0x1688] sm:$0xff]
    %v763 = vld [vmem:[%s1 + $0x1690] sm:$0xff]
    %v764 = vld [vmem:[%s1 + $0x1698] sm:$0xff]
    %v765 = vld [vmem:[%s1 + $0x16a0] sm:$0xff]
    %v766 = vld [vmem:[%s1 + $0x16a8] sm:$0xff]
    %v767 = vld [vmem:[%s1 + $0x16b0] sm:$0xff]
    %v768 = vld [vmem:[%s1 + $0x16b8] sm:$0xff]
    %v769 = vld [vmem:[%s1 + $0x16c0] sm:$0xff]
    %v770 = vld [vmem:[%s1 + $0x16c8] sm:$0xff]
    %v771 = vld [vmem:[%s1 + $0x16d0] sm:$0xff]
    %v772 = vld [vmem:[%s1 + $0x16d8] sm:$0xff]
    %v773 = vld [vmem:[%s1 + $0x16e0] sm:$0xff]
    %v774 = vld [vmem:[%s1 + $0x16e8] sm:$0xff]
    %v775 = vld [vmem:[%s1 + $0x16f0] sm:$0xff]
    %v776 = vld [vmem:[%s1 + $0x16f8] sm:$0xff]
    %v777 = vld [vmem:[%s1 + $0x1700] sm:$0xff]
    %v778 = vld [vmem:[%s1 + $0x1708] sm:$0xff]
    %v779 = vld [vmem:[%s1 + $0x1710] sm:$0xff]
    %v780 = vld [vmem:[%s1 + $0x1718] sm:$0xff]
    %v781 = vld [vmem:[%s1 + $0x1720] sm:$0xff]
    %v782 = vld [vmem:[%s1 + $0x1728] sm:$0xff]
    %v783 = vld [vmem:[%s1 + $0x1730] sm:$0xff]
    %v784 = vld [vmem:[%s1 + $0x1738] sm:$0xff]
    %v785 = vld [vmem:[%s1 + $0x1740] sm:$0xff]
    %v786 = vld [vmem:[%s1 + $0x1748] sm:$0xff]
    %v787 = vld [vmem:[%s1 + $0x1750] sm:$0xff]
    %v788 = vld [vmem:[%s1 + $0x1758] sm:$0xff]
    %v789 = vld [vmem:[%s1 + $0x1760] sm:$0xff]
    %v790 = vld [vmem:[%s1 + $0x1768] sm:$0xff]
    %v791 = vld [vmem:[%s1 + $0x1770] sm:$0xff]
    %v792 = vld [vmem:[%s1 + $0x1778] sm:$0xff]
    %v793 = vld [vmem:[%s1 + $0x1780] sm:$0xff]
    %v794 = vld [vmem:[%s1 + $0x1788] sm:$0xff]
    %v795 = vld [vmem:[%s1 + $0x1790] sm:$0xff]
    %v796 = vld [vmem:[%s1 + $0x1798] sm:$0xff]
    %v797 = vld [vmem:[%s1 + $0x17a0] sm:$0xff]
    %v798 = vld [vmem:[%s1 + $0x17a8] sm:$0xff]
    %v799 = vld [vmem:[%s1 + $0x17b0] sm:$0xff]
    %v800 = vld [vmem:[%s1 + $0x17b8] sm:$0xff]
    %v801 = vld [vmem:[%s1 + $0x17c0] sm:$0xff]
    %v802 = vld [vmem:[%s1 + $0x17c8] sm:$0xff]
    %v803 = vld [vmem:[%s1 + $0x17d0] sm:$0xff]
    %v804 = vld [vmem:[%s1 + $0x17d8] sm:$0xff]
    %v805 = vld [vmem:[%s1 + $0x17e0] sm:$0xff]
    %v806 = vld [vmem:[%s1 + $0x17e8] sm:$0xff]
    %v807 = vld [vmem:[%s1 + $0x17f0] sm:$0xff]
    %v808 = vld [vmem:[%s1 + $0x17f8] sm:$0xff]
    %v809 = vld [vmem:[%s1 + $0x1800] sm:$0xff]
    %v810 = vld [vmem:[%s1 + $0x1808] sm:$0xff]
    %v811 = vld [vmem:[%s1 + $0x1810] sm:$0xff]
    %v812 = vld [vmem:[%s1 + $0x1818] sm:$0xff]
    %v813 = vld [vmem:[%s1 + $0x1820] sm:$0xff]
    %v814 = vld [vmem:[%s1 + $0x1828] sm:$0xff]
    %v815 = vld [vmem:[%s1 + $0x1830] sm:$0xff]
    %v816 = vld [vmem:[%s1 + $0x1838] sm:$0xff]
    %v817 = vld [vmem:[%s1 + $0x1840] sm:$0xff]
    %v818 = vld [vmem:[%s1 + $0x1848] sm:$0xff]
    %v819 = vld [vmem:[%s1 + $0x1850] sm:$0xff]
    %v820 = vld [vmem:[%s1 + $0x1858] sm:$0xff]
    %v821 = vld [vmem:[%s1 + $0x1860] sm:$0xff]
    %v822 = vld [vmem:[%s1 + $0x1868] sm:$0xff]
    %v823 = vld [vmem:[%s1 + $0x1870] sm:$0xff]
    %v824 = vld [vmem:[%s1 + $0x1878] sm:$0xff]
    %v825 = vld [vmem:[%s1 + $0x1880] sm:$0xff]
    %v826 = vld [vmem:[%s1 + $0x1888] sm:$0xff]
    %v827 = vld [vmem:[%s1 + $0x1890] sm:$0xff]
    %v828 = vld [vmem:[%s1 + $0x1898] sm:$0xff]
    %v829 = vld [vmem:[%s1 + $0x18a0] sm:$0xff]
    %v830 = vld [vmem:[%s1 + $0x18a8] sm:$0xff]
    %v831 = vld [vmem:[%s1 + $0x18b0] sm:$0xff]
    %v832 = vld [vmem:[%s1 + $0x18b8] sm:$0xff]
    %v833 = vld [vmem:[%s1 + $0x18c0] sm:$0xff]
    %v834 = vld [vmem:[%s1 + $0x18c8] sm:$0xff]
    %v835 = vld [vmem:[%s1 + $0x18d0] sm:$0xff]
    %v836 = vld [vmem:[%s1 + $0x18d8] sm:$0xff]
    %v837 = vld [vmem:[%s1 + $0x18e0] sm:$0xff]
    %v838 = vld [vmem:[%s1 + $0x18e8] sm:$0xff]
    %v839 = vld [vmem:[%s1 + $0x18f0] sm:$0xff]
    %v840 = vld [vmem:[%s1 + $0x18f8] sm:$0xff]
    %v841 = vld [vmem:[%s1 + $0x1900] sm:$0xff]
    %v842 = vld [vmem:[%s1 + $0x1908] sm:$0xff]
    %v843 = vld [vmem:[%s1 + $0x1910] sm:$0xff]
    %v844 = vld [vmem:[%s1 + $0x1918] sm:$0xff]
    %v845 = vld [vmem:[%s1 + $0x1920] sm:$0xff]
    %v846 = vld [vmem:[%s1 + $0x1928] sm:$0xff]
    %v847 = vld [vmem:[%s1 + $0x1930] sm:$0xff]
    %v848 = vld [vmem:[%s1 + $0x1938] sm:$0xff]
    %v849 = vld [vmem:[%s1 + $0x1940] sm:$0xff]
    %v850 = vld [vmem:[%s1 + $0x1948] sm:$0xff]
    %v851 = vld [vmem:[%s1 + $0x1950] sm:$0xff]
    %v852 = vld [vmem:[%s1 + $0x1958] sm:$0xff]
    %v853 = vld [vmem:[%s1 + $0x1960] sm:$0xff]
    %v854 = vld [vmem:[%s1 + $0x1968] sm:$0xff]
    %v855 = vld [vmem:[%s1 + $0x1970] sm:$0xff]
    %v856 = vld [vmem:[%s1 + $0x1978] sm:$0xff]
    %v857 = vld [vmem:[%s1 + $0x1980] sm:$0xff]
    %v858 = vld [vmem:[%s1 + $0x1988] sm:$0xff]
    %v859 = vld [vmem:[%s1 + $0x1990] sm:$0xff]
    %v860 = vld [vmem:[%s1 + $0x1998] sm:$0xff]
    %v861 = vld [vmem:[%s1 + $0x19a0] sm:$0xff]
    %v862 = vld [vmem:[%s1 + $0x19a8] sm:$0xff]
    %v863 = vld [vmem:[%s1 + $0x19b0] sm:$0xff]
    %v864 = vld [vmem:[%s1 + $0x19b8] sm:$0xff]
    %v865 = vld [vmem:[%s1 + $0x19c0] sm:$0xff]
    %v866 = vld [vmem:[%s1 + $0x19c8] sm:$0xff]
    %v867 = vld [vmem:[%s1 + $0x19d0] sm:$0xff]
    %v868 = vld [vmem:[%s1 + $0x19d8] sm:$0xff]
    %v869 = vld [vmem:[%s1 + $0x19e0] sm:$0xff]
    %v870 = vld [vmem:[%s1 + $0x19e8] sm:$0xff]
    %v871 = vld [vmem:[%s1 + $0x19f0] sm:$0xff]
    %v872 = vld [vmem:[%s1 + $0x19f8] sm:$0xff]
    %v873 = vld [vmem:[%s1 + $0x1a00] sm:$0xff]
    %v874 = vld [vmem:[%s1 + $0x1a08] sm:$0xff]
    %v875 = vld [vmem:[%s1 + $0x1a10] sm:$0xff]
    %v876 = vld [vmem:[%s1 + $0x1a18] sm:$0xff]
    %v877 = vld [vmem:[%s1 + $0x1a20] sm:$0xff]
    %v878 = vld [vmem:[%s1 + $0x1a28] sm:$0xff]
    %v879 = vld [vmem:[%s1 + $0x1a30] sm:$0xff]
    %v880 = vld [vmem:[%s1 + $0x1a38] sm:$0xff]
    %v881 = vld [vmem:[%s1 + $0x1a40] sm:$0xff]
    %v882 = vld [vmem:[%s1 + $0x1a48] sm:$0xff]
    %v883 = vld [vmem:[%s1 + $0x1a50] sm:$0xff]
    %v884 = vld [vmem:[%s1 + $0x1a58] sm:$0xff]
    %v885 = vld [vmem:[%s1 + $0x1a60] sm:$0xff]
    %v886 = vld [vmem:[%s1 + $0x1a68] sm:$0xff]
    %v887 = vld [vmem:[%s1 + $0x1a70] sm:$0xff]
    %v888 = vld [vmem:[%s1 + $0x1a78] sm:$0xff]
    %v889 = vld [vmem:[%s1 + $0x1a80] sm:$0xff]
    %v890 = vld [vmem:[%s1 + $0x1a88] sm:$0xff]
    %v891 = vld [vmem:[%s1 + $0x1a90] sm:$0xff]
    %v892 = vld [vmem:[%s1 + $0x1a98] sm:$0xff]
    %v893 = vld [vmem:[%s1 + $0x1aa0] sm:$0xff]
    %v894 = vld [vmem:[%s1 + $0x1aa8] sm:$0xff]
    %v895 = vld [vmem:[%s1 + $0x1ab0] sm:$0xff]
    %v896 = vld [vmem:[%s1 + $0x1ab8] sm:$0xff]
    %v897 = vld [vmem:[%s1 + $0x1ac0] sm:$0xff]
    %v898 = vld [vmem:[%s1 + $0x1ac8] sm:$0xff]
    %v899 = vld [vmem:[%s1 + $0x1ad0] sm:$0xff]
    %v900 = vld [vmem:[%s1 + $0x1ad8] sm:$0xff]
    %v901 = vld [vmem:[%s1 + $0x1ae0] sm:$0xff]
    %v902 = vld [vmem:[%s1 + $0x1ae8] sm:$0xff]
    %v903 = vld [vmem:[%s1 + $0x1af0] sm:$0xff]
    %v904 = vld [vmem:[%s1 + $0x1af8] sm:$0xff]
    %v905 = vld [vmem:[%s1 + $0x1b00] sm:$0xff]
    %v906 = vld [vmem:[%s1 + $0x1b08] sm:$0xff]
    %v907 = vld [vmem:[%s1 + $0x1b10] sm:$0xff]
    %v908 = vld [vmem:[%s1 + $0x1b18] sm:$0xff]
    %v909 = vld [vmem:[%s1 + $0x1b20] sm:$0xff]
    %v910 = vld [vmem:[%s1 + $0x1b28] sm:$0xff]
    %v911 = vld [vmem:[%s1 + $0x1b30] sm:$0xff]
    %v912 = vld [vmem:[%s1 + $0x1b38] sm:$0xff]
    %v913 = vld [vmem:[%s1 + $0x1b40] sm:$0xff]
    %v914 = vld [vmem:[%s1 + $0x1b48] sm:$0xff]
    %v915 = vld [vmem:[%s1 + $0x1b50] sm:$0xff]
    %v916 = vld [vmem:[%s1 + $0x1b58] sm:$0xff]
    %v917 = vld [vmem:[%s1 + $0x1b60] sm:$0xff]
    %v918 = vld [vmem:[%s1 + $0x1b68] sm:$0xff]
    %v919 = vld [vmem:[%s1 + $0x1b70] sm:$0xff]
    %v920 = vld [vmem:[%s1 + $0x1b78] sm:$0xff]
    %v921 = vld [vmem:[%s1 + $0x1b80] sm:$0xff]
    %v922 = vld [vmem:[%s1 + $0x1b88] sm:$0xff]
    %v923 = vld [vmem:[%s1 + $0x1b90] sm:$0xff]
    %v924 = vld [vmem:[%s1 + $0x1b98] sm:$0xff]
    %v925 = vld [vmem:[%s1 + $0x1ba0] sm:$0xff]
    %v926 = vld [vmem:[%s1 + $0x1ba8] sm:$0xff]
    %v927 = vld [vmem:[%s1 + $0x1bb0] sm:$0xff]
    %v928 = vld [vmem:[%s1 + $0x1bb8] sm:$0xff]
    %v929 = vld [vmem:[%s1 + $0x1bc0] sm:$0xff]
    %v930 = vld [vmem:[%s1 + $0x1bc8] sm:$0xff]
    %v931 = vld [vmem:[%s1 + $0x1bd0] sm:$0xff]
    %v932 = vld [vmem:[%s1 + $0x1bd8] sm:$0xff]
    %v933 = vld [vmem:[%s1 + $0x1be0] sm:$0xff]
    %v934 = vld [vmem:[%s1 + $0x1be8] sm:$0xff]
    %v935 = vld [vmem:[%s1 + $0x1bf0] sm:$0xff]
    %v936 = vld [vmem:[%s1 + $0x1bf8] sm:$0xff]
    %v937 = vld [vmem:[%s1 + $0x1c00] sm:$0xff]
    %v938 = vld [vmem:[%s1 + $0x1c08] sm:$0xff]
    %v939 = vld [vmem:[%s1 + $0x1c10] sm:$0xff]
    %v940 = vld [vmem:[%s1 + $0x1c18] sm:$0xff]
    %v941 = vld [vmem:[%s1 + $0x1c20] sm:$0xff]
    %v942 = vld [vmem:[%s1 + $0x1c28] sm:$0xff]
    %v943 = vld [vmem:[%s1 + $0x1c30] sm:$0xff]
    %v944 = vld [vmem:[%s1 + $0x1c38] sm:$0xff]
    %v945 = vld [vmem:[%s1 + $0x1c40] sm:$0xff]
    %v946 = vld [vmem:[%s1 + $0x1c48] sm:$0xff]
    %v947 = vld [vmem:[%s1 + $0x1c50] sm:$0xff]
    %v948 = vld [vmem:[%s1 + $0x1c58] sm:$0xff]
    %v949 = vld [vmem:[%s1 + $0x1c60] sm:$0xff]
    %v950 = vld [vmem:[%s1 + $0x1c68] sm:$0xff]
    %v951 = vld [vmem:[%s1 + $0x1c70] sm:$0xff]
    %v952 = vld [vmem:[%s1 + $0x1c78] sm:$0xff]
    %v953 = vld [vmem:[%s1 + $0x1c80] sm:$0xff]
    %v954 = vld [vmem:[%s1 + $0x1c88] sm:$0xff]
    %v955 = vld [vmem:[%s1 + $0x1c90] sm:$0xff]
    %v956 = vld [vmem:[%s1 + $0x1c98] sm:$0xff]
    %v957 = vld [vmem:[%s1 + $0x1ca0] sm:$0xff]
    %v958 = vld [vmem:[%s1 + $0x1ca8] sm:$0xff]
    %v959 = vld [vmem:[%s1 + $0x1cb0] sm:$0xff]
    %v960 = vld [vmem:[%s1 + $0x1cb8] sm:$0xff]
    %v961 = vld [vmem:[%s1 + $0x1cc0] sm:$0xff]
    %v962 = vld [vmem:[%s1 + $0x1cc8] sm:$0xff]
    %v963 = vld [vmem:[%s1 + $0x1cd0] sm:$0xff]
    %v964 = vld [vmem:[%s1 + $0x1cd8] sm:$0xff]
    %v965 = vld [vmem:[%s1 + $0x1ce0] sm:$0xff]
    %v966 = vld [vmem:[%s1 + $0x1ce8] sm:$0xff]
    %v967 = vld [vmem:[%s1 + $0x1cf0] sm:$0xff]
    %v968 = vld [vmem:[%s1 + $0x1cf8] sm:$0xff]
    %v969 = vld [vmem:[%s1 + $0x1d00] sm:$0xff]
    %v970 = vld [vmem:[%s1 + $0x1d08] sm:$0xff]
    %v971 = vld [vmem:[%s1 + $0x1d10] sm:$0xff]
    %v972 = vld [vmem:[%s1 + $0x1d18] sm:$0xff]
    %v973 = vld [vmem:[%s1 + $0x1d20] sm:$0xff]
    %v974 = vld [vmem:[%s1 + $0x1d28] sm:$0xff]
    %v975 = vld [vmem:[%s1 + $0x1d30] sm:$0xff]
    %v976 = vld [vmem:[%s1 + $0x1d38] sm:$0xff]
    %v977 = vld [vmem:[%s1 + $0x1d40] sm:$0xff]
    %v978 = vld [vmem:[%s1 + $0x1d48] sm:$0xff]
    %v979 = vld [vmem:[%s1 + $0x1d50] sm:$0xff]
    %v980 = vld [vmem:[%s1 + $0x1d58] sm:$0xff]
    %v981 = vld [vmem:[%s1 + $0x1d60] sm:$0xff]
    %v982 = vld [vmem:[%s1 + $0x1d68] sm:$0xff]
    %v983 = vld [vmem:[%s1 + $0x1d70] sm:$0xff]
    %v984 = vld [vmem:[%s1 + $0x1d78] sm:$0xff]
    %v985 = vld [vmem:[%s1 + $0x1d80] sm:$0xff]
    %v986 = vld [vmem:[%s1 + $0x1d88] sm:$0xff]
    %v987 = vld [vmem:[%s1 + $0x1d90] sm:$0xff]
    %v988 = vld [vmem:[%s1 + $0x1d98] sm:$0xff]
    %v989 = vld [vmem:[%s1 + $0x1da0] sm:$0xff]
    %v990 = vld [vmem:[%s1 + $0x1da8] sm:$0xff]
    %v991 = vld [vmem:[%s1 + $0x1db0] sm:$0xff]
    %v992 = vld [vmem:[%s1 + $0x1db8] sm:$0xff]
    %v993 = vld [vmem:[%s1 + $0x1dc0] sm:$0xff]
    %v994 = vld [vmem:[%s1 + $0x1dc8] sm:$0xff]
    %v995 = vld [vmem:[%s1 + $0x1dd0] sm:$0xff]
    %v996 = vld [vmem:[%s1 + $0x1dd8] sm:$0xff]
    %v997 = vld [vmem:[%s1 + $0x1de0] sm:$0xff]
    %v998 = vld [vmem:[%s1 + $0x1de8] sm:$0xff]
    %v999 = vld [vmem:[%s1 + $0x1df0] sm:$0xff]
    %v1000 = vld [vmem:[%s1 + $0x1df8] sm:$0xff]
    %v1001 = vld [vmem:[%s1 + $0x1e00] sm:$0xff]
    %v1002 = vld [vmem:[%s1 + $0x1e08] sm:$0xff]
    %v1003 = vld [vmem:[%s1 + $0x1e10] sm:$0xff]
    %v1004 = vld [vmem:[%s1 + $0x1e18] sm:$0xff]
    %v1005 = vld [vmem:[%s1 + $0x1e20] sm:$0xff]
    %v1006 = vld [vmem:[%s1 + $0x1e28] sm:$0xff]
    %v1007 = vld [vmem:[%s1 + $0x1e30] sm:$0xff]
    %v1008 = vld [vmem:[%s1 + $0x1e38] sm:$0xff]
    %v1009 = vld [vmem:[%s1 + $0x1e40] sm:$0xff]
    %v1010 = vld [vmem:[%s1 + $0x1e48] sm:$0xff]
    %v1011 = vld [vmem:[%s1 + $0x1e50] sm:$0xff]
    %v1012 = vld [vmem:[%s1 + $0x1e58] sm:$0xff]
    %v1013 = vld [vmem:[%s1 + $0x1e60] sm:$0xff]
    %v1014 = vld [vmem:[%s1 + $0x1e68] sm:$0xff]
    %v1015 = vld [vmem:[%s1 + $0x1e70] sm:$0xff]
    %v1016 = vld [vmem:[%s1 + $0x1e78] sm:$0xff]
    %v1017 = vld [vmem:[%s1 + $0x1e80] sm:$0xff]
    %v1018 = vld [vmem:[%s1 + $0x1e88] sm:$0xff]
    %v1019 = vld [vmem:[%s1 + $0x1e90] sm:$0xff]
    %v1020 = vld [vmem:[%s1 + $0x1e98] sm:$0xff]
    %v1021 = vld [vmem:[%s1 + $0x1ea0] sm:$0xff]
    %v1022 = vld [vmem:[%s1 + $0x1ea8] sm:$0xff]
    %v1023 = vld [vmem:[%s1 + $0x1eb0] sm:$0xff]
    %v1024 = vld [vmem:[%s1 + $0x1eb8] sm:$0xff]
    %v1025 = vld [vmem:[%s1 + $0x1ec0] sm:$0xff]
    %v1026 = vld [vmem:[%s1 + $0x1ec8] sm:$0xff]
    %v1027 = vld [vmem:[%s1 + $0x1ed0] sm:$0xff]
    %v1028 = vld [vmem:[%s1 + $0x1ed8] sm:$0xff]
    %v1029 = vld [vmem:[%s1 + $0x1ee0] sm:$0xff]
    %v1030 = vld [vmem:[%s1 + $0x1ee8] sm:$0xff]
    %v1031 = vld [vmem:[%s1 + $0x1ef0] sm:$0xff]
    %v1032 = vld [vmem:[%s1 + $0x1ef8] sm:$0xff]
    %v1033 = vld [vmem:[%s1 + $0x1f00] sm:$0xff]
    %v1034 = vld [vmem:[%s1 + $0x1f08] sm:$0xff]
    %v1035 = vld [vmem:[%s1 + $0x1f10] sm:$0xff]
    %v1036 = vld [vmem:[%s1 + $0x1f18] sm:$0xff]
    %v1037 = vld [vmem:[%s1 + $0x1f20] sm:$0xff]
    %v1038 = vld [vmem:[%s1 + $0x1f28] sm:$0xff]
    %v1039 = vld [vmem:[%s1 + $0x1f30] sm:$0xff]
    %v1040 = vld [vmem:[%s1 + $0x1f38] sm:$0xff]
    %v1041 = vld [vmem:[%s1 + $0x1f40] sm:$0xff]
    %v1042 = vld [vmem:[%s1 + $0x1f48] sm:$0xff]
    %v1043 = vld [vmem:[%s1 + $0x1f50] sm:$0xff]
    %v1044 = vld [vmem:[%s1 + $0x1f58] sm:$0xff]
    %v1045 = vld [vmem:[%s1 + $0x1f60] sm:$0xff]
    %v1046 = vld [vmem:[%s1 + $0x1f68] sm:$0xff]
    %v1047 = vld [vmem:[%s1 + $0x1f70] sm:$0xff]
    %v1048 = vld [vmem:[%s1 + $0x1f78] sm:$0xff]
    %v1049 = vld [vmem:[%s1 + $0x1f80] sm:$0xff]
    %v1050 = vld [vmem:[%s1 + $0x1f88] sm:$0xff]
    %v1051 = vld [vmem:[%s1 + $0x1f90] sm:$0xff]
    %v1052 = vld [vmem:[%s1 + $0x1f98] sm:$0xff]
    %v1053 = vld [vmem:[%s1 + $0x1fa0] sm:$0xff]
    %v1054 = vld [vmem:[%s1 + $0x1fa8] sm:$0xff]
    %v1055 = vld [vmem:[%s1 + $0x1fb0] sm:$0xff]
    %v1056 = vld [vmem:[%s1 + $0x1fb8] sm:$0xff]
    %v1057 = vld [vmem:[%s1 + $0x1fc0] sm:$0xff]
    %v1058 = vld [vmem:[%s1 + $0x1fc8] sm:$0xff]
    %v1059 = vld [vmem:[%s1 + $0x1fd0] sm:$0xff]
    %v1060 = vld [vmem:[%s1 + $0x1fd8] sm:$0xff]
    %v1061 = vld [vmem:[%s1 + $0x1fe0] sm:$0xff]
    %v1062 = vld [vmem:[%s1 + $0x1fe8] sm:$0xff]
    %v1063 = vld [vmem:[%s1 + $0x1ff0] sm:$0xff]
    %v1064 = vld [vmem:[%s1 + $0x1ff8] sm:$0xff]
    %v1065 = vld [vmem:[%s1 + $0x2000] sm:$0xff]
    %v1066 = vld [vmem:[%s1 + $0x2008] sm:$0xff]
    %v1067 = vld [vmem:[%s1 + $0x2010] sm:$0xff]
    %v1068 = vld [vmem:[%s1 + $0x2018] sm:$0xff]
    %v1069 = vld [vmem:[%s1 + $0x2020] sm:$0xff]
    %v1070 = vld [vmem:[%s1 + $0x2028] sm:$0xff]
    %v1071 = vld [vmem:[%s1 + $0x2030] sm:$0xff]
    %v1072 = vld [vmem:[%s1 + $0x2038] sm:$0xff]
    %v1073 = vld [vmem:[%s1 + $0x2040] sm:$0xff]
    %v1074 = vld [vmem:[%s1 + $0x2048] sm:$0xff]
    %v1075 = vld [vmem:[%s1 + $0x2050] sm:$0xff]
    %v1076 = vld [vmem:[%s1 + $0x2058] sm:$0xff]
    %v1077 = vld [vmem:[%s1 + $0x2060] sm:$0xff]
    %v1078 = vld [vmem:[%s1 + $0x2068] sm:$0xff]
    %v1079 = vld [vmem:[%s1 + $0x2070] sm:$0xff]
    %v1080 = vld [vmem:[%s1 + $0x2078] sm:$0xff]
    %v1081 = vld [vmem:[%s1 + $0x2080] sm:$0xff]
    %v1082 = vld [vmem:[%s1 + $0x2088] sm:$0xff]
    %v1083 = vld [vmem:[%s1 + $0x2090] sm:$0xff]
    %v1084 = vld [vmem:[%s1 + $0x2098] sm:$0xff]
    %v1085 = vld [vmem:[%s1 + $0x20a0] sm:$0xff]
    %v1086 = vld [vmem:[%s1 + $0x20a8] sm:$0xff]
    %v1087 = vld [vmem:[%s1 + $0x20b0] sm:$0xff]
    %v1088 = vld [vmem:[%s1 + $0x20b8] sm:$0xff]
    %v1089 = vld [vmem:[%s1 + $0x20c0] sm:$0xff]
    %v1090 = vld [vmem:[%s1 + $0x20c8] sm:$0xff]
    %v1091 = vld [vmem:[%s1 + $0x20d0] sm:$0xff]
    %v1092 = vld [vmem:[%s1 + $0x20d8] sm:$0xff]
    %v1093 = vld [vmem:[%s1 + $0x20e0] sm:$0xff]
    %v1094 = vld [vmem:[%s1 + $0x20e8] sm:$0xff]
    %v1095 = vld [vmem:[%s1 + $0x20f0] sm:$0xff]
    %v1096 = vld [vmem:[%s1 + $0x20f8] sm:$0xff]
    %v1097 = vld [vmem:[%s1 + $0x2100] sm:$0xff]
    %v1098 = vld [vmem:[%s1 + $0x2108] sm:$0xff]
    %v1099 = vld [vmem:[%s1 + $0x2110] sm:$0xff]
    %v1100 = vld [vmem:[%s1 + $0x2118] sm:$0xff]
    %v1101 = vld [vmem:[%s1 + $0x2120] sm:$0xff]
    %v1102 = vld [vmem:[%s1 + $0x2128] sm:$0xff]
    %v1103 = vld [vmem:[%s1 + $0x2130] sm:$0xff]
    %v1104 = vld [vmem:[%s1 + $0x2138] sm:$0xff]
    %v1105 = vld [vmem:[%s1 + $0x2140] sm:$0xff]
    %v1106 = vld [vmem:[%s1 + $0x2148] sm:$0xff]
    %v1107 = vld [vmem:[%s1 + $0x2150] sm:$0xff]
    %v1108 = vld [vmem:[%s1 + $0x2158] sm:$0xff]
    %v1109 = vld [vmem:[%s1 + $0x2160] sm:$0xff]
    %v1110 = vld [vmem:[%s1 + $0x2168] sm:$0xff]
    %v1111 = vld [vmem:[%s1 + $0x2170] sm:$0xff]
    %v1112 = vld [vmem:[%s1 + $0x2178] sm:$0xff]
    %v1113 = vld [vmem:[%s1 + $0x2180] sm:$0xff]
    %v1114 = vld [vmem:[%s1 + $0x2188] sm:$0xff]
    %v1115 = vld [vmem:[%s1 + $0x2190] sm:$0xff]
    %v1116 = vld [vmem:[%s1 + $0x2198] sm:$0xff]
    %v1117 = vld [vmem:[%s1 + $0x21a0] sm:$0xff]
    %v1118 = vld [vmem:[%s1 + $0x21a8] sm:$0xff]
    %v1119 = vld [vmem:[%s1 + $0x21b0] sm:$0xff]
    %v1120 = vld [vmem:[%s1 + $0x21b8] sm:$0xff]
    %v1121 = vld [vmem:[%s1 + $0x21c0] sm:$0xff]
    %v1122 = vld [vmem:[%s1 + $0x21c8] sm:$0xff]
    %v1123 = vld [vmem:[%s1 + $0x21d0] sm:$0xff]
    %v1124 = vld [vmem:[%s1 + $0x21d8] sm:$0xff]
    %v1125 = vld [vmem:[%s1 + $0x21e0] sm:$0xff]
    %v1126 = vld [vmem:[%s1 + $0x21e8] sm:$0xff]
    %v1127 = vld [vmem:[%s1 + $0x21f0] sm:$0xff]
    %v1128 = vld [vmem:[%s1 + $0x21f8] sm:$0xff]
    %v1129 = vld [vmem:[%s1 + $0x2200] sm:$0xff]
    %v1130 = vld [vmem:[%s1 + $0x2208] sm:$0xff]
    %v1131 = vld [vmem:[%s1 + $0x2210] sm:$0xff]
    %v1132 = vld [vmem:[%s1 + $0x2218] sm:$0xff]
    %v1133 = vld [vmem:[%s1 + $0x2220] sm:$0xff]
    %v1134 = vld [vmem:[%s1 + $0x2228] sm:$0xff]
    %v1135 = vld [vmem:[%s1 + $0x2230] sm:$0xff]
    %v1136 = vld [vmem:[%s1 + $0x2238] sm:$0xff]
    %v1137 = vld [vmem:[%s1 + $0x2240] sm:$0xff]
    %v1138 = vld [vmem:[%s1 + $0x2248] sm:$0xff]
    %v1139 = vld [vmem:[%s1 + $0x2250] sm:$0xff]
    %v1140 = vld [vmem:[%s1 + $0x2258] sm:$0xff]
    %v1141 = vld [vmem:[%s1 + $0x2260] sm:$0xff]
    %v1142 = vld [vmem:[%s1 + $0x2268] sm:$0xff]
    %v1143 = vld [vmem:[%s1 + $0x2270] sm:$0xff]
    %v1144 = vld [vmem:[%s1 + $0x2278] sm:$0xff]
    %v1145 = vld [vmem:[%s1 + $0x2280] sm:$0xff]
    %v1146 = vld [vmem:[%s1 + $0x2288] sm:$0xff]
    %v1147 = vld [vmem:[%s1 + $0x2290] sm:$0xff]
    %v1148 = vld [vmem:[%s1 + $0x2298] sm:$0xff]
    %v1149 = vld [vmem:[%s1 + $0x22a0] sm:$0xff]
    %v1150 = vld [vmem:[%s1 + $0x22a8] sm:$0xff]
    %v1151 = vld [vmem:[%s1 + $0x22b0] sm:$0xff]
    %v1152 = vld [vmem:[%s1 + $0x22b8] sm:$0xff]
    %v1153 = vld [vmem:[%s1 + $0x22c0] sm:$0xff]
    %v1154 = vld [vmem:[%s1 + $0x22c8] sm:$0xff]
    %v1155 = vld [vmem:[%s1 + $0x22d0] sm:$0xff]
    %v1156 = vld [vmem:[%s1 + $0x22d8] sm:$0xff]
    %v1157 = vld [vmem:[%s1 + $0x22e0] sm:$0xff]
    %v1158 = vld [vmem:[%s1 + $0x22e8] sm:$0xff]
    %v1159 = vld [vmem:[%s1 + $0x22f0] sm:$0xff]
    %v1160 = vld [vmem:[%s1 + $0x22f8] sm:$0xff]
    %v1161 = vld [vmem:[%s1 + $0x2300] sm:$0xff]
    %v1162 = vld [vmem:[%s1 + $0x2308] sm:$0xff]
    %v1163 = vld [vmem:[%s1 + $0x2310] sm:$0xff]
    %v1164 = vld [vmem:[%s1 + $0x2318] sm:$0xff]
    %v1165 = vld [vmem:[%s1 + $0x2320] sm:$0xff]
    %v1166 = vld [vmem:[%s1 + $0x2328] sm:$0xff]
    %v1167 = vld [vmem:[%s1 + $0x2330] sm:$0xff]
    %v1168 = vld [vmem:[%s1 + $0x2338] sm:$0xff]
    %v1169 = vld [vmem:[%s1 + $0x2340] sm:$0xff]
    %v1170 = vld [vmem:[%s1 + $0x2348] sm:$0xff]
    %v1171 = vld [vmem:[%s1 + $0x2350] sm:$0xff]
    %v1172 = vld [vmem:[%s1 + $0x2358] sm:$0xff]
    %v1173 = vld [vmem:[%s1 + $0x2360] sm:$0xff]
    %v1174 = vld [vmem:[%s1 + $0x2368] sm:$0xff]
    %v1175 = vld [vmem:[%s1 + $0x2370] sm:$0xff]
    %v1176 = vld [vmem:[%s1 + $0x2378] sm:$0xff]
    %v1177 = vld [vmem:[%s1 + $0x2380] sm:$0xff]
    %v1178 = vld [vmem:[%s1 + $0x2388] sm:$0xff]
    %v1179 = vld [vmem:[%s1 + $0x2390] sm:$0xff]
    %v1180 = vld [vmem:[%s1 + $0x2398] sm:$0xff]
    %v1181 = vld [vmem:[%s1 + $0x23a0] sm:$0xff]
    %v1182 = vld [vmem:[%s1 + $0x23a8] sm:$0xff]
    %v1183 = vld [vmem:[%s1 + $0x23b0] sm:$0xff]
    %v1184 = vld [vmem:[%s1 + $0x23b8] sm:$0xff]
    %v1185 = vld [vmem:[%s1 + $0x23c0] sm:$0xff]
    %v1186 = vld [vmem:[%s1 + $0x23c8] sm:$0xff]
    %v1187 = vld [vmem:[%s1 + $0x23d0] sm:$0xff]
    %v1188 = vld [vmem:[%s1 + $0x23d8] sm:$0xff]
    %v1189 = vld [vmem:[%s1 + $0x23e0] sm:$0xff]
    %v1190 = vld [vmem:[%s1 + $0x23e8] sm:$0xff]
    %v1191 = vld [vmem:[%s1 + $0x23f0] sm:$0xff]
    %v1192 = vld [vmem:[%s1 + $0x23f8] sm:$0xff]
    %v1193 = vld [vmem:[%s1 + $0x2400] sm:$0xff]
    %v1194 = vld [vmem:[%s1 + $0x2408] sm:$0xff]
    %v1195 = vld [vmem:[%s1 + $0x2410] sm:$0xff]
    %v1196 = vld [vmem:[%s1 + $0x2418] sm:$0xff]
    %v1197 = vld [vmem:[%s1 + $0x2420] sm:$0xff]
    %v1198 = vld [vmem:[%s1 + $0x2428] sm:$0xff]
    %v1199 = vld [vmem:[%s1 + $0x2430] sm:$0xff]
    %v1200 = vld [vmem:[%s1 + $0x2438] sm:$0xff]
    %v1201 = vld [vmem:[%s1 + $0x2440] sm:$0xff]
    %v1202 = vld [vmem:[%s1 + $0x2448] sm:$0xff]
    %v1203 = vld [vmem:[%s1 + $0x2450] sm:$0xff]
    %v1204 = vld [vmem:[%s1 + $0x2458] sm:$0xff]
    %v1205 = vld [vmem:[%s1 + $0x2460] sm:$0xff]
    %v1206 = vld [vmem:[%s1 + $0x2468] sm:$0xff]
    %v1207 = vld [vmem:[%s1 + $0x2470] sm:$0xff]
    %v1208 = vld [vmem:[%s1 + $0x2478] sm:$0xff]
    %v1209 = vld [vmem:[%s1 + $0x2480] sm:$0xff]
    %v1210 = vld [vmem:[%s1 + $0x2488] sm:$0xff]
    %v1211 = vld [vmem:[%s1 + $0x2490] sm:$0xff]
    %v1212 = vld [vmem:[%s1 + $0x2498] sm:$0xff]
    %v1213 = vld [vmem:[%s1 + $0x24a0] sm:$0xff]
    %v1214 = vld [vmem:[%s1 + $0x24a8] sm:$0xff]
    %v1215 = vld [vmem:[%s1 + $0x24b0] sm:$0xff]
    %v1216 = vld [vmem:[%s1 + $0x24b8] sm:$0xff]
    %v1217 = vld [vmem:[%s1 + $0x24c0] sm:$0xff]
    %v1218 = vld [vmem:[%s1 + $0x24c8] sm:$0xff]
    %v1219 = vld [vmem:[%s1 + $0x24d0] sm:$0xff]
    %v1220 = vld [vmem:[%s1 + $0x24d8] sm:$0xff]
    %v1221 = vld [vmem:[%s1 + $0x24e0] sm:$0xff]
    %v1222 = vld [vmem:[%s1 + $0x24e8] sm:$0xff]
    %v1223 = vld [vmem:[%s1 + $0x24f0] sm:$0xff]
    %v1224 = vld [vmem:[%s1 + $0x24f8] sm:$0xff]
    %v1225 = vld [vmem:[%s1 + $0x2500] sm:$0xff]
    %v1226 = vld [vmem:[%s1 + $0x2508] sm:$0xff]
    %v1227 = vld [vmem:[%s1 + $0x2510] sm:$0xff]
    %v1228 = vld [vmem:[%s1 + $0x2518] sm:$0xff]
    %v1229 = vld [vmem:[%s1 + $0x2520] sm:$0xff]
    %v1230 = vld [vmem:[%s1 + $0x2528] sm:$0xff]
    %v1231 = vld [vmem:[%s1 + $0x2530] sm:$0xff]
    %v1232 = vld [vmem:[%s1 + $0x2538] sm:$0xff]
    %v1233 = vld [vmem:[%s1 + $0x2540] sm:$0xff]
    %v1234 = vld [vmem:[%s1 + $0x2548] sm:$0xff]
    %v1235 = vld [vmem:[%s1 + $0x2550] sm:$0xff]
    %v1236 = vld [vmem:[%s1 + $0x2558] sm:$0xff]
    %v1237 = vld [vmem:[%s1 + $0x2560] sm:$0xff]
    %v1238 = vld [vmem:[%s1 + $0x2568] sm:$0xff]
    %v1239 = vld [vmem:[%s1 + $0x2570] sm:$0xff]
    %v1240 = vld [vmem:[%s1 + $0x2578] sm:$0xff]
    %v1241 = vld [vmem:[%s1 + $0x2580] sm:$0xff]
    %v1242 = vld [vmem:[%s1 + $0x2588] sm:$0xff]
    %v1243 = vld [vmem:[%s1 + $0x2590] sm:$0xff]
    %v1244 = vld [vmem:[%s1 + $0x2598] sm:$0xff]
    %v1245 = vld [vmem:[%s1 + $0x25a0] sm:$0xff]
    %v1246 = vld [vmem:[%s1 + $0x25a8] sm:$0xff]
    %v1247 = vld [vmem:[%s1 + $0x25b0] sm:$0xff]
    %v1248 = vld [vmem:[%s1 + $0x25b8] sm:$0xff]
    %v1249 = vld [vmem:[%s1 + $0x25c0] sm:$0xff]
    %v1250 = vld [vmem:[%s1 + $0x25c8] sm:$0xff]
    %v1251 = vld [vmem:[%s1 + $0x25d0] sm:$0xff]
    %v1252 = vld [vmem:[%s1 + $0x25d8] sm:$0xff]
    %v1253 = vld [vmem:[%s1 + $0x25e0] sm:$0xff]
    %v1254 = vld [vmem:[%s1 + $0x25e8] sm:$0xff]
    %v1255 = vld [vmem:[%s1 + $0x25f0] sm:$0xff]
    %v1256 = vld [vmem:[%s1 + $0x25f8] sm:$0xff]
    %v1257 = vld [vmem:[%s1 + $0x2600] sm:$0xff]
    %v1258 = vld [vmem:[%s1 + $0x2608] sm:$0xff]
    %v1259 = vld [vmem:[%s1 + $0x2610] sm:$0xff]
    %v1260 = vld [vmem:[%s1 + $0x2618] sm:$0xff]
    %v1261 = vld [vmem:[%s1 + $0x2620] sm:$0xff]
    %v1262 = vld [vmem:[%s1 + $0x2628] sm:$0xff]
    %v1263 = vld [vmem:[%s1 + $0x2630] sm:$0xff]
    %v1264 = vld [vmem:[%s1 + $0x2638] sm:$0xff]
    %v1265 = vld [vmem:[%s1 + $0x2640] sm:$0xff]
    %v1266 = vld [vmem:[%s1 + $0x2648] sm:$0xff]
    %v1267 = vld [vmem:[%s1 + $0x2650] sm:$0xff]
    %v1268 = vld [vmem:[%s1 + $0x2658] sm:$0xff]
    %v1269 = vld [vmem:[%s1 + $0x2660] sm:$0xff]
    %v1270 = vld [vmem:[%s1 + $0x2668] sm:$0xff]
    %v1271 = vld [vmem:[%s1 + $0x2670] sm:$0xff]
    %v1272 = vld [vmem:[%s1 + $0x2678] sm:$0xff]
    %v1273 = vld [vmem:[%s1 + $0x2680] sm:$0xff]
    %v1274 = vld [vmem:[%s1 + $0x2688] sm:$0xff]
    %v1275 = vld [vmem:[%s1 + $0x2690] sm:$0xff]
    %v1276 = vld [vmem:[%s1 + $0x2698] sm:$0xff]
    %v1277 = vld [vmem:[%s1 + $0x26a0] sm:$0xff]
    %v1278 = vld [vmem:[%s1 + $0x26a8] sm:$0xff]
    %v1279 = vld [vmem:[%s1 + $0x26b0] sm:$0xff]
    %v1280 = vld [vmem:[%s1 + $0x26b8] sm:$0xff]
    %v1281 = vld [vmem:[%s1 + $0x26c0] sm:$0xff]
    %v1282 = vld [vmem:[%s1 + $0x26c8] sm:$0xff]
    %v1283 = vld [vmem:[%s1 + $0x26d0] sm:$0xff]
    %v1284 = vld [vmem:[%s1 + $0x26d8] sm:$0xff]
    %v1285 = vld [vmem:[%s1 + $0x26e0] sm:$0xff]
    %v1286 = vld [vmem:[%s1 + $0x26e8] sm:$0xff]
    %v1287 = vld [vmem:[%s1 + $0x26f0] sm:$0xff]
    %v1288 = vld [vmem:[%s1 + $0x26f8] sm:$0xff]
    %v1289 = vld [vmem:[%s1 + $0x2700] sm:$0xff]
    %v1290 = vld [vmem:[%s1 + $0x2708] sm:$0xff]
    %v1291 = vld [vmem:[%s2] sm:$0x1]
    %v1293 = vlaneseq
    %v1294 = vshrl.u32 %v1293, 7
    %v1295 = vsub.s32 0, %v1294
    %v1296 = vrot.slane %v1291, %v1295
    %v1318 = vcombine.high %v21, %v21
    %v1320 = vunpack.c.l.s4 1983009808
    %v1321 = vunpack.c.0.s8 %v1320
    %v1322 = vlaneseq
    %v1323 = vshrl.u32 %v1322, 7
    %v1324 = vsub.s32 %v1321, %v1323
    %v1325 = vrot.slane %v21, %v1324
    %v1327 = vunpack.c.l.s4 1983009808
    %v1328 = vunpack.c.0.s8 %v1327
    %v1329 = vlaneseq
    %v1330 = vshrl.u32 %v1329, 7
    %v1331 = vsub.s32 %v1328, %v1330
    %v1332 = vrot.slane %v1318, %v1331
    %v1333 = vcombine.high %v1325, %v1325
    %v1334 = vcombine.high %v1332, %v1332
    %v1335 = vcombine.high %v22, %v22
    %v1337 = vunpack.c.l.s4 1983009808
    %v1338 = vunpack.c.0.s8 %v1337
    %v1339 = vlaneseq
    %v1340 = vshrl.u32 %v1339, 7
    %v1341 = vsub.s32 %v1338, %v1340
    %v1342 = vrot.slane %v22, %v1341
    %v1344 = vunpack.c.l.s4 1983009808
    %v1345 = vunpack.c.0.s8 %v1344
    %v1346 = vlaneseq
    %v1347 = vshrl.u32 %v1346, 7
    %v1348 = vsub.s32 %v1345, %v1347
    %v1349 = vrot.slane %v1335, %v1348
    %v1350 = vcombine.high %v1342, %v1342
    %v1351 = vcombine.high %v1349, %v1349
    %v1352 = vcombine.high %v23, %v23
    %v1354 = vunpack.c.l.s4 1983009808
    %v1355 = vunpack.c.0.s8 %v1354
    %v1356 = vlaneseq
    %v1357 = vshrl.u32 %v1356, 7
    %v1358 = vsub.s32 %v1355, %v1357
    %v1359 = vrot.slane %v23, %v1358
    %v1361 = vunpack.c.l.s4 1983009808
    %v1362 = vunpack.c.0.s8 %v1361
    %v1363 = vlaneseq
    %v1364 = vshrl.u32 %v1363, 7
    %v1365 = vsub.s32 %v1362, %v1364
    %v1366 = vrot.slane %v1352, %v1365
    %v1367 = vcombine.high %v1359, %v1359
    %v1368 = vcombine.high %v1366, %v1366
    %v1369 = vcombine.high %v24, %v24
    %v1371 = vunpack.c.l.s4 1983009808
    %v1372 = vunpack.c.0.s8 %v1371
    %v1373 = vlaneseq
    %v1374 = vshrl.u32 %v1373, 7
    %v1375 = vsub.s32 %v1372, %v1374
    %v1376 = vrot.slane %v24, %v1375
    %v1378 = vunpack.c.l.s4 1983009808
    %v1379 = vunpack.c.0.s8 %v1378
    %v1380 = vlaneseq
    %v1381 = vshrl.u32 %v1380, 7
    %v1382 = vsub.s32 %v1379, %v1381
    %v1383 = vrot.slane %v1369, %v1382
    %v1384 = vcombine.high %v1376, %v1376
    %v1385 = vcombine.high %v1383, %v1383
    %v1386 = vcombine.high %v25, %v25
    %v1388 = vunpack.c.l.s4 1983009808
    %v1389 = vunpack.c.0.s8 %v1388
    %v1390 = vlaneseq
    %v1391 = vshrl.u32 %v1390, 7
    %v1392 = vsub.s32 %v1389, %v1391
    %v1393 = vrot.slane %v25, %v1392
    %v1395 = vunpack.c.l.s4 1983009808
    %v1396 = vunpack.c.0.s8 %v1395
    %v1397 = vlaneseq
    %v1398 = vshrl.u32 %v1397, 7
    %v1399 = vsub.s32 %v1396, %v1398
    %v1400 = vrot.slane %v1386, %v1399
    %v1401 = vcombine.high %v1393, %v1393
    %v1402 = vcombine.high %v1400, %v1400
    %v1403 = vcombine.high %v26, %v26
    %v1405 = vunpack.c.l.s4 1983009808
    %v1406 = vunpack.c.0.s8 %v1405
    %v1407 = vlaneseq
    %v1408 = vshrl.u32 %v1407, 7
    %v1409 = vsub.s32 %v1406, %v1408
    %v1410 = vrot.slane %v26, %v1409
    %v1412 = vunpack.c.l.s4 1983009808
    %v1413 = vunpack.c.0.s8 %v1412
    %v1414 = vlaneseq
    %v1415 = vshrl.u32 %v1414, 7
    %v1416 = vsub.s32 %v1413, %v1415
    %v1417 = vrot.slane %v1403, %v1416
    %v1418 = vcombine.high %v1410, %v1410
    %v1419 = vcombine.high %v1417, %v1417
    %v1420 = vcombine.high %v27, %v27
    %v1422 = vunpack.c.l.s4 1983009808
    %v1423 = vunpack.c.0.s8 %v1422
    %v1424 = vlaneseq
    %v1425 = vshrl.u32 %v1424, 7
    %v1426 = vsub.s32 %v1423, %v1425
    %v1427 = vrot.slane %v27, %v1426
    %v1429 = vunpack.c.l.s4 1983009808
    %v1430 = vunpack.c.0.s8 %v1429
    %v1431 = vlaneseq
    %v1432 = vshrl.u32 %v1431, 7
    %v1433 = vsub.s32 %v1430, %v1432
    %v1434 = vrot.slane %v1420, %v1433
    %v1435 = vcombine.high %v1427, %v1427
    %v1436 = vcombine.high %v1434, %v1434
    %v1437 = vcombine.high %v28, %v28
    %v1439 = vunpack.c.l.s4 1983009808
    %v1440 = vunpack.c.0.s8 %v1439
    %v1441 = vlaneseq
    %v1442 = vshrl.u32 %v1441, 7
    %v1443 = vsub.s32 %v1440, %v1442
    %v1444 = vrot.slane %v28, %v1443
    %v1446 = vunpack.c.l.s4 1983009808
    %v1447 = vunpack.c.0.s8 %v1446
    %v1448 = vlaneseq
    %v1449 = vshrl.u32 %v1448, 7
    %v1450 = vsub.s32 %v1447, %v1449
    %v1451 = vrot.slane %v1437, %v1450
    %v1452 = vcombine.high %v1444, %v1444
    %v1453 = vcombine.high %v1451, %v1451
    %v1454 = vcombine.high %v29, %v29
    %v1456 = vunpack.c.l.s4 1983009808
    %v1457 = vunpack.c.0.s8 %v1456
    %v1458 = vlaneseq
    %v1459 = vshrl.u32 %v1458, 7
    %v1460 = vsub.s32 %v1457, %v1459
    %v1461 = vrot.slane %v29, %v1460
    %v1463 = vunpack.c.l.s4 1983009808
    %v1464 = vunpack.c.0.s8 %v1463
    %v1465 = vlaneseq
    %v1466 = vshrl.u32 %v1465, 7
    %v1467 = vsub.s32 %v1464, %v1466
    %v1468 = vrot.slane %v1454, %v1467
    %v1469 = vcombine.high %v1461, %v1461
    %v1470 = vcombine.high %v1468, %v1468
    %v1471 = vcombine.high %v30, %v30
    %v1473 = vunpack.c.l.s4 1983009808
    %v1474 = vunpack.c.0.s8 %v1473
    %v1475 = vlaneseq
    %v1476 = vshrl.u32 %v1475, 7
    %v1477 = vsub.s32 %v1474, %v1476
    %v1478 = vrot.slane %v30, %v1477
    %v1480 = vunpack.c.l.s4 1983009808
    %v1481 = vunpack.c.0.s8 %v1480
    %v1482 = vlaneseq
    %v1483 = vshrl.u32 %v1482, 7
    %v1484 = vsub.s32 %v1481, %v1483
    %v1485 = vrot.slane %v1471, %v1484
    %v1486 = vcombine.high %v1478, %v1478
    %v1487 = vcombine.high %v1485, %v1485
    %v1488 = vcombine.high %v31, %v31
    %v1490 = vunpack.c.l.s4 1983009808
    %v1491 = vunpack.c.0.s8 %v1490
    %v1492 = vlaneseq
    %v1493 = vshrl.u32 %v1492, 7
    %v1494 = vsub.s32 %v1491, %v1493
    %v1495 = vrot.slane %v31, %v1494
    %v1497 = vunpack.c.l.s4 1983009808
    %v1498 = vunpack.c.0.s8 %v1497
    %v1499 = vlaneseq
    %v1500 = vshrl.u32 %v1499, 7
    %v1501 = vsub.s32 %v1498, %v1500
    %v1502 = vrot.slane %v1488, %v1501
    %v1503 = vcombine.high %v1495, %v1495
    %v1504 = vcombine.high %v1502, %v1502
    %v1505 = vcombine.high %v32, %v32
    %v1507 = vunpack.c.l.s4 1983009808
    %v1508 = vunpack.c.0.s8 %v1507
    %v1509 = vlaneseq
    %v1510 = vshrl.u32 %v1509, 7
    %v1511 = vsub.s32 %v1508, %v1510
    %v1512 = vrot.slane %v32, %v1511
    %v1514 = vunpack.c.l.s4 1983009808
    %v1515 = vunpack.c.0.s8 %v1514
    %v1516 = vlaneseq
    %v1517 = vshrl.u32 %v1516, 7
    %v1518 = vsub.s32 %v1515, %v1517
    %v1519 = vrot.slane %v1505, %v1518
    %v1520 = vcombine.high %v1512, %v1512
    %v1521 = vcombine.high %v1519, %v1519
    %v1522 = vcombine.high %v33, %v33
    %v1524 = vunpack.c.l.s4 1983009808
    %v1525 = vunpack.c.0.s8 %v1524
    %v1526 = vlaneseq
    %v1527 = vshrl.u32 %v1526, 7
    %v1528 = vsub.s32 %v1525, %v1527
    %v1529 = vrot.slane %v33, %v1528
    %v1531 = vunpack.c.l.s4 1983009808
    %v1532 = vunpack.c.0.s8 %v1531
    %v1533 = vlaneseq
    %v1534 = vshrl.u32 %v1533, 7
    %v1535 = vsub.s32 %v1532, %v1534
    %v1536 = vrot.slane %v1522, %v1535
    %v1537 = vcombine.high %v1529, %v1529
    %v1538 = vcombine.high %v1536, %v1536
    %v1539 = vcombine.high %v34, %v34
    %v1541 = vunpack.c.l.s4 1983009808
    %v1542 = vunpack.c.0.s8 %v1541
    %v1543 = vlaneseq
    %v1544 = vshrl.u32 %v1543, 7
    %v1545 = vsub.s32 %v1542, %v1544
    %v1546 = vrot.slane %v34, %v1545
    %v1548 = vunpack.c.l.s4 1983009808
    %v1549 = vunpack.c.0.s8 %v1548
    %v1550 = vlaneseq
    %v1551 = vshrl.u32 %v1550, 7
    %v1552 = vsub.s32 %v1549, %v1551
    %v1553 = vrot.slane %v1539, %v1552
    %v1554 = vcombine.high %v1546, %v1546
    %v1555 = vcombine.high %v1553, %v1553
    %v1556 = vcombine.high %v35, %v35
    %v1558 = vunpack.c.l.s4 1983009808
    %v1559 = vunpack.c.0.s8 %v1558
    %v1560 = vlaneseq
    %v1561 = vshrl.u32 %v1560, 7
    %v1562 = vsub.s32 %v1559, %v1561
    %v1563 = vrot.slane %v35, %v1562
    %v1565 = vunpack.c.l.s4 1983009808
    %v1566 = vunpack.c.0.s8 %v1565
    %v1567 = vlaneseq
    %v1568 = vshrl.u32 %v1567, 7
    %v1569 = vsub.s32 %v1566, %v1568
    %v1570 = vrot.slane %v1556, %v1569
    %v1571 = vcombine.high %v1563, %v1563
    %v1572 = vcombine.high %v1570, %v1570
    %v1573 = vcombine.high %v36, %v36
    %v1575 = vunpack.c.l.s4 1983009808
    %v1576 = vunpack.c.0.s8 %v1575
    %v1577 = vlaneseq
    %v1578 = vshrl.u32 %v1577, 7
    %v1579 = vsub.s32 %v1576, %v1578
    %v1580 = vrot.slane %v36, %v1579
    %v1582 = vunpack.c.l.s4 1983009808
    %v1583 = vunpack.c.0.s8 %v1582
    %v1584 = vlaneseq
    %v1585 = vshrl.u32 %v1584, 7
    %v1586 = vsub.s32 %v1583, %v1585
    %v1587 = vrot.slane %v1573, %v1586
    %v1588 = vcombine.high %v1580, %v1580
    %v1589 = vcombine.high %v1587, %v1587
    %v1590 = vcombine.high %v37, %v37
    %v1592 = vunpack.c.l.s4 1983009808
    %v1593 = vunpack.c.0.s8 %v1592
    %v1594 = vlaneseq
    %v1595 = vshrl.u32 %v1594, 7
    %v1596 = vsub.s32 %v1593, %v1595
    %v1597 = vrot.slane %v37, %v1596
    %v1599 = vunpack.c.l.s4 1983009808
    %v1600 = vunpack.c.0.s8 %v1599
    %v1601 = vlaneseq
    %v1602 = vshrl.u32 %v1601, 7
    %v1603 = vsub.s32 %v1600, %v1602
    %v1604 = vrot.slane %v1590, %v1603
    %v1605 = vcombine.high %v1597, %v1597
    %v1606 = vcombine.high %v1604, %v1604
    %v1607 = vcombine.high %v38, %v38
    %v1609 = vunpack.c.l.s4 1983009808
    %v1610 = vunpack.c.0.s8 %v1609
    %v1611 = vlaneseq
    %v1612 = vshrl.u32 %v1611, 7
    %v1613 = vsub.s32 %v1610, %v1612
    %v1614 = vrot.slane %v38, %v1613
    %v1616 = vunpack.c.l.s4 1983009808
    %v1617 = vunpack.c.0.s8 %v1616
    %v1618 = vlaneseq
    %v1619 = vshrl.u32 %v1618, 7
    %v1620 = vsub.s32 %v1617, %v1619
    %v1621 = vrot.slane %v1607, %v1620
    %v1622 = vcombine.high %v1614, %v1614
    %v1623 = vcombine.high %v1621, %v1621
    %v1624 = vcombine.high %v39, %v39
    %v1626 = vunpack.c.l.s4 1983009808
    %v1627 = vunpack.c.0.s8 %v1626
    %v1628 = vlaneseq
    %v1629 = vshrl.u32 %v1628, 7
    %v1630 = vsub.s32 %v1627, %v1629
    %v1631 = vrot.slane %v39, %v1630
    %v1633 = vunpack.c.l.s4 1983009808
    %v1634 = vunpack.c.0.s8 %v1633
    %v1635 = vlaneseq
    %v1636 = vshrl.u32 %v1635, 7
    %v1637 = vsub.s32 %v1634, %v1636
    %v1638 = vrot.slane %v1624, %v1637
    %v1639 = vcombine.high %v1631, %v1631
    %v1640 = vcombine.high %v1638, %v1638
    %v1641 = vcombine.high %v40, %v40
    %v1643 = vunpack.c.l.s4 1983009808
    %v1644 = vunpack.c.0.s8 %v1643
    %v1645 = vlaneseq
    %v1646 = vshrl.u32 %v1645, 7
    %v1647 = vsub.s32 %v1644, %v1646
    %v1648 = vrot.slane %v40, %v1647
    %v1650 = vunpack.c.l.s4 1983009808
    %v1651 = vunpack.c.0.s8 %v1650
    %v1652 = vlaneseq
    %v1653 = vshrl.u32 %v1652, 7
    %v1654 = vsub.s32 %v1651, %v1653
    %v1655 = vrot.slane %v1641, %v1654
    %v1656 = vcombine.high %v1648, %v1648
    %vm1735 = vcmask 130048
    %v1736 = vsel %vm1735, %v1655, 0
    %1738 = vmatprep.subr.mxu0 0.0
    %1739 = vmatpush1.msra.mxu0 %v41
    %1740 = vmatprep.subr.mxu0 0.0
    %1741 = vmatpush1.msra.mxu0 %v42
    %1742 = vmatprep.subr.mxu0 0.0
    %1743 = vmatpush1.msra.mxu0 %v43
    %1744 = vmatprep.subr.mxu0 0.0
    %1745 = vmatpush1.msra.mxu0 %v44
    %1746 = vmatprep.subr.mxu0 0.0
    %1747 = vmatpush1.msra.mxu0 %v45
    %1748 = vmatprep.subr.mxu0 0.0
    %1749 = vmatpush1.msra.mxu0 %v46
    %1750 = vmatprep.subr.mxu0 0.0
    %1751 = vmatpush1.msra.mxu0 %v47
    %1752 = vmatprep.subr.mxu0 0.0
    %1753 = vmatpush1.msra.mxu0 %v48
    %1754 = vmatprep.subr.mxu0 0.0
    %1755 = vmatpush1.msra.mxu0 %v49
    %1756 = vmatprep.subr.mxu0 0.0
    %1757 = vmatpush1.msra.mxu0 %v50
    %1758 = vmatprep.subr.mxu0 0.0
    %1759 = vmatpush1.msra.mxu0 %v51
    %1760 = vmatprep.subr.mxu0 0.0
    %1761 = vmatpush1.msra.mxu0 %v52
    %1762 = vmatprep.subr.mxu0 0.0
    %1763 = vmatpush1.msra.mxu0 %v53
    %1764 = vmatprep.subr.mxu0 0.0
    %1765 = vmatpush1.msra.mxu0 %v54
    %1766 = vmatprep.subr.mxu0 0.0
    %1767 = vmatpush1.msra.mxu0 %v55
    %1768 = vmatprep.subr.mxu0 0.0
    %1769 = vmatpush1.msra.mxu0 %v56
    %1770 = vmatprep.subr.mxu0 0.0
    %1771 = vmatpush1.msra.mxu0 %v57
    %1772 = vmatprep.subr.mxu0 0.0
    %1773 = vmatpush1.msra.mxu0 %v58
    %1774 = vmatprep.subr.mxu0 0.0
    %1775 = vmatpush1.msra.mxu0 %v59
    %1776 = vmatprep.subr.mxu0 0.0
    %1777 = vmatpush1.msra.mxu0 %v60
    %1778 = vmatprep.subr.mxu0 0.0
    %1779 = vmatpush1.msra.mxu0 %v61
    %1780 = vmatprep.subr.mxu0 0.0
    %1781 = vmatpush1.msra.mxu0 %v62
    %1782 = vmatprep.subr.mxu0 0.0
    %1783 = vmatpush1.msra.mxu0 %v63
    %1784 = vmatprep.subr.mxu0 0.0
    %1785 = vmatpush1.msra.mxu0 %v64
    %1786 = vmatprep.subr.mxu0 0.0
    %1787 = vmatpush1.msra.mxu0 %v65
    %1788 = vmatprep.subr.mxu0 0.0
    %1789 = vmatpush1.msra.mxu0 %v66
    %1790 = vmatprep.subr.mxu0 0.0
    %1791 = vmatpush1.msra.mxu0 %v67
    %1792 = vmatprep.subr.mxu0 0.0
    %1793 = vmatpush1.msra.mxu0 %v68
    %1794 = vmatprep.subr.mxu0 0.0
    %1795 = vmatpush1.msra.mxu0 %v69
    %1796 = vmatprep.subr.mxu0 0.0
    %1797 = vmatpush1.msra.mxu0 %v70
    %1798 = vmatprep.subr.mxu0 0.0
    %1799 = vmatpush1.msra.mxu0 %v71
    %1800 = vmatprep.subr.mxu0 0.0
    %1801 = vmatpush1.msra.mxu0 %v72
    %1802 = vmatprep.mubr.f32.mxu0 %v1333
    %1803 = vmatmul.mubr.f32.gmra.mrb[0].mxu0 %v1325
    %v1804 = vpop.f32.mrb[0].mxu0
    %v1805 = vadd.f32 %v1296, %v1804
    %v1806 = vpop.f32.mrb[0].mxu0
    %1807 = vdwg.mxu0
    %1808 = vmatprep.subr.mxu0 0.0
    %1809 = vmatpush1.msra.mxu0 %v73
    %1810 = vmatprep.subr.mxu0 0.0
    %1811 = vmatpush1.msra.mxu0 %v74
    %1812 = vmatprep.subr.mxu0 0.0
    %1813 = vmatpush1.msra.mxu0 %v75
    %1814 = vmatprep.subr.mxu0 0.0
    %1815 = vmatpush1.msra.mxu0 %v76
    %1816 = vmatprep.subr.mxu0 0.0
    %1817 = vmatpush1.msra.mxu0 %v77
    %1818 = vmatprep.subr.mxu0 0.0
    %1819 = vmatpush1.msra.mxu0 %v78
    %1820 = vmatprep.subr.mxu0 0.0
    %1821 = vmatpush1.msra.mxu0 %v79
    %1822 = vmatprep.subr.mxu0 0.0
    %1823 = vmatpush1.msra.mxu0 %v80
    %1824 = vmatprep.subr.mxu0 0.0
    %1825 = vmatpush1.msra.mxu0 %v81
    %1826 = vmatprep.subr.mxu0 0.0
    %1827 = vmatpush1.msra.mxu0 %v82
    %1828 = vmatprep.subr.mxu0 0.0
    %1829 = vmatpush1.msra.mxu0 %v83
    %1830 = vmatprep.subr.mxu0 0.0
    %1831 = vmatpush1.msra.mxu0 %v84
    %1832 = vmatprep.subr.mxu0 0.0
    %1833 = vmatpush1.msra.mxu0 %v85
    %1834 = vmatprep.subr.mxu0 0.0
    %1835 = vmatpush1.msra.mxu0 %v86
    %1836 = vmatprep.subr.mxu0 0.0
    %1837 = vmatpush1.msra.mxu0 %v87
    %1838 = vmatprep.subr.mxu0 0.0
    %1839 = vmatpush1.msra.mxu0 %v88
    %1840 = vmatprep.subr.mxu0 0.0
    %1841 = vmatpush1.msra.mxu0 %v89
    %1842 = vmatprep.subr.mxu0 0.0
    %1843 = vmatpush1.msra.mxu0 %v90
    %1844 = vmatprep.subr.mxu0 0.0
    %1845 = vmatpush1.msra.mxu0 %v91
    %1846 = vmatprep.subr.mxu0 0.0
    %1847 = vmatpush1.msra.mxu0 %v92
    %1848 = vmatprep.subr.mxu0 0.0
    %1849 = vmatpush1.msra.mxu0 %v93
    %1850 = vmatprep.subr.mxu0 0.0
    %1851 = vmatpush1.msra.mxu0 %v94
    %1852 = vmatprep.subr.mxu0 0.0
    %1853 = vmatpush1.msra.mxu0 %v95
    %1854 = vmatprep.subr.mxu0 0.0
    %1855 = vmatpush1.msra.mxu0 %v96
    %1856 = vmatprep.subr.mxu0 0.0
    %1857 = vmatpush1.msra.mxu0 %v97
    %1858 = vmatprep.subr.mxu0 0.0
    %1859 = vmatpush1.msra.mxu0 %v98
    %1860 = vmatprep.subr.mxu0 0.0
    %1861 = vmatpush1.msra.mxu0 %v99
    %1862 = vmatprep.subr.mxu0 0.0
    %1863 = vmatpush1.msra.mxu0 %v100
    %1864 = vmatprep.subr.mxu0 0.0
    %1865 = vmatpush1.msra.mxu0 %v101
    %1866 = vmatprep.subr.mxu0 0.0
    %1867 = vmatpush1.msra.mxu0 %v102
    %1868 = vmatprep.subr.mxu0 0.0
    %1869 = vmatpush1.msra.mxu0 %v103
    %1870 = vmatprep.subr.mxu0 0.0
    %1871 = vmatpush1.msra.mxu0 %v104
    %1872 = vmatprep.mubr.f32.mxu0 %v1334
    %1873 = vmatmul.mubr.f32.gmra.mrb[0].mxu0 %v1332
    %v1874 = vpop.f32.mrb[0].mxu0
    %v1875 = vadd.f32 %v1805, %v1874
    %v1876 = vpop.f32.mrb[0].mxu0
    %1877 = vdwg.mxu0
    %1878 = vmatprep.subr.mxu0 0.0
    %1879 = vmatpush1.msra.mxu0 %v105
    %1880 = vmatprep.subr.mxu0 0.0
    %1881 = vmatpush1.msra.mxu0 %v106
    %1882 = vmatprep.subr.mxu0 0.0
    %1883 = vmatpush1.msra.mxu0 %v107
    %1884 = vmatprep.subr.mxu0 0.0
    %1885 = vmatpush1.msra.mxu0 %v108
    %1886 = vmatprep.subr.mxu0 0.0
    %1887 = vmatpush1.msra.mxu0 %v109
    %1888 = vmatprep.subr.mxu0 0.0
    %1889 = vmatpush1.msra.mxu0 %v110
    %1890 = vmatprep.subr.mxu0 0.0
    %1891 = vmatpush1.msra.mxu0 %v111
    %1892 = vmatprep.subr.mxu0 0.0
    %1893 = vmatpush1.msra.mxu0 %v112
    %1894 = vmatprep.subr.mxu0 0.0
    %1895 = vmatpush1.msra.mxu0 %v113
    %1896 = vmatprep.subr.mxu0 0.0
    %1897 = vmatpush1.msra.mxu0 %v114
    %1898 = vmatprep.subr.mxu0 0.0
    %1899 = vmatpush1.msra.mxu0 %v115
    %1900 = vmatprep.subr.mxu0 0.0
    %1901 = vmatpush1.msra.mxu0 %v116
    %1902 = vmatprep.subr.mxu0 0.0
    %1903 = vmatpush1.msra.mxu0 %v117
    %1904 = vmatprep.subr.mxu0 0.0
    %1905 = vmatpush1.msra.mxu0 %v118
    %1906 = vmatprep.subr.mxu0 0.0
    %1907 = vmatpush1.msra.mxu0 %v119
    %1908 = vmatprep.subr.mxu0 0.0
    %1909 = vmatpush1.msra.mxu0 %v120
    %1910 = vmatprep.subr.mxu0 0.0
    %1911 = vmatpush1.msra.mxu0 %v121
    %1912 = vmatprep.subr.mxu0 0.0
    %1913 = vmatpush1.msra.mxu0 %v122
    %1914 = vmatprep.subr.mxu0 0.0
    %1915 = vmatpush1.msra.mxu0 %v123
    %1916 = vmatprep.subr.mxu0 0.0
    %1917 = vmatpush1.msra.mxu0 %v124
    %1918 = vmatprep.subr.mxu0 0.0
    %1919 = vmatpush1.msra.mxu0 %v125
    %1920 = vmatprep.subr.mxu0 0.0
    %1921 = vmatpush1.msra.mxu0 %v126
    %1922 = vmatprep.subr.mxu0 0.0
    %1923 = vmatpush1.msra.mxu0 %v127
    %1924 = vmatprep.subr.mxu0 0.0
    %1925 = vmatpush1.msra.mxu0 %v128
    %1926 = vmatprep.subr.mxu0 0.0
    %1927 = vmatpush1.msra.mxu0 %v129
    %1928 = vmatprep.subr.mxu0 0.0
    %1929 = vmatpush1.msra.mxu0 %v130
    %1930 = vmatprep.subr.mxu0 0.0
    %1931 = vmatpush1.msra.mxu0 %v131
    %1932 = vmatprep.subr.mxu0 0.0
    %1933 = vmatpush1.msra.mxu0 %v132
    %1934 = vmatprep.subr.mxu0 0.0
    %1935 = vmatpush1.msra.mxu0 %v133
    %1936 = vmatprep.subr.mxu0 0.0
    %1937 = vmatpush1.msra.mxu0 %v134
    %1938 = vmatprep.subr.mxu0 0.0
    %1939 = vmatpush1.msra.mxu0 %v135
    %1940 = vmatprep.subr.mxu0 0.0
    %1941 = vmatpush1.msra.mxu0 %v136
    %1942 = vmatprep.mubr.f32.mxu0 %v1350
    %1943 = vmatmul.mubr.f32.gmra.mrb[0].mxu0 %v1342
    %v1944 = vpop.f32.mrb[0].mxu0
    %v1945 = vadd.f32 %v1875, %v1944
    %v1946 = vpop.f32.mrb[0].mxu0
    %1947 = vdwg.mxu0
    %1948 = vmatprep.subr.mxu0 0.0
    %1949 = vmatpush1.msra.mxu0 %v137
    %1950 = vmatprep.subr.mxu0 0.0
    %1951 = vmatpush1.msra.mxu0 %v138
    %1952 = vmatprep.subr.mxu0 0.0
    %1953 = vmatpush1.msra.mxu0 %v139
    %1954 = vmatprep.subr.mxu0 0.0
    %1955 = vmatpush1.msra.mxu0 %v140
    %1956 = vmatprep.subr.mxu0 0.0
    %1957 = vmatpush1.msra.mxu0 %v141
    %1958 = vmatprep.subr.mxu0 0.0
    %1959 = vmatpush1.msra.mxu0 %v142
    %1960 = vmatprep.subr.mxu0 0.0
    %1961 = vmatpush1.msra.mxu0 %v143
    %1962 = vmatprep.subr.mxu0 0.0
    %1963 = vmatpush1.msra.mxu0 %v144
    %1964 = vmatprep.subr.mxu0 0.0
    %1965 = vmatpush1.msra.mxu0 %v145
    %1966 = vmatprep.subr.mxu0 0.0
    %1967 = vmatpush1.msra.mxu0 %v146
    %1968 = vmatprep.subr.mxu0 0.0
    %1969 = vmatpush1.msra.mxu0 %v147
    %1970 = vmatprep.subr.mxu0 0.0
    %1971 = vmatpush1.msra.mxu0 %v148
    %1972 = vmatprep.subr.mxu0 0.0
    %1973 = vmatpush1.msra.mxu0 %v149
    %1974 = vmatprep.subr.mxu0 0.0
    %1975 = vmatpush1.msra.mxu0 %v150
    %1976 = vmatprep.subr.mxu0 0.0
    %1977 = vmatpush1.msra.mxu0 %v151
    %1978 = vmatprep.subr.mxu0 0.0
    %1979 = vmatpush1.msra.mxu0 %v152
    %1980 = vmatprep.subr.mxu0 0.0
    %1981 = vmatpush1.msra.mxu0 %v153
    %1982 = vmatprep.subr.mxu0 0.0
    %1983 = vmatpush1.msra.mxu0 %v154
    %1984 = vmatprep.subr.mxu0 0.0
    %1985 = vmatpush1.msra.mxu0 %v155
    %1986 = vmatprep.subr.mxu0 0.0
    %1987 = vmatpush1.msra.mxu0 %v156
    %1988 = vmatprep.subr.mxu0 0.0
    %1989 = vmatpush1.msra.mxu0 %v157
    %1990 = vmatprep.subr.mxu0 0.0
    %1991 = vmatpush1.msra.mxu0 %v158
    %1992 = vmatprep.subr.mxu0 0.0
    %1993 = vmatpush1.msra.mxu0 %v159
    %1994 = vmatprep.subr.mxu0 0.0
    %1995 = vmatpush1.msra.mxu0 %v160
    %1996 = vmatprep.subr.mxu0 0.0
    %1997 = vmatpush1.msra.mxu0 %v161
    %1998 = vmatprep.subr.mxu0 0.0
    %1999 = vmatpush1.msra.mxu0 %v162
    %2000 = vmatprep.subr.mxu0 0.0
    %2001 = vmatpush1.msra.mxu0 %v163
    %2002 = vmatprep.subr.mxu0 0.0
    %2003 = vmatpush1.msra.mxu0 %v164
    %2004 = vmatprep.subr.mxu0 0.0
    %2005 = vmatpush1.msra.mxu0 %v165
    %2006 = vmatprep.subr.mxu0 0.0
    %2007 = vmatpush1.msra.mxu0 %v166
    %2008 = vmatprep.subr.mxu0 0.0
    %2009 = vmatpush1.msra.mxu0 %v167
    %2010 = vmatprep.subr.mxu0 0.0
    %2011 = vmatpush1.msra.mxu0 %v168
    %2012 = vmatprep.mubr.f32.mxu0 %v1351
    %2013 = vmatmul.mubr.f32.gmra.mrb[0].mxu0 %v1349
    %v2014 = vpop.f32.mrb[0].mxu0
    %v2015 = vadd.f32 %v1945, %v2014
    %v2016 = vpop.f32.mrb[0].mxu0
    %2017 = vdwg.mxu0
    %2018 = vmatprep.subr.mxu0 0.0
    %2019 = vmatpush1.msra.mxu0 %v169
    %2020 = vmatprep.subr.mxu0 0.0
    %2021 = vmatpush1.msra.mxu0 %v170
    %2022 = vmatprep.subr.mxu0 0.0
    %2023 = vmatpush1.msra.mxu0 %v171
    %2024 = vmatprep.subr.mxu0 0.0
    %2025 = vmatpush1.msra.mxu0 %v172
    %2026 = vmatprep.subr.mxu0 0.0
    %2027 = vmatpush1.msra.mxu0 %v173
    %2028 = vmatprep.subr.mxu0 0.0
    %2029 = vmatpush1.msra.mxu0 %v174
    %2030 = vmatprep.subr.mxu0 0.0
    %2031 = vmatpush1.msra.mxu0 %v175
    %2032 = vmatprep.subr.mxu0 0.0
    %2033 = vmatpush1.msra.mxu0 %v176
    %2034 = vmatprep.subr.mxu0 0.0
    %2035 = vmatpush1.msra.mxu0 %v177
    %2036 = vmatprep.subr.mxu0 0.0
    %2037 = vmatpush1.msra.mxu0 %v178
    %2038 = vmatprep.subr.mxu0 0.0
    %2039 = vmatpush1.msra.mxu0 %v179
    %2040 = vmatprep.subr.mxu0 0.0
    %2041 = vmatpush1.msra.mxu0 %v180
    %2042 = vmatprep.subr.mxu0 0.0
    %2043 = vmatpush1.msra.mxu0 %v181
    %2044 = vmatprep.subr.mxu0 0.0
    %2045 = vmatpush1.msra.mxu0 %v182
    %2046 = vmatprep.subr.mxu0 0.0
    %2047 = vmatpush1.msra.mxu0 %v183
    %2048 = vmatprep.subr.mxu0 0.0
    %2049 = vmatpush1.msra.mxu0 %v184
    %2050 = vmatprep.subr.mxu0 0.0
    %2051 = vmatpush1.msra.mxu0 %v185
    %2052 = vmatprep.subr.mxu0 0.0
    %2053 = vmatpush1.msra.mxu0 %v186
    %2054 = vmatprep.subr.mxu0 0.0
    %2055 = vmatpush1.msra.mxu0 %v187
    %2056 = vmatprep.subr.mxu0 0.0
    %2057 = vmatpush1.msra.mxu0 %v188
    %2058 = vmatprep.subr.mxu0 0.0
    %2059 = vmatpush1.msra.mxu0 %v189
    %2060 = vmatprep.subr.mxu0 0.0
    %2061 = vmatpush1.msra.mxu0 %v190
    %2062 = vmatprep.subr.mxu0 0.0
    %2063 = vmatpush1.msra.mxu0 %v191
    %2064 = vmatprep.subr.mxu0 0.0
    %2065 = vmatpush1.msra.mxu0 %v192
    %2066 = vmatprep.subr.mxu0 0.0
    %2067 = vmatpush1.msra.mxu0 %v193
    %2068 = vmatprep.subr.mxu0 0.0
    %2069 = vmatpush1.msra.mxu0 %v194
    %2070 = vmatprep.subr.mxu0 0.0
    %2071 = vmatpush1.msra.mxu0 %v195
    %2072 = vmatprep.subr.mxu0 0.0
    %2073 = vmatpush1.msra.mxu0 %v196
    %2074 = vmatprep.subr.mxu0 0.0
    %2075 = vmatpush1.msra.mxu0 %v197
    %2076 = vmatprep.subr.mxu0 0.0
    %2077 = vmatpush1.msra.mxu0 %v198
    %2078 = vmatprep.subr.mxu0 0.0
    %2079 = vmatpush1.msra.mxu0 %v199
    %2080 = vmatprep.subr.mxu0 0.0
    %2081 = vmatpush1.msra.mxu0 %v200
    %2082 = vmatprep.mubr.f32.mxu0 %v1367
    %2083 = vmatmul.mubr.f32.gmra.mrb[0].mxu0 %v1359
    %v2084 = vpop.f32.mrb[0].mxu0
    %v2085 = vadd.f32 %v2015, %v2084
    %v2086 = vpop.f32.mrb[0].mxu0
    %2087 = vdwg.mxu0
    %2088 = vmatprep.subr.mxu0 0.0
    %2089 = vmatpush1.msra.mxu0 %v201
    %2090 = vmatprep.subr.mxu0 0.0
    %2091 = vmatpush1.msra.mxu0 %v202
    %2092 = vmatprep.subr.mxu0 0.0
    %2093 = vmatpush1.msra.mxu0 %v203
    %2094 = vmatprep.subr.mxu0 0.0
    %2095 = vmatpush1.msra.mxu0 %v204
    %2096 = vmatprep.subr.mxu0 0.0
    %2097 = vmatpush1.msra.mxu0 %v205
    %2098 = vmatprep.subr.mxu0 0.0
    %2099 = vmatpush1.msra.mxu0 %v206
    %2100 = vmatprep.subr.mxu0 0.0
    %2101 = vmatpush1.msra.mxu0 %v207
    %2102 = vmatprep.subr.mxu0 0.0
    %2103 = vmatpush1.msra.mxu0 %v208
    %2104 = vmatprep.subr.mxu0 0.0
    %2105 = vmatpush1.msra.mxu0 %v209
    %2106 = vmatprep.subr.mxu0 0.0
    %2107 = vmatpush1.msra.mxu0 %v210
    %2108 = vmatprep.subr.mxu0 0.0
    %2109 = vmatpush1.msra.mxu0 %v211
    %2110 = vmatprep.subr.mxu0 0.0
    %2111 = vmatpush1.msra.mxu0 %v212
    %2112 = vmatprep.subr.mxu0 0.0
    %2113 = vmatpush1.msra.mxu0 %v213
    %2114 = vmatprep.subr.mxu0 0.0
    %2115 = vmatpush1.msra.mxu0 %v214
    %2116 = vmatprep.subr.mxu0 0.0
    %2117 = vmatpush1.msra.mxu0 %v215
    %2118 = vmatprep.subr.mxu0 0.0
    %2119 = vmatpush1.msra.mxu0 %v216
    %2120 = vmatprep.subr.mxu0 0.0
    %2121 = vmatpush1.msra.mxu0 %v217
    %2122 = vmatprep.subr.mxu0 0.0
    %2123 = vmatpush1.msra.mxu0 %v218
    %2124 = vmatprep.subr.mxu0 0.0
    %2125 = vmatpush1.msra.mxu0 %v219
    %2126 = vmatprep.subr.mxu0 0.0
    %2127 = vmatpush1.msra.mxu0 %v220
    %2128 = vmatprep.subr.mxu0 0.0
    %2129 = vmatpush1.msra.mxu0 %v221
    %2130 = vmatprep.subr.mxu0 0.0
    %2131 = vmatpush1.msra.mxu0 %v222
    %2132 = vmatprep.subr.mxu0 0.0
    %2133 = vmatpush1.msra.mxu0 %v223
    %2134 = vmatprep.subr.mxu0 0.0
    %2135 = vmatpush1.msra.mxu0 %v224
    %2136 = vmatprep.subr.mxu0 0.0
    %2137 = vmatpush1.msra.mxu0 %v225
    %2138 = vmatprep.subr.mxu0 0.0
    %2139 = vmatpush1.msra.mxu0 %v226
    %2140 = vmatprep.subr.mxu0 0.0
    %2141 = vmatpush1.msra.mxu0 %v227
    %2142 = vmatprep.subr.mxu0 0.0
    %2143 = vmatpush1.msra.mxu0 %v228
    %2144 = vmatprep.subr.mxu0 0.0
    %2145 = vmatpush1.msra.mxu0 %v229
    %2146 = vmatprep.subr.mxu0 0.0
    %2147 = vmatpush1.msra.mxu0 %v230
    %2148 = vmatprep.subr.mxu0 0.0
    %2149 = vmatpush1.msra.mxu0 %v231
    %2150 = vmatprep.subr.mxu0 0.0
    %2151 = vmatpush1.msra.mxu0 %v232
    %2152 = vmatprep.mubr.f32.mxu0 %v1368
    %2153 = vmatmul.mubr.f32.gmra.mrb[0].mxu0 %v1366
    %v2154 = vpop.f32.mrb[0].mxu0
    %v2155 = vadd.f32 %v2085, %v2154
    %v2156 = vpop.f32.mrb[0].mxu0
    %2157 = vdwg.mxu0
    %2158 = vmatprep.subr.mxu0 0.0
    %2159 = vmatpush1.msra.mxu0 %v233
    %2160 = vmatprep.subr.mxu0 0.0
    %2161 = vmatpush1.msra.mxu0 %v234
    %2162 = vmatprep.subr.mxu0 0.0
    %2163 = vmatpush1.msra.mxu0 %v235
    %2164 = vmatprep.subr.mxu0 0.0
    %2165 = vmatpush1.msra.mxu0 %v236
    %2166 = vmatprep.subr.mxu0 0.0
    %2167 = vmatpush1.msra.mxu0 %v237
    %2168 = vmatprep.subr.mxu0 0.0
    %2169 = vmatpush1.msra.mxu0 %v238
    %2170 = vmatprep.subr.mxu0 0.0
    %2171 = vmatpush1.msra.mxu0 %v239
    %2172 = vmatprep.subr.mxu0 0.0
    %2173 = vmatpush1.msra.mxu0 %v240
    %2174 = vmatprep.subr.mxu0 0.0
    %2175 = vmatpush1.msra.mxu0 %v241
    %2176 = vmatprep.subr.mxu0 0.0
    %2177 = vmatpush1.msra.mxu0 %v242
    %2178 = vmatprep.subr.mxu0 0.0
    %2179 = vmatpush1.msra.mxu0 %v243
    %2180 = vmatprep.subr.mxu0 0.0
    %2181 = vmatpush1.msra.mxu0 %v244
    %2182 = vmatprep.subr.mxu0 0.0
    %2183 = vmatpush1.msra.mxu0 %v245
    %2184 = vmatprep.subr.mxu0 0.0
    %2185 = vmatpush1.msra.mxu0 %v246
    %2186 = vmatprep.subr.mxu0 0.0
    %2187 = vmatpush1.msra.mxu0 %v247
    %2188 = vmatprep.subr.mxu0 0.0
    %2189 = vmatpush1.msra.mxu0 %v248
    %2190 = vmatprep.subr.mxu0 0.0
    %2191 = vmatpush1.msra.mxu0 %v249
    %2192 = vmatprep.subr.mxu0 0.0
    %2193 = vmatpush1.msra.mxu0 %v250
    %2194 = vmatprep.subr.mxu0 0.0
    %2195 = vmatpush1.msra.mxu0 %v251
    %2196 = vmatprep.subr.mxu0 0.0
    %2197 = vmatpush1.msra.mxu0 %v252
    %2198 = vmatprep.subr.mxu0 0.0
    %2199 = vmatpush1.msra.mxu0 %v253
    %2200 = vmatprep.subr.mxu0 0.0
    %2201 = vmatpush1.msra.mxu0 %v254
    %2202 = vmatprep.subr.mxu0 0.0
    %2203 = vmatpush1.msra.mxu0 %v255
    %2204 = vmatprep.subr.mxu0 0.0
    %2205 = vmatpush1.msra.mxu0 %v256
    %2206 = vmatprep.subr.mxu0 0.0
    %2207 = vmatpush1.msra.mxu0 %v257
    %2208 = vmatprep.subr.mxu0 0.0
    %2209 = vmatpush1.msra.mxu0 %v258
    %2210 = vmatprep.subr.mxu0 0.0
    %2211 = vmatpush1.msra.mxu0 %v259
    %2212 = vmatprep.subr.mxu0 0.0
    %2213 = vmatpush1.msra.mxu0 %v260
    %2214 = vmatprep.subr.mxu0 0.0
    %2215 = vmatpush1.msra.mxu0 %v261
    %2216 = vmatprep.subr.mxu0 0.0
    %2217 = vmatpush1.msra.mxu0 %v262
    %2218 = vmatprep.subr.mxu0 0.0
    %2219 = vmatpush1.msra.mxu0 %v263
    %2220 = vmatprep.subr.mxu0 0.0
    %2221 = vmatpush1.msra.mxu0 %v264
    %2222 = vmatprep.mubr.f32.mxu0 %v1384
    %2223 = vmatmul.mubr.f32.gmra.mrb[0].mxu0 %v1376
    %v2224 = vpop.f32.mrb[0].mxu0
    %v2225 = vadd.f32 %v2155, %v2224
    %v2226 = vpop.f32.mrb[0].mxu0
    %2227 = vdwg.mxu0
    %2228 = vmatprep.subr.mxu0 0.0
    %2229 = vmatpush1.msra.mxu0 %v265
    %2230 = vmatprep.subr.mxu0 0.0
    %2231 = vmatpush1.msra.mxu0 %v266
    %2232 = vmatprep.subr.mxu0 0.0
    %2233 = vmatpush1.msra.mxu0 %v267
    %2234 = vmatprep.subr.mxu0 0.0
    %2235 = vmatpush1.msra.mxu0 %v268
    %2236 = vmatprep.subr.mxu0 0.0
    %2237 = vmatpush1.msra.mxu0 %v269
    %2238 = vmatprep.subr.mxu0 0.0
    %2239 = vmatpush1.msra.mxu0 %v270
    %2240 = vmatprep.subr.mxu0 0.0
    %2241 = vmatpush1.msra.mxu0 %v271
    %2242 = vmatprep.subr.mxu0 0.0
    %2243 = vmatpush1.msra.mxu0 %v272
    %2244 = vmatprep.subr.mxu0 0.0
    %2245 = vmatpush1.msra.mxu0 %v273
    %2246 = vmatprep.subr.mxu0 0.0
    %2247 = vmatpush1.msra.mxu0 %v274
    %2248 = vmatprep.subr.mxu0 0.0
    %2249 = vmatpush1.msra.mxu0 %v275
    %2250 = vmatprep.subr.mxu0 0.0
    %2251 = vmatpush1.msra.mxu0 %v276
    %2252 = vmatprep.subr.mxu0 0.0
    %2253 = vmatpush1.msra.mxu0 %v277
    %2254 = vmatprep.subr.mxu0 0.0
    %2255 = vmatpush1.msra.mxu0 %v278
    %2256 = vmatprep.subr.mxu0 0.0
    %2257 = vmatpush1.msra.mxu0 %v279
    %2258 = vmatprep.subr.mxu0 0.0
    %2259 = vmatpush1.msra.mxu0 %v280
    %2260 = vmatprep.subr.mxu0 0.0
    %2261 = vmatpush1.msra.mxu0 %v281
    %2262 = vmatprep.subr.mxu0 0.0
    %2263 = vmatpush1.msra.mxu0 %v282
    %2264 = vmatprep.subr.mxu0 0.0
    %2265 = vmatpush1.msra.mxu0 %v283
    %2266 = vmatprep.subr.mxu0 0.0
    %2267 = vmatpush1.msra.mxu0 %v284
    %2268 = vmatprep.subr.mxu0 0.0
    %2269 = vmatpush1.msra.mxu0 %v285
    %2270 = vmatprep.subr.mxu0 0.0
    %2271 = vmatpush1.msra.mxu0 %v286
    %2272 = vmatprep.subr.mxu0 0.0
    %2273 = vmatpush1.msra.mxu0 %v287
    %2274 = vmatprep.subr.mxu0 0.0
    %2275 = vmatpush1.msra.mxu0 %v288
    %2276 = vmatprep.subr.mxu0 0.0
    %2277 = vmatpush1.msra.mxu0 %v289
    %2278 = vmatprep.subr.mxu0 0.0
    %2279 = vmatpush1.msra.mxu0 %v290
    %2280 = vmatprep.subr.mxu0 0.0
    %2281 = vmatpush1.msra.mxu0 %v291
    %2282 = vmatprep.subr.mxu0 0.0
    %2283 = vmatpush1.msra.mxu0 %v292
    %2284 = vmatprep.subr.mxu0 0.0
    %2285 = vmatpush1.msra.mxu0 %v293
    %2286 = vmatprep.subr.mxu0 0.0
    %2287 = vmatpush1.msra.mxu0 %v294
    %2288 = vmatprep.subr.mxu0 0.0
    %2289 = vmatpush1.msra.mxu0 %v295
    %2290 = vmatprep.subr.mxu0 0.0
    %2291 = vmatpush1.msra.mxu0 %v296
    %2292 = vmatprep.mubr.f32.mxu0 %v1385
    %2293 = vmatmul.mubr.f32.gmra.mrb[0].mxu0 %v1383
    %v2294 = vpop.f32.mrb[0].mxu0
    %v2295 = vadd.f32 %v2225, %v2294
    %v2296 = vpop.f32.mrb[0].mxu0
    %2297 = vdwg.mxu0
    %2298 = vmatprep.subr.mxu0 0.0
    %2299 = vmatpush1.msra.mxu0 %v297
    %2300 = vmatprep.subr.mxu0 0.0
    %2301 = vmatpush1.msra.mxu0 %v298
    %2302 = vmatprep.subr.mxu0 0.0
    %2303 = vmatpush1.msra.mxu0 %v299
    %2304 = vmatprep.subr.mxu0 0.0
    %2305 = vmatpush1.msra.mxu0 %v300
    %2306 = vmatprep.subr.mxu0 0.0
    %2307 = vmatpush1.msra.mxu0 %v301
    %2308 = vmatprep.subr.mxu0 0.0
    %2309 = vmatpush1.msra.mxu0 %v302
    %2310 = vmatprep.subr.mxu0 0.0
    %2311 = vmatpush1.msra.mxu0 %v303
    %2312 = vmatprep.subr.mxu0 0.0
    %2313 = vmatpush1.msra.mxu0 %v304
    %2314 = vmatprep.subr.mxu0 0.0
    %2315 = vmatpush1.msra.mxu0 %v305
    %2316 = vmatprep.subr.mxu0 0.0
    %2317 = vmatpush1.msra.mxu0 %v306
    %2318 = vmatprep.subr.mxu0 0.0
    %2319 = vmatpush1.msra.mxu0 %v307
    %2320 = vmatprep.subr.mxu0 0.0
    %2321 = vmatpush1.msra.mxu0 %v308
    %2322 = vmatprep.subr.mxu0 0.0
    %2323 = vmatpush1.msra.mxu0 %v309
    %2324 = vmatprep.subr.mxu0 0.0
    %2325 = vmatpush1.msra.mxu0 %v310
    %2326 = vmatprep.subr.mxu0 0.0
    %2327 = vmatpush1.msra.mxu0 %v311
    %2328 = vmatprep.subr.mxu0 0.0
    %2329 = vmatpush1.msra.mxu0 %v312
    %2330 = vmatprep.subr.mxu0 0.0
    %2331 = vmatpush1.msra.mxu0 %v313
    %2332 = vmatprep.subr.mxu0 0.0
    %2333 = vmatpush1.msra.mxu0 %v314
    %2334 = vmatprep.subr.mxu0 0.0
    %2335 = vmatpush1.msra.mxu0 %v315
    %2336 = vmatprep.subr.mxu0 0.0
    %2337 = vmatpush1.msra.mxu0 %v316
    %2338 = vmatprep.subr.mxu0 0.0
    %2339 = vmatpush1.msra.mxu0 %v317
    %2340 = vmatprep.subr.mxu0 0.0
    %2341 = vmatpush1.msra.mxu0 %v318
    %2342 = vmatprep.subr.mxu0 0.0
    %2343 = vmatpush1.msra.mxu0 %v319
    %2344 = vmatprep.subr.mxu0 0.0
    %2345 = vmatpush1.msra.mxu0 %v320
    %2346 = vmatprep.subr.mxu0 0.0
    %2347 = vmatpush1.msra.mxu0 %v321
    %2348 = vmatprep.subr.mxu0 0.0
    %2349 = vmatpush1.msra.mxu0 %v322
    %2350 = vmatprep.subr.mxu0 0.0
    %2351 = vmatpush1.msra.mxu0 %v323
    %2352 = vmatprep.subr.mxu0 0.0
    %2353 = vmatpush1.msra.mxu0 %v324
    %2354 = vmatprep.subr.mxu0 0.0
    %2355 = vmatpush1.msra.mxu0 %v325
    %2356 = vmatprep.subr.mxu0 0.0
    %2357 = vmatpush1.msra.mxu0 %v326
    %2358 = vmatprep.subr.mxu0 0.0
    %2359 = vmatpush1.msra.mxu0 %v327
    %2360 = vmatprep.subr.mxu0 0.0
    %2361 = vmatpush1.msra.mxu0 %v328
    %2362 = vmatprep.mubr.f32.mxu0 %v1401
    %2363 = vmatmul.mubr.f32.gmra.mrb[0].mxu0 %v1393
    %v2364 = vpop.f32.mrb[0].mxu0
    %v2365 = vadd.f32 %v2295, %v2364
    %v2366 = vpop.f32.mrb[0].mxu0
    %2367 = vdwg.mxu0
    %2368 = vmatprep.subr.mxu0 0.0
    %2369 = vmatpush1.msra.mxu0 %v329
    %2370 = vmatprep.subr.mxu0 0.0
    %2371 = vmatpush1.msra.mxu0 %v330
    %2372 = vmatprep.subr.mxu0 0.0
    %2373 = vmatpush1.msra.mxu0 %v331
    %2374 = vmatprep.subr.mxu0 0.0
    %2375 = vmatpush1.msra.mxu0 %v332
    %2376 = vmatprep.subr.mxu0 0.0
    %2377 = vmatpush1.msra.mxu0 %v333
    %2378 = vmatprep.subr.mxu0 0.0
    %2379 = vmatpush1.msra.mxu0 %v334
    %2380 = vmatprep.subr.mxu0 0.0
    %2381 = vmatpush1.msra.mxu0 %v335
    %2382 = vmatprep.subr.mxu0 0.0
    %2383 = vmatpush1.msra.mxu0 %v336
    %2384 = vmatprep.subr.mxu0 0.0
    %2385 = vmatpush1.msra.mxu0 %v337
    %2386 = vmatprep.subr.mxu0 0.0
    %2387 = vmatpush1.msra.mxu0 %v338
    %2388 = vmatprep.subr.mxu0 0.0
    %2389 = vmatpush1.msra.mxu0 %v339
    %2390 = vmatprep.subr.mxu0 0.0
    %2391 = vmatpush1.msra.mxu0 %v340
    %2392 = vmatprep.subr.mxu0 0.0
    %2393 = vmatpush1.msra.mxu0 %v341
    %2394 = vmatprep.subr.mxu0 0.0
    %2395 = vmatpush1.msra.mxu0 %v342
    %2396 = vmatprep.subr.mxu0 0.0
    %2397 = vmatpush1.msra.mxu0 %v343
    %2398 = vmatprep.subr.mxu0 0.0
    %2399 = vmatpush1.msra.mxu0 %v344
    %2400 = vmatprep.subr.mxu0 0.0
    %2401 = vmatpush1.msra.mxu0 %v345
    %2402 = vmatprep.subr.mxu0 0.0
    %2403 = vmatpush1.msra.mxu0 %v346
    %2404 = vmatprep.subr.mxu0 0.0
    %2405 = vmatpush1.msra.mxu0 %v347
    %2406 = vmatprep.subr.mxu0 0.0
    %2407 = vmatpush1.msra.mxu0 %v348
    %2408 = vmatprep.subr.mxu0 0.0
    %2409 = vmatpush1.msra.mxu0 %v349
    %2410 = vmatprep.subr.mxu0 0.0
    %2411 = vmatpush1.msra.mxu0 %v350
    %2412 = vmatprep.subr.mxu0 0.0
    %2413 = vmatpush1.msra.mxu0 %v351
    %2414 = vmatprep.subr.mxu0 0.0
    %2415 = vmatpush1.msra.mxu0 %v352
    %2416 = vmatprep.subr.mxu0 0.0
    %2417 = vmatpush1.msra.mxu0 %v353
    %2418 = vmatprep.subr.mxu0 0.0
    %2419 = vmatpush1.msra.mxu0 %v354
    %2420 = vmatprep.subr.mxu0 0.0
    %2421 = vmatpush1.msra.mxu0 %v355
    %2422 = vmatprep.subr.mxu0 0.0
    %2423 = vmatpush1.msra.mxu0 %v356
    %2424 = vmatprep.subr.mxu0 0.0
    %2425 = vmatpush1.msra.mxu0 %v357
    %2426 = vmatprep.subr.mxu0 0.0
    %2427 = vmatpush1.msra.mxu0 %v358
    %2428 = vmatprep.subr.mxu0 0.0
    %2429 = vmatpush1.msra.mxu0 %v359
    %2430 = vmatprep.subr.mxu0 0.0
    %2431 = vmatpush1.msra.mxu0 %v360
    %2432 = vmatprep.mubr.f32.mxu0 %v1402
    %2433 = vmatmul.mubr.f32.gmra.mrb[0].mxu0 %v1400
    %v2434 = vpop.f32.mrb[0].mxu0
    %v2435 = vadd.f32 %v2365, %v2434
    %v2436 = vpop.f32.mrb[0].mxu0
    %2437 = vdwg.mxu0
    %2438 = vmatprep.subr.mxu0 0.0
    %2439 = vmatpush1.msra.mxu0 %v361
    %2440 = vmatprep.subr.mxu0 0.0
    %2441 = vmatpush1.msra.mxu0 %v362
    %2442 = vmatprep.subr.mxu0 0.0
    %2443 = vmatpush1.msra.mxu0 %v363
    %2444 = vmatprep.subr.mxu0 0.0
    %2445 = vmatpush1.msra.mxu0 %v364
    %2446 = vmatprep.subr.mxu0 0.0
    %2447 = vmatpush1.msra.mxu0 %v365
    %2448 = vmatprep.subr.mxu0 0.0
    %2449 = vmatpush1.msra.mxu0 %v366
    %2450 = vmatprep.subr.mxu0 0.0
    %2451 = vmatpush1.msra.mxu0 %v367
    %2452 = vmatprep.subr.mxu0 0.0
    %2453 = vmatpush1.msra.mxu0 %v368
    %2454 = vmatprep.subr.mxu0 0.0
    %2455 = vmatpush1.msra.mxu0 %v369
    %2456 = vmatprep.subr.mxu0 0.0
    %2457 = vmatpush1.msra.mxu0 %v370
    %2458 = vmatprep.subr.mxu0 0.0
    %2459 = vmatpush1.msra.mxu0 %v371
    %2460 = vmatprep.subr.mxu0 0.0
    %2461 = vmatpush1.msra.mxu0 %v372
    %2462 = vmatprep.subr.mxu0 0.0
    %2463 = vmatpush1.msra.mxu0 %v373
    %2464 = vmatprep.subr.mxu0 0.0
    %2465 = vmatpush1.msra.mxu0 %v374
    %2466 = vmatprep.subr.mxu0 0.0
    %2467 = vmatpush1.msra.mxu0 %v375
    %2468 = vmatprep.subr.mxu0 0.0
    %2469 = vmatpush1.msra.mxu0 %v376
    %2470 = vmatprep.subr.mxu0 0.0
    %2471 = vmatpush1.msra.mxu0 %v377
    %2472 = vmatprep.subr.mxu0 0.0
    %2473 = vmatpush1.msra.mxu0 %v378
    %2474 = vmatprep.subr.mxu0 0.0
    %2475 = vmatpush1.msra.mxu0 %v379
    %2476 = vmatprep.subr.mxu0 0.0
    %2477 = vmatpush1.msra.mxu0 %v380
    %2478 = vmatprep.subr.mxu0 0.0
    %2479 = vmatpush1.msra.mxu0 %v381
    %2480 = vmatprep.subr.mxu0 0.0
    %2481 = vmatpush1.msra.mxu0 %v382
    %2482 = vmatprep.subr.mxu0 0.0
    %2483 = vmatpush1.msra.mxu0 %v383
    %2484 = vmatprep.subr.mxu0 0.0
    %2485 = vmatpush1.msra.mxu0 %v384
    %2486 = vmatprep.subr.mxu0 0.0
    %2487 = vmatpush1.msra.mxu0 %v385
    %2488 = vmatprep.subr.mxu0 0.0
    %2489 = vmatpush1.msra.mxu0 %v386
    %2490 = vmatprep.subr.mxu0 0.0
    %2491 = vmatpush1.msra.mxu0 %v387
    %2492 = vmatprep.subr.mxu0 0.0
    %2493 = vmatpush1.msra.mxu0 %v388
    %2494 = vmatprep.subr.mxu0 0.0
    %2495 = vmatpush1.msra.mxu0 %v389
    %2496 = vmatprep.subr.mxu0 0.0
    %2497 = vmatpush1.msra.mxu0 %v390
    %2498 = vmatprep.subr.mxu0 0.0
    %2499 = vmatpush1.msra.mxu0 %v391
    %2500 = vmatprep.subr.mxu0 0.0
    %2501 = vmatpush1.msra.mxu0 %v392
    %2502 = vmatprep.mubr.f32.mxu0 %v1418
    %2503 = vmatmul.mubr.f32.gmra.mrb[0].mxu0 %v1410
    %v2504 = vpop.f32.mrb[0].mxu0
    %v2505 = vadd.f32 %v2435, %v2504
    %v2506 = vpop.f32.mrb[0].mxu0
    %2507 = vdwg.mxu0
    %2508 = vmatprep.subr.mxu0 0.0
    %2509 = vmatpush1.msra.mxu0 %v393
    %2510 = vmatprep.subr.mxu0 0.0
    %2511 = vmatpush1.msra.mxu0 %v394
    %2512 = vmatprep.subr.mxu0 0.0
    %2513 = vmatpush1.msra.mxu0 %v395
    %2514 = vmatprep.subr.mxu0 0.0
    %2515 = vmatpush1.msra.mxu0 %v396
    %2516 = vmatprep.subr.mxu0 0.0
    %2517 = vmatpush1.msra.mxu0 %v397
    %2518 = vmatprep.subr.mxu0 0.0
    %2519 = vmatpush1.msra.mxu0 %v398
    %2520 = vmatprep.subr.mxu0 0.0
    %2521 = vmatpush1.msra.mxu0 %v399
    %2522 = vmatprep.subr.mxu0 0.0
    %2523 = vmatpush1.msra.mxu0 %v400
    %2524 = vmatprep.subr.mxu0 0.0
    %2525 = vmatpush1.msra.mxu0 %v401
    %2526 = vmatprep.subr.mxu0 0.0
    %2527 = vmatpush1.msra.mxu0 %v402
    %2528 = vmatprep.subr.mxu0 0.0
    %2529 = vmatpush1.msra.mxu0 %v403
    %2530 = vmatprep.subr.mxu0 0.0
    %2531 = vmatpush1.msra.mxu0 %v404
    %2532 = vmatprep.subr.mxu0 0.0
    %2533 = vmatpush1.msra.mxu0 %v405
    %2534 = vmatprep.subr.mxu0 0.0
    %2535 = vmatpush1.msra.mxu0 %v406
    %2536 = vmatprep.subr.mxu0 0.0
    %2537 = vmatpush1.msra.mxu0 %v407
    %2538 = vmatprep.subr.mxu0 0.0
    %2539 = vmatpush1.msra.mxu0 %v408
    %2540 = vmatprep.subr.mxu0 0.0
    %2541 = vmatpush1.msra.mxu0 %v409
    %2542 = vmatprep.subr.mxu0 0.0
    %2543 = vmatpush1.msra.mxu0 %v410
    %2544 = vmatprep.subr.mxu0 0.0
    %2545 = vmatpush1.msra.mxu0 %v411
    %2546 = vmatprep.subr.mxu0 0.0
    %2547 = vmatpush1.msra.mxu0 %v412
    %2548 = vmatprep.subr.mxu0 0.0
    %2549 = vmatpush1.msra.mxu0 %v413
    %2550 = vmatprep.subr.mxu0 0.0
    %2551 = vmatpush1.msra.mxu0 %v414
    %2552 = vmatprep.subr.mxu0 0.0
    %2553 = vmatpush1.msra.mxu0 %v415
    %2554 = vmatprep.subr.mxu0 0.0
    %2555 = vmatpush1.msra.mxu0 %v416
    %2556 = vmatprep.subr.mxu0 0.0
    %2557 = vmatpush1.msra.mxu0 %v417
    %2558 = vmatprep.subr.mxu0 0.0
    %2559 = vmatpush1.msra.mxu0 %v418
    %2560 = vmatprep.subr.mxu0 0.0
    %2561 = vmatpush1.msra.mxu0 %v419
    %2562 = vmatprep.subr.mxu0 0.0
    %2563 = vmatpush1.msra.mxu0 %v420
    %2564 = vmatprep.subr.mxu0 0.0
    %2565 = vmatpush1.msra.mxu0 %v421
    %2566 = vmatprep.subr.mxu0 0.0
    %2567 = vmatpush1.msra.mxu0 %v422
    %2568 = vmatprep.subr.mxu0 0.0
    %2569 = vmatpush1.msra.mxu0 %v423
    %2570 = vmatprep.subr.mxu0 0.0
    %2571 = vmatpush1.msra.mxu0 %v424
    %2572 = vmatprep.mubr.f32.mxu0 %v1419
    %2573 = vmatmul.mubr.f32.gmra.mrb[0].mxu0 %v1417
    %v2574 = vpop.f32.mrb[0].mxu0
    %v2575 = vadd.f32 %v2505, %v2574
    %v2576 = vpop.f32.mrb[0].mxu0
    %2577 = vdwg.mxu0
    %2578 = vmatprep.subr.mxu0 0.0
    %2579 = vmatpush1.msra.mxu0 %v425
    %2580 = vmatprep.subr.mxu0 0.0
    %2581 = vmatpush1.msra.mxu0 %v426
    %2582 = vmatprep.subr.mxu0 0.0
    %2583 = vmatpush1.msra.mxu0 %v427
    %2584 = vmatprep.subr.mxu0 0.0
    %2585 = vmatpush1.msra.mxu0 %v428
    %2586 = vmatprep.subr.mxu0 0.0
    %2587 = vmatpush1.msra.mxu0 %v429
    %2588 = vmatprep.subr.mxu0 0.0
    %2589 = vmatpush1.msra.mxu0 %v430
    %2590 = vmatprep.subr.mxu0 0.0
    %2591 = vmatpush1.msra.mxu0 %v431
    %2592 = vmatprep.subr.mxu0 0.0
    %2593 = vmatpush1.msra.mxu0 %v432
    %2594 = vmatprep.subr.mxu0 0.0
    %2595 = vmatpush1.msra.mxu0 %v433
    %2596 = vmatprep.subr.mxu0 0.0
    %2597 = vmatpush1.msra.mxu0 %v434
    %2598 = vmatprep.subr.mxu0 0.0
    %2599 = vmatpush1.msra.mxu0 %v435
    %2600 = vmatprep.subr.mxu0 0.0
    %2601 = vmatpush1.msra.mxu0 %v436
    %2602 = vmatprep.subr.mxu0 0.0
    %2603 = vmatpush1.msra.mxu0 %v437
    %2604 = vmatprep.subr.mxu0 0.0
    %2605 = vmatpush1.msra.mxu0 %v438
    %2606 = vmatprep.subr.mxu0 0.0
    %2607 = vmatpush1.msra.mxu0 %v439
    %2608 = vmatprep.subr.mxu0 0.0
    %2609 = vmatpush1.msra.mxu0 %v440
    %2610 = vmatprep.subr.mxu0 0.0
    %2611 = vmatpush1.msra.mxu0 %v441
    %2612 = vmatprep.subr.mxu0 0.0
    %2613 = vmatpush1.msra.mxu0 %v442
    %2614 = vmatprep.subr.mxu0 0.0
    %2615 = vmatpush1.msra.mxu0 %v443
    %2616 = vmatprep.subr.mxu0 0.0
    %2617 = vmatpush1.msra.mxu0 %v444
    %2618 = vmatprep.subr.mxu0 0.0
    %2619 = vmatpush1.msra.mxu0 %v445
    %2620 = vmatprep.subr.mxu0 0.0
    %2621 = vmatpush1.msra.mxu0 %v446
    %2622 = vmatprep.subr.mxu0 0.0
    %2623 = vmatpush1.msra.mxu0 %v447
    %2624 = vmatprep.subr.mxu0 0.0
    %2625 = vmatpush1.msra.mxu0 %v448
    %2626 = vmatprep.subr.mxu0 0.0
    %2627 = vmatpush1.msra.mxu0 %v449
    %2628 = vmatprep.subr.mxu0 0.0
    %2629 = vmatpush1.msra.mxu0 %v450
    %2630 = vmatprep.subr.mxu0 0.0
    %2631 = vmatpush1.msra.mxu0 %v451
    %2632 = vmatprep.subr.mxu0 0.0
    %2633 = vmatpush1.msra.mxu0 %v452
    %2634 = vmatprep.subr.mxu0 0.0
    %2635 = vmatpush1.msra.mxu0 %v453
    %2636 = vmatprep.subr.mxu0 0.0
    %2637 = vmatpush1.msra.mxu0 %v454
    %2638 = vmatprep.subr.mxu0 0.0
    %2639 = vmatpush1.msra.mxu0 %v455
    %2640 = vmatprep.subr.mxu0 0.0
    %2641 = vmatpush1.msra.mxu0 %v456
    %2642 = vmatprep.mubr.f32.mxu0 %v1435
    %2643 = vmatmul.mubr.f32.gmra.mrb[0].mxu0 %v1427
    %v2644 = vpop.f32.mrb[0].mxu0
    %v2645 = vadd.f32 %v2575, %v2644
    %v2646 = vpop.f32.mrb[0].mxu0
    %2647 = vdwg.mxu0
    %2648 = vmatprep.subr.mxu0 0.0
    %2649 = vmatpush1.msra.mxu0 %v457
    %2650 = vmatprep.subr.mxu0 0.0
    %2651 = vmatpush1.msra.mxu0 %v458
    %2652 = vmatprep.subr.mxu0 0.0
    %2653 = vmatpush1.msra.mxu0 %v459
    %2654 = vmatprep.subr.mxu0 0.0
    %2655 = vmatpush1.msra.mxu0 %v460
    %2656 = vmatprep.subr.mxu0 0.0
    %2657 = vmatpush1.msra.mxu0 %v461
    %2658 = vmatprep.subr.mxu0 0.0
    %2659 = vmatpush1.msra.mxu0 %v462
    %2660 = vmatprep.subr.mxu0 0.0
    %2661 = vmatpush1.msra.mxu0 %v463
    %2662 = vmatprep.subr.mxu0 0.0
    %2663 = vmatpush1.msra.mxu0 %v464
    %2664 = vmatprep.subr.mxu0 0.0
    %2665 = vmatpush1.msra.mxu0 %v465
    %2666 = vmatprep.subr.mxu0 0.0
    %2667 = vmatpush1.msra.mxu0 %v466
    %2668 = vmatprep.subr.mxu0 0.0
    %2669 = vmatpush1.msra.mxu0 %v467
    %2670 = vmatprep.subr.mxu0 0.0
    %2671 = vmatpush1.msra.mxu0 %v468
    %2672 = vmatprep.subr.mxu0 0.0
    %2673 = vmatpush1.msra.mxu0 %v469
    %2674 = vmatprep.subr.mxu0 0.0
    %2675 = vmatpush1.msra.mxu0 %v470
    %2676 = vmatprep.subr.mxu0 0.0
    %2677 = vmatpush1.msra.mxu0 %v471
    %2678 = vmatprep.subr.mxu0 0.0
    %2679 = vmatpush1.msra.mxu0 %v472
    %2680 = vmatprep.subr.mxu0 0.0
    %2681 = vmatpush1.msra.mxu0 %v473
    %2682 = vmatprep.subr.mxu0 0.0
    %2683 = vmatpush1.msra.mxu0 %v474
    %2684 = vmatprep.subr.mxu0 0.0
    %2685 = vmatpush1.msra.mxu0 %v475
    %2686 = vmatprep.subr.mxu0 0.0
    %2687 = vmatpush1.msra.mxu0 %v476
    %2688 = vmatprep.subr.mxu0 0.0
    %2689 = vmatpush1.msra.mxu0 %v477
    %2690 = vmatprep.subr.mxu0 0.0
    %2691 = vmatpush1.msra.mxu0 %v478
    %2692 = vmatprep.subr.mxu0 0.0
    %2693 = vmatpush1.msra.mxu0 %v479
    %2694 = vmatprep.subr.mxu0 0.0
    %2695 = vmatpush1.msra.mxu0 %v480
    %2696 = vmatprep.subr.mxu0 0.0
    %2697 = vmatpush1.msra.mxu0 %v481
    %2698 = vmatprep.subr.mxu0 0.0
    %2699 = vmatpush1.msra.mxu0 %v482
    %2700 = vmatprep.subr.mxu0 0.0
    %2701 = vmatpush1.msra.mxu0 %v483
    %2702 = vmatprep.subr.mxu0 0.0
    %2703 = vmatpush1.msra.mxu0 %v484
    %2704 = vmatprep.subr.mxu0 0.0
    %2705 = vmatpush1.msra.mxu0 %v485
    %2706 = vmatprep.subr.mxu0 0.0
    %2707 = vmatpush1.msra.mxu0 %v486
    %2708 = vmatprep.subr.mxu0 0.0
    %2709 = vmatpush1.msra.mxu0 %v487
    %2710 = vmatprep.subr.mxu0 0.0
    %2711 = vmatpush1.msra.mxu0 %v488
    %2712 = vmatprep.mubr.f32.mxu0 %v1436
    %2713 = vmatmul.mubr.f32.gmra.mrb[0].mxu0 %v1434
    %v2714 = vpop.f32.mrb[0].mxu0
    %v2715 = vadd.f32 %v2645, %v2714
    %v2716 = vpop.f32.mrb[0].mxu0
    %2717 = vdwg.mxu0
    %2718 = vmatprep.subr.mxu0 0.0
    %2719 = vmatpush1.msra.mxu0 %v489
    %2720 = vmatprep.subr.mxu0 0.0
    %2721 = vmatpush1.msra.mxu0 %v490
    %2722 = vmatprep.subr.mxu0 0.0
    %2723 = vmatpush1.msra.mxu0 %v491
    %2724 = vmatprep.subr.mxu0 0.0
    %2725 = vmatpush1.msra.mxu0 %v492
    %2726 = vmatprep.subr.mxu0 0.0
    %2727 = vmatpush1.msra.mxu0 %v493
    %2728 = vmatprep.subr.mxu0 0.0
    %2729 = vmatpush1.msra.mxu0 %v494
    %2730 = vmatprep.subr.mxu0 0.0
    %2731 = vmatpush1.msra.mxu0 %v495
    %2732 = vmatprep.subr.mxu0 0.0
    %2733 = vmatpush1.msra.mxu0 %v496
    %2734 = vmatprep.subr.mxu0 0.0
    %2735 = vmatpush1.msra.mxu0 %v497
    %2736 = vmatprep.subr.mxu0 0.0
    %2737 = vmatpush1.msra.mxu0 %v498
    %2738 = vmatprep.subr.mxu0 0.0
    %2739 = vmatpush1.msra.mxu0 %v499
    %2740 = vmatprep.subr.mxu0 0.0
    %2741 = vmatpush1.msra.mxu0 %v500
    %2742 = vmatprep.subr.mxu0 0.0
    %2743 = vmatpush1.msra.mxu0 %v501
    %2744 = vmatprep.subr.mxu0 0.0
    %2745 = vmatpush1.msra.mxu0 %v502
    %2746 = vmatprep.subr.mxu0 0.0
    %2747 = vmatpush1.msra.mxu0 %v503
    %2748 = vmatprep.subr.mxu0 0.0
    %2749 = vmatpush1.msra.mxu0 %v504
    %2750 = vmatprep.subr.mxu0 0.0
    %2751 = vmatpush1.msra.mxu0 %v505
    %2752 = vmatprep.subr.mxu0 0.0
    %2753 = vmatpush1.msra.mxu0 %v506
    %2754 = vmatprep.subr.mxu0 0.0
    %2755 = vmatpush1.msra.mxu0 %v507
    %2756 = vmatprep.subr.mxu0 0.0
    %2757 = vmatpush1.msra.mxu0 %v508
    %2758 = vmatprep.subr.mxu0 0.0
    %2759 = vmatpush1.msra.mxu0 %v509
    %2760 = vmatprep.subr.mxu0 0.0
    %2761 = vmatpush1.msra.mxu0 %v510
    %2762 = vmatprep.subr.mxu0 0.0
    %2763 = vmatpush1.msra.mxu0 %v511
    %2764 = vmatprep.subr.mxu0 0.0
    %2765 = vmatpush1.msra.mxu0 %v512
    %2766 = vmatprep.subr.mxu0 0.0
    %2767 = vmatpush1.msra.mxu0 %v513
    %2768 = vmatprep.subr.mxu0 0.0
    %2769 = vmatpush1.msra.mxu0 %v514
    %2770 = vmatprep.subr.mxu0 0.0
    %2771 = vmatpush1.msra.mxu0 %v515
    %2772 = vmatprep.subr.mxu0 0.0
    %2773 = vmatpush1.msra.mxu0 %v516
    %2774 = vmatprep.subr.mxu0 0.0
    %2775 = vmatpush1.msra.mxu0 %v517
    %2776 = vmatprep.subr.mxu0 0.0
    %2777 = vmatpush1.msra.mxu0 %v518
    %2778 = vmatprep.subr.mxu0 0.0
    %2779 = vmatpush1.msra.mxu0 %v519
    %2780 = vmatprep.subr.mxu0 0.0
    %2781 = vmatpush1.msra.mxu0 %v520
    %2782 = vmatprep.mubr.f32.mxu0 %v1452
    %2783 = vmatmul.mubr.f32.gmra.mrb[0].mxu0 %v1444
    %v2784 = vpop.f32.mrb[0].mxu0
    %v2785 = vadd.f32 %v2715, %v2784
    %v2786 = vpop.f32.mrb[0].mxu0
    %2787 = vdwg.mxu0
    %2788 = vmatprep.subr.mxu0 0.0
    %2789 = vmatpush1.msra.mxu0 %v521
    %2790 = vmatprep.subr.mxu0 0.0
    %2791 = vmatpush1.msra.mxu0 %v522
    %2792 = vmatprep.subr.mxu0 0.0
    %2793 = vmatpush1.msra.mxu0 %v523
    %2794 = vmatprep.subr.mxu0 0.0
    %2795 = vmatpush1.msra.mxu0 %v524
    %2796 = vmatprep.subr.mxu0 0.0
    %2797 = vmatpush1.msra.mxu0 %v525
    %2798 = vmatprep.subr.mxu0 0.0
    %2799 = vmatpush1.msra.mxu0 %v526
    %2800 = vmatprep.subr.mxu0 0.0
    %2801 = vmatpush1.msra.mxu0 %v527
    %2802 = vmatprep.subr.mxu0 0.0
    %2803 = vmatpush1.msra.mxu0 %v528
    %2804 = vmatprep.subr.mxu0 0.0
    %2805 = vmatpush1.msra.mxu0 %v529
    %2806 = vmatprep.subr.mxu0 0.0
    %2807 = vmatpush1.msra.mxu0 %v530
    %2808 = vmatprep.subr.mxu0 0.0
    %2809 = vmatpush1.msra.mxu0 %v531
    %2810 = vmatprep.subr.mxu0 0.0
    %2811 = vmatpush1.msra.mxu0 %v532
    %2812 = vmatprep.subr.mxu0 0.0
    %2813 = vmatpush1.msra.mxu0 %v533
    %2814 = vmatprep.subr.mxu0 0.0
    %2815 = vmatpush1.msra.mxu0 %v534
    %2816 = vmatprep.subr.mxu0 0.0
    %2817 = vmatpush1.msra.mxu0 %v535
    %2818 = vmatprep.subr.mxu0 0.0
    %2819 = vmatpush1.msra.mxu0 %v536
    %2820 = vmatprep.subr.mxu0 0.0
    %2821 = vmatpush1.msra.mxu0 %v537
    %2822 = vmatprep.subr.mxu0 0.0
    %2823 = vmatpush1.msra.mxu0 %v538
    %2824 = vmatprep.subr.mxu0 0.0
    %2825 = vmatpush1.msra.mxu0 %v539
    %2826 = vmatprep.subr.mxu0 0.0
    %2827 = vmatpush1.msra.mxu0 %v540
    %2828 = vmatprep.subr.mxu0 0.0
    %2829 = vmatpush1.msra.mxu0 %v541
    %2830 = vmatprep.subr.mxu0 0.0
    %2831 = vmatpush1.msra.mxu0 %v542
    %2832 = vmatprep.subr.mxu0 0.0
    %2833 = vmatpush1.msra.mxu0 %v543
    %2834 = vmatprep.subr.mxu0 0.0
    %2835 = vmatpush1.msra.mxu0 %v544
    %2836 = vmatprep.subr.mxu0 0.0
    %2837 = vmatpush1.msra.mxu0 %v545
    %2838 = vmatprep.subr.mxu0 0.0
    %2839 = vmatpush1.msra.mxu0 %v546
    %2840 = vmatprep.subr.mxu0 0.0
    %2841 = vmatpush1.msra.mxu0 %v547
    %2842 = vmatprep.subr.mxu0 0.0
    %2843 = vmatpush1.msra.mxu0 %v548
    %2844 = vmatprep.subr.mxu0 0.0
    %2845 = vmatpush1.msra.mxu0 %v549
    %2846 = vmatprep.subr.mxu0 0.0
    %2847 = vmatpush1.msra.mxu0 %v550
    %2848 = vmatprep.subr.mxu0 0.0
    %2849 = vmatpush1.msra.mxu0 %v551
    %2850 = vmatprep.subr.mxu0 0.0
    %2851 = vmatpush1.msra.mxu0 %v552
    %2852 = vmatprep.mubr.f32.mxu0 %v1453
    %2853 = vmatmul.mubr.f32.gmra.mrb[0].mxu0 %v1451
    %v2854 = vpop.f32.mrb[0].mxu0
    %v2855 = vadd.f32 %v2785, %v2854
    %v2856 = vpop.f32.mrb[0].mxu0
    %2857 = vdwg.mxu0
    %2858 = vmatprep.subr.mxu0 0.0
    %2859 = vmatpush1.msra.mxu0 %v553
    %2860 = vmatprep.subr.mxu0 0.0
    %2861 = vmatpush1.msra.mxu0 %v554
    %2862 = vmatprep.subr.mxu0 0.0
    %2863 = vmatpush1.msra.mxu0 %v555
    %2864 = vmatprep.subr.mxu0 0.0
    %2865 = vmatpush1.msra.mxu0 %v556
    %2866 = vmatprep.subr.mxu0 0.0
    %2867 = vmatpush1.msra.mxu0 %v557
    %2868 = vmatprep.subr.mxu0 0.0
    %2869 = vmatpush1.msra.mxu0 %v558
    %2870 = vmatprep.subr.mxu0 0.0
    %2871 = vmatpush1.msra.mxu0 %v559
    %2872 = vmatprep.subr.mxu0 0.0
    %2873 = vmatpush1.msra.mxu0 %v560
    %2874 = vmatprep.subr.mxu0 0.0
    %2875 = vmatpush1.msra.mxu0 %v561
    %2876 = vmatprep.subr.mxu0 0.0
    %2877 = vmatpush1.msra.mxu0 %v562
    %2878 = vmatprep.subr.mxu0 0.0
    %2879 = vmatpush1.msra.mxu0 %v563
    %2880 = vmatprep.subr.mxu0 0.0
    %2881 = vmatpush1.msra.mxu0 %v564
    %2882 = vmatprep.subr.mxu0 0.0
    %2883 = vmatpush1.msra.mxu0 %v565
    %2884 = vmatprep.subr.mxu0 0.0
    %2885 = vmatpush1.msra.mxu0 %v566
    %2886 = vmatprep.subr.mxu0 0.0
    %2887 = vmatpush1.msra.mxu0 %v567
    %2888 = vmatprep.subr.mxu0 0.0
    %2889 = vmatpush1.msra.mxu0 %v568
    %2890 = vmatprep.subr.mxu0 0.0
    %2891 = vmatpush1.msra.mxu0 %v569
    %2892 = vmatprep.subr.mxu0 0.0
    %2893 = vmatpush1.msra.mxu0 %v570
    %2894 = vmatprep.subr.mxu0 0.0
    %2895 = vmatpush1.msra.mxu0 %v571
    %2896 = vmatprep.subr.mxu0 0.0
    %2897 = vmatpush1.msra.mxu0 %v572
    %2898 = vmatprep.subr.mxu0 0.0
    %2899 = vmatpush1.msra.mxu0 %v573
    %2900 = vmatprep.subr.mxu0 0.0
    %2901 = vmatpush1.msra.mxu0 %v574
    %2902 = vmatprep.subr.mxu0 0.0
    %2903 = vmatpush1.msra.mxu0 %v575
    %2904 = vmatprep.subr.mxu0 0.0
    %2905 = vmatpush1.msra.mxu0 %v576
    %2906 = vmatprep.subr.mxu0 0.0
    %2907 = vmatpush1.msra.mxu0 %v577
    %2908 = vmatprep.subr.mxu0 0.0
    %2909 = vmatpush1.msra.mxu0 %v578
    %2910 = vmatprep.subr.mxu0 0.0
    %2911 = vmatpush1.msra.mxu0 %v579
    %2912 = vmatprep.subr.mxu0 0.0
    %2913 = vmatpush1.msra.mxu0 %v580
    %2914 = vmatprep.subr.mxu0 0.0
    %2915 = vmatpush1.msra.mxu0 %v581
    %2916 = vmatprep.subr.mxu0 0.0
    %2917 = vmatpush1.msra.mxu0 %v582
    %2918 = vmatprep.subr.mxu0 0.0
    %2919 = vmatpush1.msra.mxu0 %v583
    %2920 = vmatprep.subr.mxu0 0.0
    %2921 = vmatpush1.msra.mxu0 %v584
    %2922 = vmatprep.mubr.f32.mxu0 %v1469
    %2923 = vmatmul.mubr.f32.gmra.mrb[0].mxu0 %v1461
    %v2924 = vpop.f32.mrb[0].mxu0
    %v2925 = vadd.f32 %v2855, %v2924
    %v2926 = vpop.f32.mrb[0].mxu0
    %2927 = vdwg.mxu0
    %2928 = vmatprep.subr.mxu0 0.0
    %2929 = vmatpush1.msra.mxu0 %v585
    %2930 = vmatprep.subr.mxu0 0.0
    %2931 = vmatpush1.msra.mxu0 %v586
    %2932 = vmatprep.subr.mxu0 0.0
    %2933 = vmatpush1.msra.mxu0 %v587
    %2934 = vmatprep.subr.mxu0 0.0
    %2935 = vmatpush1.msra.mxu0 %v588
    %2936 = vmatprep.subr.mxu0 0.0
    %2937 = vmatpush1.msra.mxu0 %v589
    %2938 = vmatprep.subr.mxu0 0.0
    %2939 = vmatpush1.msra.mxu0 %v590
    %2940 = vmatprep.subr.mxu0 0.0
    %2941 = vmatpush1.msra.mxu0 %v591
    %2942 = vmatprep.subr.mxu0 0.0
    %2943 = vmatpush1.msra.mxu0 %v592
    %2944 = vmatprep.subr.mxu0 0.0
    %2945 = vmatpush1.msra.mxu0 %v593
    %2946 = vmatprep.subr.mxu0 0.0
    %2947 = vmatpush1.msra.mxu0 %v594
    %2948 = vmatprep.subr.mxu0 0.0
    %2949 = vmatpush1.msra.mxu0 %v595
    %2950 = vmatprep.subr.mxu0 0.0
    %2951 = vmatpush1.msra.mxu0 %v596
    %2952 = vmatprep.subr.mxu0 0.0
    %2953 = vmatpush1.msra.mxu0 %v597
    %2954 = vmatprep.subr.mxu0 0.0
    %2955 = vmatpush1.msra.mxu0 %v598
    %2956 = vmatprep.subr.mxu0 0.0
    %2957 = vmatpush1.msra.mxu0 %v599
    %2958 = vmatprep.subr.mxu0 0.0
    %2959 = vmatpush1.msra.mxu0 %v600
    %2960 = vmatprep.subr.mxu0 0.0
    %2961 = vmatpush1.msra.mxu0 %v601
    %2962 = vmatprep.subr.mxu0 0.0
    %2963 = vmatpush1.msra.mxu0 %v602
    %2964 = vmatprep.subr.mxu0 0.0
    %2965 = vmatpush1.msra.mxu0 %v603
    %2966 = vmatprep.subr.mxu0 0.0
    %2967 = vmatpush1.msra.mxu0 %v604
    %2968 = vmatprep.subr.mxu0 0.0
    %2969 = vmatpush1.msra.mxu0 %v605
    %2970 = vmatprep.subr.mxu0 0.0
    %2971 = vmatpush1.msra.mxu0 %v606
    %2972 = vmatprep.subr.mxu0 0.0
    %2973 = vmatpush1.msra.mxu0 %v607
    %2974 = vmatprep.subr.mxu0 0.0
    %2975 = vmatpush1.msra.mxu0 %v608
    %2976 = vmatprep.subr.mxu0 0.0
    %2977 = vmatpush1.msra.mxu0 %v609
    %2978 = vmatprep.subr.mxu0 0.0
    %2979 = vmatpush1.msra.mxu0 %v610
    %2980 = vmatprep.subr.mxu0 0.0
    %2981 = vmatpush1.msra.mxu0 %v611
    %2982 = vmatprep.subr.mxu0 0.0
    %2983 = vmatpush1.msra.mxu0 %v612
    %2984 = vmatprep.subr.mxu0 0.0
    %2985 = vmatpush1.msra.mxu0 %v613
    %2986 = vmatprep.subr.mxu0 0.0
    %2987 = vmatpush1.msra.mxu0 %v614
    %2988 = vmatprep.subr.mxu0 0.0
    %2989 = vmatpush1.msra.mxu0 %v615
    %2990 = vmatprep.subr.mxu0 0.0
    %2991 = vmatpush1.msra.mxu0 %v616
    %2992 = vmatprep.mubr.f32.mxu0 %v1470
    %2993 = vmatmul.mubr.f32.gmra.mrb[0].mxu0 %v1468
    %v2994 = vpop.f32.mrb[0].mxu0
    %v2995 = vadd.f32 %v2925, %v2994
    %v2996 = vpop.f32.mrb[0].mxu0
    %2997 = vdwg.mxu0
    %2998 = vmatprep.subr.mxu0 0.0
    %2999 = vmatpush1.msra.mxu0 %v617
    %3000 = vmatprep.subr.mxu0 0.0
    %3001 = vmatpush1.msra.mxu0 %v618
    %3002 = vmatprep.subr.mxu0 0.0
    %3003 = vmatpush1.msra.mxu0 %v619
    %3004 = vmatprep.subr.mxu0 0.0
    %3005 = vmatpush1.msra.mxu0 %v620
    %3006 = vmatprep.subr.mxu0 0.0
    %3007 = vmatpush1.msra.mxu0 %v621
    %3008 = vmatprep.subr.mxu0 0.0
    %3009 = vmatpush1.msra.mxu0 %v622
    %3010 = vmatprep.subr.mxu0 0.0
    %3011 = vmatpush1.msra.mxu0 %v623
    %3012 = vmatprep.subr.mxu0 0.0
    %3013 = vmatpush1.msra.mxu0 %v624
    %3014 = vmatprep.subr.mxu0 0.0
    %3015 = vmatpush1.msra.mxu0 %v625
    %3016 = vmatprep.subr.mxu0 0.0
    %3017 = vmatpush1.msra.mxu0 %v626
    %3018 = vmatprep.subr.mxu0 0.0
    %3019 = vmatpush1.msra.mxu0 %v627
    %3020 = vmatprep.subr.mxu0 0.0
    %3021 = vmatpush1.msra.mxu0 %v628
    %3022 = vmatprep.subr.mxu0 0.0
    %3023 = vmatpush1.msra.mxu0 %v629
    %3024 = vmatprep.subr.mxu0 0.0
    %3025 = vmatpush1.msra.mxu0 %v630
    %3026 = vmatprep.subr.mxu0 0.0
    %3027 = vmatpush1.msra.mxu0 %v631
    %3028 = vmatprep.subr.mxu0 0.0
    %3029 = vmatpush1.msra.mxu0 %v632
    %3030 = vmatprep.subr.mxu0 0.0
    %3031 = vmatpush1.msra.mxu0 %v633
    %3032 = vmatprep.subr.mxu0 0.0
    %3033 = vmatpush1.msra.mxu0 %v634
    %3034 = vmatprep.subr.mxu0 0.0
    %3035 = vmatpush1.msra.mxu0 %v635
    %3036 = vmatprep.subr.mxu0 0.0
    %3037 = vmatpush1.msra.mxu0 %v636
    %3038 = vmatprep.subr.mxu0 0.0
    %3039 = vmatpush1.msra.mxu0 %v637
    %3040 = vmatprep.subr.mxu0 0.0
    %3041 = vmatpush1.msra.mxu0 %v638
    %3042 = vmatprep.subr.mxu0 0.0
    %3043 = vmatpush1.msra.mxu0 %v639
    %3044 = vmatprep.subr.mxu0 0.0
    %3045 = vmatpush1.msra.mxu0 %v640
    %3046 = vmatprep.subr.mxu0 0.0
    %3047 = vmatpush1.msra.mxu0 %v641
    %3048 = vmatprep.subr.mxu0 0.0
    %3049 = vmatpush1.msra.mxu0 %v642
    %3050 = vmatprep.subr.mxu0 0.0
    %3051 = vmatpush1.msra.mxu0 %v643
    %3052 = vmatprep.subr.mxu0 0.0
    %3053 = vmatpush1.msra.mxu0 %v644
    %3054 = vmatprep.subr.mxu0 0.0
    %3055 = vmatpush1.msra.mxu0 %v645
    %3056 = vmatprep.subr.mxu0 0.0
    %3057 = vmatpush1.msra.mxu0 %v646
    %3058 = vmatprep.subr.mxu0 0.0
    %3059 = vmatpush1.msra.mxu0 %v647
    %3060 = vmatprep.subr.mxu0 0.0
    %3061 = vmatpush1.msra.mxu0 %v648
    %3062 = vmatprep.mubr.f32.mxu0 %v1486
    %3063 = vmatmul.mubr.f32.gmra.mrb[0].mxu0 %v1478
    %v3064 = vpop.f32.mrb[0].mxu0
    %v3065 = vadd.f32 %v2995, %v3064
    %v3066 = vpop.f32.mrb[0].mxu0
    %3067 = vdwg.mxu0
    %3068 = vmatprep.subr.mxu0 0.0
    %3069 = vmatpush1.msra.mxu0 %v649
    %3070 = vmatprep.subr.mxu0 0.0
    %3071 = vmatpush1.msra.mxu0 %v650
    %3072 = vmatprep.subr.mxu0 0.0
    %3073 = vmatpush1.msra.mxu0 %v651
    %3074 = vmatprep.subr.mxu0 0.0
    %3075 = vmatpush1.msra.mxu0 %v652
    %3076 = vmatprep.subr.mxu0 0.0
    %3077 = vmatpush1.msra.mxu0 %v653
    %3078 = vmatprep.subr.mxu0 0.0
    %3079 = vmatpush1.msra.mxu0 %v654
    %3080 = vmatprep.subr.mxu0 0.0
    %3081 = vmatpush1.msra.mxu0 %v655
    %3082 = vmatprep.subr.mxu0 0.0
    %3083 = vmatpush1.msra.mxu0 %v656
    %3084 = vmatprep.subr.mxu0 0.0
    %3085 = vmatpush1.msra.mxu0 %v657
    %3086 = vmatprep.subr.mxu0 0.0
    %3087 = vmatpush1.msra.mxu0 %v658
    %3088 = vmatprep.subr.mxu0 0.0
    %3089 = vmatpush1.msra.mxu0 %v659
    %3090 = vmatprep.subr.mxu0 0.0
    %3091 = vmatpush1.msra.mxu0 %v660
    %3092 = vmatprep.subr.mxu0 0.0
    %3093 = vmatpush1.msra.mxu0 %v661
    %3094 = vmatprep.subr.mxu0 0.0
    %3095 = vmatpush1.msra.mxu0 %v662
    %3096 = vmatprep.subr.mxu0 0.0
    %3097 = vmatpush1.msra.mxu0 %v663
    %3098 = vmatprep.subr.mxu0 0.0
    %3099 = vmatpush1.msra.mxu0 %v664
    %3100 = vmatprep.subr.mxu0 0.0
    %3101 = vmatpush1.msra.mxu0 %v665
    %3102 = vmatprep.subr.mxu0 0.0
    %3103 = vmatpush1.msra.mxu0 %v666
    %3104 = vmatprep.subr.mxu0 0.0
    %3105 = vmatpush1.msra.mxu0 %v667
    %3106 = vmatprep.subr.mxu0 0.0
    %3107 = vmatpush1.msra.mxu0 %v668
    %3108 = vmatprep.subr.mxu0 0.0
    %3109 = vmatpush1.msra.mxu0 %v669
    %3110 = vmatprep.subr.mxu0 0.0
    %3111 = vmatpush1.msra.mxu0 %v670
    %3112 = vmatprep.subr.mxu0 0.0
    %3113 = vmatpush1.msra.mxu0 %v671
    %3114 = vmatprep.subr.mxu0 0.0
    %3115 = vmatpush1.msra.mxu0 %v672
    %3116 = vmatprep.subr.mxu0 0.0
    %3117 = vmatpush1.msra.mxu0 %v673
    %3118 = vmatprep.subr.mxu0 0.0
    %3119 = vmatpush1.msra.mxu0 %v674
    %3120 = vmatprep.subr.mxu0 0.0
    %3121 = vmatpush1.msra.mxu0 %v675
    %3122 = vmatprep.subr.mxu0 0.0
    %3123 = vmatpush1.msra.mxu0 %v676
    %3124 = vmatprep.subr.mxu0 0.0
    %3125 = vmatpush1.msra.mxu0 %v677
    %3126 = vmatprep.subr.mxu0 0.0
    %3127 = vmatpush1.msra.mxu0 %v678
    %3128 = vmatprep.subr.mxu0 0.0
    %3129 = vmatpush1.msra.mxu0 %v679
    %3130 = vmatprep.subr.mxu0 0.0
    %3131 = vmatpush1.msra.mxu0 %v680
    %3132 = vmatprep.mubr.f32.mxu0 %v1487
    %3133 = vmatmul.mubr.f32.gmra.mrb[0].mxu0 %v1485
    %v3134 = vpop.f32.mrb[0].mxu0
    %v3135 = vadd.f32 %v3065, %v3134
    %v3136 = vpop.f32.mrb[0].mxu0
    %3137 = vdwg.mxu0
    %3138 = vmatprep.subr.mxu0 0.0
    %3139 = vmatpush1.msra.mxu0 %v681
    %3140 = vmatprep.subr.mxu0 0.0
    %3141 = vmatpush1.msra.mxu0 %v682
    %3142 = vmatprep.subr.mxu0 0.0
    %3143 = vmatpush1.msra.mxu0 %v683
    %3144 = vmatprep.subr.mxu0 0.0
    %3145 = vmatpush1.msra.mxu0 %v684
    %3146 = vmatprep.subr.mxu0 0.0
    %3147 = vmatpush1.msra.mxu0 %v685
    %3148 = vmatprep.subr.mxu0 0.0
    %3149 = vmatpush1.msra.mxu0 %v686
    %3150 = vmatprep.subr.mxu0 0.0
    %3151 = vmatpush1.msra.mxu0 %v687
    %3152 = vmatprep.subr.mxu0 0.0
    %3153 = vmatpush1.msra.mxu0 %v688
    %3154 = vmatprep.subr.mxu0 0.0
    %3155 = vmatpush1.msra.mxu0 %v689
    %3156 = vmatprep.subr.mxu0 0.0
    %3157 = vmatpush1.msra.mxu0 %v690
    %3158 = vmatprep.subr.mxu0 0.0
    %3159 = vmatpush1.msra.mxu0 %v691
    %3160 = vmatprep.subr.mxu0 0.0
    %3161 = vmatpush1.msra.mxu0 %v692
    %3162 = vmatprep.subr.mxu0 0.0
    %3163 = vmatpush1.msra.mxu0 %v693
    %3164 = vmatprep.subr.mxu0 0.0
    %3165 = vmatpush1.msra.mxu0 %v694
    %3166 = vmatprep.subr.mxu0 0.0
    %3167 = vmatpush1.msra.mxu0 %v695
    %3168 = vmatprep.subr.mxu0 0.0
    %3169 = vmatpush1.msra.mxu0 %v696
    %3170 = vmatprep.subr.mxu0 0.0
    %3171 = vmatpush1.msra.mxu0 %v697
    %3172 = vmatprep.subr.mxu0 0.0
    %3173 = vmatpush1.msra.mxu0 %v698
    %3174 = vmatprep.subr.mxu0 0.0
    %3175 = vmatpush1.msra.mxu0 %v699
    %3176 = vmatprep.subr.mxu0 0.0
    %3177 = vmatpush1.msra.mxu0 %v700
    %3178 = vmatprep.subr.mxu0 0.0
    %3179 = vmatpush1.msra.mxu0 %v701
    %3180 = vmatprep.subr.mxu0 0.0
    %3181 = vmatpush1.msra.mxu0 %v702
    %3182 = vmatprep.subr.mxu0 0.0
    %3183 = vmatpush1.msra.mxu0 %v703
    %3184 = vmatprep.subr.mxu0 0.0
    %3185 = vmatpush1.msra.mxu0 %v704
    %3186 = vmatprep.subr.mxu0 0.0
    %3187 = vmatpush1.msra.mxu0 %v705
    %3188 = vmatprep.subr.mxu0 0.0
    %3189 = vmatpush1.msra.mxu0 %v706
    %3190 = vmatprep.subr.mxu0 0.0
    %3191 = vmatpush1.msra.mxu0 %v707
    %3192 = vmatprep.subr.mxu0 0.0
    %3193 = vmatpush1.msra.mxu0 %v708
    %3194 = vmatprep.subr.mxu0 0.0
    %3195 = vmatpush1.msra.mxu0 %v709
    %3196 = vmatprep.subr.mxu0 0.0
    %3197 = vmatpush1.msra.mxu0 %v710
    %3198 = vmatprep.subr.mxu0 0.0
    %3199 = vmatpush1.msra.mxu0 %v711
    %3200 = vmatprep.subr.mxu0 0.0
    %3201 = vmatpush1.msra.mxu0 %v712
    %3202 = vmatprep.mubr.f32.mxu0 %v1503
    %3203 = vmatmul.mubr.f32.gmra.mrb[0].mxu0 %v1495
    %v3204 = vpop.f32.mrb[0].mxu0
    %v3205 = vadd.f32 %v3135, %v3204
    %v3206 = vpop.f32.mrb[0].mxu0
    %3207 = vdwg.mxu0
    %3208 = vmatprep.subr.mxu0 0.0
    %3209 = vmatpush1.msra.mxu0 %v713
    %3210 = vmatprep.subr.mxu0 0.0
    %3211 = vmatpush1.msra.mxu0 %v714
    %3212 = vmatprep.subr.mxu0 0.0
    %3213 = vmatpush1.msra.mxu0 %v715
    %3214 = vmatprep.subr.mxu0 0.0
    %3215 = vmatpush1.msra.mxu0 %v716
    %3216 = vmatprep.subr.mxu0 0.0
    %3217 = vmatpush1.msra.mxu0 %v717
    %3218 = vmatprep.subr.mxu0 0.0
    %3219 = vmatpush1.msra.mxu0 %v718
    %3220 = vmatprep.subr.mxu0 0.0
    %3221 = vmatpush1.msra.mxu0 %v719
    %3222 = vmatprep.subr.mxu0 0.0
    %3223 = vmatpush1.msra.mxu0 %v720
    %3224 = vmatprep.subr.mxu0 0.0
    %3225 = vmatpush1.msra.mxu0 %v721
    %3226 = vmatprep.subr.mxu0 0.0
    %3227 = vmatpush1.msra.mxu0 %v722
    %3228 = vmatprep.subr.mxu0 0.0
    %3229 = vmatpush1.msra.mxu0 %v723
    %3230 = vmatprep.subr.mxu0 0.0
    %3231 = vmatpush1.msra.mxu0 %v724
    %3232 = vmatprep.subr.mxu0 0.0
    %3233 = vmatpush1.msra.mxu0 %v725
    %3234 = vmatprep.subr.mxu0 0.0
    %3235 = vmatpush1.msra.mxu0 %v726
    %3236 = vmatprep.subr.mxu0 0.0
    %3237 = vmatpush1.msra.mxu0 %v727
    %3238 = vmatprep.subr.mxu0 0.0
    %3239 = vmatpush1.msra.mxu0 %v728
    %3240 = vmatprep.subr.mxu0 0.0
    %3241 = vmatpush1.msra.mxu0 %v729
    %3242 = vmatprep.subr.mxu0 0.0
    %3243 = vmatpush1.msra.mxu0 %v730
    %3244 = vmatprep.subr.mxu0 0.0
    %3245 = vmatpush1.msra.mxu0 %v731
    %3246 = vmatprep.subr.mxu0 0.0
    %3247 = vmatpush1.msra.mxu0 %v732
    %3248 = vmatprep.subr.mxu0 0.0
    %3249 = vmatpush1.msra.mxu0 %v733
    %3250 = vmatprep.subr.mxu0 0.0
    %3251 = vmatpush1.msra.mxu0 %v734
    %3252 = vmatprep.subr.mxu0 0.0
    %3253 = vmatpush1.msra.mxu0 %v735
    %3254 = vmatprep.subr.mxu0 0.0
    %3255 = vmatpush1.msra.mxu0 %v736
    %3256 = vmatprep.subr.mxu0 0.0
    %3257 = vmatpush1.msra.mxu0 %v737
    %3258 = vmatprep.subr.mxu0 0.0
    %3259 = vmatpush1.msra.mxu0 %v738
    %3260 = vmatprep.subr.mxu0 0.0
    %3261 = vmatpush1.msra.mxu0 %v739
    %3262 = vmatprep.subr.mxu0 0.0
    %3263 = vmatpush1.msra.mxu0 %v740
    %3264 = vmatprep.subr.mxu0 0.0
    %3265 = vmatpush1.msra.mxu0 %v741
    %3266 = vmatprep.subr.mxu0 0.0
    %3267 = vmatpush1.msra.mxu0 %v742
    %3268 = vmatprep.subr.mxu0 0.0
    %3269 = vmatpush1.msra.mxu0 %v743
    %3270 = vmatprep.subr.mxu0 0.0
    %3271 = vmatpush1.msra.mxu0 %v744
    %3272 = vmatprep.mubr.f32.mxu0 %v1504
    %3273 = vmatmul.mubr.f32.gmra.mrb[0].mxu0 %v1502
    %v3274 = vpop.f32.mrb[0].mxu0
    %v3275 = vadd.f32 %v3205, %v3274
    %v3276 = vpop.f32.mrb[0].mxu0
    %3277 = vdwg.mxu0
    %3278 = vmatprep.subr.mxu0 0.0
    %3279 = vmatpush1.msra.mxu0 %v745
    %3280 = vmatprep.subr.mxu0 0.0
    %3281 = vmatpush1.msra.mxu0 %v746
    %3282 = vmatprep.subr.mxu0 0.0
    %3283 = vmatpush1.msra.mxu0 %v747
    %3284 = vmatprep.subr.mxu0 0.0
    %3285 = vmatpush1.msra.mxu0 %v748
    %3286 = vmatprep.subr.mxu0 0.0
    %3287 = vmatpush1.msra.mxu0 %v749
    %3288 = vmatprep.subr.mxu0 0.0
    %3289 = vmatpush1.msra.mxu0 %v750
    %3290 = vmatprep.subr.mxu0 0.0
    %3291 = vmatpush1.msra.mxu0 %v751
    %3292 = vmatprep.subr.mxu0 0.0
    %3293 = vmatpush1.msra.mxu0 %v752
    %3294 = vmatprep.subr.mxu0 0.0
    %3295 = vmatpush1.msra.mxu0 %v753
    %3296 = vmatprep.subr.mxu0 0.0
    %3297 = vmatpush1.msra.mxu0 %v754
    %3298 = vmatprep.subr.mxu0 0.0
    %3299 = vmatpush1.msra.mxu0 %v755
    %3300 = vmatprep.subr.mxu0 0.0
    %3301 = vmatpush1.msra.mxu0 %v756
    %3302 = vmatprep.subr.mxu0 0.0
    %3303 = vmatpush1.msra.mxu0 %v757
    %3304 = vmatprep.subr.mxu0 0.0
    %3305 = vmatpush1.msra.mxu0 %v758
    %3306 = vmatprep.subr.mxu0 0.0
    %3307 = vmatpush1.msra.mxu0 %v759
    %3308 = vmatprep.subr.mxu0 0.0
    %3309 = vmatpush1.msra.mxu0 %v760
    %3310 = vmatprep.subr.mxu0 0.0
    %3311 = vmatpush1.msra.mxu0 %v761
    %3312 = vmatprep.subr.mxu0 0.0
    %3313 = vmatpush1.msra.mxu0 %v762
    %3314 = vmatprep.subr.mxu0 0.0
    %3315 = vmatpush1.msra.mxu0 %v763
    %3316 = vmatprep.subr.mxu0 0.0
    %3317 = vmatpush1.msra.mxu0 %v764
    %3318 = vmatprep.subr.mxu0 0.0
    %3319 = vmatpush1.msra.mxu0 %v765
    %3320 = vmatprep.subr.mxu0 0.0
    %3321 = vmatpush1.msra.mxu0 %v766
    %3322 = vmatprep.subr.mxu0 0.0
    %3323 = vmatpush1.msra.mxu0 %v767
    %3324 = vmatprep.subr.mxu0 0.0
    %3325 = vmatpush1.msra.mxu0 %v768
    %3326 = vmatprep.subr.mxu0 0.0
    %3327 = vmatpush1.msra.mxu0 %v769
    %3328 = vmatprep.subr.mxu0 0.0
    %3329 = vmatpush1.msra.mxu0 %v770
    %3330 = vmatprep.subr.mxu0 0.0
    %3331 = vmatpush1.msra.mxu0 %v771
    %3332 = vmatprep.subr.mxu0 0.0
    %3333 = vmatpush1.msra.mxu0 %v772
    %3334 = vmatprep.subr.mxu0 0.0
    %3335 = vmatpush1.msra.mxu0 %v773
    %3336 = vmatprep.subr.mxu0 0.0
    %3337 = vmatpush1.msra.mxu0 %v774
    %3338 = vmatprep.subr.mxu0 0.0
    %3339 = vmatpush1.msra.mxu0 %v775
    %3340 = vmatprep.subr.mxu0 0.0
    %3341 = vmatpush1.msra.mxu0 %v776
    %3342 = vmatprep.mubr.f32.mxu0 %v1520
    %3343 = vmatmul.mubr.f32.gmra.mrb[0].mxu0 %v1512
    %v3344 = vpop.f32.mrb[0].mxu0
    %v3345 = vadd.f32 %v3275, %v3344
    %v3346 = vpop.f32.mrb[0].mxu0
    %3347 = vdwg.mxu0
    %3348 = vmatprep.subr.mxu0 0.0
    %3349 = vmatpush1.msra.mxu0 %v777
    %3350 = vmatprep.subr.mxu0 0.0
    %3351 = vmatpush1.msra.mxu0 %v778
    %3352 = vmatprep.subr.mxu0 0.0
    %3353 = vmatpush1.msra.mxu0 %v779
    %3354 = vmatprep.subr.mxu0 0.0
    %3355 = vmatpush1.msra.mxu0 %v780
    %3356 = vmatprep.subr.mxu0 0.0
    %3357 = vmatpush1.msra.mxu0 %v781
    %3358 = vmatprep.subr.mxu0 0.0
    %3359 = vmatpush1.msra.mxu0 %v782
    %3360 = vmatprep.subr.mxu0 0.0
    %3361 = vmatpush1.msra.mxu0 %v783
    %3362 = vmatprep.subr.mxu0 0.0
    %3363 = vmatpush1.msra.mxu0 %v784
    %3364 = vmatprep.subr.mxu0 0.0
    %3365 = vmatpush1.msra.mxu0 %v785
    %3366 = vmatprep.subr.mxu0 0.0
    %3367 = vmatpush1.msra.mxu0 %v786
    %3368 = vmatprep.subr.mxu0 0.0
    %3369 = vmatpush1.msra.mxu0 %v787
    %3370 = vmatprep.subr.mxu0 0.0
    %3371 = vmatpush1.msra.mxu0 %v788
    %3372 = vmatprep.subr.mxu0 0.0
    %3373 = vmatpush1.msra.mxu0 %v789
    %3374 = vmatprep.subr.mxu0 0.0
    %3375 = vmatpush1.msra.mxu0 %v790
    %3376 = vmatprep.subr.mxu0 0.0
    %3377 = vmatpush1.msra.mxu0 %v791
    %3378 = vmatprep.subr.mxu0 0.0
    %3379 = vmatpush1.msra.mxu0 %v792
    %3380 = vmatprep.subr.mxu0 0.0
    %3381 = vmatpush1.msra.mxu0 %v793
    %3382 = vmatprep.subr.mxu0 0.0
    %3383 = vmatpush1.msra.mxu0 %v794
    %3384 = vmatprep.subr.mxu0 0.0
    %3385 = vmatpush1.msra.mxu0 %v795
    %3386 = vmatprep.subr.mxu0 0.0
    %3387 = vmatpush1.msra.mxu0 %v796
    %3388 = vmatprep.subr.mxu0 0.0
    %3389 = vmatpush1.msra.mxu0 %v797
    %3390 = vmatprep.subr.mxu0 0.0
    %3391 = vmatpush1.msra.mxu0 %v798
    %3392 = vmatprep.subr.mxu0 0.0
    %3393 = vmatpush1.msra.mxu0 %v799
    %3394 = vmatprep.subr.mxu0 0.0
    %3395 = vmatpush1.msra.mxu0 %v800
    %3396 = vmatprep.subr.mxu0 0.0
    %3397 = vmatpush1.msra.mxu0 %v801
    %3398 = vmatprep.subr.mxu0 0.0
    %3399 = vmatpush1.msra.mxu0 %v802
    %3400 = vmatprep.subr.mxu0 0.0
    %3401 = vmatpush1.msra.mxu0 %v803
    %3402 = vmatprep.subr.mxu0 0.0
    %3403 = vmatpush1.msra.mxu0 %v804
    %3404 = vmatprep.subr.mxu0 0.0
    %3405 = vmatpush1.msra.mxu0 %v805
    %3406 = vmatprep.subr.mxu0 0.0
    %3407 = vmatpush1.msra.mxu0 %v806
    %3408 = vmatprep.subr.mxu0 0.0
    %3409 = vmatpush1.msra.mxu0 %v807
    %3410 = vmatprep.subr.mxu0 0.0
    %3411 = vmatpush1.msra.mxu0 %v808
    %3412 = vmatprep.mubr.f32.mxu0 %v1521
    %3413 = vmatmul.mubr.f32.gmra.mrb[0].mxu0 %v1519
    %v3414 = vpop.f32.mrb[0].mxu0
    %v3415 = vadd.f32 %v3345, %v3414
    %v3416 = vpop.f32.mrb[0].mxu0
    %3417 = vdwg.mxu0
    %3418 = vmatprep.subr.mxu0 0.0
    %3419 = vmatpush1.msra.mxu0 %v809
    %3420 = vmatprep.subr.mxu0 0.0
    %3421 = vmatpush1.msra.mxu0 %v810
    %3422 = vmatprep.subr.mxu0 0.0
    %3423 = vmatpush1.msra.mxu0 %v811
    %3424 = vmatprep.subr.mxu0 0.0
    %3425 = vmatpush1.msra.mxu0 %v812
    %3426 = vmatprep.subr.mxu0 0.0
    %3427 = vmatpush1.msra.mxu0 %v813
    %3428 = vmatprep.subr.mxu0 0.0
    %3429 = vmatpush1.msra.mxu0 %v814
    %3430 = vmatprep.subr.mxu0 0.0
    %3431 = vmatpush1.msra.mxu0 %v815
    %3432 = vmatprep.subr.mxu0 0.0
    %3433 = vmatpush1.msra.mxu0 %v816
    %3434 = vmatprep.subr.mxu0 0.0
    %3435 = vmatpush1.msra.mxu0 %v817
    %3436 = vmatprep.subr.mxu0 0.0
    %3437 = vmatpush1.msra.mxu0 %v818
    %3438 = vmatprep.subr.mxu0 0.0
    %3439 = vmatpush1.msra.mxu0 %v819
    %3440 = vmatprep.subr.mxu0 0.0
    %3441 = vmatpush1.msra.mxu0 %v820
    %3442 = vmatprep.subr.mxu0 0.0
    %3443 = vmatpush1.msra.mxu0 %v821
    %3444 = vmatprep.subr.mxu0 0.0
    %3445 = vmatpush1.msra.mxu0 %v822
    %3446 = vmatprep.subr.mxu0 0.0
    %3447 = vmatpush1.msra.mxu0 %v823
    %3448 = vmatprep.subr.mxu0 0.0
    %3449 = vmatpush1.msra.mxu0 %v824
    %3450 = vmatprep.subr.mxu0 0.0
    %3451 = vmatpush1.msra.mxu0 %v825
    %3452 = vmatprep.subr.mxu0 0.0
    %3453 = vmatpush1.msra.mxu0 %v826
    %3454 = vmatprep.subr.mxu0 0.0
    %3455 = vmatpush1.msra.mxu0 %v827
    %3456 = vmatprep.subr.mxu0 0.0
    %3457 = vmatpush1.msra.mxu0 %v828
    %3458 = vmatprep.subr.mxu0 0.0
    %3459 = vmatpush1.msra.mxu0 %v829
    %3460 = vmatprep.subr.mxu0 0.0
    %3461 = vmatpush1.msra.mxu0 %v830
    %3462 = vmatprep.subr.mxu0 0.0
    %3463 = vmatpush1.msra.mxu0 %v831
    %3464 = vmatprep.subr.mxu0 0.0
    %3465 = vmatpush1.msra.mxu0 %v832
    %3466 = vmatprep.subr.mxu0 0.0
    %3467 = vmatpush1.msra.mxu0 %v833
    %3468 = vmatprep.subr.mxu0 0.0
    %3469 = vmatpush1.msra.mxu0 %v834
    %3470 = vmatprep.subr.mxu0 0.0
    %3471 = vmatpush1.msra.mxu0 %v835
    %3472 = vmatprep.subr.mxu0 0.0
    %3473 = vmatpush1.msra.mxu0 %v836
    %3474 = vmatprep.subr.mxu0 0.0
    %3475 = vmatpush1.msra.mxu0 %v837
    %3476 = vmatprep.subr.mxu0 0.0
    %3477 = vmatpush1.msra.mxu0 %v838
    %3478 = vmatprep.subr.mxu0 0.0
    %3479 = vmatpush1.msra.mxu0 %v839
    %3480 = vmatprep.subr.mxu0 0.0
    %3481 = vmatpush1.msra.mxu0 %v840
    %3482 = vmatprep.mubr.f32.mxu0 %v1537
    %3483 = vmatmul.mubr.f32.gmra.mrb[0].mxu0 %v1529
    %v3484 = vpop.f32.mrb[0].mxu0
    %v3485 = vadd.f32 %v3415, %v3484
    %v3486 = vpop.f32.mrb[0].mxu0
    %3487 = vdwg.mxu0
    %3488 = vmatprep.subr.mxu0 0.0
    %3489 = vmatpush1.msra.mxu0 %v841
    %3490 = vmatprep.subr.mxu0 0.0
    %3491 = vmatpush1.msra.mxu0 %v842
    %3492 = vmatprep.subr.mxu0 0.0
    %3493 = vmatpush1.msra.mxu0 %v843
    %3494 = vmatprep.subr.mxu0 0.0
    %3495 = vmatpush1.msra.mxu0 %v844
    %3496 = vmatprep.subr.mxu0 0.0
    %3497 = vmatpush1.msra.mxu0 %v845
    %3498 = vmatprep.subr.mxu0 0.0
    %3499 = vmatpush1.msra.mxu0 %v846
    %3500 = vmatprep.subr.mxu0 0.0
    %3501 = vmatpush1.msra.mxu0 %v847
    %3502 = vmatprep.subr.mxu0 0.0
    %3503 = vmatpush1.msra.mxu0 %v848
    %3504 = vmatprep.subr.mxu0 0.0
    %3505 = vmatpush1.msra.mxu0 %v849
    %3506 = vmatprep.subr.mxu0 0.0
    %3507 = vmatpush1.msra.mxu0 %v850
    %3508 = vmatprep.subr.mxu0 0.0
    %3509 = vmatpush1.msra.mxu0 %v851
    %3510 = vmatprep.subr.mxu0 0.0
    %3511 = vmatpush1.msra.mxu0 %v852
    %3512 = vmatprep.subr.mxu0 0.0
    %3513 = vmatpush1.msra.mxu0 %v853
    %3514 = vmatprep.subr.mxu0 0.0
    %3515 = vmatpush1.msra.mxu0 %v854
    %3516 = vmatprep.subr.mxu0 0.0
    %3517 = vmatpush1.msra.mxu0 %v855
    %3518 = vmatprep.subr.mxu0 0.0
    %3519 = vmatpush1.msra.mxu0 %v856
    %3520 = vmatprep.subr.mxu0 0.0
    %3521 = vmatpush1.msra.mxu0 %v857
    %3522 = vmatprep.subr.mxu0 0.0
    %3523 = vmatpush1.msra.mxu0 %v858
    %3524 = vmatprep.subr.mxu0 0.0
    %3525 = vmatpush1.msra.mxu0 %v859
    %3526 = vmatprep.subr.mxu0 0.0
    %3527 = vmatpush1.msra.mxu0 %v860
    %3528 = vmatprep.subr.mxu0 0.0
    %3529 = vmatpush1.msra.mxu0 %v861
    %3530 = vmatprep.subr.mxu0 0.0
    %3531 = vmatpush1.msra.mxu0 %v862
    %3532 = vmatprep.subr.mxu0 0.0
    %3533 = vmatpush1.msra.mxu0 %v863
    %3534 = vmatprep.subr.mxu0 0.0
    %3535 = vmatpush1.msra.mxu0 %v864
    %3536 = vmatprep.subr.mxu0 0.0
    %3537 = vmatpush1.msra.mxu0 %v865
    %3538 = vmatprep.subr.mxu0 0.0
    %3539 = vmatpush1.msra.mxu0 %v866
    %3540 = vmatprep.subr.mxu0 0.0
    %3541 = vmatpush1.msra.mxu0 %v867
    %3542 = vmatprep.subr.mxu0 0.0
    %3543 = vmatpush1.msra.mxu0 %v868
    %3544 = vmatprep.subr.mxu0 0.0
    %3545 = vmatpush1.msra.mxu0 %v869
    %3546 = vmatprep.subr.mxu0 0.0
    %3547 = vmatpush1.msra.mxu0 %v870
    %3548 = vmatprep.subr.mxu0 0.0
    %3549 = vmatpush1.msra.mxu0 %v871
    %3550 = vmatprep.subr.mxu0 0.0
    %3551 = vmatpush1.msra.mxu0 %v872
    %3552 = vmatprep.mubr.f32.mxu0 %v1538
    %3553 = vmatmul.mubr.f32.gmra.mrb[0].mxu0 %v1536
    %v3554 = vpop.f32.mrb[0].mxu0
    %v3555 = vadd.f32 %v3485, %v3554
    %v3556 = vpop.f32.mrb[0].mxu0
    %3557 = vdwg.mxu0
    %3558 = vmatprep.subr.mxu0 0.0
    %3559 = vmatpush1.msra.mxu0 %v873
    %3560 = vmatprep.subr.mxu0 0.0
    %3561 = vmatpush1.msra.mxu0 %v874
    %3562 = vmatprep.subr.mxu0 0.0
    %3563 = vmatpush1.msra.mxu0 %v875
    %3564 = vmatprep.subr.mxu0 0.0
    %3565 = vmatpush1.msra.mxu0 %v876
    %3566 = vmatprep.subr.mxu0 0.0
    %3567 = vmatpush1.msra.mxu0 %v877
    %3568 = vmatprep.subr.mxu0 0.0
    %3569 = vmatpush1.msra.mxu0 %v878
    %3570 = vmatprep.subr.mxu0 0.0
    %3571 = vmatpush1.msra.mxu0 %v879
    %3572 = vmatprep.subr.mxu0 0.0
    %3573 = vmatpush1.msra.mxu0 %v880
    %3574 = vmatprep.subr.mxu0 0.0
    %3575 = vmatpush1.msra.mxu0 %v881
    %3576 = vmatprep.subr.mxu0 0.0
    %3577 = vmatpush1.msra.mxu0 %v882
    %3578 = vmatprep.subr.mxu0 0.0
    %3579 = vmatpush1.msra.mxu0 %v883
    %3580 = vmatprep.subr.mxu0 0.0
    %3581 = vmatpush1.msra.mxu0 %v884
    %3582 = vmatprep.subr.mxu0 0.0
    %3583 = vmatpush1.msra.mxu0 %v885
    %3584 = vmatprep.subr.mxu0 0.0
    %3585 = vmatpush1.msra.mxu0 %v886
    %3586 = vmatprep.subr.mxu0 0.0
    %3587 = vmatpush1.msra.mxu0 %v887
    %3588 = vmatprep.subr.mxu0 0.0
    %3589 = vmatpush1.msra.mxu0 %v888
    %3590 = vmatprep.subr.mxu0 0.0
    %3591 = vmatpush1.msra.mxu0 %v889
    %3592 = vmatprep.subr.mxu0 0.0
    %3593 = vmatpush1.msra.mxu0 %v890
    %3594 = vmatprep.subr.mxu0 0.0
    %3595 = vmatpush1.msra.mxu0 %v891
    %3596 = vmatprep.subr.mxu0 0.0
    %3597 = vmatpush1.msra.mxu0 %v892
    %3598 = vmatprep.subr.mxu0 0.0
    %3599 = vmatpush1.msra.mxu0 %v893
    %3600 = vmatprep.subr.mxu0 0.0
    %3601 = vmatpush1.msra.mxu0 %v894
    %3602 = vmatprep.subr.mxu0 0.0
    %3603 = vmatpush1.msra.mxu0 %v895
    %3604 = vmatprep.subr.mxu0 0.0
    %3605 = vmatpush1.msra.mxu0 %v896
    %3606 = vmatprep.subr.mxu0 0.0
    %3607 = vmatpush1.msra.mxu0 %v897
    %3608 = vmatprep.subr.mxu0 0.0
    %3609 = vmatpush1.msra.mxu0 %v898
    %3610 = vmatprep.subr.mxu0 0.0
    %3611 = vmatpush1.msra.mxu0 %v899
    %3612 = vmatprep.subr.mxu0 0.0
    %3613 = vmatpush1.msra.mxu0 %v900
    %3614 = vmatprep.subr.mxu0 0.0
    %3615 = vmatpush1.msra.mxu0 %v901
    %3616 = vmatprep.subr.mxu0 0.0
    %3617 = vmatpush1.msra.mxu0 %v902
    %3618 = vmatprep.subr.mxu0 0.0
    %3619 = vmatpush1.msra.mxu0 %v903
    %3620 = vmatprep.subr.mxu0 0.0
    %3621 = vmatpush1.msra.mxu0 %v904
    %3622 = vmatprep.mubr.f32.mxu0 %v1554
    %3623 = vmatmul.mubr.f32.gmra.mrb[0].mxu0 %v1546
    %v3624 = vpop.f32.mrb[0].mxu0
    %v3625 = vadd.f32 %v3555, %v3624
    %v3626 = vpop.f32.mrb[0].mxu0
    %3627 = vdwg.mxu0
    %3628 = vmatprep.subr.mxu0 0.0
    %3629 = vmatpush1.msra.mxu0 %v905
    %3630 = vmatprep.subr.mxu0 0.0
    %3631 = vmatpush1.msra.mxu0 %v906
    %3632 = vmatprep.subr.mxu0 0.0
    %3633 = vmatpush1.msra.mxu0 %v907
    %3634 = vmatprep.subr.mxu0 0.0
    %3635 = vmatpush1.msra.mxu0 %v908
    %3636 = vmatprep.subr.mxu0 0.0
    %3637 = vmatpush1.msra.mxu0 %v909
    %3638 = vmatprep.subr.mxu0 0.0
    %3639 = vmatpush1.msra.mxu0 %v910
    %3640 = vmatprep.subr.mxu0 0.0
    %3641 = vmatpush1.msra.mxu0 %v911
    %3642 = vmatprep.subr.mxu0 0.0
    %3643 = vmatpush1.msra.mxu0 %v912
    %3644 = vmatprep.subr.mxu0 0.0
    %3645 = vmatpush1.msra.mxu0 %v913
    %3646 = vmatprep.subr.mxu0 0.0
    %3647 = vmatpush1.msra.mxu0 %v914
    %3648 = vmatprep.subr.mxu0 0.0
    %3649 = vmatpush1.msra.mxu0 %v915
    %3650 = vmatprep.subr.mxu0 0.0
    %3651 = vmatpush1.msra.mxu0 %v916
    %3652 = vmatprep.subr.mxu0 0.0
    %3653 = vmatpush1.msra.mxu0 %v917
    %3654 = vmatprep.subr.mxu0 0.0
    %3655 = vmatpush1.msra.mxu0 %v918
    %3656 = vmatprep.subr.mxu0 0.0
    %3657 = vmatpush1.msra.mxu0 %v919
    %3658 = vmatprep.subr.mxu0 0.0
    %3659 = vmatpush1.msra.mxu0 %v920
    %3660 = vmatprep.subr.mxu0 0.0
    %3661 = vmatpush1.msra.mxu0 %v921
    %3662 = vmatprep.subr.mxu0 0.0
    %3663 = vmatpush1.msra.mxu0 %v922
    %3664 = vmatprep.subr.mxu0 0.0
    %3665 = vmatpush1.msra.mxu0 %v923
    %3666 = vmatprep.subr.mxu0 0.0
    %3667 = vmatpush1.msra.mxu0 %v924
    %3668 = vmatprep.subr.mxu0 0.0
    %3669 = vmatpush1.msra.mxu0 %v925
    %3670 = vmatprep.subr.mxu0 0.0
    %3671 = vmatpush1.msra.mxu0 %v926
    %3672 = vmatprep.subr.mxu0 0.0
    %3673 = vmatpush1.msra.mxu0 %v927
    %3674 = vmatprep.subr.mxu0 0.0
    %3675 = vmatpush1.msra.mxu0 %v928
    %3676 = vmatprep.subr.mxu0 0.0
    %3677 = vmatpush1.msra.mxu0 %v929
    %3678 = vmatprep.subr.mxu0 0.0
    %3679 = vmatpush1.msra.mxu0 %v930
    %3680 = vmatprep.subr.mxu0 0.0
    %3681 = vmatpush1.msra.mxu0 %v931
    %3682 = vmatprep.subr.mxu0 0.0
    %3683 = vmatpush1.msra.mxu0 %v932
    %3684 = vmatprep.subr.mxu0 0.0
    %3685 = vmatpush1.msra.mxu0 %v933
    %3686 = vmatprep.subr.mxu0 0.0
    %3687 = vmatpush1.msra.mxu0 %v934
    %3688 = vmatprep.subr.mxu0 0.0
    %3689 = vmatpush1.msra.mxu0 %v935
    %3690 = vmatprep.subr.mxu0 0.0
    %3691 = vmatpush1.msra.mxu0 %v936
    %3692 = vmatprep.mubr.f32.mxu0 %v1555
    %3693 = vmatmul.mubr.f32.gmra.mrb[0].mxu0 %v1553
    %v3694 = vpop.f32.mrb[0].mxu0
    %v3695 = vadd.f32 %v3625, %v3694
    %v3696 = vpop.f32.mrb[0].mxu0
    %3697 = vdwg.mxu0
    %3698 = vmatprep.subr.mxu0 0.0
    %3699 = vmatpush1.msra.mxu0 %v937
    %3700 = vmatprep.subr.mxu0 0.0
    %3701 = vmatpush1.msra.mxu0 %v938
    %3702 = vmatprep.subr.mxu0 0.0
    %3703 = vmatpush1.msra.mxu0 %v939
    %3704 = vmatprep.subr.mxu0 0.0
    %3705 = vmatpush1.msra.mxu0 %v940
    %3706 = vmatprep.subr.mxu0 0.0
    %3707 = vmatpush1.msra.mxu0 %v941
    %3708 = vmatprep.subr.mxu0 0.0
    %3709 = vmatpush1.msra.mxu0 %v942
    %3710 = vmatprep.subr.mxu0 0.0
    %3711 = vmatpush1.msra.mxu0 %v943
    %3712 = vmatprep.subr.mxu0 0.0
    %3713 = vmatpush1.msra.mxu0 %v944
    %3714 = vmatprep.subr.mxu0 0.0
    %3715 = vmatpush1.msra.mxu0 %v945
    %3716 = vmatprep.subr.mxu0 0.0
    %3717 = vmatpush1.msra.mxu0 %v946
    %3718 = vmatprep.subr.mxu0 0.0
    %3719 = vmatpush1.msra.mxu0 %v947
    %3720 = vmatprep.subr.mxu0 0.0
    %3721 = vmatpush1.msra.mxu0 %v948
    %3722 = vmatprep.subr.mxu0 0.0
    %3723 = vmatpush1.msra.mxu0 %v949
    %3724 = vmatprep.subr.mxu0 0.0
    %3725 = vmatpush1.msra.mxu0 %v950
    %3726 = vmatprep.subr.mxu0 0.0
    %3727 = vmatpush1.msra.mxu0 %v951
    %3728 = vmatprep.subr.mxu0 0.0
    %3729 = vmatpush1.msra.mxu0 %v952
    %3730 = vmatprep.subr.mxu0 0.0
    %3731 = vmatpush1.msra.mxu0 %v953
    %3732 = vmatprep.subr.mxu0 0.0
    %3733 = vmatpush1.msra.mxu0 %v954
    %3734 = vmatprep.subr.mxu0 0.0
    %3735 = vmatpush1.msra.mxu0 %v955
    %3736 = vmatprep.subr.mxu0 0.0
    %3737 = vmatpush1.msra.mxu0 %v956
    %3738 = vmatprep.subr.mxu0 0.0
    %3739 = vmatpush1.msra.mxu0 %v957
    %3740 = vmatprep.subr.mxu0 0.0
    %3741 = vmatpush1.msra.mxu0 %v958
    %3742 = vmatprep.subr.mxu0 0.0
    %3743 = vmatpush1.msra.mxu0 %v959
    %3744 = vmatprep.subr.mxu0 0.0
    %3745 = vmatpush1.msra.mxu0 %v960
    %3746 = vmatprep.subr.mxu0 0.0
    %3747 = vmatpush1.msra.mxu0 %v961
    %3748 = vmatprep.subr.mxu0 0.0
    %3749 = vmatpush1.msra.mxu0 %v962
    %3750 = vmatprep.subr.mxu0 0.0
    %3751 = vmatpush1.msra.mxu0 %v963
    %3752 = vmatprep.subr.mxu0 0.0
    %3753 = vmatpush1.msra.mxu0 %v964
    %3754 = vmatprep.subr.mxu0 0.0
    %3755 = vmatpush1.msra.mxu0 %v965
    %3756 = vmatprep.subr.mxu0 0.0
    %3757 = vmatpush1.msra.mxu0 %v966
    %3758 = vmatprep.subr.mxu0 0.0
    %3759 = vmatpush1.msra.mxu0 %v967
    %3760 = vmatprep.subr.mxu0 0.0
    %3761 = vmatpush1.msra.mxu0 %v968
    %3762 = vmatprep.mubr.f32.mxu0 %v1571
    %3763 = vmatmul.mubr.f32.gmra.mrb[0].mxu0 %v1563
    %v3764 = vpop.f32.mrb[0].mxu0
    %v3765 = vadd.f32 %v3695, %v3764
    %v3766 = vpop.f32.mrb[0].mxu0
    %3767 = vdwg.mxu0
    %3768 = vmatprep.subr.mxu0 0.0
    %3769 = vmatpush1.msra.mxu0 %v969
    %3770 = vmatprep.subr.mxu0 0.0
    %3771 = vmatpush1.msra.mxu0 %v970
    %3772 = vmatprep.subr.mxu0 0.0
    %3773 = vmatpush1.msra.mxu0 %v971
    %3774 = vmatprep.subr.mxu0 0.0
    %3775 = vmatpush1.msra.mxu0 %v972
    %3776 = vmatprep.subr.mxu0 0.0
    %3777 = vmatpush1.msra.mxu0 %v973
    %3778 = vmatprep.subr.mxu0 0.0
    %3779 = vmatpush1.msra.mxu0 %v974
    %3780 = vmatprep.subr.mxu0 0.0
    %3781 = vmatpush1.msra.mxu0 %v975
    %3782 = vmatprep.subr.mxu0 0.0
    %3783 = vmatpush1.msra.mxu0 %v976
    %3784 = vmatprep.subr.mxu0 0.0
    %3785 = vmatpush1.msra.mxu0 %v977
    %3786 = vmatprep.subr.mxu0 0.0
    %3787 = vmatpush1.msra.mxu0 %v978
    %3788 = vmatprep.subr.mxu0 0.0
    %3789 = vmatpush1.msra.mxu0 %v979
    %3790 = vmatprep.subr.mxu0 0.0
    %3791 = vmatpush1.msra.mxu0 %v980
    %3792 = vmatprep.subr.mxu0 0.0
    %3793 = vmatpush1.msra.mxu0 %v981
    %3794 = vmatprep.subr.mxu0 0.0
    %3795 = vmatpush1.msra.mxu0 %v982
    %3796 = vmatprep.subr.mxu0 0.0
    %3797 = vmatpush1.msra.mxu0 %v983
    %3798 = vmatprep.subr.mxu0 0.0
    %3799 = vmatpush1.msra.mxu0 %v984
    %3800 = vmatprep.subr.mxu0 0.0
    %3801 = vmatpush1.msra.mxu0 %v985
    %3802 = vmatprep.subr.mxu0 0.0
    %3803 = vmatpush1.msra.mxu0 %v986
    %3804 = vmatprep.subr.mxu0 0.0
    %3805 = vmatpush1.msra.mxu0 %v987
    %3806 = vmatprep.subr.mxu0 0.0
    %3807 = vmatpush1.msra.mxu0 %v988
    %3808 = vmatprep.subr.mxu0 0.0
    %3809 = vmatpush1.msra.mxu0 %v989
    %3810 = vmatprep.subr.mxu0 0.0
    %3811 = vmatpush1.msra.mxu0 %v990
    %3812 = vmatprep.subr.mxu0 0.0
    %3813 = vmatpush1.msra.mxu0 %v991
    %3814 = vmatprep.subr.mxu0 0.0
    %3815 = vmatpush1.msra.mxu0 %v992
    %3816 = vmatprep.subr.mxu0 0.0
    %3817 = vmatpush1.msra.mxu0 %v993
    %3818 = vmatprep.subr.mxu0 0.0
    %3819 = vmatpush1.msra.mxu0 %v994
    %3820 = vmatprep.subr.mxu0 0.0
    %3821 = vmatpush1.msra.mxu0 %v995
    %3822 = vmatprep.subr.mxu0 0.0
    %3823 = vmatpush1.msra.mxu0 %v996
    %3824 = vmatprep.subr.mxu0 0.0
    %3825 = vmatpush1.msra.mxu0 %v997
    %3826 = vmatprep.subr.mxu0 0.0
    %3827 = vmatpush1.msra.mxu0 %v998
    %3828 = vmatprep.subr.mxu0 0.0
    %3829 = vmatpush1.msra.mxu0 %v999
    %3830 = vmatprep.subr.mxu0 0.0
    %3831 = vmatpush1.msra.mxu0 %v1000
    %3832 = vmatprep.mubr.f32.mxu0 %v1572
    %3833 = vmatmul.mubr.f32.gmra.mrb[0].mxu0 %v1570
    %v3834 = vpop.f32.mrb[0].mxu0
    %v3835 = vadd.f32 %v3765, %v3834
    %v3836 = vpop.f32.mrb[0].mxu0
    %3837 = vdwg.mxu0
    %3838 = vmatprep.subr.mxu0 0.0
    %3839 = vmatpush1.msra.mxu0 %v1001
    %3840 = vmatprep.subr.mxu0 0.0
    %3841 = vmatpush1.msra.mxu0 %v1002
    %3842 = vmatprep.subr.mxu0 0.0
    %3843 = vmatpush1.msra.mxu0 %v1003
    %3844 = vmatprep.subr.mxu0 0.0
    %3845 = vmatpush1.msra.mxu0 %v1004
    %3846 = vmatprep.subr.mxu0 0.0
    %3847 = vmatpush1.msra.mxu0 %v1005
    %3848 = vmatprep.subr.mxu0 0.0
    %3849 = vmatpush1.msra.mxu0 %v1006
    %3850 = vmatprep.subr.mxu0 0.0
    %3851 = vmatpush1.msra.mxu0 %v1007
    %3852 = vmatprep.subr.mxu0 0.0
    %3853 = vmatpush1.msra.mxu0 %v1008
    %3854 = vmatprep.subr.mxu0 0.0
    %3855 = vmatpush1.msra.mxu0 %v1009
    %3856 = vmatprep.subr.mxu0 0.0
    %3857 = vmatpush1.msra.mxu0 %v1010
    %3858 = vmatprep.subr.mxu0 0.0
    %3859 = vmatpush1.msra.mxu0 %v1011
    %3860 = vmatprep.subr.mxu0 0.0
    %3861 = vmatpush1.msra.mxu0 %v1012
    %3862 = vmatprep.subr.mxu0 0.0
    %3863 = vmatpush1.msra.mxu0 %v1013
    %3864 = vmatprep.subr.mxu0 0.0
    %3865 = vmatpush1.msra.mxu0 %v1014
    %3866 = vmatprep.subr.mxu0 0.0
    %3867 = vmatpush1.msra.mxu0 %v1015
    %3868 = vmatprep.subr.mxu0 0.0
    %3869 = vmatpush1.msra.mxu0 %v1016
    %3870 = vmatprep.subr.mxu0 0.0
    %3871 = vmatpush1.msra.mxu0 %v1017
    %3872 = vmatprep.subr.mxu0 0.0
    %3873 = vmatpush1.msra.mxu0 %v1018
    %3874 = vmatprep.subr.mxu0 0.0
    %3875 = vmatpush1.msra.mxu0 %v1019
    %3876 = vmatprep.subr.mxu0 0.0
    %3877 = vmatpush1.msra.mxu0 %v1020
    %3878 = vmatprep.subr.mxu0 0.0
    %3879 = vmatpush1.msra.mxu0 %v1021
    %3880 = vmatprep.subr.mxu0 0.0
    %3881 = vmatpush1.msra.mxu0 %v1022
    %3882 = vmatprep.subr.mxu0 0.0
    %3883 = vmatpush1.msra.mxu0 %v1023
    %3884 = vmatprep.subr.mxu0 0.0
    %3885 = vmatpush1.msra.mxu0 %v1024
    %3886 = vmatprep.subr.mxu0 0.0
    %3887 = vmatpush1.msra.mxu0 %v1025
    %3888 = vmatprep.subr.mxu0 0.0
    %3889 = vmatpush1.msra.mxu0 %v1026
    %3890 = vmatprep.subr.mxu0 0.0
    %3891 = vmatpush1.msra.mxu0 %v1027
    %3892 = vmatprep.subr.mxu0 0.0
    %3893 = vmatpush1.msra.mxu0 %v1028
    %3894 = vmatprep.subr.mxu0 0.0
    %3895 = vmatpush1.msra.mxu0 %v1029
    %3896 = vmatprep.subr.mxu0 0.0
    %3897 = vmatpush1.msra.mxu0 %v1030
    %3898 = vmatprep.subr.mxu0 0.0
    %3899 = vmatpush1.msra.mxu0 %v1031
    %3900 = vmatprep.subr.mxu0 0.0
    %3901 = vmatpush1.msra.mxu0 %v1032
    %3902 = vmatprep.mubr.f32.mxu0 %v1588
    %3903 = vmatmul.mubr.f32.gmra.mrb[0].mxu0 %v1580
    %v3904 = vpop.f32.mrb[0].mxu0
    %v3905 = vadd.f32 %v3835, %v3904
    %v3906 = vpop.f32.mrb[0].mxu0
    %3907 = vdwg.mxu0
    %3908 = vmatprep.subr.mxu0 0.0
    %3909 = vmatpush1.msra.mxu0 %v1033
    %3910 = vmatprep.subr.mxu0 0.0
    %3911 = vmatpush1.msra.mxu0 %v1034
    %3912 = vmatprep.subr.mxu0 0.0
    %3913 = vmatpush1.msra.mxu0 %v1035
    %3914 = vmatprep.subr.mxu0 0.0
    %3915 = vmatpush1.msra.mxu0 %v1036
    %3916 = vmatprep.subr.mxu0 0.0
    %3917 = vmatpush1.msra.mxu0 %v1037
    %3918 = vmatprep.subr.mxu0 0.0
    %3919 = vmatpush1.msra.mxu0 %v1038
    %3920 = vmatprep.subr.mxu0 0.0
    %3921 = vmatpush1.msra.mxu0 %v1039
    %3922 = vmatprep.subr.mxu0 0.0
    %3923 = vmatpush1.msra.mxu0 %v1040
    %3924 = vmatprep.subr.mxu0 0.0
    %3925 = vmatpush1.msra.mxu0 %v1041
    %3926 = vmatprep.subr.mxu0 0.0
    %3927 = vmatpush1.msra.mxu0 %v1042
    %3928 = vmatprep.subr.mxu0 0.0
    %3929 = vmatpush1.msra.mxu0 %v1043
    %3930 = vmatprep.subr.mxu0 0.0
    %3931 = vmatpush1.msra.mxu0 %v1044
    %3932 = vmatprep.subr.mxu0 0.0
    %3933 = vmatpush1.msra.mxu0 %v1045
    %3934 = vmatprep.subr.mxu0 0.0
    %3935 = vmatpush1.msra.mxu0 %v1046
    %3936 = vmatprep.subr.mxu0 0.0
    %3937 = vmatpush1.msra.mxu0 %v1047
    %3938 = vmatprep.subr.mxu0 0.0
    %3939 = vmatpush1.msra.mxu0 %v1048
    %3940 = vmatprep.subr.mxu0 0.0
    %3941 = vmatpush1.msra.mxu0 %v1049
    %3942 = vmatprep.subr.mxu0 0.0
    %3943 = vmatpush1.msra.mxu0 %v1050
    %3944 = vmatprep.subr.mxu0 0.0
    %3945 = vmatpush1.msra.mxu0 %v1051
    %3946 = vmatprep.subr.mxu0 0.0
    %3947 = vmatpush1.msra.mxu0 %v1052
    %3948 = vmatprep.subr.mxu0 0.0
    %3949 = vmatpush1.msra.mxu0 %v1053
    %3950 = vmatprep.subr.mxu0 0.0
    %3951 = vmatpush1.msra.mxu0 %v1054
    %3952 = vmatprep.subr.mxu0 0.0
    %3953 = vmatpush1.msra.mxu0 %v1055
    %3954 = vmatprep.subr.mxu0 0.0
    %3955 = vmatpush1.msra.mxu0 %v1056
    %3956 = vmatprep.subr.mxu0 0.0
    %3957 = vmatpush1.msra.mxu0 %v1057
    %3958 = vmatprep.subr.mxu0 0.0
    %3959 = vmatpush1.msra.mxu0 %v1058
    %3960 = vmatprep.subr.mxu0 0.0
    %3961 = vmatpush1.msra.mxu0 %v1059
    %3962 = vmatprep.subr.mxu0 0.0
    %3963 = vmatpush1.msra.mxu0 %v1060
    %3964 = vmatprep.subr.mxu0 0.0
    %3965 = vmatpush1.msra.mxu0 %v1061
    %3966 = vmatprep.subr.mxu0 0.0
    %3967 = vmatpush1.msra.mxu0 %v1062
    %3968 = vmatprep.subr.mxu0 0.0
    %3969 = vmatpush1.msra.mxu0 %v1063
    %3970 = vmatprep.subr.mxu0 0.0
    %3971 = vmatpush1.msra.mxu0 %v1064
    %3972 = vmatprep.mubr.f32.mxu0 %v1589
    %3973 = vmatmul.mubr.f32.gmra.mrb[0].mxu0 %v1587
    %v3974 = vpop.f32.mrb[0].mxu0
    %v3975 = vadd.f32 %v3905, %v3974
    %v3976 = vpop.f32.mrb[0].mxu0
    %3977 = vdwg.mxu0
    %3978 = vmatprep.subr.mxu0 0.0
    %3979 = vmatpush1.msra.mxu0 %v1065
    %3980 = vmatprep.subr.mxu0 0.0
    %3981 = vmatpush1.msra.mxu0 %v1066
    %3982 = vmatprep.subr.mxu0 0.0
    %3983 = vmatpush1.msra.mxu0 %v1067
    %3984 = vmatprep.subr.mxu0 0.0
    %3985 = vmatpush1.msra.mxu0 %v1068
    %3986 = vmatprep.subr.mxu0 0.0
    %3987 = vmatpush1.msra.mxu0 %v1069
    %3988 = vmatprep.subr.mxu0 0.0
    %3989 = vmatpush1.msra.mxu0 %v1070
    %3990 = vmatprep.subr.mxu0 0.0
    %3991 = vmatpush1.msra.mxu0 %v1071
    %3992 = vmatprep.subr.mxu0 0.0
    %3993 = vmatpush1.msra.mxu0 %v1072
    %3994 = vmatprep.subr.mxu0 0.0
    %3995 = vmatpush1.msra.mxu0 %v1073
    %3996 = vmatprep.subr.mxu0 0.0
    %3997 = vmatpush1.msra.mxu0 %v1074
    %3998 = vmatprep.subr.mxu0 0.0
    %3999 = vmatpush1.msra.mxu0 %v1075
    %4000 = vmatprep.subr.mxu0 0.0
    %4001 = vmatpush1.msra.mxu0 %v1076
    %4002 = vmatprep.subr.mxu0 0.0
    %4003 = vmatpush1.msra.mxu0 %v1077
    %4004 = vmatprep.subr.mxu0 0.0
    %4005 = vmatpush1.msra.mxu0 %v1078
    %4006 = vmatprep.subr.mxu0 0.0
    %4007 = vmatpush1.msra.mxu0 %v1079
    %4008 = vmatprep.subr.mxu0 0.0
    %4009 = vmatpush1.msra.mxu0 %v1080
    %4010 = vmatprep.subr.mxu0 0.0
    %4011 = vmatpush1.msra.mxu0 %v1081
    %4012 = vmatprep.subr.mxu0 0.0
    %4013 = vmatpush1.msra.mxu0 %v1082
    %4014 = vmatprep.subr.mxu0 0.0
    %4015 = vmatpush1.msra.mxu0 %v1083
    %4016 = vmatprep.subr.mxu0 0.0
    %4017 = vmatpush1.msra.mxu0 %v1084
    %4018 = vmatprep.subr.mxu0 0.0
    %4019 = vmatpush1.msra.mxu0 %v1085
    %4020 = vmatprep.subr.mxu0 0.0
    %4021 = vmatpush1.msra.mxu0 %v1086
    %4022 = vmatprep.subr.mxu0 0.0
    %4023 = vmatpush1.msra.mxu0 %v1087
    %4024 = vmatprep.subr.mxu0 0.0
    %4025 = vmatpush1.msra.mxu0 %v1088
    %4026 = vmatprep.subr.mxu0 0.0
    %4027 = vmatpush1.msra.mxu0 %v1089
    %4028 = vmatprep.subr.mxu0 0.0
    %4029 = vmatpush1.msra.mxu0 %v1090
    %4030 = vmatprep.subr.mxu0 0.0
    %4031 = vmatpush1.msra.mxu0 %v1091
    %4032 = vmatprep.subr.mxu0 0.0
    %4033 = vmatpush1.msra.mxu0 %v1092
    %4034 = vmatprep.subr.mxu0 0.0
    %4035 = vmatpush1.msra.mxu0 %v1093
    %4036 = vmatprep.subr.mxu0 0.0
    %4037 = vmatpush1.msra.mxu0 %v1094
    %4038 = vmatprep.subr.mxu0 0.0
    %4039 = vmatpush1.msra.mxu0 %v1095
    %4040 = vmatprep.subr.mxu0 0.0
    %4041 = vmatpush1.msra.mxu0 %v1096
    %4042 = vmatprep.mubr.f32.mxu0 %v1605
    %4043 = vmatmul.mubr.f32.gmra.mrb[0].mxu0 %v1597
    %v4044 = vpop.f32.mrb[0].mxu0
    %v4045 = vadd.f32 %v3975, %v4044
    %v4046 = vpop.f32.mrb[0].mxu0
    %4047 = vdwg.mxu0
    %4048 = vmatprep.subr.mxu0 0.0
    %4049 = vmatpush1.msra.mxu0 %v1097
    %4050 = vmatprep.subr.mxu0 0.0
    %4051 = vmatpush1.msra.mxu0 %v1098
    %4052 = vmatprep.subr.mxu0 0.0
    %4053 = vmatpush1.msra.mxu0 %v1099
    %4054 = vmatprep.subr.mxu0 0.0
    %4055 = vmatpush1.msra.mxu0 %v1100
    %4056 = vmatprep.subr.mxu0 0.0
    %4057 = vmatpush1.msra.mxu0 %v1101
    %4058 = vmatprep.subr.mxu0 0.0
    %4059 = vmatpush1.msra.mxu0 %v1102
    %4060 = vmatprep.subr.mxu0 0.0
    %4061 = vmatpush1.msra.mxu0 %v1103
    %4062 = vmatprep.subr.mxu0 0.0
    %4063 = vmatpush1.msra.mxu0 %v1104
    %4064 = vmatprep.subr.mxu0 0.0
    %4065 = vmatpush1.msra.mxu0 %v1105
    %4066 = vmatprep.subr.mxu0 0.0
    %4067 = vmatpush1.msra.mxu0 %v1106
    %4068 = vmatprep.subr.mxu0 0.0
    %4069 = vmatpush1.msra.mxu0 %v1107
    %4070 = vmatprep.subr.mxu0 0.0
    %4071 = vmatpush1.msra.mxu0 %v1108
    %4072 = vmatprep.subr.mxu0 0.0
    %4073 = vmatpush1.msra.mxu0 %v1109
    %4074 = vmatprep.subr.mxu0 0.0
    %4075 = vmatpush1.msra.mxu0 %v1110
    %4076 = vmatprep.subr.mxu0 0.0
    %4077 = vmatpush1.msra.mxu0 %v1111
    %4078 = vmatprep.subr.mxu0 0.0
    %4079 = vmatpush1.msra.mxu0 %v1112
    %4080 = vmatprep.subr.mxu0 0.0
    %4081 = vmatpush1.msra.mxu0 %v1113
    %4082 = vmatprep.subr.mxu0 0.0
    %4083 = vmatpush1.msra.mxu0 %v1114
    %4084 = vmatprep.subr.mxu0 0.0
    %4085 = vmatpush1.msra.mxu0 %v1115
    %4086 = vmatprep.subr.mxu0 0.0
    %4087 = vmatpush1.msra.mxu0 %v1116
    %4088 = vmatprep.subr.mxu0 0.0
    %4089 = vmatpush1.msra.mxu0 %v1117
    %4090 = vmatprep.subr.mxu0 0.0
    %4091 = vmatpush1.msra.mxu0 %v1118
    %4092 = vmatprep.subr.mxu0 0.0
    %4093 = vmatpush1.msra.mxu0 %v1119
    %4094 = vmatprep.subr.mxu0 0.0
    %4095 = vmatpush1.msra.mxu0 %v1120
    %4096 = vmatprep.subr.mxu0 0.0
    %4097 = vmatpush1.msra.mxu0 %v1121
    %4098 = vmatprep.subr.mxu0 0.0
    %4099 = vmatpush1.msra.mxu0 %v1122
    %4100 = vmatprep.subr.mxu0 0.0
    %4101 = vmatpush1.msra.mxu0 %v1123
    %4102 = vmatprep.subr.mxu0 0.0
    %4103 = vmatpush1.msra.mxu0 %v1124
    %4104 = vmatprep.subr.mxu0 0.0
    %4105 = vmatpush1.msra.mxu0 %v1125
    %4106 = vmatprep.subr.mxu0 0.0
    %4107 = vmatpush1.msra.mxu0 %v1126
    %4108 = vmatprep.subr.mxu0 0.0
    %4109 = vmatpush1.msra.mxu0 %v1127
    %4110 = vmatprep.subr.mxu0 0.0
    %4111 = vmatpush1.msra.mxu0 %v1128
    %4112 = vmatprep.mubr.f32.mxu0 %v1606
    %4113 = vmatmul.mubr.f32.gmra.mrb[0].mxu0 %v1604
    %v4114 = vpop.f32.mrb[0].mxu0
    %v4115 = vadd.f32 %v4045, %v4114
    %v4116 = vpop.f32.mrb[0].mxu0
    %4117 = vdwg.mxu0
    %4118 = vmatprep.subr.mxu0 0.0
    %4119 = vmatpush1.msra.mxu0 %v1129
    %4120 = vmatprep.subr.mxu0 0.0
    %4121 = vmatpush1.msra.mxu0 %v1130
    %4122 = vmatprep.subr.mxu0 0.0
    %4123 = vmatpush1.msra.mxu0 %v1131
    %4124 = vmatprep.subr.mxu0 0.0
    %4125 = vmatpush1.msra.mxu0 %v1132
    %4126 = vmatprep.subr.mxu0 0.0
    %4127 = vmatpush1.msra.mxu0 %v1133
    %4128 = vmatprep.subr.mxu0 0.0
    %4129 = vmatpush1.msra.mxu0 %v1134
    %4130 = vmatprep.subr.mxu0 0.0
    %4131 = vmatpush1.msra.mxu0 %v1135
    %4132 = vmatprep.subr.mxu0 0.0
    %4133 = vmatpush1.msra.mxu0 %v1136
    %4134 = vmatprep.subr.mxu0 0.0
    %4135 = vmatpush1.msra.mxu0 %v1137
    %4136 = vmatprep.subr.mxu0 0.0
    %4137 = vmatpush1.msra.mxu0 %v1138
    %4138 = vmatprep.subr.mxu0 0.0
    %4139 = vmatpush1.msra.mxu0 %v1139
    %4140 = vmatprep.subr.mxu0 0.0
    %4141 = vmatpush1.msra.mxu0 %v1140
    %4142 = vmatprep.subr.mxu0 0.0
    %4143 = vmatpush1.msra.mxu0 %v1141
    %4144 = vmatprep.subr.mxu0 0.0
    %4145 = vmatpush1.msra.mxu0 %v1142
    %4146 = vmatprep.subr.mxu0 0.0
    %4147 = vmatpush1.msra.mxu0 %v1143
    %4148 = vmatprep.subr.mxu0 0.0
    %4149 = vmatpush1.msra.mxu0 %v1144
    %4150 = vmatprep.subr.mxu0 0.0
    %4151 = vmatpush1.msra.mxu0 %v1145
    %4152 = vmatprep.subr.mxu0 0.0
    %4153 = vmatpush1.msra.mxu0 %v1146
    %4154 = vmatprep.subr.mxu0 0.0
    %4155 = vmatpush1.msra.mxu0 %v1147
    %4156 = vmatprep.subr.mxu0 0.0
    %4157 = vmatpush1.msra.mxu0 %v1148
    %4158 = vmatprep.subr.mxu0 0.0
    %4159 = vmatpush1.msra.mxu0 %v1149
    %4160 = vmatprep.subr.mxu0 0.0
    %4161 = vmatpush1.msra.mxu0 %v1150
    %4162 = vmatprep.subr.mxu0 0.0
    %4163 = vmatpush1.msra.mxu0 %v1151
    %4164 = vmatprep.subr.mxu0 0.0
    %4165 = vmatpush1.msra.mxu0 %v1152
    %4166 = vmatprep.subr.mxu0 0.0
    %4167 = vmatpush1.msra.mxu0 %v1153
    %4168 = vmatprep.subr.mxu0 0.0
    %4169 = vmatpush1.msra.mxu0 %v1154
    %4170 = vmatprep.subr.mxu0 0.0
    %4171 = vmatpush1.msra.mxu0 %v1155
    %4172 = vmatprep.subr.mxu0 0.0
    %4173 = vmatpush1.msra.mxu0 %v1156
    %4174 = vmatprep.subr.mxu0 0.0
    %4175 = vmatpush1.msra.mxu0 %v1157
    %4176 = vmatprep.subr.mxu0 0.0
    %4177 = vmatpush1.msra.mxu0 %v1158
    %4178 = vmatprep.subr.mxu0 0.0
    %4179 = vmatpush1.msra.mxu0 %v1159
    %4180 = vmatprep.subr.mxu0 0.0
    %4181 = vmatpush1.msra.mxu0 %v1160
    %4182 = vmatprep.mubr.f32.mxu0 %v1622
    %4183 = vmatmul.mubr.f32.gmra.mrb[0].mxu0 %v1614
    %v4184 = vpop.f32.mrb[0].mxu0
    %v4185 = vadd.f32 %v4115, %v4184
    %v4186 = vpop.f32.mrb[0].mxu0
    %4187 = vdwg.mxu0
    %4188 = vmatprep.subr.mxu0 0.0
    %4189 = vmatpush1.msra.mxu0 %v1161
    %4190 = vmatprep.subr.mxu0 0.0
    %4191 = vmatpush1.msra.mxu0 %v1162
    %4192 = vmatprep.subr.mxu0 0.0
    %4193 = vmatpush1.msra.mxu0 %v1163
    %4194 = vmatprep.subr.mxu0 0.0
    %4195 = vmatpush1.msra.mxu0 %v1164
    %4196 = vmatprep.subr.mxu0 0.0
    %4197 = vmatpush1.msra.mxu0 %v1165
    %4198 = vmatprep.subr.mxu0 0.0
    %4199 = vmatpush1.msra.mxu0 %v1166
    %4200 = vmatprep.subr.mxu0 0.0
    %4201 = vmatpush1.msra.mxu0 %v1167
    %4202 = vmatprep.subr.mxu0 0.0
    %4203 = vmatpush1.msra.mxu0 %v1168
    %4204 = vmatprep.subr.mxu0 0.0
    %4205 = vmatpush1.msra.mxu0 %v1169
    %4206 = vmatprep.subr.mxu0 0.0
    %4207 = vmatpush1.msra.mxu0 %v1170
    %4208 = vmatprep.subr.mxu0 0.0
    %4209 = vmatpush1.msra.mxu0 %v1171
    %4210 = vmatprep.subr.mxu0 0.0
    %4211 = vmatpush1.msra.mxu0 %v1172
    %4212 = vmatprep.subr.mxu0 0.0
    %4213 = vmatpush1.msra.mxu0 %v1173
    %4214 = vmatprep.subr.mxu0 0.0
    %4215 = vmatpush1.msra.mxu0 %v1174
    %4216 = vmatprep.subr.mxu0 0.0
    %4217 = vmatpush1.msra.mxu0 %v1175
    %4218 = vmatprep.subr.mxu0 0.0
    %4219 = vmatpush1.msra.mxu0 %v1176
    %4220 = vmatprep.subr.mxu0 0.0
    %4221 = vmatpush1.msra.mxu0 %v1177
    %4222 = vmatprep.subr.mxu0 0.0
    %4223 = vmatpush1.msra.mxu0 %v1178
    %4224 = vmatprep.subr.mxu0 0.0
    %4225 = vmatpush1.msra.mxu0 %v1179
    %4226 = vmatprep.subr.mxu0 0.0
    %4227 = vmatpush1.msra.mxu0 %v1180
    %4228 = vmatprep.subr.mxu0 0.0
    %4229 = vmatpush1.msra.mxu0 %v1181
    %4230 = vmatprep.subr.mxu0 0.0
    %4231 = vmatpush1.msra.mxu0 %v1182
    %4232 = vmatprep.subr.mxu0 0.0
    %4233 = vmatpush1.msra.mxu0 %v1183
    %4234 = vmatprep.subr.mxu0 0.0
    %4235 = vmatpush1.msra.mxu0 %v1184
    %4236 = vmatprep.subr.mxu0 0.0
    %4237 = vmatpush1.msra.mxu0 %v1185
    %4238 = vmatprep.subr.mxu0 0.0
    %4239 = vmatpush1.msra.mxu0 %v1186
    %4240 = vmatprep.subr.mxu0 0.0
    %4241 = vmatpush1.msra.mxu0 %v1187
    %4242 = vmatprep.subr.mxu0 0.0
    %4243 = vmatpush1.msra.mxu0 %v1188
    %4244 = vmatprep.subr.mxu0 0.0
    %4245 = vmatpush1.msra.mxu0 %v1189
    %4246 = vmatprep.subr.mxu0 0.0
    %4247 = vmatpush1.msra.mxu0 %v1190
    %4248 = vmatprep.subr.mxu0 0.0
    %4249 = vmatpush1.msra.mxu0 %v1191
    %4250 = vmatprep.subr.mxu0 0.0
    %4251 = vmatpush1.msra.mxu0 %v1192
    %4252 = vmatprep.mubr.f32.mxu0 %v1623
    %4253 = vmatmul.mubr.f32.gmra.mrb[0].mxu0 %v1621
    %v4254 = vpop.f32.mrb[0].mxu0
    %v4255 = vadd.f32 %v4185, %v4254
    %v4256 = vpop.f32.mrb[0].mxu0
    %4257 = vdwg.mxu0
    %4258 = vmatprep.subr.mxu0 0.0
    %4259 = vmatpush1.msra.mxu0 %v1193
    %4260 = vmatprep.subr.mxu0 0.0
    %4261 = vmatpush1.msra.mxu0 %v1194
    %4262 = vmatprep.subr.mxu0 0.0
    %4263 = vmatpush1.msra.mxu0 %v1195
    %4264 = vmatprep.subr.mxu0 0.0
    %4265 = vmatpush1.msra.mxu0 %v1196
    %4266 = vmatprep.subr.mxu0 0.0
    %4267 = vmatpush1.msra.mxu0 %v1197
    %4268 = vmatprep.subr.mxu0 0.0
    %4269 = vmatpush1.msra.mxu0 %v1198
    %4270 = vmatprep.subr.mxu0 0.0
    %4271 = vmatpush1.msra.mxu0 %v1199
    %4272 = vmatprep.subr.mxu0 0.0
    %4273 = vmatpush1.msra.mxu0 %v1200
    %4274 = vmatprep.subr.mxu0 0.0
    %4275 = vmatpush1.msra.mxu0 %v1201
    %4276 = vmatprep.subr.mxu0 0.0
    %4277 = vmatpush1.msra.mxu0 %v1202
    %4278 = vmatprep.subr.mxu0 0.0
    %4279 = vmatpush1.msra.mxu0 %v1203
    %4280 = vmatprep.subr.mxu0 0.0
    %4281 = vmatpush1.msra.mxu0 %v1204
    %4282 = vmatprep.subr.mxu0 0.0
    %4283 = vmatpush1.msra.mxu0 %v1205
    %4284 = vmatprep.subr.mxu0 0.0
    %4285 = vmatpush1.msra.mxu0 %v1206
    %4286 = vmatprep.subr.mxu0 0.0
    %4287 = vmatpush1.msra.mxu0 %v1207
    %4288 = vmatprep.subr.mxu0 0.0
    %4289 = vmatpush1.msra.mxu0 %v1208
    %4290 = vmatprep.subr.mxu0 0.0
    %4291 = vmatpush1.msra.mxu0 %v1209
    %4292 = vmatprep.subr.mxu0 0.0
    %4293 = vmatpush1.msra.mxu0 %v1210
    %4294 = vmatprep.subr.mxu0 0.0
    %4295 = vmatpush1.msra.mxu0 %v1211
    %4296 = vmatprep.subr.mxu0 0.0
    %4297 = vmatpush1.msra.mxu0 %v1212
    %4298 = vmatprep.subr.mxu0 0.0
    %4299 = vmatpush1.msra.mxu0 %v1213
    %4300 = vmatprep.subr.mxu0 0.0
    %4301 = vmatpush1.msra.mxu0 %v1214
    %4302 = vmatprep.subr.mxu0 0.0
    %4303 = vmatpush1.msra.mxu0 %v1215
    %4304 = vmatprep.subr.mxu0 0.0
    %4305 = vmatpush1.msra.mxu0 %v1216
    %4306 = vmatprep.subr.mxu0 0.0
    %4307 = vmatpush1.msra.mxu0 %v1217
    %4308 = vmatprep.subr.mxu0 0.0
    %4309 = vmatpush1.msra.mxu0 %v1218
    %4310 = vmatprep.subr.mxu0 0.0
    %4311 = vmatpush1.msra.mxu0 %v1219
    %4312 = vmatprep.subr.mxu0 0.0
    %4313 = vmatpush1.msra.mxu0 %v1220
    %4314 = vmatprep.subr.mxu0 0.0
    %4315 = vmatpush1.msra.mxu0 %v1221
    %4316 = vmatprep.subr.mxu0 0.0
    %4317 = vmatpush1.msra.mxu0 %v1222
    %4318 = vmatprep.subr.mxu0 0.0
    %4319 = vmatpush1.msra.mxu0 %v1223
    %4320 = vmatprep.subr.mxu0 0.0
    %4321 = vmatpush1.msra.mxu0 %v1224
    %4322 = vmatprep.mubr.f32.mxu0 %v1639
    %4323 = vmatmul.mubr.f32.gmra.mrb[0].mxu0 %v1631
    %v4324 = vpop.f32.mrb[0].mxu0
    %v4325 = vadd.f32 %v4255, %v4324
    %v4326 = vpop.f32.mrb[0].mxu0
    %4327 = vdwg.mxu0
    %4328 = vmatprep.subr.mxu0 0.0
    %4329 = vmatpush1.msra.mxu0 %v1225
    %4330 = vmatprep.subr.mxu0 0.0
    %4331 = vmatpush1.msra.mxu0 %v1226
    %4332 = vmatprep.subr.mxu0 0.0
    %4333 = vmatpush1.msra.mxu0 %v1227
    %4334 = vmatprep.subr.mxu0 0.0
    %4335 = vmatpush1.msra.mxu0 %v1228
    %4336 = vmatprep.subr.mxu0 0.0
    %4337 = vmatpush1.msra.mxu0 %v1229
    %4338 = vmatprep.subr.mxu0 0.0
    %4339 = vmatpush1.msra.mxu0 %v1230
    %4340 = vmatprep.subr.mxu0 0.0
    %4341 = vmatpush1.msra.mxu0 %v1231
    %4342 = vmatprep.subr.mxu0 0.0
    %4343 = vmatpush1.msra.mxu0 %v1232
    %4344 = vmatprep.subr.mxu0 0.0
    %4345 = vmatpush1.msra.mxu0 %v1233
    %4346 = vmatprep.subr.mxu0 0.0
    %4347 = vmatpush1.msra.mxu0 %v1234
    %4348 = vmatprep.subr.mxu0 0.0
    %4349 = vmatpush1.msra.mxu0 %v1235
    %4350 = vmatprep.subr.mxu0 0.0
    %4351 = vmatpush1.msra.mxu0 %v1236
    %4352 = vmatprep.subr.mxu0 0.0
    %4353 = vmatpush1.msra.mxu0 %v1237
    %4354 = vmatprep.subr.mxu0 0.0
    %4355 = vmatpush1.msra.mxu0 %v1238
    %4356 = vmatprep.subr.mxu0 0.0
    %4357 = vmatpush1.msra.mxu0 %v1239
    %4358 = vmatprep.subr.mxu0 0.0
    %4359 = vmatpush1.msra.mxu0 %v1240
    %4360 = vmatprep.subr.mxu0 0.0
    %4361 = vmatpush1.msra.mxu0 %v1241
    %4362 = vmatprep.subr.mxu0 0.0
    %4363 = vmatpush1.msra.mxu0 %v1242
    %4364 = vmatprep.subr.mxu0 0.0
    %4365 = vmatpush1.msra.mxu0 %v1243
    %4366 = vmatprep.subr.mxu0 0.0
    %4367 = vmatpush1.msra.mxu0 %v1244
    %4368 = vmatprep.subr.mxu0 0.0
    %4369 = vmatpush1.msra.mxu0 %v1245
    %4370 = vmatprep.subr.mxu0 0.0
    %4371 = vmatpush1.msra.mxu0 %v1246
    %4372 = vmatprep.subr.mxu0 0.0
    %4373 = vmatpush1.msra.mxu0 %v1247
    %4374 = vmatprep.subr.mxu0 0.0
    %4375 = vmatpush1.msra.mxu0 %v1248
    %4376 = vmatprep.subr.mxu0 0.0
    %4377 = vmatpush1.msra.mxu0 %v1249
    %4378 = vmatprep.subr.mxu0 0.0
    %4379 = vmatpush1.msra.mxu0 %v1250
    %4380 = vmatprep.subr.mxu0 0.0
    %4381 = vmatpush1.msra.mxu0 %v1251
    %4382 = vmatprep.subr.mxu0 0.0
    %4383 = vmatpush1.msra.mxu0 %v1252
    %4384 = vmatprep.subr.mxu0 0.0
    %4385 = vmatpush1.msra.mxu0 %v1253
    %4386 = vmatprep.subr.mxu0 0.0
    %4387 = vmatpush1.msra.mxu0 %v1254
    %4388 = vmatprep.subr.mxu0 0.0
    %4389 = vmatpush1.msra.mxu0 %v1255
    %4390 = vmatprep.subr.mxu0 0.0
    %4391 = vmatpush1.msra.mxu0 %v1256
    %4392 = vmatprep.mubr.f32.mxu0 %v1640
    %4393 = vmatmul.mubr.f32.gmra.mrb[0].mxu0 %v1638
    %v4394 = vpop.f32.mrb[0].mxu0
    %v4395 = vadd.f32 %v4325, %v4394
    %v4396 = vpop.f32.mrb[0].mxu0
    %4397 = vdwg.mxu0
    %4398 = vmatprep.subr.mxu0 0.0
    %4399 = vmatpush1.msra.mxu0 %v1257
    %4400 = vmatprep.subr.mxu0 0.0
    %4401 = vmatpush1.msra.mxu0 %v1258
    %4402 = vmatprep.subr.mxu0 0.0
    %4403 = vmatpush1.msra.mxu0 %v1259
    %4404 = vmatprep.subr.mxu0 0.0
    %4405 = vmatpush1.msra.mxu0 %v1260
    %4406 = vmatprep.subr.mxu0 0.0
    %4407 = vmatpush1.msra.mxu0 %v1261
    %4408 = vmatprep.subr.mxu0 0.0
    %4409 = vmatpush1.msra.mxu0 %v1262
    %4410 = vmatprep.subr.mxu0 0.0
    %4411 = vmatpush1.msra.mxu0 %v1263
    %4412 = vmatprep.subr.mxu0 0.0
    %4413 = vmatpush1.msra.mxu0 %v1264
    %4414 = vmatprep.subr.mxu0 0.0
    %4415 = vmatpush1.msra.mxu0 %v1265
    %4416 = vmatprep.subr.mxu0 0.0
    %4417 = vmatpush1.msra.mxu0 %v1266
    %4418 = vmatprep.subr.mxu0 0.0
    %4419 = vmatpush1.msra.mxu0 %v1267
    %4420 = vmatprep.subr.mxu0 0.0
    %4421 = vmatpush1.msra.mxu0 %v1268
    %4422 = vmatprep.subr.mxu0 0.0
    %4423 = vmatpush1.msra.mxu0 %v1269
    %4424 = vmatprep.subr.mxu0 0.0
    %4425 = vmatpush1.msra.mxu0 %v1270
    %4426 = vmatprep.subr.mxu0 0.0
    %4427 = vmatpush1.msra.mxu0 %v1271
    %4428 = vmatprep.subr.mxu0 0.0
    %4429 = vmatpush1.msra.mxu0 %v1272
    %4430 = vmatprep.subr.mxu0 0.0
    %4431 = vmatpush1.msra.mxu0 %v1273
    %4432 = vmatprep.subr.mxu0 0.0
    %4433 = vmatpush1.msra.mxu0 %v1274
    %4434 = vmatprep.subr.mxu0 0.0
    %4435 = vmatpush1.msra.mxu0 %v1275
    %4436 = vmatprep.subr.mxu0 0.0
    %4437 = vmatpush1.msra.mxu0 %v1276
    %4438 = vmatprep.subr.mxu0 0.0
    %4439 = vmatpush1.msra.mxu0 %v1277
    %4440 = vmatprep.subr.mxu0 0.0
    %4441 = vmatpush1.msra.mxu0 %v1278
    %4442 = vmatprep.subr.mxu0 0.0
    %4443 = vmatpush1.msra.mxu0 %v1279
    %4444 = vmatprep.subr.mxu0 0.0
    %4445 = vmatpush1.msra.mxu0 %v1280
    %4446 = vmatprep.subr.mxu0 0.0
    %4447 = vmatpush1.msra.mxu0 %v1281
    %4448 = vmatprep.subr.mxu0 0.0
    %4449 = vmatpush1.msra.mxu0 %v1282
    %4450 = vmatprep.subr.mxu0 0.0
    %4451 = vmatpush1.msra.mxu0 %v1283
    %4452 = vmatprep.subr.mxu0 0.0
    %4453 = vmatpush1.msra.mxu0 %v1284
    %4454 = vmatprep.subr.mxu0 0.0
    %4455 = vmatpush1.msra.mxu0 %v1285
    %4456 = vmatprep.subr.mxu0 0.0
    %4457 = vmatpush1.msra.mxu0 %v1286
    %4458 = vmatprep.subr.mxu0 0.0
    %4459 = vmatpush1.msra.mxu0 %v1287
    %4460 = vmatprep.subr.mxu0 0.0
    %4461 = vmatpush1.msra.mxu0 %v1288
    %4462 = vmatprep.mubr.f32.mxu0 %v1656
    %4463 = vmatmul.mubr.f32.gmra.mrb[0].mxu0 %v1648
    %v4464 = vpop.f32.mrb[0].mxu0
    %v4465 = vadd.f32 %v4395, %v4464
    %v4466 = vpop.f32.mrb[0].mxu0
    %4467 = vdwg.mxu0
    %4468 = vmatprep.subr.mxu0 0.0
    %4469 = vmatpush1.msra.mxu0 %v1289
    %4470 = vmatprep.subr.mxu0 0.0
    %4471 = vmatpush1.msra.mxu0 %v1290
    %4472 = vmatprep.subr.mxu0 0.0
    %4473 = vmatpush1.msra.mxu0 0.0
    %4474 = vmatprep.subr.mxu0 0.0
    %4475 = vmatpush1.msra.mxu0 0.0
    %4476 = vmatprep.subr.mxu0 0.0
    %4477 = vmatpush1.msra.mxu0 0.0
    %4478 = vmatprep.subr.mxu0 0.0
    %4479 = vmatpush1.msra.mxu0 0.0
    %4480 = vmatprep.subr.mxu0 0.0
    %4481 = vmatpush1.msra.mxu0 0.0
    %4482 = vmatprep.subr.mxu0 0.0
    %4483 = vmatpush1.msra.mxu0 0.0
    %4484 = vmatprep.subr.mxu0 0.0
    %4485 = vmatpush1.msra.mxu0 0.0
    %4486 = vmatprep.subr.mxu0 0.0
    %4487 = vmatpush1.msra.mxu0 0.0
    %4488 = vmatprep.subr.mxu0 0.0
    %4489 = vmatpush1.msra.mxu0 0.0
    %4490 = vmatprep.subr.mxu0 0.0
    %4491 = vmatpush1.msra.mxu0 0.0
    %4492 = vmatprep.subr.mxu0 0.0
    %4493 = vmatpush1.msra.mxu0 0.0
    %4494 = vmatprep.subr.mxu0 0.0
    %4495 = vmatpush1.msra.mxu0 0.0
    %4496 = vmatprep.subr.mxu0 0.0
    %4497 = vmatpush1.msra.mxu0 0.0
    %4498 = vmatprep.subr.mxu0 0.0
    %4499 = vmatpush1.msra.mxu0 0.0
    %4500 = vmatprep.subr.mxu0 0.0
    %4501 = vmatpush1.msra.mxu0 0.0
    %4502 = vmatprep.subr.mxu0 0.0
    %4503 = vmatpush1.msra.mxu0 0.0
    %4504 = vmatprep.subr.mxu0 0.0
    %4505 = vmatpush1.msra.mxu0 0.0
    %4506 = vmatprep.subr.mxu0 0.0
    %4507 = vmatpush1.msra.mxu0 0.0
    %4508 = vmatprep.subr.mxu0 0.0
    %4509 = vmatpush1.msra.mxu0 0.0
    %4510 = vmatprep.subr.mxu0 0.0
    %4511 = vmatpush1.msra.mxu0 0.0
    %4512 = vmatprep.subr.mxu0 0.0
    %4513 = vmatpush1.msra.mxu0 0.0
    %4514 = vmatprep.subr.mxu0 0.0
    %4515 = vmatpush1.msra.mxu0 0.0
    %4516 = vmatprep.subr.mxu0 0.0
    %4517 = vmatpush1.msra.mxu0 0.0
    %4518 = vmatprep.subr.mxu0 0.0
    %4519 = vmatpush1.msra.mxu0 0.0
    %4520 = vmatprep.subr.mxu0 0.0
    %4521 = vmatpush1.msra.mxu0 0.0
    %4522 = vmatprep.subr.mxu0 0.0
    %4523 = vmatpush1.msra.mxu0 0.0
    %4524 = vmatprep.subr.mxu0 0.0
    %4525 = vmatpush1.msra.mxu0 0.0
    %4526 = vmatprep.subr.mxu0 0.0
    %4527 = vmatpush1.msra.mxu0 0.0
    %4528 = vmatprep.subr.mxu0 0.0
    %4529 = vmatpush1.msra.mxu0 0.0
    %4530 = vmatprep.subr.mxu0 0.0
    %4531 = vmatpush1.msra.mxu0 0.0
    %4532 = vmatprep.mubr.f32.mxu0 0.0
    %4533 = vmatmul.mubr.f32.gmra.mrb[0].mxu0 %v1736
    %v4534 = vpop.f32.mrb[0].mxu0
    %v4535 = vadd.f32 %v4465, %v4534
    %v4536 = vpop.f32.mrb[0].mxu0
    %4537 = vdwg.mxu0
    %v4538 = vmax.f32 %v4535, 0.0
    %v4539 = vld [vmem:[%s3] sm:$0xff]
    %v4540 = vld [vmem:[%s3 + $0x8] sm:$0xff]
    %v4541 = vld [vmem:[%s3 + $0x10] sm:$0xff]
    %v4542 = vld [vmem:[%s3 + $0x18] sm:$0xff]
    %v4543 = vld [vmem:[%s3 + $0x20] sm:$0xff]
    %v4544 = vld [vmem:[%s3 + $0x28] sm:$0xff]
    %v4545 = vld [vmem:[%s3 + $0x30] sm:$0xff]
    %v4546 = vld [vmem:[%s3 + $0x38] sm:$0xff]
    %v4547 = vld [vmem:[%s3 + $0x40] sm:$0xff]
    %v4548 = vld [vmem:[%s3 + $0x48] sm:$0xff]
    %v4549 = vld [vmem:[%s3 + $0x50] sm:$0xff]
    %v4550 = vld [vmem:[%s3 + $0x58] sm:$0xff]
    %v4551 = vld [vmem:[%s3 + $0x60] sm:$0xff]
    %v4552 = vld [vmem:[%s3 + $0x68] sm:$0xff]
    %v4553 = vld [vmem:[%s3 + $0x70] sm:$0xff]
    %v4554 = vld [vmem:[%s3 + $0x78] sm:$0xff]
    %v4555 = vld [vmem:[%s4] sm:$0x1]
    %v4557 = vlaneseq
    %v4558 = vshrl.u32 %v4557, 7
    %v4559 = vsub.s32 0, %v4558
    %v4560 = vrot.slane %v4555, %v4559
    %4562 = vmatprep.subr.mxu0 0.0
    %4563 = vmatpush1.msra.mxu0 %v4539
    %4564 = vmatprep.subr.mxu0 0.0
    %4565 = vmatpush1.msra.mxu0 %v4540
    %4566 = vmatprep.subr.mxu0 0.0
    %4567 = vmatpush1.msra.mxu0 %v4541
    %4568 = vmatprep.subr.mxu0 0.0
    %4569 = vmatpush1.msra.mxu0 %v4542
    %4570 = vmatprep.subr.mxu0 0.0
    %4571 = vmatpush1.msra.mxu0 %v4543
    %4572 = vmatprep.subr.mxu0 0.0
    %4573 = vmatpush1.msra.mxu0 %v4544
    %4574 = vmatprep.subr.mxu0 0.0
    %4575 = vmatpush1.msra.mxu0 %v4545
    %4576 = vmatprep.subr.mxu0 0.0
    %4577 = vmatpush1.msra.mxu0 %v4546
    %4578 = vmatprep.subr.mxu0 0.0
    %4579 = vmatpush1.msra.mxu0 %v4547
    %4580 = vmatprep.subr.mxu0 0.0
    %4581 = vmatpush1.msra.mxu0 %v4548
    %4582 = vmatprep.subr.mxu0 0.0
    %4583 = vmatpush1.msra.mxu0 %v4549
    %4584 = vmatprep.subr.mxu0 0.0
    %4585 = vmatpush1.msra.mxu0 %v4550
    %4586 = vmatprep.subr.mxu0 0.0
    %4587 = vmatpush1.msra.mxu0 %v4551
    %4588 = vmatprep.subr.mxu0 0.0
    %4589 = vmatpush1.msra.mxu0 %v4552
    %4590 = vmatprep.subr.mxu0 0.0
    %4591 = vmatpush1.msra.mxu0 %v4553
    %4592 = vmatprep.subr.mxu0 0.0
    %4593 = vmatpush1.msra.mxu0 %v4554
    %4594 = vmatprep.subr.mxu0 0.0
    %4595 = vmatpush1.msra.mxu0 0.0
    %4596 = vmatprep.subr.mxu0 0.0
    %4597 = vmatpush1.msra.mxu0 0.0
    %4598 = vmatprep.subr.mxu0 0.0
    %4599 = vmatpush1.msra.mxu0 0.0
    %4600 = vmatprep.subr.mxu0 0.0
    %4601 = vmatpush1.msra.mxu0 0.0
    %4602 = vmatprep.subr.mxu0 0.0
    %4603 = vmatpush1.msra.mxu0 0.0
    %4604 = vmatprep.subr.mxu0 0.0
    %4605 = vmatpush1.msra.mxu0 0.0
    %4606 = vmatprep.subr.mxu0 0.0
    %4607 = vmatpush1.msra.mxu0 0.0
    %4608 = vmatprep.subr.mxu0 0.0
    %4609 = vmatpush1.msra.mxu0 0.0
    %4610 = vmatprep.subr.mxu0 0.0
    %4611 = vmatpush1.msra.mxu0 0.0
    %4612 = vmatprep.subr.mxu0 0.0
    %4613 = vmatpush1.msra.mxu0 0.0
    %4614 = vmatprep.subr.mxu0 0.0
    %4615 = vmatpush1.msra.mxu0 0.0
    %4616 = vmatprep.subr.mxu0 0.0
    %4617 = vmatpush1.msra.mxu0 0.0
    %4618 = vmatprep.subr.mxu0 0.0
    %4619 = vmatpush1.msra.mxu0 0.0
    %4620 = vmatprep.subr.mxu0 0.0
    %4621 = vmatpush1.msra.mxu0 0.0
    %4622 = vmatprep.subr.mxu0 0.0
    %4623 = vmatpush1.msra.mxu0 0.0
    %4624 = vmatprep.subr.mxu0 0.0
    %4625 = vmatpush1.msra.mxu0 0.0
    %4626 = vmatprep.mubr.f32.mxu0 0.0
    %4627 = vmatmul.mubr.f32.gmra.mrb[0].mxu0 %v4538
    %v4628 = vpop.f32.mrb[0].mxu0
    %v4629 = vadd.f32 %v4560, %v4628
    %v4630 = vpop.f32.mrb[0].mxu0
    %4631 = vdwg.mxu0
    %vm4632 = vcmask 74752
    %4633 = vst.msk [vmem:[#allocation2] sm:$0x3] %vm4632, %v4629
    // Predicated region
    $region22: #{_lambda_.5} parent=1 // pred_check
      _
    $region23: #{_lambda_.5} parent=1 // pred_check_branch
      %4635 = sbr.rel (0) target = $region25
    $region24: #{_lambda_.5} parent=1 // pred_region
      %s4637 = ssub.s32 32, 32
      %4638 = vsyncadd [#allocation3], %s4637
      %s4640 = sshll.u32 [#allocation2], 4
      %s4641 = int_to_ptr.vmem [resolvable:$true] %s4640
      %4643 = dma.vmem_to_hbm [thread:$0]  %s4641, 32, %s5, [#allocation3]
    $region25: #{_lambda_.5} parent=1 // pred_fallthru
      _
    // Predicated region
    $region26: #{_lambda_.5} parent=1 // pred_check
      _
    $region27: #{_lambda_.5} parent=1 // pred_check_branch
      %4645 = sbr.rel (0) target = $region29
    $region28: #{_lambda_.5} parent=1 // pred_region
      %4646 = dma.done [#allocation3], 32
    $region29: #{_lambda_.5} parent=1 // pred_fallthru
      _
    %4647 = vsyncpa [#allocation3], 1

</llo_original>
